<compile_context>
chip_gen: v7x
topology: tpu7x:2x2x1
jax: 0.10.0
libtpu: 0.0.40
codegen_flags: <defaults>
</compile_context>

<pallas_src>
import jax
import jax.numpy as jnp
from jax.experimental import pallas as pl
from jax.experimental.pallas import tpu as pltpu

NEG_SLOPE = 0.01   # nn.LeakyReLU default slope
BN_EPS = 1e-5      # nn.BatchNorm1d default eps


def _leaky(x):
    return jnp.where(x >= 0, x, NEG_SLOPE * x)


# ----------------------------- Pallas kernel --------------------------------------
def _discriminator_kernel(x_ref,
                          wred_ref, bred_ref,
                          wc0_ref, sh0_ref, wc1_ref, sh1_ref,
                          wc2_ref, sh2_ref, wc3_ref, sh3_ref,
                          wm0_ref, sm0_ref, wm1_ref, sm1_ref, wm2_ref, sm2_ref,
                          wm3_ref, sm3_ref, wm4_ref, sm4_ref,
                          wl_ref, bl_ref,
                          out_ref):
    """Whole DiscriminatorV2 forward for one batch tile, weights resident in VMEM."""
    f32 = jnp.float32

    # reduction_layer: Conv2d(1, 4, (1, D)) + ReLU as one matmul producing the
    # channel-major lane layout (lane j = c*L + l).
    h = jnp.dot(x_ref[...], wred_ref[...], preferred_element_type=f32) + bred_ref[...]
    h = jnp.maximum(h, 0.0)

    # convultion_layer: each (Conv1d k=3 pad=1 -> BatchNorm1d -> LeakyReLU) is ONE
    # matmul against a banded (Cin*L, Cout*L) weight (BN scale folded in) + shift.
    for wc_ref, sh_ref in ((wc0_ref, sh0_ref), (wc1_ref, sh1_ref),
                           (wc2_ref, sh2_ref), (wc3_ref, sh3_ref)):
        h = _leaky(jnp.dot(h, wc_ref[...], preferred_element_type=f32) + sh_ref[...])

    # mlp_layer: lanes are already in PyTorch's flatten order (c*L + l), so the
    # first Linear(4L, 2048) is a single matmul.  bf16 weights/activations, f32 acc;
    # BN(1) scalar scale is folded into the weights, bias into the shift.
    z = h
    for wm_ref, sm_ref in ((wm0_ref, sm0_ref), (wm1_ref, sm1_ref), (wm2_ref, sm2_ref),
                           (wm3_ref, sm3_ref), (wm4_ref, sm4_ref)):
        z = jnp.dot(z.astype(jnp.bfloat16), wm_ref[...],
                    preferred_element_type=f32) + sm_ref[...]
        z = _leaky(z)

    # final Linear(16, 1) (kept f32, it is tiny)
    out_ref[...] = jnp.dot(z, wl_ref[...], preferred_element_type=f32) + bl_ref[...]


# ----------------------------- wrapper ---------------------------------------------
def discriminator_v2(X, kp, tile_b=None):
    """X: (B, 1, L, D) NCHW float32 -> (B, 1) float32."""
    B = X.shape[0]
    L, D = kp["length"], kp["dict_size"]

    # NCHW (B,1,L,D) -> (B, L*D); row b, lane l*D + d (matches wred row index).
    x2d = X.reshape(B, L * D)

    weights = [kp["wred"], kp["bred"]]
    for w, s in kp["conv"]:
        weights += [w, s]
    for w, s in kp["mlp"]:
        weights += [w, s]
    weights += [kp["wlast"], kp["blast"]]

    # Batch-tile grid: weights use a constant block index (stay resident in VMEM),
    # only the activation tile advances.  For real batches pick tile_b >= 128 rows.
    tile_b = B if tile_b is None else tile_b
    grid = (pl.cdiv(B, tile_b),)

    in_specs = ([pl.BlockSpec((tile_b, L * D), lambda i: (i, 0))]
                + [pl.BlockSpec(w.shape, lambda i: (0, 0)) for w in weights])
    out_specs = pl.BlockSpec((tile_b, 1), lambda i: (i, 0))

    return pl.pallas_call(
        _discriminator_kernel,
        out_shape=jax.ShapeDtypeStruct((B, 1), jnp.float32),
        grid=grid,
        in_specs=in_specs,
        out_specs=out_specs,
        compiler_params=pltpu.CompilerParams(
            dimension_semantics=("parallel",),   # v7x: shard batch tiles over 2 TCs
            vmem_limit_bytes=24 << 20),          # ~11 MiB resident (bf16 MLP weights)
    )(x2d, *weights)


# ----------------------------- parameters ------------------------------------------
def init_raw_params(key, length, dict_size):
    """Deterministic parameters in the original PyTorch layouts."""
    keys = iter(jax.random.split(key, 128))

    def rnd(shape, scale):
        return (scale * jax.random.normal(next(keys), shape)).astype(jnp.float32)

    raw = {"length": length, "dict_size": dict_size}
    raw["conv2d_w"] = rnd((4, 1, 1, dict_size), dict_size ** -0.5)
    raw["conv2d_b"] = rnd((4,), 0.05)

    conv1d = []
    for cin, cout in [(4, 8), (8, 16), (16, 8), (8, 4)]:
        w = rnd((cout, cin, 3), (cin * 3) ** -0.5)
        b = rnd((cout,), 0.05)
        g = 1.0 + rnd((cout,), 0.1)
        be = rnd((cout,), 0.1)
        mu = rnd((cout,), 0.1)
        var = 1.0 + jnp.abs(rnd((cout,), 0.1))
        conv1d.append((w, b, g, be, mu, var))
    raw["conv1d"] = conv1d

    dims = [4 * length, 2048, 1024, 256, 64, 16, 1]
    mlp, mlp_bn = [], []
    for i in range(6):
        fi, fo = dims[i], dims[i + 1]
        mlp.append((rnd((fo, fi), fi ** -0.5), rnd((fo,), 0.05)))
        if i < 5:
            g = 1.0 + rnd((1,), 0.1)
            be = rnd((1,), 0.1)
            mu = rnd((1,), 0.1)
            var = 1.0 + jnp.abs(rnd((1,), 0.1))
            mlp_bn.append((g, be, mu, var))
    raw["mlp"] = mlp
    raw["mlp_bn"] = mlp_bn
    return raw


def prepare_kernel_params(raw):
    """Fold conv taps / zero padding / biases / eval-mode BN into kernel-ready arrays."""
    L, D = raw["length"], raw["dict_size"]
    kp = {"length": L, "dict_size": D}
    eye_L = jnp.eye(L, dtype=jnp.float32)

    # reduction_layer: Conv2d(1,4,(1,D)) as a (L*D, 4*L) matmul -> lanes c*L + l.
    w2 = raw["conv2d_w"].reshape(4, D)                                   # (4, D)
    kp["wred"] = jnp.einsum("cd,lk->ldck", w2, eye_L).reshape(L * D, 4 * L)
    kp["bred"] = jnp.repeat(raw["conv2d_b"], L).reshape(1, 4 * L)

    # convultion_layer: band matrices realise the +/-1 position shifts with zero
    # padding; BN scale folded into the columns, conv bias folded into the BN shift.
    bands = jnp.stack([jnp.eye(L, k=1 - t, dtype=jnp.float32) for t in range(3)])
    conv = []
    for (w, b, g, be, mu, var) in raw["conv1d"]:
        cout, cin, _ = w.shape
        sc = g / jnp.sqrt(var + BN_EPS)                                  # (cout,)
        wk = jnp.einsum("oct,tij->cioj", w, bands)                       # (cin,L,cout,L)
        wk = wk * sc[None, None, :, None]
        wbig = wk.reshape(cin * L, cout * L)
        shift = jnp.repeat((b - mu) * sc + be, L).reshape(1, cout * L)
        conv.append((wbig, shift))
    kp["conv"] = conv

    # mlp_layer: BatchNorm1d(1) scalar scale folded into bf16 weights, bias folded
    # into the per-feature shift.  Lane order c*L + l already matches W1's columns.
    mlp = []
    for i in range(5):
        W, b = raw["mlp"][i]                                             # (fout, fin)
        g, be, mu, var = raw["mlp_bn"][i]                                # each (1,)
        sc = (g / jnp.sqrt(var + BN_EPS))[0]
        wt = (W.T * sc).astype(jnp.bfloat16)                             # (fin, fout)
        shift = ((b - mu[0]) * sc + be[0]).reshape(1, -1).astype(jnp.float32)
        mlp.append((wt, shift))
    kp["mlp"] = mlp

    W6, b6 = raw["mlp"][5]
    kp["wlast"] = W6.T                                                   # (16, 1) f32
    kp["blast"] = b6.reshape(1, 1)
    return kp


# ----------------------------- pure-JAX reference (PyTorch semantics) ----------------
def reference_forward(X, raw):
    B = X.shape[0]
    L, D = raw["length"], raw["dict_size"]
    x = X.reshape(B, L, D)
    w2 = raw["conv2d_w"].reshape(4, D)
    h = jnp.einsum("bld,od->bol", x, w2, precision="highest") \
        + raw["conv2d_b"][None, :, None]
    h = jnp.maximum(h, 0.0)                                   # (B, 4, L)

    for (w, b, g, be, mu, var) in raw["conv1d"]:
        hp = jnp.pad(h, ((0, 0), (0, 0), (1, 1)))
        y = sum(jnp.einsum("bcl,oc->bol", hp[:, :, t:t + L], w[:, :, t],
                           precision="highest") for t in range(3))
        y = y + b[None, :, None]
        y = (y - mu[None, :, None]) / jnp.sqrt(var[None, :, None] + BN_EPS) \
            * g[None, :, None] + be[None, :, None]
        h = jnp.where(y >= 0, y, NEG_SLOPE * y)

    z = h.reshape(B, 4 * L)                                   # channel-major flatten
    for i, (W, b) in enumerate(raw["mlp"]):
        z = jnp.dot(z, W.T, precision="highest") + b
        if i < 5:
            g, be, mu, var = raw["mlp_bn"][i]
            z = (z - mu) / jnp.sqrt(var + BN_EPS) * g + be
            z = jnp.where(z >= 0, z, NEG_SLOPE * z)
    return z.reshape(B, 1)


# ----------------------------- main --------------------------------------------------
if __name__ == "__main__":
    LENGTH, DICT_SIZE, BATCH = 16, 32, 2

    key = jax.random.PRNGKey(0)
    k_x, k_p = jax.random.split(key)
    X = jax.random.normal(k_x, (BATCH, 1, LENGTH, DICT_SIZE), jnp.float32)  # NCHW

    raw = init_raw_params(k_p, LENGTH, DICT_SIZE)
    kernel_params = prepare_kernel_params(raw)

    out = discriminator_v2(X, kernel_params)
    out = jax.block_until_ready(out)

    ref = reference_forward(X, raw)
    assert out.shape == (BATCH, 1), out.shape
    # 2e-2 tolerance covers the bf16 MLP weight path (f32 accumulation).
    if not jnp.allclose(out, ref, rtol=2e-2, atol=2e-2):
        raise AssertionError(f"mismatch: kernel={out} ref={ref}")

    print("KERNEL_OK")
</pallas_src>

<mosaic_0001>
module attributes {stable_mosaic.version = 11 : i64} {
  func.func @_discriminator_kernel(%arg0: i32, %arg1: memref<2x512xf32, #tpu.memory_space<vmem>>, %arg2: memref<512x64xf32, #tpu.memory_space<vmem>>, %arg3: memref<1x64xf32, #tpu.memory_space<vmem>>, %arg4: memref<64x128xf32, #tpu.memory_space<vmem>>, %arg5: memref<1x128xf32, #tpu.memory_space<vmem>>, %arg6: memref<128x256xf32, #tpu.memory_space<vmem>>, %arg7: memref<1x256xf32, #tpu.memory_space<vmem>>, %arg8: memref<256x128xf32, #tpu.memory_space<vmem>>, %arg9: memref<1x128xf32, #tpu.memory_space<vmem>>, %arg10: memref<128x64xf32, #tpu.memory_space<vmem>>, %arg11: memref<1x64xf32, #tpu.memory_space<vmem>>, %arg12: memref<64x2048xbf16, #tpu.memory_space<vmem>>, %arg13: memref<1x2048xf32, #tpu.memory_space<vmem>>, %arg14: memref<2048x1024xbf16, #tpu.memory_space<vmem>>, %arg15: memref<1x1024xf32, #tpu.memory_space<vmem>>, %arg16: memref<1024x256xbf16, #tpu.memory_space<vmem>>, %arg17: memref<1x256xf32, #tpu.memory_space<vmem>>, %arg18: memref<256x64xbf16, #tpu.memory_space<vmem>>, %arg19: memref<1x64xf32, #tpu.memory_space<vmem>>, %arg20: memref<64x16xbf16, #tpu.memory_space<vmem>>, %arg21: memref<1x16xf32, #tpu.memory_space<vmem>>, %arg22: memref<16x1xf32, #tpu.memory_space<vmem>>, %arg23: memref<1x1xf32, #tpu.memory_space<vmem>>, %arg24: memref<2x1xf32, #tpu.memory_space<vmem>>) attributes {dimension_semantics = [#tpu.dimension_semantics<parallel>], iteration_bounds = array<i64: 1>, scalar_prefetch = 0 : i64, scratch_operands = 0 : i64, tpu.core_type = #tpu.core_type<tc>, window_params = [{transform_indices = @transform_0, window_bounds = array<i64: 2, 512>}, {pipeline_mode = #tpu.pipeline_mode<synchronous>, transform_indices = @transform_1, window_bounds = array<i64: 512, 64>}, {pipeline_mode = #tpu.pipeline_mode<synchronous>, transform_indices = @transform_2, window_bounds = array<i64: 1, 64>}, {pipeline_mode = #tpu.pipeline_mode<synchronous>, transform_indices = @transform_3, window_bounds = array<i64: 64, 128>}, {pipeline_mode = #tpu.pipeline_mode<synchronous>, transform_indices = @transform_4, window_bounds = array<i64: 1, 128>}, {pipeline_mode = #tpu.pipeline_mode<synchronous>, transform_indices = @transform_5, window_bounds = array<i64: 128, 256>}, {pipeline_mode = #tpu.pipeline_mode<synchronous>, transform_indices = @transform_6, window_bounds = array<i64: 1, 256>}, {pipeline_mode = #tpu.pipeline_mode<synchronous>, transform_indices = @transform_7, window_bounds = array<i64: 256, 128>}, {pipeline_mode = #tpu.pipeline_mode<synchronous>, transform_indices = @transform_8, window_bounds = array<i64: 1, 128>}, {pipeline_mode = #tpu.pipeline_mode<synchronous>, transform_indices = @transform_9, window_bounds = array<i64: 128, 64>}, {pipeline_mode = #tpu.pipeline_mode<synchronous>, transform_indices = @transform_10, window_bounds = array<i64: 1, 64>}, {pipeline_mode = #tpu.pipeline_mode<synchronous>, transform_indices = @transform_11, window_bounds = array<i64: 64, 2048>}, {pipeline_mode = #tpu.pipeline_mode<synchronous>, transform_indices = @transform_12, window_bounds = array<i64: 1, 2048>}, {pipeline_mode = #tpu.pipeline_mode<synchronous>, transform_indices = @transform_13, window_bounds = array<i64: 2048, 1024>}, {pipeline_mode = #tpu.pipeline_mode<synchronous>, transform_indices = @transform_14, window_bounds = array<i64: 1, 1024>}, {pipeline_mode = #tpu.pipeline_mode<synchronous>, transform_indices = @transform_15, window_bounds = array<i64: 1024, 256>}, {pipeline_mode = #tpu.pipeline_mode<synchronous>, transform_indices = @transform_16, window_bounds = array<i64: 1, 256>}, {pipeline_mode = #tpu.pipeline_mode<synchronous>, transform_indices = @transform_17, window_bounds = array<i64: 256, 64>}, {pipeline_mode = #tpu.pipeline_mode<synchronous>, transform_indices = @transform_18, window_bounds = array<i64: 1, 64>}, {pipeline_mode = #tpu.pipeline_mode<synchronous>, transform_indices = @transform_19, window_bounds = array<i64: 64, 16>}, {pipeline_mode = #tpu.pipeline_mode<synchronous>, transform_indices = @transform_20, window_bounds = array<i64: 1, 16>}, {pipeline_mode = #tpu.pipeline_mode<synchronous>, transform_indices = @transform_21, window_bounds = array<i64: 16, 1>}, {pipeline_mode = #tpu.pipeline_mode<synchronous>, transform_indices = @transform_22, window_bounds = array<i64: 1, 1>}, {transform_indices = @transform_23, window_bounds = array<i64: 2, 1>}]} {
    %c0 = arith.constant 0 : index
    %c0_0 = arith.constant 0 : index
    %0 = vector.load %arg1[%c0, %c0_0] : memref<2x512xf32, #tpu.memory_space<vmem>>, vector<2x512xf32>
    %c0_1 = arith.constant 0 : index
    %c0_2 = arith.constant 0 : index
    %1 = vector.load %arg2[%c0_1, %c0_2] : memref<512x64xf32, #tpu.memory_space<vmem>>, vector<512x64xf32>
    %cst = arith.constant dense<0.000000e+00> : vector<2x64xf32>
    %2 = tpu.matmul %0, %1, %cst {dimension_numbers = #tpu.dot_dimension_numbers<[1], [0], [0], [1], [0, 0, 1, 1], [], []>} : vector<2x512xf32>, vector<512x64xf32>, vector<2x64xf32> -> vector<2x64xf32>
    %c0_3 = arith.constant 0 : index
    %c0_4 = arith.constant 0 : index
    %3 = vector.load %arg3[%c0_3, %c0_4] : memref<1x64xf32, #tpu.memory_space<vmem>>, vector<1x64xf32>
    %4 = vector.broadcast %3 : vector<1x64xf32> to vector<2x64xf32>
    %5 = arith.addf %2, %4 : vector<2x64xf32>
    %cst_5 = arith.constant 0.000000e+00 : f32
    %6 = vector.broadcast %cst_5 : f32 to vector<2x64xf32>
    %7 = arith.maximumf %5, %6 : vector<2x64xf32>
    %c0_6 = arith.constant 0 : index
    %c0_7 = arith.constant 0 : index
    %8 = vector.load %arg4[%c0_6, %c0_7] : memref<64x128xf32, #tpu.memory_space<vmem>>, vector<64x128xf32>
    %cst_8 = arith.constant dense<0.000000e+00> : vector<2x128xf32>
    %9 = tpu.matmul %7, %8, %cst_8 {dimension_numbers = #tpu.dot_dimension_numbers<[1], [0], [0], [1], [0, 0, 1, 1], [], []>} : vector<2x64xf32>, vector<64x128xf32>, vector<2x128xf32> -> vector<2x128xf32>
    %c0_9 = arith.constant 0 : index
    %c0_10 = arith.constant 0 : index
    %10 = vector.load %arg5[%c0_9, %c0_10] : memref<1x128xf32, #tpu.memory_space<vmem>>, vector<1x128xf32>
    %11 = vector.broadcast %10 : vector<1x128xf32> to vector<2x128xf32>
    %12 = arith.addf %9, %11 : vector<2x128xf32>
    %cst_11 = arith.constant 0.000000e+00 : f32
    %13 = vector.broadcast %cst_11 : f32 to vector<2x128xf32>
    %14 = arith.cmpf oge, %12, %13 : vector<2x128xf32>
    %cst_12 = arith.constant 0.00999999977 : f32
    %15 = vector.broadcast %cst_12 : f32 to vector<2x128xf32>
    %16 = arith.mulf %15, %12 : vector<2x128xf32>
    %17 = arith.select %14, %12, %16 : vector<2x128xi1>, vector<2x128xf32>
    %c0_13 = arith.constant 0 : index
    %c0_14 = arith.constant 0 : index
    %18 = vector.load %arg6[%c0_13, %c0_14] : memref<128x256xf32, #tpu.memory_space<vmem>>, vector<128x256xf32>
    %cst_15 = arith.constant dense<0.000000e+00> : vector<2x256xf32>
    %19 = tpu.matmul %17, %18, %cst_15 {dimension_numbers = #tpu.dot_dimension_numbers<[1], [0], [0], [1], [0, 0, 1, 1], [], []>} : vector<2x128xf32>, vector<128x256xf32>, vector<2x256xf32> -> vector<2x256xf32>
    %c0_16 = arith.constant 0 : index
    %c0_17 = arith.constant 0 : index
    %20 = vector.load %arg7[%c0_16, %c0_17] : memref<1x256xf32, #tpu.memory_space<vmem>>, vector<1x256xf32>
    %21 = vector.broadcast %20 : vector<1x256xf32> to vector<2x256xf32>
    %22 = arith.addf %19, %21 : vector<2x256xf32>
    %cst_18 = arith.constant 0.000000e+00 : f32
    %23 = vector.broadcast %cst_18 : f32 to vector<2x256xf32>
    %24 = arith.cmpf oge, %22, %23 : vector<2x256xf32>
    %cst_19 = arith.constant 0.00999999977 : f32
    %25 = vector.broadcast %cst_19 : f32 to vector<2x256xf32>
    %26 = arith.mulf %25, %22 : vector<2x256xf32>
    %27 = arith.select %24, %22, %26 : vector<2x256xi1>, vector<2x256xf32>
    %c0_20 = arith.constant 0 : index
    %c0_21 = arith.constant 0 : index
    %28 = vector.load %arg8[%c0_20, %c0_21] : memref<256x128xf32, #tpu.memory_space<vmem>>, vector<256x128xf32>
    %cst_22 = arith.constant dense<0.000000e+00> : vector<2x128xf32>
    %29 = tpu.matmul %27, %28, %cst_22 {dimension_numbers = #tpu.dot_dimension_numbers<[1], [0], [0], [1], [0, 0, 1, 1], [], []>} : vector<2x256xf32>, vector<256x128xf32>, vector<2x128xf32> -> vector<2x128xf32>
    %c0_23 = arith.constant 0 : index
    %c0_24 = arith.constant 0 : index
    %30 = vector.load %arg9[%c0_23, %c0_24] : memref<1x128xf32, #tpu.memory_space<vmem>>, vector<1x128xf32>
    %31 = vector.broadcast %30 : vector<1x128xf32> to vector<2x128xf32>
    %32 = arith.addf %29, %31 : vector<2x128xf32>
    %cst_25 = arith.constant 0.000000e+00 : f32
    %33 = vector.broadcast %cst_25 : f32 to vector<2x128xf32>
    %34 = arith.cmpf oge, %32, %33 : vector<2x128xf32>
    %cst_26 = arith.constant 0.00999999977 : f32
    %35 = vector.broadcast %cst_26 : f32 to vector<2x128xf32>
    %36 = arith.mulf %35, %32 : vector<2x128xf32>
    %37 = arith.select %34, %32, %36 : vector<2x128xi1>, vector<2x128xf32>
    %c0_27 = arith.constant 0 : index
    %c0_28 = arith.constant 0 : index
    %38 = vector.load %arg10[%c0_27, %c0_28] : memref<128x64xf32, #tpu.memory_space<vmem>>, vector<128x64xf32>
    %cst_29 = arith.constant dense<0.000000e+00> : vector<2x64xf32>
    %39 = tpu.matmul %37, %38, %cst_29 {dimension_numbers = #tpu.dot_dimension_numbers<[1], [0], [0], [1], [0, 0, 1, 1], [], []>} : vector<2x128xf32>, vector<128x64xf32>, vector<2x64xf32> -> vector<2x64xf32>
    %c0_30 = arith.constant 0 : index
    %c0_31 = arith.constant 0 : index
    %40 = vector.load %arg11[%c0_30, %c0_31] : memref<1x64xf32, #tpu.memory_space<vmem>>, vector<1x64xf32>
    %41 = vector.broadcast %40 : vector<1x64xf32> to vector<2x64xf32>
    %42 = arith.addf %39, %41 : vector<2x64xf32>
    %cst_32 = arith.constant 0.000000e+00 : f32
    %43 = vector.broadcast %cst_32 : f32 to vector<2x64xf32>
    %44 = arith.cmpf oge, %42, %43 : vector<2x64xf32>
    %cst_33 = arith.constant 0.00999999977 : f32
    %45 = vector.broadcast %cst_33 : f32 to vector<2x64xf32>
    %46 = arith.mulf %45, %42 : vector<2x64xf32>
    %47 = arith.select %44, %42, %46 : vector<2x64xi1>, vector<2x64xf32>
    %48 = arith.truncf %47 : vector<2x64xf32> to vector<2x64xbf16>
    %c0_34 = arith.constant 0 : index
    %c0_35 = arith.constant 0 : index
    %49 = vector.load %arg12[%c0_34, %c0_35] : memref<64x2048xbf16, #tpu.memory_space<vmem>>, vector<64x2048xbf16>
    %cst_36 = arith.constant dense<0.000000e+00> : vector<2x2048xf32>
    %50 = tpu.matmul %48, %49, %cst_36 {dimension_numbers = #tpu.dot_dimension_numbers<[1], [0], [0], [1], [0, 0, 1, 1], [], []>} : vector<2x64xbf16>, vector<64x2048xbf16>, vector<2x2048xf32> -> vector<2x2048xf32>
    %c0_37 = arith.constant 0 : index
    %c0_38 = arith.constant 0 : index
    %51 = vector.load %arg13[%c0_37, %c0_38] : memref<1x2048xf32, #tpu.memory_space<vmem>>, vector<1x2048xf32>
    %52 = vector.broadcast %51 : vector<1x2048xf32> to vector<2x2048xf32>
    %53 = arith.addf %50, %52 : vector<2x2048xf32>
    %cst_39 = arith.constant 0.000000e+00 : f32
    %54 = vector.broadcast %cst_39 : f32 to vector<2x2048xf32>
    %55 = arith.cmpf oge, %53, %54 : vector<2x2048xf32>
    %cst_40 = arith.constant 0.00999999977 : f32
    %56 = vector.broadcast %cst_40 : f32 to vector<2x2048xf32>
    %57 = arith.mulf %56, %53 : vector<2x2048xf32>
    %58 = arith.select %55, %53, %57 : vector<2x2048xi1>, vector<2x2048xf32>
    %59 = arith.truncf %58 : vector<2x2048xf32> to vector<2x2048xbf16>
    %c0_41 = arith.constant 0 : index
    %c0_42 = arith.constant 0 : index
    %60 = vector.load %arg14[%c0_41, %c0_42] : memref<2048x1024xbf16, #tpu.memory_space<vmem>>, vector<2048x1024xbf16>
    %cst_43 = arith.constant dense<0.000000e+00> : vector<2x1024xf32>
    %61 = tpu.matmul %59, %60, %cst_43 {dimension_numbers = #tpu.dot_dimension_numbers<[1], [0], [0], [1], [0, 0, 1, 1], [], []>} : vector<2x2048xbf16>, vector<2048x1024xbf16>, vector<2x1024xf32> -> vector<2x1024xf32>
    %c0_44 = arith.constant 0 : index
    %c0_45 = arith.constant 0 : index
    %62 = vector.load %arg15[%c0_44, %c0_45] : memref<1x1024xf32, #tpu.memory_space<vmem>>, vector<1x1024xf32>
    %63 = vector.broadcast %62 : vector<1x1024xf32> to vector<2x1024xf32>
    %64 = arith.addf %61, %63 : vector<2x1024xf32>
    %cst_46 = arith.constant 0.000000e+00 : f32
    %65 = vector.broadcast %cst_46 : f32 to vector<2x1024xf32>
    %66 = arith.cmpf oge, %64, %65 : vector<2x1024xf32>
    %cst_47 = arith.constant 0.00999999977 : f32
    %67 = vector.broadcast %cst_47 : f32 to vector<2x1024xf32>
    %68 = arith.mulf %67, %64 : vector<2x1024xf32>
    %69 = arith.select %66, %64, %68 : vector<2x1024xi1>, vector<2x1024xf32>
    %70 = arith.truncf %69 : vector<2x1024xf32> to vector<2x1024xbf16>
    %c0_48 = arith.constant 0 : index
    %c0_49 = arith.constant 0 : index
    %71 = vector.load %arg16[%c0_48, %c0_49] : memref<1024x256xbf16, #tpu.memory_space<vmem>>, vector<1024x256xbf16>
    %cst_50 = arith.constant dense<0.000000e+00> : vector<2x256xf32>
    %72 = tpu.matmul %70, %71, %cst_50 {dimension_numbers = #tpu.dot_dimension_numbers<[1], [0], [0], [1], [0, 0, 1, 1], [], []>} : vector<2x1024xbf16>, vector<1024x256xbf16>, vector<2x256xf32> -> vector<2x256xf32>
    %c0_51 = arith.constant 0 : index
    %c0_52 = arith.constant 0 : index
    %73 = vector.load %arg17[%c0_51, %c0_52] : memref<1x256xf32, #tpu.memory_space<vmem>>, vector<1x256xf32>
    %74 = vector.broadcast %73 : vector<1x256xf32> to vector<2x256xf32>
    %75 = arith.addf %72, %74 : vector<2x256xf32>
    %cst_53 = arith.constant 0.000000e+00 : f32
    %76 = vector.broadcast %cst_53 : f32 to vector<2x256xf32>
    %77 = arith.cmpf oge, %75, %76 : vector<2x256xf32>
    %cst_54 = arith.constant 0.00999999977 : f32
    %78 = vector.broadcast %cst_54 : f32 to vector<2x256xf32>
    %79 = arith.mulf %78, %75 : vector<2x256xf32>
    %80 = arith.select %77, %75, %79 : vector<2x256xi1>, vector<2x256xf32>
    %81 = arith.truncf %80 : vector<2x256xf32> to vector<2x256xbf16>
    %c0_55 = arith.constant 0 : index
    %c0_56 = arith.constant 0 : index
    %82 = vector.load %arg18[%c0_55, %c0_56] : memref<256x64xbf16, #tpu.memory_space<vmem>>, vector<256x64xbf16>
    %cst_57 = arith.constant dense<0.000000e+00> : vector<2x64xf32>
    %83 = tpu.matmul %81, %82, %cst_57 {dimension_numbers = #tpu.dot_dimension_numbers<[1], [0], [0], [1], [0, 0, 1, 1], [], []>} : vector<2x256xbf16>, vector<256x64xbf16>, vector<2x64xf32> -> vector<2x64xf32>
    %c0_58 = arith.constant 0 : index
    %c0_59 = arith.constant 0 : index
    %84 = vector.load %arg19[%c0_58, %c0_59] : memref<1x64xf32, #tpu.memory_space<vmem>>, vector<1x64xf32>
    %85 = vector.broadcast %84 : vector<1x64xf32> to vector<2x64xf32>
    %86 = arith.addf %83, %85 : vector<2x64xf32>
    %cst_60 = arith.constant 0.000000e+00 : f32
    %87 = vector.broadcast %cst_60 : f32 to vector<2x64xf32>
    %88 = arith.cmpf oge, %86, %87 : vector<2x64xf32>
    %cst_61 = arith.constant 0.00999999977 : f32
    %89 = vector.broadcast %cst_61 : f32 to vector<2x64xf32>
    %90 = arith.mulf %89, %86 : vector<2x64xf32>
    %91 = arith.select %88, %86, %90 : vector<2x64xi1>, vector<2x64xf32>
    %92 = arith.truncf %91 : vector<2x64xf32> to vector<2x64xbf16>
    %c0_62 = arith.constant 0 : index
    %c0_63 = arith.constant 0 : index
    %93 = vector.load %arg20[%c0_62, %c0_63] : memref<64x16xbf16, #tpu.memory_space<vmem>>, vector<64x16xbf16>
    %cst_64 = arith.constant dense<0.000000e+00> : vector<2x16xf32>
    %94 = tpu.matmul %92, %93, %cst_64 {dimension_numbers = #tpu.dot_dimension_numbers<[1], [0], [0], [1], [0, 0, 1, 1], [], []>} : vector<2x64xbf16>, vector<64x16xbf16>, vector<2x16xf32> -> vector<2x16xf32>
    %c0_65 = arith.constant 0 : index
    %c0_66 = arith.constant 0 : index
    %95 = vector.load %arg21[%c0_65, %c0_66] : memref<1x16xf32, #tpu.memory_space<vmem>>, vector<1x16xf32>
    %96 = vector.broadcast %95 : vector<1x16xf32> to vector<2x16xf32>
    %97 = arith.addf %94, %96 : vector<2x16xf32>
    %cst_67 = arith.constant 0.000000e+00 : f32
    %98 = vector.broadcast %cst_67 : f32 to vector<2x16xf32>
    %99 = arith.cmpf oge, %97, %98 : vector<2x16xf32>
    %cst_68 = arith.constant 0.00999999977 : f32
    %100 = vector.broadcast %cst_68 : f32 to vector<2x16xf32>
    %101 = arith.mulf %100, %97 : vector<2x16xf32>
    %102 = arith.select %99, %97, %101 : vector<2x16xi1>, vector<2x16xf32>
    %c0_69 = arith.constant 0 : index
    %c0_70 = arith.constant 0 : index
    %103 = vector.load %arg22[%c0_69, %c0_70] : memref<16x1xf32, #tpu.memory_space<vmem>>, vector<16x1xf32>
    %cst_71 = arith.constant dense<0.000000e+00> : vector<2x1xf32>
    %104 = tpu.matmul %102, %103, %cst_71 {dimension_numbers = #tpu.dot_dimension_numbers<[1], [0], [0], [1], [0, 0, 1, 1], [], []>} : vector<2x16xf32>, vector<16x1xf32>, vector<2x1xf32> -> vector<2x1xf32>
    %c0_72 = arith.constant 0 : index
    %c0_73 = arith.constant 0 : index
    %105 = vector.load %arg23[%c0_72, %c0_73] : memref<1x1xf32, #tpu.memory_space<vmem>>, vector<1x1xf32>
    %106 = vector.broadcast %105 : vector<1x1xf32> to vector<2x1xf32>
    %107 = arith.addf %104, %106 : vector<2x1xf32>
    %c0_74 = arith.constant 0 : index
    %c0_75 = arith.constant 0 : index
    %108 = vector.load %arg24[%c0_74, %c0_75] : memref<2x1xf32, #tpu.memory_space<vmem>>, vector<2x1xf32>
    tpu.vector_store %arg24[%c0_74, %c0_75], %107 {strides = array<i32>} : memref<2x1xf32, #tpu.memory_space<vmem>>, vector<2x1xf32>,
    return
  }
  func.func @transform_0(%arg0: i32) -> (i32, i32) {
    %c0_i32 = arith.constant 0 : i32
    %c0_i32_0 = arith.constant 0 : i32
    return %arg0, %c0_i32 : i32, i32
  }
  func.func @transform_1(%arg0: i32) -> (i32, i32) {
    %c0_i32 = arith.constant 0 : i32
    %c0_i32_0 = arith.constant 0 : i32
    %c0_i32_1 = arith.constant 0 : i32
    return %c0_i32, %c0_i32_0 : i32, i32
  }
  func.func @transform_2(%arg0: i32) -> (i32, i32) {
    %c0_i32 = arith.constant 0 : i32
    %c0_i32_0 = arith.constant 0 : i32
    %c0_i32_1 = arith.constant 0 : i32
    return %c0_i32, %c0_i32_0 : i32, i32
  }
  func.func @transform_3(%arg0: i32) -> (i32, i32) {
    %c0_i32 = arith.constant 0 : i32
    %c0_i32_0 = arith.constant 0 : i32
    %c0_i32_1 = arith.constant 0 : i32
    return %c0_i32, %c0_i32_0 : i32, i32
  }
  func.func @transform_4(%arg0: i32) -> (i32, i32) {
    %c0_i32 = arith.constant 0 : i32
    %c0_i32_0 = arith.constant 0 : i32
    %c0_i32_1 = arith.constant 0 : i32
    return %c0_i32, %c0_i32_0 : i32, i32
  }
  func.func @transform_5(%arg0: i32) -> (i32, i32) {
    %c0_i32 = arith.constant 0 : i32
    %c0_i32_0 = arith.constant 0 : i32
    %c0_i32_1 = arith.constant 0 : i32
    return %c0_i32, %c0_i32_0 : i32, i32
  }
  func.func @transform_6(%arg0: i32) -> (i32, i32) {
    %c0_i32 = arith.constant 0 : i32
    %c0_i32_0 = arith.constant 0 : i32
    %c0_i32_1 = arith.constant 0 : i32
    return %c0_i32, %c0_i32_0 : i32, i32
  }
  func.func @transform_7(%arg0: i32) -> (i32, i32) {
    %c0_i32 = arith.constant 0 : i32
    %c0_i32_0 = arith.constant 0 : i32
    %c0_i32_1 = arith.constant 0 : i32
    return %c0_i32, %c0_i32_0 : i32, i32
  }
  func.func @transform_8(%arg0: i32) -> (i32, i32) {
    %c0_i32 = arith.constant 0 : i32
    %c0_i32_0 = arith.constant 0 : i32
    %c0_i32_1 = arith.constant 0 : i32
    return %c0_i32, %c0_i32_0 : i32, i32
  }
  func.func @transform_9(%arg0: i32) -> (i32, i32) {
    %c0_i32 = arith.constant 0 : i32
    %c0_i32_0 = arith.constant 0 : i32
    %c0_i32_1 = arith.constant 0 : i32
    return %c0_i32, %c0_i32_0 : i32, i32
  }
  func.func @transform_10(%arg0: i32) -> (i32, i32) {
    %c0_i32 = arith.constant 0 : i32
    %c0_i32_0 = arith.constant 0 : i32
    %c0_i32_1 = arith.constant 0 : i32
    return %c0_i32, %c0_i32_0 : i32, i32
  }
  func.func @transform_11(%arg0: i32) -> (i32, i32) {
    %c0_i32 = arith.constant 0 : i32
    %c0_i32_0 = arith.constant 0 : i32
    %c0_i32_1 = arith.constant 0 : i32
    return %c0_i32, %c0_i32_0 : i32, i32
  }
  func.func @transform_12(%arg0: i32) -> (i32, i32) {
    %c0_i32 = arith.constant 0 : i32
    %c0_i32_0 = arith.constant 0 : i32
    %c0_i32_1 = arith.constant 0 : i32
    return %c0_i32, %c0_i32_0 : i32, i32
  }
  func.func @transform_13(%arg0: i32) -> (i32, i32) {
    %c0_i32 = arith.constant 0 : i32
    %c0_i32_0 = arith.constant 0 : i32
    %c0_i32_1 = arith.constant 0 : i32
    return %c0_i32, %c0_i32_0 : i32, i32
  }
  func.func @transform_14(%arg0: i32) -> (i32, i32) {
    %c0_i32 = arith.constant 0 : i32
    %c0_i32_0 = arith.constant 0 : i32
    %c0_i32_1 = arith.constant 0 : i32
    return %c0_i32, %c0_i32_0 : i32, i32
  }
  func.func @transform_15(%arg0: i32) -> (i32, i32) {
    %c0_i32 = arith.constant 0 : i32
    %c0_i32_0 = arith.constant 0 : i32
    %c0_i32_1 = arith.constant 0 : i32
    return %c0_i32, %c0_i32_0 : i32, i32
  }
  func.func @transform_16(%arg0: i32) -> (i32, i32) {
    %c0_i32 = arith.constant 0 : i32
    %c0_i32_0 = arith.constant 0 : i32
    %c0_i32_1 = arith.constant 0 : i32
    return %c0_i32, %c0_i32_0 : i32, i32
  }
  func.func @transform_17(%arg0: i32) -> (i32, i32) {
    %c0_i32 = arith.constant 0 : i32
    %c0_i32_0 = arith.constant 0 : i32
    %c0_i32_1 = arith.constant 0 : i32
    return %c0_i32, %c0_i32_0 : i32, i32
  }
  func.func @transform_18(%arg0: i32) -> (i32, i32) {
    %c0_i32 = arith.constant 0 : i32
    %c0_i32_0 = arith.constant 0 : i32
    %c0_i32_1 = arith.constant 0 : i32
    return %c0_i32, %c0_i32_0 : i32, i32
  }
  func.func @transform_19(%arg0: i32) -> (i32, i32) {
    %c0_i32 = arith.constant 0 : i32
    %c0_i32_0 = arith.constant 0 : i32
    %c0_i32_1 = arith.constant 0 : i32
    return %c0_i32, %c0_i32_0 : i32, i32
  }
  func.func @transform_20(%arg0: i32) -> (i32, i32) {
    %c0_i32 = arith.constant 0 : i32
    %c0_i32_0 = arith.constant 0 : i32
    %c0_i32_1 = arith.constant 0 : i32
    return %c0_i32, %c0_i32_0 : i32, i32
  }
  func.func @transform_21(%arg0: i32) -> (i32, i32) {
    %c0_i32 = arith.constant 0 : i32
    %c0_i32_0 = arith.constant 0 : i32
    %c0_i32_1 = arith.constant 0 : i32
    return %c0_i32, %c0_i32_0 : i32, i32
  }
  func.func @transform_22(%arg0: i32) -> (i32, i32) {
    %c0_i32 = arith.constant 0 : i32
    %c0_i32_0 = arith.constant 0 : i32
    %c0_i32_1 = arith.constant 0 : i32
    return %c0_i32, %c0_i32_0 : i32, i32
  }
  func.func @transform_23(%arg0: i32) -> (i32, i32) {
    %c0_i32 = arith.constant 0 : i32
    %c0_i32_0 = arith.constant 0 : i32
    return %arg0, %c0_i32 : i32, i32
  }
}

</mosaic_0001>

<llo_original>
// kernel: tpu_custom_call.1
$region0: #{tpu_custom_call.1}
  #allocation0 [shape = 'u32[]', space=smem, size = 0x4, offset = 0x4, fixed_abs, tag = 'smem constant byte address 0x4 - core index']
  #allocation1 [shape = 'u32[144,128]{1,0:T(1,128)}', space=vmem, size = 0x12000, scoped, tag = 'internal scratch']
  #allocation2 [shape = 'f32[1,1]{1,0:T(1,128)S(1)}', space=vmem, size = 0x200, scoped, tag = 'scoped memory for tpu_custom_call.1']
  %s0 = inlined_call_operand.hbm [shape: f32[2,512], index: 0, kind: input, shape index: {}]
  %s1 = inlined_call_operand.vmem [shape: f32[512,64], index: 1, kind: input, shape index: {}]
  %s2 = inlined_call_operand.hbm [shape: f32[1,64], index: 2, kind: input, shape index: {}]
  %s3 = inlined_call_operand.hbm [shape: f32[64,128], index: 3, kind: input, shape index: {}]
  %s4 = inlined_call_operand.hbm [shape: f32[1,128], index: 4, kind: input, shape index: {}]
  %s5 = inlined_call_operand.hbm [shape: f32[128,256], index: 5, kind: input, shape index: {}]
  %s6 = inlined_call_operand.hbm [shape: f32[1,256], index: 6, kind: input, shape index: {}]
  %s7 = inlined_call_operand.hbm [shape: f32[256,128], index: 7, kind: input, shape index: {}]
  %s8 = inlined_call_operand.hbm [shape: f32[1,128], index: 8, kind: input, shape index: {}]
  %s9 = inlined_call_operand.vmem [shape: f32[128,64], index: 9, kind: input, shape index: {}]
  %s10 = inlined_call_operand.hbm [shape: f32[1,64], index: 10, kind: input, shape index: {}]
  %s11 = inlined_call_operand.hbm [shape: bf16[64,2048], index: 11, kind: input, shape index: {}]
  %s12 = inlined_call_operand.hbm [shape: f32[1,2048], index: 12, kind: input, shape index: {}]
  %s13 = inlined_call_operand.hbm [shape: bf16[2048,1024], index: 13, kind: input, shape index: {}]
  %s14 = inlined_call_operand.hbm [shape: f32[1,1024], index: 14, kind: input, shape index: {}]
  %s15 = inlined_call_operand.hbm [shape: bf16[1024,256], index: 15, kind: input, shape index: {}]
  %s16 = inlined_call_operand.hbm [shape: f32[1,256], index: 16, kind: input, shape index: {}]
  %s17 = inlined_call_operand.vmem [shape: bf16[256,64], index: 17, kind: input, shape index: {}]
  %s18 = inlined_call_operand.hbm [shape: f32[1,64], index: 18, kind: input, shape index: {}]
  %s19 = inlined_call_operand.vmem [shape: bf16[64,16], index: 19, kind: input, shape index: {}]
  %s20 = inlined_call_operand.hbm [shape: f32[1,16], index: 20, kind: input, shape index: {}]
  %s21 = inlined_call_operand.vmem [shape: f32[16,1], index: 21, kind: input, shape index: {}]
  %s22 = inlined_call_operand.<no memory space> [shape: f32[1,1], index: 22, kind: input, shape index: {}]
  %s23 = inlined_call_operand.vmem [shape: f32[2,1], index: 23, kind: output, shape index: {}]
  %s24 = sld [smem:[#allocation0]]
  $region170: #{tpu_custom_call.1} parent=0
    _
  %s26 = ssub.s32 1, %s24
  %s27 = scalar_select 0, %s26, %s24
  %v28 = vstv %s22
  %29 = vst [vmem:[#allocation2] sm:$0x1] %v28
  $region1: #{tpu_custom_call.1} parent=0
    #allocation3 [shape = 'u8[4096]{0}', space=vmem, size = 0x1000, scoped, tag = 'input window, operand 0, single buffered']
    #allocation4 [shape = 's32[1]{0}', space=sflag, size = 0x4, scoped, tag = 'scoped memory for tpu_custom_call.1']
    #allocation5 [shape = 'u8[512]{0}', space=vmem, size = 0x400, scoped, tag = 'input window, operand 2, single buffered']
    #allocation6 [shape = 's32[1]{0}', space=sflag, size = 0x4, scoped, tag = 'scoped memory for tpu_custom_call.1']
    #allocation7 [shape = 'u8[32768]{0}', space=vmem, size = 0x8000, scoped, tag = 'input window, operand 3, single buffered']
    #allocation8 [shape = 'u8[512]{0}', space=vmem, size = 0x400, scoped, tag = 'input window, operand 4, single buffered']
    #allocation9 [shape = 's32[1]{0}', space=sflag, size = 0x4, scoped, tag = 'scoped memory for tpu_custom_call.1']
    #allocation10 [shape = 'u8[131072]{0}', space=vmem, size = 0x20000, scoped, tag = 'input window, operand 5, single buffered']
    #allocation11 [shape = 'u8[1024]{0}', space=vmem, size = 0x400, scoped, tag = 'input window, operand 6, single buffered']
    #allocation12 [shape = 's32[1]{0}', space=sflag, size = 0x4, scoped, tag = 'scoped memory for tpu_custom_call.1']
    #allocation13 [shape = 'u8[131072]{0}', space=vmem, size = 0x20000, scoped, tag = 'input window, operand 7, single buffered']
    #allocation14 [shape = 'u8[512]{0}', space=vmem, size = 0x400, scoped, tag = 'input window, operand 8, single buffered']
    #allocation15 [shape = 's32[1]{0}', space=sflag, size = 0x4, scoped, tag = 'scoped memory for tpu_custom_call.1']
    #allocation16 [shape = 'u8[512]{0}', space=vmem, size = 0x400, scoped, tag = 'input window, operand 10, single buffered']
    #allocation17 [shape = 'u8[262144]{0}', space=vmem, size = 0x40000, scoped, tag = 'input window, operand 11, single buffered']
    #allocation18 [shape = 's32[1]{0}', space=sflag, size = 0x4, scoped, tag = 'scoped memory for tpu_custom_call.1']
    #allocation19 [shape = 'u8[8192]{0}', space=vmem, size = 0x2000, scoped, tag = 'input window, operand 12, single buffered']
    #allocation20 [shape = 'u8[4194304]{0}', space=vmem, size = 0x400000, scoped, tag = 'input window, operand 13, single buffered']
    #allocation21 [shape = 's32[1]{0}', space=sflag, size = 0x4, scoped, tag = 'scoped memory for tpu_custom_call.1']
    #allocation22 [shape = 'u8[4096]{0}', space=vmem, size = 0x1000, scoped, tag = 'input window, operand 14, single buffered']
    #allocation23 [shape = 'u8[524288]{0}', space=vmem, size = 0x80000, scoped, tag = 'input window, operand 15, single buffered']
    #allocation24 [shape = 's32[1]{0}', space=sflag, size = 0x4, scoped, tag = 'scoped memory for tpu_custom_call.1']
    #allocation25 [shape = 'u8[1024]{0}', space=vmem, size = 0x400, scoped, tag = 'input window, operand 16, single buffered']
    #allocation26 [shape = 'u8[512]{0}', space=vmem, size = 0x400, scoped, tag = 'input window, operand 18, single buffered']
    #allocation27 [shape = 's32[1]{0}', space=sflag, size = 0x4, scoped, tag = 'scoped memory for tpu_custom_call.1']
    #allocation28 [shape = 'u8[512]{0}', space=vmem, size = 0x400, scoped, tag = 'input window, operand 20, single buffered']
    %30 = vsyncpa [#allocation4], 0
    %31 = vsyncpa [#allocation6], 0
    %32 = vsyncpa [#allocation9], 0
    %33 = vsyncpa [#allocation12], 0
    %34 = vsyncpa [#allocation15], 0
    %35 = vsyncpa [#allocation18], 0
    %36 = vsyncpa [#allocation21], 0
    %37 = vsyncpa [#allocation24], 0
    %38 = vsyncpa [#allocation27], 0
    // Predicated region
    $region2: #{tpu_custom_call.1} parent=1 // pred_check
      _
    $region3: #{tpu_custom_call.1} parent=1 // pred_check_branch
      %40 = sbr.rel (0) target = $region5
    $region4: #{tpu_custom_call.1} parent=1 // pred_region
      %s42 = ssub.s32 128, 128
      %43 = vsyncadd [#allocation4], %s42
      %s45 = sshll.u32 [#allocation3], 4
      %s46 = int_to_ptr.vmem [resolvable:$true] %s45
      %48 = dma.hbm_to_vmem [thread:$0]  %s0, 128, %s46, [#allocation4]
    $region5: #{tpu_custom_call.1} parent=1 // pred_fallthru
      _
    // Predicated region
    $region6: #{tpu_custom_call.1} parent=1 // pred_check
      _
    $region7: #{tpu_custom_call.1} parent=1 // pred_check_branch
      %50 = sbr.rel (0) target = $region9
    $region8: #{tpu_custom_call.1} parent=1 // pred_region
      _
    $region9: #{tpu_custom_call.1} parent=1 // pred_fallthru
      _
    // Predicated region
    $region10: #{tpu_custom_call.1} parent=1 // pred_check
      _
    $region11: #{tpu_custom_call.1} parent=1 // pred_check_branch
      %52 = sbr.rel (0) target = $region13
    $region12: #{tpu_custom_call.1} parent=1 // pred_region
      %s54 = ssub.s32 16, 16
      %55 = vsyncadd [#allocation6], %s54
      %s57 = sshll.u32 [#allocation5], 4
      %s58 = int_to_ptr.vmem [resolvable:$true] %s57
      %60 = dma.hbm_to_vmem [thread:$0]  %s2, 16, %s58, [#allocation6]
    $region13: #{tpu_custom_call.1} parent=1 // pred_fallthru
      _
    // Predicated region
    $region14: #{tpu_custom_call.1} parent=1 // pred_check
      _
    $region15: #{tpu_custom_call.1} parent=1 // pred_check_branch
      %62 = sbr.rel (0) target = $region17
    $region16: #{tpu_custom_call.1} parent=1 // pred_region
      %s64 = ssub.s32 1024, 1024
      %65 = vsyncadd [#allocation6], %s64
      %s66 = sshll.u32 [#allocation7], 4
      %s67 = int_to_ptr.vmem [resolvable:$true] %s66
      %72 = dma.hbm_to_vmem [thread:$0]  %s3, 1024, %s67, [#allocation6], 128, 128, 8
    $region17: #{tpu_custom_call.1} parent=1 // pred_fallthru
      _
    // Predicated region
    $region18: #{tpu_custom_call.1} parent=1 // pred_check
      _
    $region19: #{tpu_custom_call.1} parent=1 // pred_check_branch
      %74 = sbr.rel (0) target = $region21
    $region20: #{tpu_custom_call.1} parent=1 // pred_region
      %s76 = ssub.s32 16, 16
      %77 = vsyncadd [#allocation9], %s76
      %s79 = sshll.u32 [#allocation8], 4
      %s80 = int_to_ptr.vmem [resolvable:$true] %s79
      %82 = dma.hbm_to_vmem [thread:$0]  %s4, 16, %s80, [#allocation9]
    $region21: #{tpu_custom_call.1} parent=1 // pred_fallthru
      _
    // Predicated region
    $region22: #{tpu_custom_call.1} parent=1 // pred_check
      _
    $region23: #{tpu_custom_call.1} parent=1 // pred_check_branch
      %84 = sbr.rel (0) target = $region25
    $region24: #{tpu_custom_call.1} parent=1 // pred_region
      %s86 = ssub.s32 4096, 4096
      %87 = vsyncadd [#allocation9], %s86
      %s88 = sshll.u32 [#allocation10], 4
      %s89 = int_to_ptr.vmem [resolvable:$true] %s88
      %94 = dma.hbm_to_vmem [thread:$0]  %s5, 4096, %s89, [#allocation9], 256, 256, 16
    $region25: #{tpu_custom_call.1} parent=1 // pred_fallthru
      _
    // Predicated region
    $region26: #{tpu_custom_call.1} parent=1 // pred_check
      _
    $region27: #{tpu_custom_call.1} parent=1 // pred_check_branch
      %96 = sbr.rel (0) target = $region29
    $region28: #{tpu_custom_call.1} parent=1 // pred_region
      %s98 = ssub.s32 32, 32
      %99 = vsyncadd [#allocation12], %s98
      %s101 = sshll.u32 [#allocation11], 4
      %s102 = int_to_ptr.vmem [resolvable:$true] %s101
      %104 = dma.hbm_to_vmem [thread:$0]  %s6, 32, %s102, [#allocation12]
    $region29: #{tpu_custom_call.1} parent=1 // pred_fallthru
      _
    // Predicated region
    $region30: #{tpu_custom_call.1} parent=1 // pred_check
      _
    $region31: #{tpu_custom_call.1} parent=1 // pred_check_branch
      %106 = sbr.rel (0) target = $region33
    $region32: #{tpu_custom_call.1} parent=1 // pred_region
      %s108 = ssub.s32 4096, 4096
      %109 = vsyncadd [#allocation12], %s108
      %s110 = sshll.u32 [#allocation13], 4
      %s111 = int_to_ptr.vmem [resolvable:$true] %s110
      %116 = dma.hbm_to_vmem [thread:$0]  %s7, 4096, %s111, [#allocation12], 128, 128, 8
    $region33: #{tpu_custom_call.1} parent=1 // pred_fallthru
      _
    // Predicated region
    $region34: #{tpu_custom_call.1} parent=1 // pred_check
      _
    $region35: #{tpu_custom_call.1} parent=1 // pred_check_branch
      %118 = sbr.rel (0) target = $region37
    $region36: #{tpu_custom_call.1} parent=1 // pred_region
      %s120 = ssub.s32 16, 16
      %121 = vsyncadd [#allocation15], %s120
      %s123 = sshll.u32 [#allocation14], 4
      %s124 = int_to_ptr.vmem [resolvable:$true] %s123
      %126 = dma.hbm_to_vmem [thread:$0]  %s8, 16, %s124, [#allocation15]
    $region37: #{tpu_custom_call.1} parent=1 // pred_fallthru
      _
    // Predicated region
    $region38: #{tpu_custom_call.1} parent=1 // pred_check
      _
    $region39: #{tpu_custom_call.1} parent=1 // pred_check_branch
      %128 = sbr.rel (0) target = $region41
    $region40: #{tpu_custom_call.1} parent=1 // pred_region
      _
    $region41: #{tpu_custom_call.1} parent=1 // pred_fallthru
      _
    // Predicated region
    $region42: #{tpu_custom_call.1} parent=1 // pred_check
      _
    $region43: #{tpu_custom_call.1} parent=1 // pred_check_branch
      %130 = sbr.rel (0) target = $region45
    $region44: #{tpu_custom_call.1} parent=1 // pred_region
      %s132 = ssub.s32 16, 16
      %133 = vsyncadd [#allocation15], %s132
      %s135 = sshll.u32 [#allocation16], 4
      %s136 = int_to_ptr.vmem [resolvable:$true] %s135
      %138 = dma.hbm_to_vmem [thread:$0]  %s10, 16, %s136, [#allocation15]
    $region45: #{tpu_custom_call.1} parent=1 // pred_fallthru
      _
    // Predicated region
    $region46: #{tpu_custom_call.1} parent=1 // pred_check
      _
    $region47: #{tpu_custom_call.1} parent=1 // pred_check_branch
      %140 = sbr.rel (0) target = $region49
    $region48: #{tpu_custom_call.1} parent=1 // pred_region
      %s142 = ssub.s32 8192, 8192
      %143 = vsyncadd [#allocation18], %s142
      %s144 = sshll.u32 [#allocation17], 4
      %s145 = int_to_ptr.vmem [resolvable:$true] %s144
      %150 = dma.hbm_to_vmem [thread:$0]  %s11, 8192, %s145, [#allocation18], 1024, 1024, 64
    $region49: #{tpu_custom_call.1} parent=1 // pred_fallthru
      _
    // Predicated region
    $region50: #{tpu_custom_call.1} parent=1 // pred_check
      _
    $region51: #{tpu_custom_call.1} parent=1 // pred_check_branch
      %152 = sbr.rel (0) target = $region53
    $region52: #{tpu_custom_call.1} parent=1 // pred_region
      %s154 = ssub.s32 256, 256
      %155 = vsyncadd [#allocation18], %s154
      %s157 = sshll.u32 [#allocation19], 4
      %s158 = int_to_ptr.vmem [resolvable:$true] %s157
      %160 = dma.hbm_to_vmem [thread:$0]  %s12, 256, %s158, [#allocation18]
    $region53: #{tpu_custom_call.1} parent=1 // pred_fallthru
      _
    // Predicated region
    $region54: #{tpu_custom_call.1} parent=1 // pred_check
      _
    $region55: #{tpu_custom_call.1} parent=1 // pred_check_branch
      %162 = sbr.rel (0) target = $region57
    $region56: #{tpu_custom_call.1} parent=1 // pred_region
      %s164 = ssub.s32 131072, 131072
      %165 = vsyncadd [#allocation21], %s164
      %s166 = sshll.u32 [#allocation20], 4
      %s167 = int_to_ptr.vmem [resolvable:$true] %s166
      %172 = dma.hbm_to_vmem [thread:$0]  %s13, 131072, %s167, [#allocation21], 512, 512, 32
    $region57: #{tpu_custom_call.1} parent=1 // pred_fallthru
      _
    // Predicated region
    $region58: #{tpu_custom_call.1} parent=1 // pred_check
      _
    $region59: #{tpu_custom_call.1} parent=1 // pred_check_branch
      %174 = sbr.rel (0) target = $region61
    $region60: #{tpu_custom_call.1} parent=1 // pred_region
      %s176 = ssub.s32 128, 128
      %177 = vsyncadd [#allocation21], %s176
      %s179 = sshll.u32 [#allocation22], 4
      %s180 = int_to_ptr.vmem [resolvable:$true] %s179
      %182 = dma.hbm_to_vmem [thread:$0]  %s14, 128, %s180, [#allocation21]
    $region61: #{tpu_custom_call.1} parent=1 // pred_fallthru
      _
    // Predicated region
    $region62: #{tpu_custom_call.1} parent=1 // pred_check
      _
    $region63: #{tpu_custom_call.1} parent=1 // pred_check_branch
      %184 = sbr.rel (0) target = $region65
    $region64: #{tpu_custom_call.1} parent=1 // pred_region
      %s186 = ssub.s32 16384, 16384
      %187 = vsyncadd [#allocation24], %s186
      %s188 = sshll.u32 [#allocation23], 4
      %s189 = int_to_ptr.vmem [resolvable:$true] %s188
      %194 = dma.hbm_to_vmem [thread:$0]  %s15, 16384, %s189, [#allocation24], 128, 128, 8
    $region65: #{tpu_custom_call.1} parent=1 // pred_fallthru
      _
    // Predicated region
    $region66: #{tpu_custom_call.1} parent=1 // pred_check
      _
    $region67: #{tpu_custom_call.1} parent=1 // pred_check_branch
      %196 = sbr.rel (0) target = $region69
    $region68: #{tpu_custom_call.1} parent=1 // pred_region
      %s198 = ssub.s32 32, 32
      %199 = vsyncadd [#allocation24], %s198
      %s201 = sshll.u32 [#allocation25], 4
      %s202 = int_to_ptr.vmem [resolvable:$true] %s201
      %204 = dma.hbm_to_vmem [thread:$0]  %s16, 32, %s202, [#allocation24]
    $region69: #{tpu_custom_call.1} parent=1 // pred_fallthru
      _
    // Predicated region
    $region70: #{tpu_custom_call.1} parent=1 // pred_check
      _
    $region71: #{tpu_custom_call.1} parent=1 // pred_check_branch
      %206 = sbr.rel (0) target = $region73
    $region72: #{tpu_custom_call.1} parent=1 // pred_region
      _
    $region73: #{tpu_custom_call.1} parent=1 // pred_fallthru
      _
    // Predicated region
    $region74: #{tpu_custom_call.1} parent=1 // pred_check
      _
    $region75: #{tpu_custom_call.1} parent=1 // pred_check_branch
      %208 = sbr.rel (0) target = $region77
    $region76: #{tpu_custom_call.1} parent=1 // pred_region
      %s210 = ssub.s32 16, 16
      %211 = vsyncadd [#allocation27], %s210
      %s213 = sshll.u32 [#allocation26], 4
      %s214 = int_to_ptr.vmem [resolvable:$true] %s213
      %216 = dma.hbm_to_vmem [thread:$0]  %s18, 16, %s214, [#allocation27]
    $region77: #{tpu_custom_call.1} parent=1 // pred_fallthru
      _
    // Predicated region
    $region78: #{tpu_custom_call.1} parent=1 // pred_check
      _
    $region79: #{tpu_custom_call.1} parent=1 // pred_check_branch
      %218 = sbr.rel (0) target = $region81
    $region80: #{tpu_custom_call.1} parent=1 // pred_region
      _
    $region81: #{tpu_custom_call.1} parent=1 // pred_fallthru
      _
    // Predicated region
    $region82: #{tpu_custom_call.1} parent=1 // pred_check
      _
    $region83: #{tpu_custom_call.1} parent=1 // pred_check_branch
      %220 = sbr.rel (0) target = $region85
    $region84: #{tpu_custom_call.1} parent=1 // pred_region
      %s222 = ssub.s32 16, 16
      %223 = vsyncadd [#allocation27], %s222
      %s225 = sshll.u32 [#allocation28], 4
      %s226 = int_to_ptr.vmem [resolvable:$true] %s225
      %228 = dma.hbm_to_vmem [thread:$0]  %s20, 16, %s226, [#allocation27]
    $region85: #{tpu_custom_call.1} parent=1 // pred_fallthru
      _
    // Predicated region
    $region86: #{tpu_custom_call.1} parent=1 // pred_check
      _
    $region87: #{tpu_custom_call.1} parent=1 // pred_check_branch
      %230 = sbr.rel (0) target = $region89
    $region88: #{tpu_custom_call.1} parent=1 // pred_region
      _
    $region89: #{tpu_custom_call.1} parent=1 // pred_fallthru
      _
    // Predicated region
    $region90: #{tpu_custom_call.1} parent=1 // pred_check
      _
    $region91: #{tpu_custom_call.1} parent=1 // pred_check_branch
      %232 = sbr.rel (0) target = $region93
    $region92: #{tpu_custom_call.1} parent=1 // pred_region
      _
    $region93: #{tpu_custom_call.1} parent=1 // pred_fallthru
      _
    // Predicated region
    $region94: #{tpu_custom_call.1} parent=1 // pred_check
      _
    $region95: #{tpu_custom_call.1} parent=1 // pred_check_branch
      %234 = sbr.rel (0) target = $region97
    $region96: #{tpu_custom_call.1} parent=1 // pred_region
      %235 = dma.done [#allocation4], 128
    $region97: #{tpu_custom_call.1} parent=1 // pred_fallthru
      _
    // Predicated region
    $region98: #{tpu_custom_call.1} parent=1 // pred_check
      _
    $region99: #{tpu_custom_call.1} parent=1 // pred_check_branch
      %237 = sbr.rel (0) target = $region101
    $region100: #{tpu_custom_call.1} parent=1 // pred_region
      %238 = dma.done [#allocation6], 16
    $region101: #{tpu_custom_call.1} parent=1 // pred_fallthru
      _
    // Predicated region
    $region102: #{tpu_custom_call.1} parent=1 // pred_check
      _
    $region103: #{tpu_custom_call.1} parent=1 // pred_check_branch
      %240 = sbr.rel (0) target = $region105
    $region104: #{tpu_custom_call.1} parent=1 // pred_region
      %241 = dma.done [#allocation6], 1024
    $region105: #{tpu_custom_call.1} parent=1 // pred_fallthru
      _
    // Predicated region
    $region106: #{tpu_custom_call.1} parent=1 // pred_check
      _
    $region107: #{tpu_custom_call.1} parent=1 // pred_check_branch
      %243 = sbr.rel (0) target = $region109
    $region108: #{tpu_custom_call.1} parent=1 // pred_region
      %244 = dma.done [#allocation9], 16
    $region109: #{tpu_custom_call.1} parent=1 // pred_fallthru
      _
    // Predicated region
    $region110: #{tpu_custom_call.1} parent=1 // pred_check
      _
    $region111: #{tpu_custom_call.1} parent=1 // pred_check_branch
      %246 = sbr.rel (0) target = $region113
    $region112: #{tpu_custom_call.1} parent=1 // pred_region
      %247 = dma.done [#allocation9], 4096
    $region113: #{tpu_custom_call.1} parent=1 // pred_fallthru
      _
    // Predicated region
    $region114: #{tpu_custom_call.1} parent=1 // pred_check
      _
    $region115: #{tpu_custom_call.1} parent=1 // pred_check_branch
      %249 = sbr.rel (0) target = $region117
    $region116: #{tpu_custom_call.1} parent=1 // pred_region
      %250 = dma.done [#allocation12], 32
    $region117: #{tpu_custom_call.1} parent=1 // pred_fallthru
      _
    // Predicated region
    $region118: #{tpu_custom_call.1} parent=1 // pred_check
      _
    $region119: #{tpu_custom_call.1} parent=1 // pred_check_branch
      %252 = sbr.rel (0) target = $region121
    $region120: #{tpu_custom_call.1} parent=1 // pred_region
      %253 = dma.done [#allocation12], 4096
    $region121: #{tpu_custom_call.1} parent=1 // pred_fallthru
      _
    // Predicated region
    $region122: #{tpu_custom_call.1} parent=1 // pred_check
      _
    $region123: #{tpu_custom_call.1} parent=1 // pred_check_branch
      %255 = sbr.rel (0) target = $region125
    $region124: #{tpu_custom_call.1} parent=1 // pred_region
      %256 = dma.done [#allocation15], 16
    $region125: #{tpu_custom_call.1} parent=1 // pred_fallthru
      _
    // Predicated region
    $region126: #{tpu_custom_call.1} parent=1 // pred_check
      _
    $region127: #{tpu_custom_call.1} parent=1 // pred_check_branch
      %258 = sbr.rel (0) target = $region129
    $region128: #{tpu_custom_call.1} parent=1 // pred_region
      %259 = dma.done [#allocation15], 16
    $region129: #{tpu_custom_call.1} parent=1 // pred_fallthru
      _
    // Predicated region
    $region130: #{tpu_custom_call.1} parent=1 // pred_check
      _
    $region131: #{tpu_custom_call.1} parent=1 // pred_check_branch
      %261 = sbr.rel (0) target = $region133
    $region132: #{tpu_custom_call.1} parent=1 // pred_region
      %262 = dma.done [#allocation18], 8192
    $region133: #{tpu_custom_call.1} parent=1 // pred_fallthru
      _
    // Predicated region
    $region134: #{tpu_custom_call.1} parent=1 // pred_check
      _
    $region135: #{tpu_custom_call.1} parent=1 // pred_check_branch
      %264 = sbr.rel (0) target = $region137
    $region136: #{tpu_custom_call.1} parent=1 // pred_region
      %265 = dma.done [#allocation18], 256
    $region137: #{tpu_custom_call.1} parent=1 // pred_fallthru
      _
    // Predicated region
    $region138: #{tpu_custom_call.1} parent=1 // pred_check
      _
    $region139: #{tpu_custom_call.1} parent=1 // pred_check_branch
      %267 = sbr.rel (0) target = $region141
    $region140: #{tpu_custom_call.1} parent=1 // pred_region
      %268 = dma.done [#allocation21], 131072
    $region141: #{tpu_custom_call.1} parent=1 // pred_fallthru
      _
    // Predicated region
    $region142: #{tpu_custom_call.1} parent=1 // pred_check
      _
    $region143: #{tpu_custom_call.1} parent=1 // pred_check_branch
      %270 = sbr.rel (0) target = $region145
    $region144: #{tpu_custom_call.1} parent=1 // pred_region
      %271 = dma.done [#allocation21], 128
    $region145: #{tpu_custom_call.1} parent=1 // pred_fallthru
      _
    // Predicated region
    $region146: #{tpu_custom_call.1} parent=1 // pred_check
      _
    $region147: #{tpu_custom_call.1} parent=1 // pred_check_branch
      %273 = sbr.rel (0) target = $region149
    $region148: #{tpu_custom_call.1} parent=1 // pred_region
      %274 = dma.done [#allocation24], 16384
    $region149: #{tpu_custom_call.1} parent=1 // pred_fallthru
      _
    // Predicated region
    $region150: #{tpu_custom_call.1} parent=1 // pred_check
      _
    $region151: #{tpu_custom_call.1} parent=1 // pred_check_branch
      %276 = sbr.rel (0) target = $region153
    $region152: #{tpu_custom_call.1} parent=1 // pred_region
      %277 = dma.done [#allocation24], 32
    $region153: #{tpu_custom_call.1} parent=1 // pred_fallthru
      _
    // Predicated region
    $region154: #{tpu_custom_call.1} parent=1 // pred_check
      _
    $region155: #{tpu_custom_call.1} parent=1 // pred_check_branch
      %279 = sbr.rel (0) target = $region157
    $region156: #{tpu_custom_call.1} parent=1 // pred_region
      %280 = dma.done [#allocation27], 16
    $region157: #{tpu_custom_call.1} parent=1 // pred_fallthru
      _
    // Predicated region
    $region158: #{tpu_custom_call.1} parent=1 // pred_check
      _
    $region159: #{tpu_custom_call.1} parent=1 // pred_check_branch
      %282 = sbr.rel (0) target = $region161
    $region160: #{tpu_custom_call.1} parent=1 // pred_region
      %283 = dma.done [#allocation27], 16
    $region161: #{tpu_custom_call.1} parent=1 // pred_fallthru
      _
    %v285 = vld [vmem:[#allocation3] sm:$0xff]
    %v286 = vld [vmem:[%s1] sm:$0xff]
    %v287 = vld [vmem:[%s1 + $0x8] sm:$0xff]
    %v288 = vld [vmem:[%s1 + $0x10] sm:$0xff]
    %v289 = vld [vmem:[%s1 + $0x18] sm:$0xff]
    %v290 = vld [vmem:[%s1 + $0x20] sm:$0xff]
    %v291 = vld [vmem:[%s1 + $0x28] sm:$0xff]
    %v292 = vld [vmem:[%s1 + $0x30] sm:$0xff]
    %v293 = vld [vmem:[%s1 + $0x38] sm:$0xff]
    %v294 = vld [vmem:[%s1 + $0x40] sm:$0xff]
    %v295 = vld [vmem:[%s1 + $0x48] sm:$0xff]
    %v296 = vld [vmem:[%s1 + $0x50] sm:$0xff]
    %v297 = vld [vmem:[%s1 + $0x58] sm:$0xff]
    %v298 = vld [vmem:[%s1 + $0x60] sm:$0xff]
    %v299 = vld [vmem:[%s1 + $0x68] sm:$0xff]
    %v300 = vld [vmem:[%s1 + $0x70] sm:$0xff]
    %v301 = vld [vmem:[%s1 + $0x78] sm:$0xff]
    %v302 = vld [vmem:[%s1 + $0x80] sm:$0xff]
    %v303 = vld [vmem:[%s1 + $0x88] sm:$0xff]
    %v304 = vld [vmem:[%s1 + $0x90] sm:$0xff]
    %v305 = vld [vmem:[%s1 + $0x98] sm:$0xff]
    %v306 = vld [vmem:[%s1 + $0xa0] sm:$0xff]
    %v307 = vld [vmem:[%s1 + $0xa8] sm:$0xff]
    %v308 = vld [vmem:[%s1 + $0xb0] sm:$0xff]
    %v309 = vld [vmem:[%s1 + $0xb8] sm:$0xff]
    %v310 = vld [vmem:[%s1 + $0xc0] sm:$0xff]
    %v311 = vld [vmem:[%s1 + $0xc8] sm:$0xff]
    %v312 = vld [vmem:[%s1 + $0xd0] sm:$0xff]
    %v313 = vld [vmem:[%s1 + $0xd8] sm:$0xff]
    %v314 = vld [vmem:[%s1 + $0xe0] sm:$0xff]
    %v315 = vld [vmem:[%s1 + $0xe8] sm:$0xff]
    %v316 = vld [vmem:[%s1 + $0xf0] sm:$0xff]
    %v317 = vld [vmem:[%s1 + $0xf8] sm:$0xff]
    %v318 = vld [vmem:[%s1 + $0x100] sm:$0xff]
    %v319 = vld [vmem:[%s1 + $0x108] sm:$0xff]
    %v320 = vld [vmem:[%s1 + $0x110] sm:$0xff]
    %v321 = vld [vmem:[%s1 + $0x118] sm:$0xff]
    %v322 = vld [vmem:[%s1 + $0x120] sm:$0xff]
    %v323 = vld [vmem:[%s1 + $0x128] sm:$0xff]
    %v324 = vld [vmem:[%s1 + $0x130] sm:$0xff]
    %v325 = vld [vmem:[%s1 + $0x138] sm:$0xff]
    %v326 = vld [vmem:[%s1 + $0x140] sm:$0xff]
    %v327 = vld [vmem:[%s1 + $0x148] sm:$0xff]
    %v328 = vld [vmem:[%s1 + $0x150] sm:$0xff]
    %v329 = vld [vmem:[%s1 + $0x158] sm:$0xff]
    %v330 = vld [vmem:[%s1 + $0x160] sm:$0xff]
    %v331 = vld [vmem:[%s1 + $0x168] sm:$0xff]
    %v332 = vld [vmem:[%s1 + $0x170] sm:$0xff]
    %v333 = vld [vmem:[%s1 + $0x178] sm:$0xff]
    %v334 = vld [vmem:[%s1 + $0x180] sm:$0xff]
    %v335 = vld [vmem:[%s1 + $0x188] sm:$0xff]
    %v336 = vld [vmem:[%s1 + $0x190] sm:$0xff]
    %v337 = vld [vmem:[%s1 + $0x198] sm:$0xff]
    %v338 = vld [vmem:[%s1 + $0x1a0] sm:$0xff]
    %v339 = vld [vmem:[%s1 + $0x1a8] sm:$0xff]
    %v340 = vld [vmem:[%s1 + $0x1b0] sm:$0xff]
    %v341 = vld [vmem:[%s1 + $0x1b8] sm:$0xff]
    %v342 = vld [vmem:[%s1 + $0x1c0] sm:$0xff]
    %v343 = vld [vmem:[%s1 + $0x1c8] sm:$0xff]
    %v344 = vld [vmem:[%s1 + $0x1d0] sm:$0xff]
    %v345 = vld [vmem:[%s1 + $0x1d8] sm:$0xff]
    %v346 = vld [vmem:[%s1 + $0x1e0] sm:$0xff]
    %v347 = vld [vmem:[%s1 + $0x1e8] sm:$0xff]
    %v348 = vld [vmem:[%s1 + $0x1f0] sm:$0xff]
    %v349 = vld [vmem:[%s1 + $0x1f8] sm:$0xff]
    %v350 = vld [vmem:[#allocation5] sm:$0x1]
    %v352 = vlaneseq
    %v353 = vshrl.u32 %v352, 7
    %v354 = vsub.s32 0, %v353
    %v355 = vrot.slane %v350, %v354
    %v358 = vcombine.high %v285, %v285
    %v360 = vunpack.c.l.s4 1983009808
    %v361 = vunpack.c.0.s8 %v360
    %v362 = vlaneseq
    %v363 = vshrl.u32 %v362, 7
    %v364 = vsub.s32 %v361, %v363
    %v365 = vrot.slane %v285, %v364
    %v367 = vunpack.c.l.s4 1983009808
    %v368 = vunpack.c.0.s8 %v367
    %v369 = vlaneseq
    %v370 = vshrl.u32 %v369, 7
    %v371 = vsub.s32 %v368, %v370
    %v372 = vrot.slane %v358, %v371
    %v373 = vcombine.high %v365, %v365
    %v374 = vcombine.high %v372, %v372
    %379 = vmatprep.subr.mxu0 0.0
    %380 = vmatpush1.msra.mxu0 %v286
    %381 = vmatprep.subr.mxu0 0.0
    %382 = vmatpush1.msra.mxu0 %v287
    %383 = vmatprep.subr.mxu0 0.0
    %384 = vmatpush1.msra.mxu0 %v288
    %385 = vmatprep.subr.mxu0 0.0
    %386 = vmatpush1.msra.mxu0 %v289
    %387 = vmatprep.subr.mxu0 0.0
    %388 = vmatpush1.msra.mxu0 %v290
    %389 = vmatprep.subr.mxu0 0.0
    %390 = vmatpush1.msra.mxu0 %v291
    %391 = vmatprep.subr.mxu0 0.0
    %392 = vmatpush1.msra.mxu0 %v292
    %393 = vmatprep.subr.mxu0 0.0
    %394 = vmatpush1.msra.mxu0 %v293
    %395 = vmatprep.subr.mxu0 0.0
    %396 = vmatpush1.msra.mxu0 %v294
    %397 = vmatprep.subr.mxu0 0.0
    %398 = vmatpush1.msra.mxu0 %v295
    %399 = vmatprep.subr.mxu0 0.0
    %400 = vmatpush1.msra.mxu0 %v296
    %401 = vmatprep.subr.mxu0 0.0
    %402 = vmatpush1.msra.mxu0 %v297
    %403 = vmatprep.subr.mxu0 0.0
    %404 = vmatpush1.msra.mxu0 %v298
    %405 = vmatprep.subr.mxu0 0.0
    %406 = vmatpush1.msra.mxu0 %v299
    %407 = vmatprep.subr.mxu0 0.0
    %408 = vmatpush1.msra.mxu0 %v300
    %409 = vmatprep.subr.mxu0 0.0
    %410 = vmatpush1.msra.mxu0 %v301
    %411 = vmatprep.subr.mxu0 0.0
    %412 = vmatpush1.msra.mxu0 %v302
    %413 = vmatprep.subr.mxu0 0.0
    %414 = vmatpush1.msra.mxu0 %v303
    %415 = vmatprep.subr.mxu0 0.0
    %416 = vmatpush1.msra.mxu0 %v304
    %417 = vmatprep.subr.mxu0 0.0
    %418 = vmatpush1.msra.mxu0 %v305
    %419 = vmatprep.subr.mxu0 0.0
    %420 = vmatpush1.msra.mxu0 %v306
    %421 = vmatprep.subr.mxu0 0.0
    %422 = vmatpush1.msra.mxu0 %v307
    %423 = vmatprep.subr.mxu0 0.0
    %424 = vmatpush1.msra.mxu0 %v308
    %425 = vmatprep.subr.mxu0 0.0
    %426 = vmatpush1.msra.mxu0 %v309
    %427 = vmatprep.subr.mxu0 0.0
    %428 = vmatpush1.msra.mxu0 %v310
    %429 = vmatprep.subr.mxu0 0.0
    %430 = vmatpush1.msra.mxu0 %v311
    %431 = vmatprep.subr.mxu0 0.0
    %432 = vmatpush1.msra.mxu0 %v312
    %433 = vmatprep.subr.mxu0 0.0
    %434 = vmatpush1.msra.mxu0 %v313
    %435 = vmatprep.subr.mxu0 0.0
    %436 = vmatpush1.msra.mxu0 %v314
    %437 = vmatprep.subr.mxu0 0.0
    %438 = vmatpush1.msra.mxu0 %v315
    %439 = vmatprep.subr.mxu0 0.0
    %440 = vmatpush1.msra.mxu0 %v316
    %441 = vmatprep.subr.mxu0 0.0
    %442 = vmatpush1.msra.mxu0 %v317
    %443 = vmatprep.mubr.f32.mxu0 %v373
    %444 = vmatmul.mubr.f32.gmra.mrb[0].mxu0 %v365
    %v445 = vpop.f32.mrb[0].mxu0
    %v446 = vadd.f32 %v355, %v445
    %v447 = vpop.f32.mrb[0].mxu0
    %448 = vdwg.mxu0
    %449 = vmatprep.subr.mxu0 0.0
    %450 = vmatpush1.msra.mxu0 %v318
    %451 = vmatprep.subr.mxu0 0.0
    %452 = vmatpush1.msra.mxu0 %v319
    %453 = vmatprep.subr.mxu0 0.0
    %454 = vmatpush1.msra.mxu0 %v320
    %455 = vmatprep.subr.mxu0 0.0
    %456 = vmatpush1.msra.mxu0 %v321
    %457 = vmatprep.subr.mxu0 0.0
    %458 = vmatpush1.msra.mxu0 %v322
    %459 = vmatprep.subr.mxu0 0.0
    %460 = vmatpush1.msra.mxu0 %v323
    %461 = vmatprep.subr.mxu0 0.0
    %462 = vmatpush1.msra.mxu0 %v324
    %463 = vmatprep.subr.mxu0 0.0
    %464 = vmatpush1.msra.mxu0 %v325
    %465 = vmatprep.subr.mxu0 0.0
    %466 = vmatpush1.msra.mxu0 %v326
    %467 = vmatprep.subr.mxu0 0.0
    %468 = vmatpush1.msra.mxu0 %v327
    %469 = vmatprep.subr.mxu0 0.0
    %470 = vmatpush1.msra.mxu0 %v328
    %471 = vmatprep.subr.mxu0 0.0
    %472 = vmatpush1.msra.mxu0 %v329
    %473 = vmatprep.subr.mxu0 0.0
    %474 = vmatpush1.msra.mxu0 %v330
    %475 = vmatprep.subr.mxu0 0.0
    %476 = vmatpush1.msra.mxu0 %v331
    %477 = vmatprep.subr.mxu0 0.0
    %478 = vmatpush1.msra.mxu0 %v332
    %479 = vmatprep.subr.mxu0 0.0
    %480 = vmatpush1.msra.mxu0 %v333
    %481 = vmatprep.subr.mxu0 0.0
    %482 = vmatpush1.msra.mxu0 %v334
    %483 = vmatprep.subr.mxu0 0.0
    %484 = vmatpush1.msra.mxu0 %v335
    %485 = vmatprep.subr.mxu0 0.0
    %486 = vmatpush1.msra.mxu0 %v336
    %487 = vmatprep.subr.mxu0 0.0
    %488 = vmatpush1.msra.mxu0 %v337
    %489 = vmatprep.subr.mxu0 0.0
    %490 = vmatpush1.msra.mxu0 %v338
    %491 = vmatprep.subr.mxu0 0.0
    %492 = vmatpush1.msra.mxu0 %v339
    %493 = vmatprep.subr.mxu0 0.0
    %494 = vmatpush1.msra.mxu0 %v340
    %495 = vmatprep.subr.mxu0 0.0
    %496 = vmatpush1.msra.mxu0 %v341
    %497 = vmatprep.subr.mxu0 0.0
    %498 = vmatpush1.msra.mxu0 %v342
    %499 = vmatprep.subr.mxu0 0.0
    %500 = vmatpush1.msra.mxu0 %v343
    %501 = vmatprep.subr.mxu0 0.0
    %502 = vmatpush1.msra.mxu0 %v344
    %503 = vmatprep.subr.mxu0 0.0
    %504 = vmatpush1.msra.mxu0 %v345
    %505 = vmatprep.subr.mxu0 0.0
    %506 = vmatpush1.msra.mxu0 %v346
    %507 = vmatprep.subr.mxu0 0.0
    %508 = vmatpush1.msra.mxu0 %v347
    %509 = vmatprep.subr.mxu0 0.0
    %510 = vmatpush1.msra.mxu0 %v348
    %511 = vmatprep.subr.mxu0 0.0
    %512 = vmatpush1.msra.mxu0 %v349
    %513 = vmatprep.mubr.f32.mxu0 %v374
    %514 = vmatmul.mubr.f32.gmra.mrb[0].mxu0 %v372
    %v515 = vpop.f32.mrb[0].mxu0
    %v516 = vadd.f32 %v446, %v515
    %v517 = vpop.f32.mrb[0].mxu0
    %518 = vdwg.mxu0
    %v519 = vmax.f32 %v516, 0.0
    %v520 = vld [vmem:[#allocation7] sm:$0xff]
    %v521 = vld [vmem:[#allocation7 + $0x8] sm:$0xff]
    %v522 = vld [vmem:[#allocation7 + $0x10] sm:$0xff]
    %v523 = vld [vmem:[#allocation7 + $0x18] sm:$0xff]
    %v524 = vld [vmem:[#allocation7 + $0x20] sm:$0xff]
    %v525 = vld [vmem:[#allocation7 + $0x28] sm:$0xff]
    %v526 = vld [vmem:[#allocation7 + $0x30] sm:$0xff]
    %v527 = vld [vmem:[#allocation7 + $0x38] sm:$0xff]
    %v528 = vld [vmem:[#allocation8] sm:$0x1]
    %v530 = vlaneseq
    %v531 = vshrl.u32 %v530, 7
    %v532 = vsub.s32 0, %v531
    %v533 = vrot.slane %v528, %v532
    %vm535 = vcmask 523264
    %v537 = vsel %vm535, %v519, 0
    %539 = vmatprep.subr.mxu0 0.0
    %540 = vmatpush1.msra.mxu0 %v520
    %541 = vmatprep.subr.mxu0 0.0
    %542 = vmatpush1.msra.mxu0 %v521
    %543 = vmatprep.subr.mxu0 0.0
    %544 = vmatpush1.msra.mxu0 %v522
    %545 = vmatprep.subr.mxu0 0.0
    %546 = vmatpush1.msra.mxu0 %v523
    %547 = vmatprep.subr.mxu0 0.0
    %548 = vmatpush1.msra.mxu0 %v524
    %549 = vmatprep.subr.mxu0 0.0
    %550 = vmatpush1.msra.mxu0 %v525
    %551 = vmatprep.subr.mxu0 0.0
    %552 = vmatpush1.msra.mxu0 %v526
    %553 = vmatprep.subr.mxu0 0.0
    %554 = vmatpush1.msra.mxu0 %v527
    %555 = vmatprep.subr.mxu0 0.0
    %556 = vmatpush1.msra.mxu0 0.0
    %557 = vmatprep.subr.mxu0 0.0
    %558 = vmatpush1.msra.mxu0 0.0
    %559 = vmatprep.subr.mxu0 0.0
    %560 = vmatpush1.msra.mxu0 0.0
    %561 = vmatprep.subr.mxu0 0.0
    %562 = vmatpush1.msra.mxu0 0.0
    %563 = vmatprep.subr.mxu0 0.0
    %564 = vmatpush1.msra.mxu0 0.0
    %565 = vmatprep.subr.mxu0 0.0
    %566 = vmatpush1.msra.mxu0 0.0
    %567 = vmatprep.subr.mxu0 0.0
    %568 = vmatpush1.msra.mxu0 0.0
    %569 = vmatprep.subr.mxu0 0.0
    %570 = vmatpush1.msra.mxu0 0.0
    %571 = vmatprep.subr.mxu0 0.0
    %572 = vmatpush1.msra.mxu0 0.0
    %573 = vmatprep.subr.mxu0 0.0
    %574 = vmatpush1.msra.mxu0 0.0
    %575 = vmatprep.subr.mxu0 0.0
    %576 = vmatpush1.msra.mxu0 0.0
    %577 = vmatprep.subr.mxu0 0.0
    %578 = vmatpush1.msra.mxu0 0.0
    %579 = vmatprep.subr.mxu0 0.0
    %580 = vmatpush1.msra.mxu0 0.0
    %581 = vmatprep.subr.mxu0 0.0
    %582 = vmatpush1.msra.mxu0 0.0
    %583 = vmatprep.subr.mxu0 0.0
    %584 = vmatpush1.msra.mxu0 0.0
    %585 = vmatprep.subr.mxu0 0.0
    %586 = vmatpush1.msra.mxu0 0.0
    %587 = vmatprep.subr.mxu0 0.0
    %588 = vmatpush1.msra.mxu0 0.0
    %589 = vmatprep.subr.mxu0 0.0
    %590 = vmatpush1.msra.mxu0 0.0
    %591 = vmatprep.subr.mxu0 0.0
    %592 = vmatpush1.msra.mxu0 0.0
    %593 = vmatprep.subr.mxu0 0.0
    %594 = vmatpush1.msra.mxu0 0.0
    %595 = vmatprep.subr.mxu0 0.0
    %596 = vmatpush1.msra.mxu0 0.0
    %597 = vmatprep.subr.mxu0 0.0
    %598 = vmatpush1.msra.mxu0 0.0
    %599 = vmatprep.subr.mxu0 0.0
    %600 = vmatpush1.msra.mxu0 0.0
    %601 = vmatprep.subr.mxu0 0.0
    %602 = vmatpush1.msra.mxu0 0.0
    %603 = vmatprep.mubr.f32.mxu0 0.0
    %604 = vmatmul.mubr.f32.gmra.mrb[0].mxu0 %v537
    %v605 = vpop.f32.mrb[0].mxu0
    %v606 = vadd.f32 %v533, %v605
    %v607 = vpop.f32.mrb[0].mxu0
    %608 = vdwg.mxu0
    %vm609 = vcmp.ge.f32.partialorder %v606, 0.0
    %v610 = vmul.f32 %v606, 0.01
    %v611 = vsel %vm609, %v606, %v610
    %v612 = vld [vmem:[#allocation10] sm:$0xff]
    %v613 = vld [vmem:[#allocation10 + $0x8] sm:$0xff]
    %v614 = vld [vmem:[#allocation10 + $0x10] sm:$0xff]
    %v615 = vld [vmem:[#allocation10 + $0x18] sm:$0xff]
    %v616 = vld [vmem:[#allocation10 + $0x20] sm:$0xff]
    %v617 = vld [vmem:[#allocation10 + $0x28] sm:$0xff]
    %v618 = vld [vmem:[#allocation10 + $0x30] sm:$0xff]
    %v619 = vld [vmem:[#allocation10 + $0x38] sm:$0xff]
    %v620 = vld [vmem:[#allocation10 + $0x40] sm:$0xff]
    %v621 = vld [vmem:[#allocation10 + $0x48] sm:$0xff]
    %v622 = vld [vmem:[#allocation10 + $0x50] sm:$0xff]
    %v623 = vld [vmem:[#allocation10 + $0x58] sm:$0xff]
    %v624 = vld [vmem:[#allocation10 + $0x60] sm:$0xff]
    %v625 = vld [vmem:[#allocation10 + $0x68] sm:$0xff]
    %v626 = vld [vmem:[#allocation10 + $0x70] sm:$0xff]
    %v627 = vld [vmem:[#allocation10 + $0x78] sm:$0xff]
    %v628 = vld [vmem:[#allocation10 + $0x80] sm:$0xff]
    %v629 = vld [vmem:[#allocation10 + $0x88] sm:$0xff]
    %v630 = vld [vmem:[#allocation10 + $0x90] sm:$0xff]
    %v631 = vld [vmem:[#allocation10 + $0x98] sm:$0xff]
    %v632 = vld [vmem:[#allocation10 + $0xa0] sm:$0xff]
    %v633 = vld [vmem:[#allocation10 + $0xa8] sm:$0xff]
    %v634 = vld [vmem:[#allocation10 + $0xb0] sm:$0xff]
    %v635 = vld [vmem:[#allocation10 + $0xb8] sm:$0xff]
    %v636 = vld [vmem:[#allocation10 + $0xc0] sm:$0xff]
    %v637 = vld [vmem:[#allocation10 + $0xc8] sm:$0xff]
    %v638 = vld [vmem:[#allocation10 + $0xd0] sm:$0xff]
    %v639 = vld [vmem:[#allocation10 + $0xd8] sm:$0xff]
    %v640 = vld [vmem:[#allocation10 + $0xe0] sm:$0xff]
    %v641 = vld [vmem:[#allocation10 + $0xe8] sm:$0xff]
    %v642 = vld [vmem:[#allocation10 + $0xf0] sm:$0xff]
    %v643 = vld [vmem:[#allocation10 + $0xf8] sm:$0xff]
    %v644 = vld [vmem:[#allocation11] sm:$0x3]
    %v646 = vlaneseq
    %v647 = vshrl.u32 %v646, 7
    %v648 = vsub.s32 0, %v647
    %v649 = vrot.slane %v644, %v648
    %v650 = vlaneseq
    %v651 = vshrl.u32 %v650, 7
    %v652 = vsub.s32 1, %v651
    %v653 = vrot.slane %v644, %v652
    %656 = vmatprep.subr.mxu0 %v613
    %657 = vmatpush1.msra.mxu0 %v612
    %658 = vmatprep.subr.mxu0 %v615
    %659 = vmatpush1.msra.mxu0 %v614
    %660 = vmatprep.subr.mxu0 %v617
    %661 = vmatpush1.msra.mxu0 %v616
    %662 = vmatprep.subr.mxu0 %v619
    %663 = vmatpush1.msra.mxu0 %v618
    %664 = vmatprep.subr.mxu0 %v621
    %665 = vmatpush1.msra.mxu0 %v620
    %666 = vmatprep.subr.mxu0 %v623
    %667 = vmatpush1.msra.mxu0 %v622
    %668 = vmatprep.subr.mxu0 %v625
    %669 = vmatpush1.msra.mxu0 %v624
    %670 = vmatprep.subr.mxu0 %v627
    %671 = vmatpush1.msra.mxu0 %v626
    %672 = vmatprep.subr.mxu0 %v629
    %673 = vmatpush1.msra.mxu0 %v628
    %674 = vmatprep.subr.mxu0 %v631
    %675 = vmatpush1.msra.mxu0 %v630
    %676 = vmatprep.subr.mxu0 %v633
    %677 = vmatpush1.msra.mxu0 %v632
    %678 = vmatprep.subr.mxu0 %v635
    %679 = vmatpush1.msra.mxu0 %v634
    %680 = vmatprep.subr.mxu0 %v637
    %681 = vmatpush1.msra.mxu0 %v636
    %682 = vmatprep.subr.mxu0 %v639
    %683 = vmatpush1.msra.mxu0 %v638
    %684 = vmatprep.subr.mxu0 %v641
    %685 = vmatpush1.msra.mxu0 %v640
    %686 = vmatprep.subr.mxu0 %v643
    %687 = vmatpush1.msra.mxu0 %v642
    %688 = vmatprep.subr.mxu0 0.0
    %689 = vmatpush1.msra.mxu0 0.0
    %690 = vmatprep.subr.mxu0 0.0
    %691 = vmatpush1.msra.mxu0 0.0
    %692 = vmatprep.subr.mxu0 0.0
    %693 = vmatpush1.msra.mxu0 0.0
    %694 = vmatprep.subr.mxu0 0.0
    %695 = vmatpush1.msra.mxu0 0.0
    %696 = vmatprep.subr.mxu0 0.0
    %697 = vmatpush1.msra.mxu0 0.0
    %698 = vmatprep.subr.mxu0 0.0
    %699 = vmatpush1.msra.mxu0 0.0
    %700 = vmatprep.subr.mxu0 0.0
    %701 = vmatpush1.msra.mxu0 0.0
    %702 = vmatprep.subr.mxu0 0.0
    %703 = vmatpush1.msra.mxu0 0.0
    %704 = vmatprep.subr.mxu0 0.0
    %705 = vmatpush1.msra.mxu0 0.0
    %706 = vmatprep.subr.mxu0 0.0
    %707 = vmatpush1.msra.mxu0 0.0
    %708 = vmatprep.subr.mxu0 0.0
    %709 = vmatpush1.msra.mxu0 0.0
    %710 = vmatprep.subr.mxu0 0.0
    %711 = vmatpush1.msra.mxu0 0.0
    %712 = vmatprep.subr.mxu0 0.0
    %713 = vmatpush1.msra.mxu0 0.0
    %714 = vmatprep.subr.mxu0 0.0
    %715 = vmatpush1.msra.mxu0 0.0
    %716 = vmatprep.subr.mxu0 0.0
    %717 = vmatpush1.msra.mxu0 0.0
    %718 = vmatprep.subr.mxu0 0.0
    %719 = vmatpush1.msra.mxu0 0.0
    %720 = vmatprep.mubr.f32.mxu0 0.0
    %721 = vmatmul.mubr.f32.gmra.mrb[0].mxu0 %v611
    %v722 = vpop.f32.mrb[0].mxu0
    %v723 = vadd.f32 %v649, %v722
    %v724 = vpop.f32.mrb[0].mxu0
    %v725 = vadd.f32 %v653, %v724
    %726 = vdwg.mxu0
    %vm727 = vcmp.ge.f32.partialorder %v723, 0.0
    %vm728 = vcmp.ge.f32.partialorder %v725, 0.0
    %v729 = vmul.f32 %v723, 0.01
    %v730 = vmul.f32 %v725, 0.01
    %v731 = vsel %vm727, %v723, %v729
    %v732 = vsel %vm728, %v725, %v730
    %v733 = vld [vmem:[#allocation13] sm:$0xff]
    %v734 = vld [vmem:[#allocation13 + $0x8] sm:$0xff]
    %v735 = vld [vmem:[#allocation13 + $0x10] sm:$0xff]
    %v736 = vld [vmem:[#allocation13 + $0x18] sm:$0xff]
    %v737 = vld [vmem:[#allocation13 + $0x20] sm:$0xff]
    %v738 = vld [vmem:[#allocation13 + $0x28] sm:$0xff]
    %v739 = vld [vmem:[#allocation13 + $0x30] sm:$0xff]
    %v740 = vld [vmem:[#allocation13 + $0x38] sm:$0xff]
    %v741 = vld [vmem:[#allocation13 + $0x40] sm:$0xff]
    %v742 = vld [vmem:[#allocation13 + $0x48] sm:$0xff]
    %v743 = vld [vmem:[#allocation13 + $0x50] sm:$0xff]
    %v744 = vld [vmem:[#allocation13 + $0x58] sm:$0xff]
    %v745 = vld [vmem:[#allocation13 + $0x60] sm:$0xff]
    %v746 = vld [vmem:[#allocation13 + $0x68] sm:$0xff]
    %v747 = vld [vmem:[#allocation13 + $0x70] sm:$0xff]
    %v748 = vld [vmem:[#allocation13 + $0x78] sm:$0xff]
    %v749 = vld [vmem:[#allocation13 + $0x80] sm:$0xff]
    %v750 = vld [vmem:[#allocation13 + $0x88] sm:$0xff]
    %v751 = vld [vmem:[#allocation13 + $0x90] sm:$0xff]
    %v752 = vld [vmem:[#allocation13 + $0x98] sm:$0xff]
    %v753 = vld [vmem:[#allocation13 + $0xa0] sm:$0xff]
    %v754 = vld [vmem:[#allocation13 + $0xa8] sm:$0xff]
    %v755 = vld [vmem:[#allocation13 + $0xb0] sm:$0xff]
    %v756 = vld [vmem:[#allocation13 + $0xb8] sm:$0xff]
    %v757 = vld [vmem:[#allocation13 + $0xc0] sm:$0xff]
    %v758 = vld [vmem:[#allocation13 + $0xc8] sm:$0xff]
    %v759 = vld [vmem:[#allocation13 + $0xd0] sm:$0xff]
    %v760 = vld [vmem:[#allocation13 + $0xd8] sm:$0xff]
    %v761 = vld [vmem:[#allocation13 + $0xe0] sm:$0xff]
    %v762 = vld [vmem:[#allocation13 + $0xe8] sm:$0xff]
    %v763 = vld [vmem:[#allocation13 + $0xf0] sm:$0xff]
    %v764 = vld [vmem:[#allocation13 + $0xf8] sm:$0xff]
    %v765 = vld [vmem:[#allocation14] sm:$0x1]
    %v767 = vlaneseq
    %v768 = vshrl.u32 %v767, 7
    %v769 = vsub.s32 0, %v768
    %v770 = vrot.slane %v765, %v769
    %772 = vmatprep.subr.mxu0 0.0
    %773 = vmatpush1.msra.mxu0 %v733
    %774 = vmatprep.subr.mxu0 0.0
    %775 = vmatpush1.msra.mxu0 %v734
    %776 = vmatprep.subr.mxu0 0.0
    %777 = vmatpush1.msra.mxu0 %v735
    %778 = vmatprep.subr.mxu0 0.0
    %779 = vmatpush1.msra.mxu0 %v736
    %780 = vmatprep.subr.mxu0 0.0
    %781 = vmatpush1.msra.mxu0 %v737
    %782 = vmatprep.subr.mxu0 0.0
    %783 = vmatpush1.msra.mxu0 %v738
    %784 = vmatprep.subr.mxu0 0.0
    %785 = vmatpush1.msra.mxu0 %v739
    %786 = vmatprep.subr.mxu0 0.0
    %787 = vmatpush1.msra.mxu0 %v740
    %788 = vmatprep.subr.mxu0 0.0
    %789 = vmatpush1.msra.mxu0 %v741
    %790 = vmatprep.subr.mxu0 0.0
    %791 = vmatpush1.msra.mxu0 %v742
    %792 = vmatprep.subr.mxu0 0.0
    %793 = vmatpush1.msra.mxu0 %v743
    %794 = vmatprep.subr.mxu0 0.0
    %795 = vmatpush1.msra.mxu0 %v744
    %796 = vmatprep.subr.mxu0 0.0
    %797 = vmatpush1.msra.mxu0 %v745
    %798 = vmatprep.subr.mxu0 0.0
    %799 = vmatpush1.msra.mxu0 %v746
    %800 = vmatprep.subr.mxu0 0.0
    %801 = vmatpush1.msra.mxu0 %v747
    %802 = vmatprep.subr.mxu0 0.0
    %803 = vmatpush1.msra.mxu0 %v748
    %804 = vmatprep.subr.mxu0 0.0
    %805 = vmatpush1.msra.mxu0 %v749
    %806 = vmatprep.subr.mxu0 0.0
    %807 = vmatpush1.msra.mxu0 %v750
    %808 = vmatprep.subr.mxu0 0.0
    %809 = vmatpush1.msra.mxu0 %v751
    %810 = vmatprep.subr.mxu0 0.0
    %811 = vmatpush1.msra.mxu0 %v752
    %812 = vmatprep.subr.mxu0 0.0
    %813 = vmatpush1.msra.mxu0 %v753
    %814 = vmatprep.subr.mxu0 0.0
    %815 = vmatpush1.msra.mxu0 %v754
    %816 = vmatprep.subr.mxu0 0.0
    %817 = vmatpush1.msra.mxu0 %v755
    %818 = vmatprep.subr.mxu0 0.0
    %819 = vmatpush1.msra.mxu0 %v756
    %820 = vmatprep.subr.mxu0 0.0
    %821 = vmatpush1.msra.mxu0 %v757
    %822 = vmatprep.subr.mxu0 0.0
    %823 = vmatpush1.msra.mxu0 %v758
    %824 = vmatprep.subr.mxu0 0.0
    %825 = vmatpush1.msra.mxu0 %v759
    %826 = vmatprep.subr.mxu0 0.0
    %827 = vmatpush1.msra.mxu0 %v760
    %828 = vmatprep.subr.mxu0 0.0
    %829 = vmatpush1.msra.mxu0 %v761
    %830 = vmatprep.subr.mxu0 0.0
    %831 = vmatpush1.msra.mxu0 %v762
    %832 = vmatprep.subr.mxu0 0.0
    %833 = vmatpush1.msra.mxu0 %v763
    %834 = vmatprep.subr.mxu0 0.0
    %835 = vmatpush1.msra.mxu0 %v764
    %836 = vmatprep.mubr.f32.mxu0 %v732
    %837 = vmatmul.mubr.f32.gmra.mrb[0].mxu0 %v731
    %v838 = vpop.f32.mrb[0].mxu0
    %v839 = vadd.f32 %v770, %v838
    %v840 = vpop.f32.mrb[0].mxu0
    %841 = vdwg.mxu0
    %vm842 = vcmp.ge.f32.partialorder %v839, 0.0
    %v843 = vmul.f32 %v839, 0.01
    %v844 = vsel %vm842, %v839, %v843
    %v845 = vld [vmem:[%s9] sm:$0xff]
    %v846 = vld [vmem:[%s9 + $0x8] sm:$0xff]
    %v847 = vld [vmem:[%s9 + $0x10] sm:$0xff]
    %v848 = vld [vmem:[%s9 + $0x18] sm:$0xff]
    %v849 = vld [vmem:[%s9 + $0x20] sm:$0xff]
    %v850 = vld [vmem:[%s9 + $0x28] sm:$0xff]
    %v851 = vld [vmem:[%s9 + $0x30] sm:$0xff]
    %v852 = vld [vmem:[%s9 + $0x38] sm:$0xff]
    %v853 = vld [vmem:[%s9 + $0x40] sm:$0xff]
    %v854 = vld [vmem:[%s9 + $0x48] sm:$0xff]
    %v855 = vld [vmem:[%s9 + $0x50] sm:$0xff]
    %v856 = vld [vmem:[%s9 + $0x58] sm:$0xff]
    %v857 = vld [vmem:[%s9 + $0x60] sm:$0xff]
    %v858 = vld [vmem:[%s9 + $0x68] sm:$0xff]
    %v859 = vld [vmem:[%s9 + $0x70] sm:$0xff]
    %v860 = vld [vmem:[%s9 + $0x78] sm:$0xff]
    %v861 = vld [vmem:[#allocation16] sm:$0x1]
    %v863 = vlaneseq
    %v864 = vshrl.u32 %v863, 7
    %v865 = vsub.s32 0, %v864
    %v866 = vrot.slane %v861, %v865
    %868 = vmatprep.subr.mxu0 0.0
    %869 = vmatpush1.msra.mxu0 %v845
    %870 = vmatprep.subr.mxu0 0.0
    %871 = vmatpush1.msra.mxu0 %v846
    %872 = vmatprep.subr.mxu0 0.0
    %873 = vmatpush1.msra.mxu0 %v847
    %874 = vmatprep.subr.mxu0 0.0
    %875 = vmatpush1.msra.mxu0 %v848
    %876 = vmatprep.subr.mxu0 0.0
    %877 = vmatpush1.msra.mxu0 %v849
    %878 = vmatprep.subr.mxu0 0.0
    %879 = vmatpush1.msra.mxu0 %v850
    %880 = vmatprep.subr.mxu0 0.0
    %881 = vmatpush1.msra.mxu0 %v851
    %882 = vmatprep.subr.mxu0 0.0
    %883 = vmatpush1.msra.mxu0 %v852
    %884 = vmatprep.subr.mxu0 0.0
    %885 = vmatpush1.msra.mxu0 %v853
    %886 = vmatprep.subr.mxu0 0.0
    %887 = vmatpush1.msra.mxu0 %v854
    %888 = vmatprep.subr.mxu0 0.0
    %889 = vmatpush1.msra.mxu0 %v855
    %890 = vmatprep.subr.mxu0 0.0
    %891 = vmatpush1.msra.mxu0 %v856
    %892 = vmatprep.subr.mxu0 0.0
    %893 = vmatpush1.msra.mxu0 %v857
    %894 = vmatprep.subr.mxu0 0.0
    %895 = vmatpush1.msra.mxu0 %v858
    %896 = vmatprep.subr.mxu0 0.0
    %897 = vmatpush1.msra.mxu0 %v859
    %898 = vmatprep.subr.mxu0 0.0
    %899 = vmatpush1.msra.mxu0 %v860
    %900 = vmatprep.subr.mxu0 0.0
    %901 = vmatpush1.msra.mxu0 0.0
    %902 = vmatprep.subr.mxu0 0.0
    %903 = vmatpush1.msra.mxu0 0.0
    %904 = vmatprep.subr.mxu0 0.0
    %905 = vmatpush1.msra.mxu0 0.0
    %906 = vmatprep.subr.mxu0 0.0
    %907 = vmatpush1.msra.mxu0 0.0
    %908 = vmatprep.subr.mxu0 0.0
    %909 = vmatpush1.msra.mxu0 0.0
    %910 = vmatprep.subr.mxu0 0.0
    %911 = vmatpush1.msra.mxu0 0.0
    %912 = vmatprep.subr.mxu0 0.0
    %913 = vmatpush1.msra.mxu0 0.0
    %914 = vmatprep.subr.mxu0 0.0
    %915 = vmatpush1.msra.mxu0 0.0
    %916 = vmatprep.subr.mxu0 0.0
    %917 = vmatpush1.msra.mxu0 0.0
    %918 = vmatprep.subr.mxu0 0.0
    %919 = vmatpush1.msra.mxu0 0.0
    %920 = vmatprep.subr.mxu0 0.0
    %921 = vmatpush1.msra.mxu0 0.0
    %922 = vmatprep.subr.mxu0 0.0
    %923 = vmatpush1.msra.mxu0 0.0
    %924 = vmatprep.subr.mxu0 0.0
    %925 = vmatpush1.msra.mxu0 0.0
    %926 = vmatprep.subr.mxu0 0.0
    %927 = vmatpush1.msra.mxu0 0.0
    %928 = vmatprep.subr.mxu0 0.0
    %929 = vmatpush1.msra.mxu0 0.0
    %930 = vmatprep.subr.mxu0 0.0
    %931 = vmatpush1.msra.mxu0 0.0
    %932 = vmatprep.mubr.f32.mxu0 0.0
    %933 = vmatmul.mubr.f32.gmra.mrb[0].mxu0 %v844
    %v934 = vpop.f32.mrb[0].mxu0
    %v935 = vadd.f32 %v866, %v934
    %v936 = vpop.f32.mrb[0].mxu0
    %937 = vdwg.mxu0
    %vm938 = vcmp.ge.f32.partialorder %v935, 0.0
    %v939 = vmul.f32 %v935, 0.01
    %v940 = vsel %vm938, %v935, %v939
    %v941 = vpack.c.bf16 %v940, %v940
    %v942 = vld [vmem:[#allocation17] sm:$0xff]
    %v943 = vld [vmem:[#allocation17 + $0x8] sm:$0xff]
    %v944 = vld [vmem:[#allocation17 + $0x10] sm:$0xff]
    %v945 = vld [vmem:[#allocation17 + $0x18] sm:$0xff]
    %v946 = vld [vmem:[#allocation17 + $0x20] sm:$0xff]
    %v947 = vld [vmem:[#allocation17 + $0x28] sm:$0xff]
    %v948 = vld [vmem:[#allocation17 + $0x30] sm:$0xff]
    %v949 = vld [vmem:[#allocation17 + $0x38] sm:$0xff]
    %v950 = vld [vmem:[#allocation17 + $0x40] sm:$0xff]
    %v951 = vld [vmem:[#allocation17 + $0x48] sm:$0xff]
    %v952 = vld [vmem:[#allocation17 + $0x50] sm:$0xff]
    %v953 = vld [vmem:[#allocation17 + $0x58] sm:$0xff]
    %v954 = vld [vmem:[#allocation17 + $0x60] sm:$0xff]
    %v955 = vld [vmem:[#allocation17 + $0x68] sm:$0xff]
    %v956 = vld [vmem:[#allocation17 + $0x70] sm:$0xff]
    %v957 = vld [vmem:[#allocation17 + $0x78] sm:$0xff]
    %v958 = vld [vmem:[#allocation17 + $0x80] sm:$0xff]
    %v959 = vld [vmem:[#allocation17 + $0x88] sm:$0xff]
    %v960 = vld [vmem:[#allocation17 + $0x90] sm:$0xff]
    %v961 = vld [vmem:[#allocation17 + $0x98] sm:$0xff]
    %v962 = vld [vmem:[#allocation17 + $0xa0] sm:$0xff]
    %v963 = vld [vmem:[#allocation17 + $0xa8] sm:$0xff]
    %v964 = vld [vmem:[#allocation17 + $0xb0] sm:$0xff]
    %v965 = vld [vmem:[#allocation17 + $0xb8] sm:$0xff]
    %v966 = vld [vmem:[#allocation17 + $0xc0] sm:$0xff]
    %v967 = vld [vmem:[#allocation17 + $0xc8] sm:$0xff]
    %v968 = vld [vmem:[#allocation17 + $0xd0] sm:$0xff]
    %v969 = vld [vmem:[#allocation17 + $0xd8] sm:$0xff]
    %v970 = vld [vmem:[#allocation17 + $0xe0] sm:$0xff]
    %v971 = vld [vmem:[#allocation17 + $0xe8] sm:$0xff]
    %v972 = vld [vmem:[#allocation17 + $0xf0] sm:$0xff]
    %v973 = vld [vmem:[#allocation17 + $0xf8] sm:$0xff]
    %v974 = vld [vmem:[#allocation17 + $0x100] sm:$0xff]
    %v975 = vld [vmem:[#allocation17 + $0x108] sm:$0xff]
    %v976 = vld [vmem:[#allocation17 + $0x110] sm:$0xff]
    %v977 = vld [vmem:[#allocation17 + $0x118] sm:$0xff]
    %v978 = vld [vmem:[#allocation17 + $0x120] sm:$0xff]
    %v979 = vld [vmem:[#allocation17 + $0x128] sm:$0xff]
    %v980 = vld [vmem:[#allocation17 + $0x130] sm:$0xff]
    %v981 = vld [vmem:[#allocation17 + $0x138] sm:$0xff]
    %v982 = vld [vmem:[#allocation17 + $0x140] sm:$0xff]
    %v983 = vld [vmem:[#allocation17 + $0x148] sm:$0xff]
    %v984 = vld [vmem:[#allocation17 + $0x150] sm:$0xff]
    %v985 = vld [vmem:[#allocation17 + $0x158] sm:$0xff]
    %v986 = vld [vmem:[#allocation17 + $0x160] sm:$0xff]
    %v987 = vld [vmem:[#allocation17 + $0x168] sm:$0xff]
    %v988 = vld [vmem:[#allocation17 + $0x170] sm:$0xff]
    %v989 = vld [vmem:[#allocation17 + $0x178] sm:$0xff]
    %v990 = vld [vmem:[#allocation17 + $0x180] sm:$0xff]
    %v991 = vld [vmem:[#allocation17 + $0x188] sm:$0xff]
    %v992 = vld [vmem:[#allocation17 + $0x190] sm:$0xff]
    %v993 = vld [vmem:[#allocation17 + $0x198] sm:$0xff]
    %v994 = vld [vmem:[#allocation17 + $0x1a0] sm:$0xff]
    %v995 = vld [vmem:[#allocation17 + $0x1a8] sm:$0xff]
    %v996 = vld [vmem:[#allocation17 + $0x1b0] sm:$0xff]
    %v997 = vld [vmem:[#allocation17 + $0x1b8] sm:$0xff]
    %v998 = vld [vmem:[#allocation17 + $0x1c0] sm:$0xff]
    %v999 = vld [vmem:[#allocation17 + $0x1c8] sm:$0xff]
    %v1000 = vld [vmem:[#allocation17 + $0x1d0] sm:$0xff]
    %v1001 = vld [vmem:[#allocation17 + $0x1d8] sm:$0xff]
    %v1002 = vld [vmem:[#allocation17 + $0x1e0] sm:$0xff]
    %v1003 = vld [vmem:[#allocation17 + $0x1e8] sm:$0xff]
    %v1004 = vld [vmem:[#allocation17 + $0x1f0] sm:$0xff]
    %v1005 = vld [vmem:[#allocation17 + $0x1f8] sm:$0xff]
    %v1006 = vld [vmem:[#allocation19] sm:$0xff]
    %v1007 = vld [vmem:[#allocation19 + $0x8] sm:$0xff]
    %v1010 = vlaneseq
    %v1011 = vshrl.u32 %v1010, 7
    %v1012 = vsub.s32 0, %v1011
    %v1013 = vrot.slane %v1006, %v1012
    %v1014 = vlaneseq
    %v1015 = vshrl.u32 %v1014, 7
    %v1016 = vsub.s32 1, %v1015
    %v1017 = vrot.slane %v1006, %v1016
    %v1018 = vlaneseq
    %v1019 = vshrl.u32 %v1018, 7
    %v1020 = vsub.s32 2, %v1019
    %v1021 = vrot.slane %v1006, %v1020
    %v1022 = vlaneseq
    %v1023 = vshrl.u32 %v1022, 7
    %v1024 = vsub.s32 3, %v1023
    %v1025 = vrot.slane %v1006, %v1024
    %v1026 = vlaneseq
    %v1027 = vshrl.u32 %v1026, 7
    %v1028 = vsub.s32 4, %v1027
    %v1029 = vrot.slane %v1006, %v1028
    %v1030 = vlaneseq
    %v1031 = vshrl.u32 %v1030, 7
    %v1032 = vsub.s32 5, %v1031
    %v1033 = vrot.slane %v1006, %v1032
    %v1034 = vlaneseq
    %v1035 = vshrl.u32 %v1034, 7
    %v1036 = vsub.s32 6, %v1035
    %v1037 = vrot.slane %v1006, %v1036
    %v1038 = vlaneseq
    %v1039 = vshrl.u32 %v1038, 7
    %v1040 = vsub.s32 7, %v1039
    %v1041 = vrot.slane %v1006, %v1040
    %v1042 = vlaneseq
    %v1043 = vshrl.u32 %v1042, 7
    %v1044 = vsub.s32 0, %v1043
    %v1045 = vrot.slane %v1007, %v1044
    %v1046 = vlaneseq
    %v1047 = vshrl.u32 %v1046, 7
    %v1048 = vsub.s32 1, %v1047
    %v1049 = vrot.slane %v1007, %v1048
    %v1050 = vlaneseq
    %v1051 = vshrl.u32 %v1050, 7
    %v1052 = vsub.s32 2, %v1051
    %v1053 = vrot.slane %v1007, %v1052
    %v1054 = vlaneseq
    %v1055 = vshrl.u32 %v1054, 7
    %v1056 = vsub.s32 3, %v1055
    %v1057 = vrot.slane %v1007, %v1056
    %v1058 = vlaneseq
    %v1059 = vshrl.u32 %v1058, 7
    %v1060 = vsub.s32 4, %v1059
    %v1061 = vrot.slane %v1007, %v1060
    %v1062 = vlaneseq
    %v1063 = vshrl.u32 %v1062, 7
    %v1064 = vsub.s32 5, %v1063
    %v1065 = vrot.slane %v1007, %v1064
    %v1066 = vlaneseq
    %v1067 = vshrl.u32 %v1066, 7
    %v1068 = vsub.s32 6, %v1067
    %v1069 = vrot.slane %v1007, %v1068
    %v1070 = vlaneseq
    %v1071 = vshrl.u32 %v1070, 7
    %v1072 = vsub.s32 7, %v1071
    %v1073 = vrot.slane %v1007, %v1072
    %v1154 = vunpack.c.l.b16 %v942
    %v1155 = vunpack.c.h.b16 %v942
    %v1156 = vunpack.c.l.b16 %v943
    %v1157 = vunpack.c.h.b16 %v943
    %v1158 = vunpack.c.l.b16 %v944
    %v1159 = vunpack.c.h.b16 %v944
    %v1160 = vunpack.c.l.b16 %v945
    %v1161 = vunpack.c.h.b16 %v945
    %v1162 = vunpack.c.l.b16 %v946
    %v1163 = vunpack.c.h.b16 %v946
    %v1164 = vunpack.c.l.b16 %v947
    %v1165 = vunpack.c.h.b16 %v947
    %v1166 = vunpack.c.l.b16 %v948
    %v1167 = vunpack.c.h.b16 %v948
    %v1168 = vunpack.c.l.b16 %v949
    %v1169 = vunpack.c.h.b16 %v949
    %v1170 = vunpack.c.l.b16 %v950
    %v1171 = vunpack.c.h.b16 %v950
    %v1172 = vunpack.c.l.b16 %v951
    %v1173 = vunpack.c.h.b16 %v951
    %v1174 = vunpack.c.l.b16 %v952
    %v1175 = vunpack.c.h.b16 %v952
    %v1176 = vunpack.c.l.b16 %v953
    %v1177 = vunpack.c.h.b16 %v953
    %v1178 = vunpack.c.l.b16 %v954
    %v1179 = vunpack.c.h.b16 %v954
    %v1180 = vunpack.c.l.b16 %v955
    %v1181 = vunpack.c.h.b16 %v955
    %v1182 = vunpack.c.l.b16 %v956
    %v1183 = vunpack.c.h.b16 %v956
    %v1184 = vunpack.c.l.b16 %v957
    %v1185 = vunpack.c.h.b16 %v957
    %v1186 = vunpack.c.l.b16 %v958
    %v1187 = vunpack.c.h.b16 %v958
    %v1188 = vunpack.c.l.b16 %v959
    %v1189 = vunpack.c.h.b16 %v959
    %v1190 = vunpack.c.l.b16 %v960
    %v1191 = vunpack.c.h.b16 %v960
    %v1192 = vunpack.c.l.b16 %v961
    %v1193 = vunpack.c.h.b16 %v961
    %v1194 = vunpack.c.l.b16 %v962
    %v1195 = vunpack.c.h.b16 %v962
    %v1196 = vunpack.c.l.b16 %v963
    %v1197 = vunpack.c.h.b16 %v963
    %v1198 = vunpack.c.l.b16 %v964
    %v1199 = vunpack.c.h.b16 %v964
    %v1200 = vunpack.c.l.b16 %v965
    %v1201 = vunpack.c.h.b16 %v965
    %v1202 = vunpack.c.l.b16 %v966
    %v1203 = vunpack.c.h.b16 %v966
    %v1204 = vunpack.c.l.b16 %v967
    %v1205 = vunpack.c.h.b16 %v967
    %v1206 = vunpack.c.l.b16 %v968
    %v1207 = vunpack.c.h.b16 %v968
    %v1208 = vunpack.c.l.b16 %v969
    %v1209 = vunpack.c.h.b16 %v969
    %v1210 = vunpack.c.l.b16 %v970
    %v1211 = vunpack.c.h.b16 %v970
    %v1212 = vunpack.c.l.b16 %v971
    %v1213 = vunpack.c.h.b16 %v971
    %v1214 = vunpack.c.l.b16 %v972
    %v1215 = vunpack.c.h.b16 %v972
    %v1216 = vunpack.c.l.b16 %v973
    %v1217 = vunpack.c.h.b16 %v973
    %v1218 = vunpack.c.l.b16 %v974
    %v1219 = vunpack.c.h.b16 %v974
    %v1220 = vunpack.c.l.b16 %v975
    %v1221 = vunpack.c.h.b16 %v975
    %v1222 = vunpack.c.l.b16 %v976
    %v1223 = vunpack.c.h.b16 %v976
    %v1224 = vunpack.c.l.b16 %v977
    %v1225 = vunpack.c.h.b16 %v977
    %v1226 = vunpack.c.l.b16 %v978
    %v1227 = vunpack.c.h.b16 %v978
    %v1228 = vunpack.c.l.b16 %v979
    %v1229 = vunpack.c.h.b16 %v979
    %v1230 = vunpack.c.l.b16 %v980
    %v1231 = vunpack.c.h.b16 %v980
    %v1232 = vunpack.c.l.b16 %v981
    %v1233 = vunpack.c.h.b16 %v981
    %v1234 = vunpack.c.l.b16 %v982
    %v1235 = vunpack.c.h.b16 %v982
    %v1236 = vunpack.c.l.b16 %v983
    %v1237 = vunpack.c.h.b16 %v983
    %v1238 = vunpack.c.l.b16 %v984
    %v1239 = vunpack.c.h.b16 %v984
    %v1240 = vunpack.c.l.b16 %v985
    %v1241 = vunpack.c.h.b16 %v985
    %v1242 = vunpack.c.l.b16 %v986
    %v1243 = vunpack.c.h.b16 %v986
    %v1244 = vunpack.c.l.b16 %v987
    %v1245 = vunpack.c.h.b16 %v987
    %v1246 = vunpack.c.l.b16 %v988
    %v1247 = vunpack.c.h.b16 %v988
    %v1248 = vunpack.c.l.b16 %v989
    %v1249 = vunpack.c.h.b16 %v989
    %v1250 = vunpack.c.l.b16 %v990
    %v1251 = vunpack.c.h.b16 %v990
    %v1252 = vunpack.c.l.b16 %v991
    %v1253 = vunpack.c.h.b16 %v991
    %v1254 = vunpack.c.l.b16 %v992
    %v1255 = vunpack.c.h.b16 %v992
    %v1256 = vunpack.c.l.b16 %v993
    %v1257 = vunpack.c.h.b16 %v993
    %v1258 = vunpack.c.l.b16 %v994
    %v1259 = vunpack.c.h.b16 %v994
    %v1260 = vunpack.c.l.b16 %v995
    %v1261 = vunpack.c.h.b16 %v995
    %v1262 = vunpack.c.l.b16 %v996
    %v1263 = vunpack.c.h.b16 %v996
    %v1264 = vunpack.c.l.b16 %v997
    %v1265 = vunpack.c.h.b16 %v997
    %v1266 = vunpack.c.l.b16 %v998
    %v1267 = vunpack.c.h.b16 %v998
    %v1268 = vunpack.c.l.b16 %v999
    %v1269 = vunpack.c.h.b16 %v999
    %v1270 = vunpack.c.l.b16 %v1000
    %v1271 = vunpack.c.h.b16 %v1000
    %v1272 = vunpack.c.l.b16 %v1001
    %v1273 = vunpack.c.h.b16 %v1001
    %v1274 = vunpack.c.l.b16 %v1002
    %v1275 = vunpack.c.h.b16 %v1002
    %v1276 = vunpack.c.l.b16 %v1003
    %v1277 = vunpack.c.h.b16 %v1003
    %v1278 = vunpack.c.l.b16 %v1004
    %v1279 = vunpack.c.h.b16 %v1004
    %v1280 = vunpack.c.l.b16 %v1005
    %v1281 = vunpack.c.h.b16 %v1005
    %v1282 = vpack.c.b16 %v1170, %v1154
    %v1283 = vpack.c.b16 %v1171, %v1155
    %v1284 = vpack.c.b16 %v1172, %v1156
    %v1285 = vpack.c.b16 %v1173, %v1157
    %v1286 = vpack.c.b16 %v1174, %v1158
    %v1287 = vpack.c.b16 %v1175, %v1159
    %v1288 = vpack.c.b16 %v1176, %v1160
    %v1289 = vpack.c.b16 %v1177, %v1161
    %v1290 = vpack.c.b16 %v1178, %v1162
    %v1291 = vpack.c.b16 %v1179, %v1163
    %v1292 = vpack.c.b16 %v1180, %v1164
    %v1293 = vpack.c.b16 %v1181, %v1165
    %v1294 = vpack.c.b16 %v1182, %v1166
    %v1295 = vpack.c.b16 %v1183, %v1167
    %v1296 = vpack.c.b16 %v1184, %v1168
    %v1297 = vpack.c.b16 %v1185, %v1169
    %v1298 = vpack.c.b16 %v1202, %v1186
    %v1299 = vpack.c.b16 %v1203, %v1187
    %v1300 = vpack.c.b16 %v1204, %v1188
    %v1301 = vpack.c.b16 %v1205, %v1189
    %v1302 = vpack.c.b16 %v1206, %v1190
    %v1303 = vpack.c.b16 %v1207, %v1191
    %v1304 = vpack.c.b16 %v1208, %v1192
    %v1305 = vpack.c.b16 %v1209, %v1193
    %v1306 = vpack.c.b16 %v1210, %v1194
    %v1307 = vpack.c.b16 %v1211, %v1195
    %v1308 = vpack.c.b16 %v1212, %v1196
    %v1309 = vpack.c.b16 %v1213, %v1197
    %v1310 = vpack.c.b16 %v1214, %v1198
    %v1311 = vpack.c.b16 %v1215, %v1199
    %v1312 = vpack.c.b16 %v1216, %v1200
    %v1313 = vpack.c.b16 %v1217, %v1201
    %v1314 = vpack.c.b16 %v1234, %v1218
    %v1315 = vpack.c.b16 %v1235, %v1219
    %v1316 = vpack.c.b16 %v1236, %v1220
    %v1317 = vpack.c.b16 %v1237, %v1221
    %v1318 = vpack.c.b16 %v1238, %v1222
    %v1319 = vpack.c.b16 %v1239, %v1223
    %v1320 = vpack.c.b16 %v1240, %v1224
    %v1321 = vpack.c.b16 %v1241, %v1225
    %v1322 = vpack.c.b16 %v1242, %v1226
    %v1323 = vpack.c.b16 %v1243, %v1227
    %v1324 = vpack.c.b16 %v1244, %v1228
    %v1325 = vpack.c.b16 %v1245, %v1229
    %v1326 = vpack.c.b16 %v1246, %v1230
    %v1327 = vpack.c.b16 %v1247, %v1231
    %v1328 = vpack.c.b16 %v1248, %v1232
    %v1329 = vpack.c.b16 %v1249, %v1233
    %v1330 = vpack.c.b16 %v1266, %v1250
    %v1331 = vpack.c.b16 %v1267, %v1251
    %v1332 = vpack.c.b16 %v1268, %v1252
    %v1333 = vpack.c.b16 %v1269, %v1253
    %v1334 = vpack.c.b16 %v1270, %v1254
    %v1335 = vpack.c.b16 %v1271, %v1255
    %v1336 = vpack.c.b16 %v1272, %v1256
    %v1337 = vpack.c.b16 %v1273, %v1257
    %v1338 = vpack.c.b16 %v1274, %v1258
    %v1339 = vpack.c.b16 %v1275, %v1259
    %v1340 = vpack.c.b16 %v1276, %v1260
    %v1341 = vpack.c.b16 %v1277, %v1261
    %v1342 = vpack.c.b16 %v1278, %v1262
    %v1343 = vpack.c.b16 %v1279, %v1263
    %v1344 = vpack.c.b16 %v1280, %v1264
    %v1345 = vpack.c.b16 %v1281, %v1265
    %v1411 = vsel %vm535, %v941, 0
    %1413 = vmatprep.subr.bf16.mxu0 %v1283
    %1414 = vmatpush1.bf16.msra.mxu0 %v1282
    %1415 = vmatprep.subr.bf16.mxu0 %v1299
    %1416 = vmatpush1.bf16.msra.mxu0 %v1298
    %1417 = vmatprep.subr.bf16.mxu0 %v1315
    %1418 = vmatpush1.bf16.msra.mxu0 %v1314
    %1419 = vmatprep.subr.bf16.mxu0 %v1331
    %1420 = vmatpush1.bf16.msra.mxu0 %v1330
    %1421 = vmatprep.subr.bf16.mxu0 0
    %1422 = vmatpush1.bf16.msra.mxu0 0
    %1423 = vmatprep.subr.bf16.mxu0 0
    %1424 = vmatpush1.bf16.msra.mxu0 0
    %1425 = vmatprep.subr.bf16.mxu0 0
    %1426 = vmatpush1.bf16.msra.mxu0 0
    %1427 = vmatprep.subr.bf16.mxu0 0
    %1428 = vmatpush1.bf16.msra.mxu0 0
    %1429 = vmatprep.subr.bf16.mxu0 0
    %1430 = vmatpush1.bf16.msra.mxu0 0
    %1431 = vmatprep.subr.bf16.mxu0 0
    %1432 = vmatpush1.bf16.msra.mxu0 0
    %1433 = vmatprep.subr.bf16.mxu0 0
    %1434 = vmatpush1.bf16.msra.mxu0 0
    %1435 = vmatprep.subr.bf16.mxu0 0
    %1436 = vmatpush1.bf16.msra.mxu0 0
    %1437 = vmatprep.subr.bf16.mxu0 0
    %1438 = vmatpush1.bf16.msra.mxu0 0
    %1439 = vmatprep.subr.bf16.mxu0 0
    %1440 = vmatpush1.bf16.msra.mxu0 0
    %1441 = vmatprep.subr.bf16.mxu0 0
    %1442 = vmatpush1.bf16.msra.mxu0 0
    %1443 = vmatprep.subr.bf16.mxu0 0
    %1444 = vmatpush1.bf16.msra.mxu0 0
    %1445 = vmatprep.mubr.bf16.mxu0 0
    %1446 = vmatmul.mubr.bf16.gmra.mrb[0].mxu0 %v1411
    %v1447 = vpop.f32.mrb[0].mxu0
    %v1448 = vadd.f32 %v1013, %v1447
    %v1449 = vpop.f32.mrb[0].mxu0
    %v1450 = vadd.f32 %v1017, %v1449
    %v1451 = vpop.f32.mrb[0].mxu0
    %v1452 = vpop.f32.mrb[0].mxu0
    %1453 = vdwg.mxu0
    %1454 = vmatprep.subr.bf16.mxu0 %v1285
    %1455 = vmatpush1.bf16.msra.mxu0 %v1284
    %1456 = vmatprep.subr.bf16.mxu0 %v1301
    %1457 = vmatpush1.bf16.msra.mxu0 %v1300
    %1458 = vmatprep.subr.bf16.mxu0 %v1317
    %1459 = vmatpush1.bf16.msra.mxu0 %v1316
    %1460 = vmatprep.subr.bf16.mxu0 %v1333
    %1461 = vmatpush1.bf16.msra.mxu0 %v1332
    %1462 = vmatprep.subr.bf16.mxu0 0
    %1463 = vmatpush1.bf16.msra.mxu0 0
    %1464 = vmatprep.subr.bf16.mxu0 0
    %1465 = vmatpush1.bf16.msra.mxu0 0
    %1466 = vmatprep.subr.bf16.mxu0 0
    %1467 = vmatpush1.bf16.msra.mxu0 0
    %1468 = vmatprep.subr.bf16.mxu0 0
    %1469 = vmatpush1.bf16.msra.mxu0 0
    %1470 = vmatprep.subr.bf16.mxu0 0
    %1471 = vmatpush1.bf16.msra.mxu0 0
    %1472 = vmatprep.subr.bf16.mxu0 0
    %1473 = vmatpush1.bf16.msra.mxu0 0
    %1474 = vmatprep.subr.bf16.mxu0 0
    %1475 = vmatpush1.bf16.msra.mxu0 0
    %1476 = vmatprep.subr.bf16.mxu0 0
    %1477 = vmatpush1.bf16.msra.mxu0 0
    %1478 = vmatprep.subr.bf16.mxu0 0
    %1479 = vmatpush1.bf16.msra.mxu0 0
    %1480 = vmatprep.subr.bf16.mxu0 0
    %1481 = vmatpush1.bf16.msra.mxu0 0
    %1482 = vmatprep.subr.bf16.mxu0 0
    %1483 = vmatpush1.bf16.msra.mxu0 0
    %1484 = vmatprep.subr.bf16.mxu0 0
    %1485 = vmatpush1.bf16.msra.mxu0 0
    %1486 = vmatprep.mubr.bf16.mxu0 0
    %1487 = vmatmul.mubr.bf16.gmra.mrb[0].mxu0 %v1411
    %v1488 = vpop.f32.mrb[0].mxu0
    %v1489 = vadd.f32 %v1021, %v1488
    %v1490 = vpop.f32.mrb[0].mxu0
    %v1491 = vadd.f32 %v1025, %v1490
    %v1492 = vpop.f32.mrb[0].mxu0
    %v1493 = vpop.f32.mrb[0].mxu0
    %1494 = vdwg.mxu0
    %1495 = vmatprep.subr.bf16.mxu0 %v1287
    %1496 = vmatpush1.bf16.msra.mxu0 %v1286
    %1497 = vmatprep.subr.bf16.mxu0 %v1303
    %1498 = vmatpush1.bf16.msra.mxu0 %v1302
    %1499 = vmatprep.subr.bf16.mxu0 %v1319
    %1500 = vmatpush1.bf16.msra.mxu0 %v1318
    %1501 = vmatprep.subr.bf16.mxu0 %v1335
    %1502 = vmatpush1.bf16.msra.mxu0 %v1334
    %1503 = vmatprep.subr.bf16.mxu0 0
    %1504 = vmatpush1.bf16.msra.mxu0 0
    %1505 = vmatprep.subr.bf16.mxu0 0
    %1506 = vmatpush1.bf16.msra.mxu0 0
    %1507 = vmatprep.subr.bf16.mxu0 0
    %1508 = vmatpush1.bf16.msra.mxu0 0
    %1509 = vmatprep.subr.bf16.mxu0 0
    %1510 = vmatpush1.bf16.msra.mxu0 0
    %1511 = vmatprep.subr.bf16.mxu0 0
    %1512 = vmatpush1.bf16.msra.mxu0 0
    %1513 = vmatprep.subr.bf16.mxu0 0
    %1514 = vmatpush1.bf16.msra.mxu0 0
    %1515 = vmatprep.subr.bf16.mxu0 0
    %1516 = vmatpush1.bf16.msra.mxu0 0
    %1517 = vmatprep.subr.bf16.mxu0 0
    %1518 = vmatpush1.bf16.msra.mxu0 0
    %1519 = vmatprep.subr.bf16.mxu0 0
    %1520 = vmatpush1.bf16.msra.mxu0 0
    %1521 = vmatprep.subr.bf16.mxu0 0
    %1522 = vmatpush1.bf16.msra.mxu0 0
    %1523 = vmatprep.subr.bf16.mxu0 0
    %1524 = vmatpush1.bf16.msra.mxu0 0
    %1525 = vmatprep.subr.bf16.mxu0 0
    %1526 = vmatpush1.bf16.msra.mxu0 0
    %1527 = vmatprep.mubr.bf16.mxu0 0
    %1528 = vmatmul.mubr.bf16.gmra.mrb[0].mxu0 %v1411
    %v1529 = vpop.f32.mrb[0].mxu0
    %v1530 = vadd.f32 %v1029, %v1529
    %v1531 = vpop.f32.mrb[0].mxu0
    %v1532 = vadd.f32 %v1033, %v1531
    %v1533 = vpop.f32.mrb[0].mxu0
    %v1534 = vpop.f32.mrb[0].mxu0
    %1535 = vdwg.mxu0
    %1536 = vmatprep.subr.bf16.mxu0 %v1289
    %1537 = vmatpush1.bf16.msra.mxu0 %v1288
    %1538 = vmatprep.subr.bf16.mxu0 %v1305
    %1539 = vmatpush1.bf16.msra.mxu0 %v1304
    %1540 = vmatprep.subr.bf16.mxu0 %v1321
    %1541 = vmatpush1.bf16.msra.mxu0 %v1320
    %1542 = vmatprep.subr.bf16.mxu0 %v1337
    %1543 = vmatpush1.bf16.msra.mxu0 %v1336
    %1544 = vmatprep.subr.bf16.mxu0 0
    %1545 = vmatpush1.bf16.msra.mxu0 0
    %1546 = vmatprep.subr.bf16.mxu0 0
    %1547 = vmatpush1.bf16.msra.mxu0 0
    %1548 = vmatprep.subr.bf16.mxu0 0
    %1549 = vmatpush1.bf16.msra.mxu0 0
    %1550 = vmatprep.subr.bf16.mxu0 0
    %1551 = vmatpush1.bf16.msra.mxu0 0
    %1552 = vmatprep.subr.bf16.mxu0 0
    %1553 = vmatpush1.bf16.msra.mxu0 0
    %1554 = vmatprep.subr.bf16.mxu0 0
    %1555 = vmatpush1.bf16.msra.mxu0 0
    %1556 = vmatprep.subr.bf16.mxu0 0
    %1557 = vmatpush1.bf16.msra.mxu0 0
    %1558 = vmatprep.subr.bf16.mxu0 0
    %1559 = vmatpush1.bf16.msra.mxu0 0
    %1560 = vmatprep.subr.bf16.mxu0 0
    %1561 = vmatpush1.bf16.msra.mxu0 0
    %1562 = vmatprep.subr.bf16.mxu0 0
    %1563 = vmatpush1.bf16.msra.mxu0 0
    %1564 = vmatprep.subr.bf16.mxu0 0
    %1565 = vmatpush1.bf16.msra.mxu0 0
    %1566 = vmatprep.subr.bf16.mxu0 0
    %1567 = vmatpush1.bf16.msra.mxu0 0
    %1568 = vmatprep.mubr.bf16.mxu0 0
    %1569 = vmatmul.mubr.bf16.gmra.mrb[0].mxu0 %v1411
    %v1570 = vpop.f32.mrb[0].mxu0
    %v1571 = vadd.f32 %v1037, %v1570
    %v1572 = vpop.f32.mrb[0].mxu0
    %v1573 = vadd.f32 %v1041, %v1572
    %v1574 = vpop.f32.mrb[0].mxu0
    %v1575 = vpop.f32.mrb[0].mxu0
    %1576 = vdwg.mxu0
    %1577 = vmatprep.subr.bf16.mxu0 %v1291
    %1578 = vmatpush1.bf16.msra.mxu0 %v1290
    %1579 = vmatprep.subr.bf16.mxu0 %v1307
    %1580 = vmatpush1.bf16.msra.mxu0 %v1306
    %1581 = vmatprep.subr.bf16.mxu0 %v1323
    %1582 = vmatpush1.bf16.msra.mxu0 %v1322
    %1583 = vmatprep.subr.bf16.mxu0 %v1339
    %1584 = vmatpush1.bf16.msra.mxu0 %v1338
    %1585 = vmatprep.subr.bf16.mxu0 0
    %1586 = vmatpush1.bf16.msra.mxu0 0
    %1587 = vmatprep.subr.bf16.mxu0 0
    %1588 = vmatpush1.bf16.msra.mxu0 0
    %1589 = vmatprep.subr.bf16.mxu0 0
    %1590 = vmatpush1.bf16.msra.mxu0 0
    %1591 = vmatprep.subr.bf16.mxu0 0
    %1592 = vmatpush1.bf16.msra.mxu0 0
    %1593 = vmatprep.subr.bf16.mxu0 0
    %1594 = vmatpush1.bf16.msra.mxu0 0
    %1595 = vmatprep.subr.bf16.mxu0 0
    %1596 = vmatpush1.bf16.msra.mxu0 0
    %1597 = vmatprep.subr.bf16.mxu0 0
    %1598 = vmatpush1.bf16.msra.mxu0 0
    %1599 = vmatprep.subr.bf16.mxu0 0
    %1600 = vmatpush1.bf16.msra.mxu0 0
    %1601 = vmatprep.subr.bf16.mxu0 0
    %1602 = vmatpush1.bf16.msra.mxu0 0
    %1603 = vmatprep.subr.bf16.mxu0 0
    %1604 = vmatpush1.bf16.msra.mxu0 0
    %1605 = vmatprep.subr.bf16.mxu0 0
    %1606 = vmatpush1.bf16.msra.mxu0 0
    %1607 = vmatprep.subr.bf16.mxu0 0
    %1608 = vmatpush1.bf16.msra.mxu0 0
    %1609 = vmatprep.mubr.bf16.mxu0 0
    %1610 = vmatmul.mubr.bf16.gmra.mrb[0].mxu0 %v1411
    %v1611 = vpop.f32.mrb[0].mxu0
    %v1612 = vadd.f32 %v1045, %v1611
    %v1613 = vpop.f32.mrb[0].mxu0
    %v1614 = vadd.f32 %v1049, %v1613
    %v1615 = vpop.f32.mrb[0].mxu0
    %v1616 = vpop.f32.mrb[0].mxu0
    %1617 = vdwg.mxu0
    %1618 = vmatprep.subr.bf16.mxu0 %v1293
    %1619 = vmatpush1.bf16.msra.mxu0 %v1292
    %1620 = vmatprep.subr.bf16.mxu0 %v1309
    %1621 = vmatpush1.bf16.msra.mxu0 %v1308
    %1622 = vmatprep.subr.bf16.mxu0 %v1325
    %1623 = vmatpush1.bf16.msra.mxu0 %v1324
    %1624 = vmatprep.subr.bf16.mxu0 %v1341
    %1625 = vmatpush1.bf16.msra.mxu0 %v1340
    %1626 = vmatprep.subr.bf16.mxu0 0
    %1627 = vmatpush1.bf16.msra.mxu0 0
    %1628 = vmatprep.subr.bf16.mxu0 0
    %1629 = vmatpush1.bf16.msra.mxu0 0
    %1630 = vmatprep.subr.bf16.mxu0 0
    %1631 = vmatpush1.bf16.msra.mxu0 0
    %1632 = vmatprep.subr.bf16.mxu0 0
    %1633 = vmatpush1.bf16.msra.mxu0 0
    %1634 = vmatprep.subr.bf16.mxu0 0
    %1635 = vmatpush1.bf16.msra.mxu0 0
    %1636 = vmatprep.subr.bf16.mxu0 0
    %1637 = vmatpush1.bf16.msra.mxu0 0
    %1638 = vmatprep.subr.bf16.mxu0 0
    %1639 = vmatpush1.bf16.msra.mxu0 0
    %1640 = vmatprep.subr.bf16.mxu0 0
    %1641 = vmatpush1.bf16.msra.mxu0 0
    %1642 = vmatprep.subr.bf16.mxu0 0
    %1643 = vmatpush1.bf16.msra.mxu0 0
    %1644 = vmatprep.subr.bf16.mxu0 0
    %1645 = vmatpush1.bf16.msra.mxu0 0
    %1646 = vmatprep.subr.bf16.mxu0 0
    %1647 = vmatpush1.bf16.msra.mxu0 0
    %1648 = vmatprep.subr.bf16.mxu0 0
    %1649 = vmatpush1.bf16.msra.mxu0 0
    %1650 = vmatprep.mubr.bf16.mxu0 0
    %1651 = vmatmul.mubr.bf16.gmra.mrb[0].mxu0 %v1411
    %v1652 = vpop.f32.mrb[0].mxu0
    %v1653 = vadd.f32 %v1053, %v1652
    %v1654 = vpop.f32.mrb[0].mxu0
    %v1655 = vadd.f32 %v1057, %v1654
    %v1656 = vpop.f32.mrb[0].mxu0
    %v1657 = vpop.f32.mrb[0].mxu0
    %1658 = vdwg.mxu0
    %1659 = vmatprep.subr.bf16.mxu0 %v1295
    %1660 = vmatpush1.bf16.msra.mxu0 %v1294
    %1661 = vmatprep.subr.bf16.mxu0 %v1311
    %1662 = vmatpush1.bf16.msra.mxu0 %v1310
    %1663 = vmatprep.subr.bf16.mxu0 %v1327
    %1664 = vmatpush1.bf16.msra.mxu0 %v1326
    %1665 = vmatprep.subr.bf16.mxu0 %v1343
    %1666 = vmatpush1.bf16.msra.mxu0 %v1342
    %1667 = vmatprep.subr.bf16.mxu0 0
    %1668 = vmatpush1.bf16.msra.mxu0 0
    %1669 = vmatprep.subr.bf16.mxu0 0
    %1670 = vmatpush1.bf16.msra.mxu0 0
    %1671 = vmatprep.subr.bf16.mxu0 0
    %1672 = vmatpush1.bf16.msra.mxu0 0
    %1673 = vmatprep.subr.bf16.mxu0 0
    %1674 = vmatpush1.bf16.msra.mxu0 0
    %1675 = vmatprep.subr.bf16.mxu0 0
    %1676 = vmatpush1.bf16.msra.mxu0 0
    %1677 = vmatprep.subr.bf16.mxu0 0
    %1678 = vmatpush1.bf16.msra.mxu0 0
    %1679 = vmatprep.subr.bf16.mxu0 0
    %1680 = vmatpush1.bf16.msra.mxu0 0
    %1681 = vmatprep.subr.bf16.mxu0 0
    %1682 = vmatpush1.bf16.msra.mxu0 0
    %1683 = vmatprep.subr.bf16.mxu0 0
    %1684 = vmatpush1.bf16.msra.mxu0 0
    %1685 = vmatprep.subr.bf16.mxu0 0
    %1686 = vmatpush1.bf16.msra.mxu0 0
    %1687 = vmatprep.subr.bf16.mxu0 0
    %1688 = vmatpush1.bf16.msra.mxu0 0
    %1689 = vmatprep.subr.bf16.mxu0 0
    %1690 = vmatpush1.bf16.msra.mxu0 0
    %1691 = vmatprep.mubr.bf16.mxu0 0
    %1692 = vmatmul.mubr.bf16.gmra.mrb[0].mxu0 %v1411
    %v1693 = vpop.f32.mrb[0].mxu0
    %v1694 = vadd.f32 %v1061, %v1693
    %v1695 = vpop.f32.mrb[0].mxu0
    %v1696 = vadd.f32 %v1065, %v1695
    %v1697 = vpop.f32.mrb[0].mxu0
    %v1698 = vpop.f32.mrb[0].mxu0
    %1699 = vdwg.mxu0
    %1700 = vmatprep.subr.bf16.mxu0 %v1297
    %1701 = vmatpush1.bf16.msra.mxu0 %v1296
    %1702 = vmatprep.subr.bf16.mxu0 %v1313
    %1703 = vmatpush1.bf16.msra.mxu0 %v1312
    %1704 = vmatprep.subr.bf16.mxu0 %v1329
    %1705 = vmatpush1.bf16.msra.mxu0 %v1328
    %1706 = vmatprep.subr.bf16.mxu0 %v1345
    %1707 = vmatpush1.bf16.msra.mxu0 %v1344
    %1708 = vmatprep.subr.bf16.mxu0 0
    %1709 = vmatpush1.bf16.msra.mxu0 0
    %1710 = vmatprep.subr.bf16.mxu0 0
    %1711 = vmatpush1.bf16.msra.mxu0 0
    %1712 = vmatprep.subr.bf16.mxu0 0
    %1713 = vmatpush1.bf16.msra.mxu0 0
    %1714 = vmatprep.subr.bf16.mxu0 0
    %1715 = vmatpush1.bf16.msra.mxu0 0
    %1716 = vmatprep.subr.bf16.mxu0 0
    %1717 = vmatpush1.bf16.msra.mxu0 0
    %1718 = vmatprep.subr.bf16.mxu0 0
    %1719 = vmatpush1.bf16.msra.mxu0 0
    %1720 = vmatprep.subr.bf16.mxu0 0
    %1721 = vmatpush1.bf16.msra.mxu0 0
    %1722 = vmatprep.subr.bf16.mxu0 0
    %1723 = vmatpush1.bf16.msra.mxu0 0
    %1724 = vmatprep.subr.bf16.mxu0 0
    %1725 = vmatpush1.bf16.msra.mxu0 0
    %1726 = vmatprep.subr.bf16.mxu0 0
    %1727 = vmatpush1.bf16.msra.mxu0 0
    %1728 = vmatprep.subr.bf16.mxu0 0
    %1729 = vmatpush1.bf16.msra.mxu0 0
    %1730 = vmatprep.subr.bf16.mxu0 0
    %1731 = vmatpush1.bf16.msra.mxu0 0
    %1732 = vmatprep.mubr.bf16.mxu0 0
    %1733 = vmatmul.mubr.bf16.gmra.mrb[0].mxu0 %v1411
    %v1734 = vpop.f32.mrb[0].mxu0
    %v1735 = vadd.f32 %v1069, %v1734
    %v1736 = vpop.f32.mrb[0].mxu0
    %v1737 = vadd.f32 %v1073, %v1736
    %v1738 = vpop.f32.mrb[0].mxu0
    %v1739 = vpop.f32.mrb[0].mxu0
    %1740 = vdwg.mxu0
    %vm1741 = vcmp.ge.f32.partialorder %v1448, 0.0
    %vm1742 = vcmp.ge.f32.partialorder %v1450, 0.0
    %vm1743 = vcmp.ge.f32.partialorder %v1489, 0.0
    %vm1744 = vcmp.ge.f32.partialorder %v1491, 0.0
    %vm1745 = vcmp.ge.f32.partialorder %v1530, 0.0
    %vm1746 = vcmp.ge.f32.partialorder %v1532, 0.0
    %vm1747 = vcmp.ge.f32.partialorder %v1571, 0.0
    %vm1748 = vcmp.ge.f32.partialorder %v1573, 0.0
    %vm1749 = vcmp.ge.f32.partialorder %v1612, 0.0
    %vm1750 = vcmp.ge.f32.partialorder %v1614, 0.0
    %vm1751 = vcmp.ge.f32.partialorder %v1653, 0.0
    %vm1752 = vcmp.ge.f32.partialorder %v1655, 0.0
    %vm1753 = vcmp.ge.f32.partialorder %v1694, 0.0
    %vm1754 = vcmp.ge.f32.partialorder %v1696, 0.0
    %vm1755 = vcmp.ge.f32.partialorder %v1735, 0.0
    %vm1756 = vcmp.ge.f32.partialorder %v1737, 0.0
    %v1757 = vmul.f32 %v1448, 0.01
    %v1758 = vmul.f32 %v1450, 0.01
    %v1759 = vmul.f32 %v1489, 0.01
    %v1760 = vmul.f32 %v1491, 0.01
    %v1761 = vmul.f32 %v1530, 0.01
    %v1762 = vmul.f32 %v1532, 0.01
    %v1763 = vmul.f32 %v1571, 0.01
    %v1764 = vmul.f32 %v1573, 0.01
    %v1765 = vmul.f32 %v1612, 0.01
    %v1766 = vmul.f32 %v1614, 0.01
    %v1767 = vmul.f32 %v1653, 0.01
    %v1768 = vmul.f32 %v1655, 0.01
    %v1769 = vmul.f32 %v1694, 0.01
    %v1770 = vmul.f32 %v1696, 0.01
    %v1771 = vmul.f32 %v1735, 0.01
    %v1772 = vmul.f32 %v1737, 0.01
    %v1773 = vsel %vm1741, %v1448, %v1757
    %v1774 = vsel %vm1742, %v1450, %v1758
    %v1775 = vsel %vm1743, %v1489, %v1759
    %v1776 = vsel %vm1744, %v1491, %v1760
    %v1777 = vsel %vm1745, %v1530, %v1761
    %v1778 = vsel %vm1746, %v1532, %v1762
    %v1779 = vsel %vm1747, %v1571, %v1763
    %v1780 = vsel %vm1748, %v1573, %v1764
    %v1781 = vsel %vm1749, %v1612, %v1765
    %v1782 = vsel %vm1750, %v1614, %v1766
    %v1783 = vsel %vm1751, %v1653, %v1767
    %v1784 = vsel %vm1752, %v1655, %v1768
    %v1785 = vsel %vm1753, %v1694, %v1769
    %v1786 = vsel %vm1754, %v1696, %v1770
    %v1787 = vsel %vm1755, %v1735, %v1771
    %v1788 = vsel %vm1756, %v1737, %v1772
    %v1789 = vpack.c.bf16 %v1773, %v1773
    %v1790 = vpack.c.bf16 %v1774, %v1774
    %v1791 = vpack.c.bf16 %v1775, %v1775
    %v1792 = vpack.c.bf16 %v1776, %v1776
    %v1793 = vpack.c.bf16 %v1777, %v1777
    %v1794 = vpack.c.bf16 %v1778, %v1778
    %v1795 = vpack.c.bf16 %v1779, %v1779
    %v1796 = vpack.c.bf16 %v1780, %v1780
    %v1797 = vpack.c.bf16 %v1781, %v1781
    %v1798 = vpack.c.bf16 %v1782, %v1782
    %v1799 = vpack.c.bf16 %v1783, %v1783
    %v1800 = vpack.c.bf16 %v1784, %v1784
    %v1801 = vpack.c.bf16 %v1785, %v1785
    %v1802 = vpack.c.bf16 %v1786, %v1786
    %v1803 = vpack.c.bf16 %v1787, %v1787
    %v1804 = vpack.c.bf16 %v1788, %v1788
    %v1805 = vld [vmem:[#allocation20] sm:$0xff]
    %v1806 = vld [vmem:[#allocation20 + $0x8] sm:$0xff]
    %v1807 = vld [vmem:[#allocation20 + $0x10] sm:$0xff]
    %v1808 = vld [vmem:[#allocation20 + $0x18] sm:$0xff]
    %v1809 = vld [vmem:[#allocation20 + $0x20] sm:$0xff]
    %v1810 = vld [vmem:[#allocation20 + $0x28] sm:$0xff]
    %v1811 = vld [vmem:[#allocation20 + $0x30] sm:$0xff]
    %v1812 = vld [vmem:[#allocation20 + $0x38] sm:$0xff]
    %v1813 = vld [vmem:[#allocation20 + $0x40] sm:$0xff]
    %v1814 = vld [vmem:[#allocation20 + $0x48] sm:$0xff]
    %v1815 = vld [vmem:[#allocation20 + $0x50] sm:$0xff]
    %v1816 = vld [vmem:[#allocation20 + $0x58] sm:$0xff]
    %v1817 = vld [vmem:[#allocation20 + $0x60] sm:$0xff]
    %v1818 = vld [vmem:[#allocation20 + $0x68] sm:$0xff]
    %v1819 = vld [vmem:[#allocation20 + $0x70] sm:$0xff]
    %v1820 = vld [vmem:[#allocation20 + $0x78] sm:$0xff]
    %v1821 = vld [vmem:[#allocation20 + $0x80] sm:$0xff]
    %v1822 = vld [vmem:[#allocation20 + $0x88] sm:$0xff]
    %v1823 = vld [vmem:[#allocation20 + $0x90] sm:$0xff]
    %v1824 = vld [vmem:[#allocation20 + $0x98] sm:$0xff]
    %v1825 = vld [vmem:[#allocation20 + $0xa0] sm:$0xff]
    %v1826 = vld [vmem:[#allocation20 + $0xa8] sm:$0xff]
    %v1827 = vld [vmem:[#allocation20 + $0xb0] sm:$0xff]
    %v1828 = vld [vmem:[#allocation20 + $0xb8] sm:$0xff]
    %v1829 = vld [vmem:[#allocation20 + $0xc0] sm:$0xff]
    %v1830 = vld [vmem:[#allocation20 + $0xc8] sm:$0xff]
    %v1831 = vld [vmem:[#allocation20 + $0xd0] sm:$0xff]
    %v1832 = vld [vmem:[#allocation20 + $0xd8] sm:$0xff]
    %v1833 = vld [vmem:[#allocation20 + $0xe0] sm:$0xff]
    %v1834 = vld [vmem:[#allocation20 + $0xe8] sm:$0xff]
    %v1835 = vld [vmem:[#allocation20 + $0xf0] sm:$0xff]
    %v1836 = vld [vmem:[#allocation20 + $0xf8] sm:$0xff]
    %v1837 = vld [vmem:[#allocation20 + $0x100] sm:$0xff]
    %v1838 = vld [vmem:[#allocation20 + $0x108] sm:$0xff]
    %v1839 = vld [vmem:[#allocation20 + $0x110] sm:$0xff]
    %v1840 = vld [vmem:[#allocation20 + $0x118] sm:$0xff]
    %v1841 = vld [vmem:[#allocation20 + $0x120] sm:$0xff]
    %v1842 = vld [vmem:[#allocation20 + $0x128] sm:$0xff]
    %v1843 = vld [vmem:[#allocation20 + $0x130] sm:$0xff]
    %v1844 = vld [vmem:[#allocation20 + $0x138] sm:$0xff]
    %v1845 = vld [vmem:[#allocation20 + $0x140] sm:$0xff]
    %v1846 = vld [vmem:[#allocation20 + $0x148] sm:$0xff]
    %v1847 = vld [vmem:[#allocation20 + $0x150] sm:$0xff]
    %v1848 = vld [vmem:[#allocation20 + $0x158] sm:$0xff]
    %v1849 = vld [vmem:[#allocation20 + $0x160] sm:$0xff]
    %v1850 = vld [vmem:[#allocation20 + $0x168] sm:$0xff]
    %v1851 = vld [vmem:[#allocation20 + $0x170] sm:$0xff]
    %v1852 = vld [vmem:[#allocation20 + $0x178] sm:$0xff]
    %v1853 = vld [vmem:[#allocation20 + $0x180] sm:$0xff]
    %v1854 = vld [vmem:[#allocation20 + $0x188] sm:$0xff]
    %v1855 = vld [vmem:[#allocation20 + $0x190] sm:$0xff]
    %v1856 = vld [vmem:[#allocation20 + $0x198] sm:$0xff]
    %v1857 = vld [vmem:[#allocation20 + $0x1a0] sm:$0xff]
    %v1858 = vld [vmem:[#allocation20 + $0x1a8] sm:$0xff]
    %v1859 = vld [vmem:[#allocation20 + $0x1b0] sm:$0xff]
    %v1860 = vld [vmem:[#allocation20 + $0x1b8] sm:$0xff]
    %v1861 = vld [vmem:[#allocation20 + $0x1c0] sm:$0xff]
    %v1862 = vld [vmem:[#allocation20 + $0x1c8] sm:$0xff]
    %v1863 = vld [vmem:[#allocation20 + $0x1d0] sm:$0xff]
    %v1864 = vld [vmem:[#allocation20 + $0x1d8] sm:$0xff]
    %v1865 = vld [vmem:[#allocation20 + $0x1e0] sm:$0xff]
    %v1866 = vld [vmem:[#allocation20 + $0x1e8] sm:$0xff]
    %v1867 = vld [vmem:[#allocation20 + $0x1f0] sm:$0xff]
    %v1868 = vld [vmem:[#allocation20 + $0x1f8] sm:$0xff]
    %v1869 = vld [vmem:[#allocation20 + $0x200] sm:$0xff]
    %v1870 = vld [vmem:[#allocation20 + $0x208] sm:$0xff]
    %v1871 = vld [vmem:[#allocation20 + $0x210] sm:$0xff]
    %v1872 = vld [vmem:[#allocation20 + $0x218] sm:$0xff]
    %v1873 = vld [vmem:[#allocation20 + $0x220] sm:$0xff]
    %v1874 = vld [vmem:[#allocation20 + $0x228] sm:$0xff]
    %v1875 = vld [vmem:[#allocation20 + $0x230] sm:$0xff]
    %v1876 = vld [vmem:[#allocation20 + $0x238] sm:$0xff]
    %v1877 = vld [vmem:[#allocation20 + $0x240] sm:$0xff]
    %v1878 = vld [vmem:[#allocation20 + $0x248] sm:$0xff]
    %v1879 = vld [vmem:[#allocation20 + $0x250] sm:$0xff]
    %v1880 = vld [vmem:[#allocation20 + $0x258] sm:$0xff]
    %v1881 = vld [vmem:[#allocation20 + $0x260] sm:$0xff]
    %v1882 = vld [vmem:[#allocation20 + $0x268] sm:$0xff]
    %v1883 = vld [vmem:[#allocation20 + $0x270] sm:$0xff]
    %v1884 = vld [vmem:[#allocation20 + $0x278] sm:$0xff]
    %v1885 = vld [vmem:[#allocation20 + $0x280] sm:$0xff]
    %v1886 = vld [vmem:[#allocation20 + $0x288] sm:$0xff]
    %v1887 = vld [vmem:[#allocation20 + $0x290] sm:$0xff]
    %v1888 = vld [vmem:[#allocation20 + $0x298] sm:$0xff]
    %v1889 = vld [vmem:[#allocation20 + $0x2a0] sm:$0xff]
    %v1890 = vld [vmem:[#allocation20 + $0x2a8] sm:$0xff]
    %v1891 = vld [vmem:[#allocation20 + $0x2b0] sm:$0xff]
    %v1892 = vld [vmem:[#allocation20 + $0x2b8] sm:$0xff]
    %v1893 = vld [vmem:[#allocation20 + $0x2c0] sm:$0xff]
    %v1894 = vld [vmem:[#allocation20 + $0x2c8] sm:$0xff]
    %v1895 = vld [vmem:[#allocation20 + $0x2d0] sm:$0xff]
    %v1896 = vld [vmem:[#allocation20 + $0x2d8] sm:$0xff]
    %v1897 = vld [vmem:[#allocation20 + $0x2e0] sm:$0xff]
    %v1898 = vld [vmem:[#allocation20 + $0x2e8] sm:$0xff]
    %v1899 = vld [vmem:[#allocation20 + $0x2f0] sm:$0xff]
    %v1900 = vld [vmem:[#allocation20 + $0x2f8] sm:$0xff]
    %v1901 = vld [vmem:[#allocation20 + $0x300] sm:$0xff]
    %v1902 = vld [vmem:[#allocation20 + $0x308] sm:$0xff]
    %v1903 = vld [vmem:[#allocation20 + $0x310] sm:$0xff]
    %v1904 = vld [vmem:[#allocation20 + $0x318] sm:$0xff]
    %v1905 = vld [vmem:[#allocation20 + $0x320] sm:$0xff]
    %v1906 = vld [vmem:[#allocation20 + $0x328] sm:$0xff]
    %v1907 = vld [vmem:[#allocation20 + $0x330] sm:$0xff]
    %v1908 = vld [vmem:[#allocation20 + $0x338] sm:$0xff]
    %v1909 = vld [vmem:[#allocation20 + $0x340] sm:$0xff]
    %v1910 = vld [vmem:[#allocation20 + $0x348] sm:$0xff]
    %v1911 = vld [vmem:[#allocation20 + $0x350] sm:$0xff]
    %v1912 = vld [vmem:[#allocation20 + $0x358] sm:$0xff]
    %v1913 = vld [vmem:[#allocation20 + $0x360] sm:$0xff]
    %v1914 = vld [vmem:[#allocation20 + $0x368] sm:$0xff]
    %v1915 = vld [vmem:[#allocation20 + $0x370] sm:$0xff]
    %v1916 = vld [vmem:[#allocation20 + $0x378] sm:$0xff]
    %v1917 = vld [vmem:[#allocation20 + $0x380] sm:$0xff]
    %v1918 = vld [vmem:[#allocation20 + $0x388] sm:$0xff]
    %v1919 = vld [vmem:[#allocation20 + $0x390] sm:$0xff]
    %v1920 = vld [vmem:[#allocation20 + $0x398] sm:$0xff]
    %v1921 = vld [vmem:[#allocation20 + $0x3a0] sm:$0xff]
    %v1922 = vld [vmem:[#allocation20 + $0x3a8] sm:$0xff]
    %v1923 = vld [vmem:[#allocation20 + $0x3b0] sm:$0xff]
    %v1924 = vld [vmem:[#allocation20 + $0x3b8] sm:$0xff]
    %v1925 = vld [vmem:[#allocation20 + $0x3c0] sm:$0xff]
    %v1926 = vld [vmem:[#allocation20 + $0x3c8] sm:$0xff]
    %v1927 = vld [vmem:[#allocation20 + $0x3d0] sm:$0xff]
    %v1928 = vld [vmem:[#allocation20 + $0x3d8] sm:$0xff]
    %v1929 = vld [vmem:[#allocation20 + $0x3e0] sm:$0xff]
    %v1930 = vld [vmem:[#allocation20 + $0x3e8] sm:$0xff]
    %v1931 = vld [vmem:[#allocation20 + $0x3f0] sm:$0xff]
    %v1932 = vld [vmem:[#allocation20 + $0x3f8] sm:$0xff]
    %v1933 = vld [vmem:[#allocation20 + $0x400] sm:$0xff]
    %v1934 = vld [vmem:[#allocation20 + $0x408] sm:$0xff]
    %v1935 = vld [vmem:[#allocation20 + $0x410] sm:$0xff]
    %v1936 = vld [vmem:[#allocation20 + $0x418] sm:$0xff]
    %v1937 = vld [vmem:[#allocation20 + $0x420] sm:$0xff]
    %v1938 = vld [vmem:[#allocation20 + $0x428] sm:$0xff]
    %v1939 = vld [vmem:[#allocation20 + $0x430] sm:$0xff]
    %v1940 = vld [vmem:[#allocation20 + $0x438] sm:$0xff]
    %v1941 = vld [vmem:[#allocation20 + $0x440] sm:$0xff]
    %v1942 = vld [vmem:[#allocation20 + $0x448] sm:$0xff]
    %v1943 = vld [vmem:[#allocation20 + $0x450] sm:$0xff]
    %v1944 = vld [vmem:[#allocation20 + $0x458] sm:$0xff]
    %v1945 = vld [vmem:[#allocation20 + $0x460] sm:$0xff]
    %v1946 = vld [vmem:[#allocation20 + $0x468] sm:$0xff]
    %v1947 = vld [vmem:[#allocation20 + $0x470] sm:$0xff]
    %v1948 = vld [vmem:[#allocation20 + $0x478] sm:$0xff]
    %v1949 = vld [vmem:[#allocation20 + $0x480] sm:$0xff]
    %v1950 = vld [vmem:[#allocation20 + $0x488] sm:$0xff]
    %v1951 = vld [vmem:[#allocation20 + $0x490] sm:$0xff]
    %v1952 = vld [vmem:[#allocation20 + $0x498] sm:$0xff]
    %v1953 = vld [vmem:[#allocation20 + $0x4a0] sm:$0xff]
    %v1954 = vld [vmem:[#allocation20 + $0x4a8] sm:$0xff]
    %v1955 = vld [vmem:[#allocation20 + $0x4b0] sm:$0xff]
    %v1956 = vld [vmem:[#allocation20 + $0x4b8] sm:$0xff]
    %v1957 = vld [vmem:[#allocation20 + $0x4c0] sm:$0xff]
    %v1958 = vld [vmem:[#allocation20 + $0x4c8] sm:$0xff]
    %v1959 = vld [vmem:[#allocation20 + $0x4d0] sm:$0xff]
    %v1960 = vld [vmem:[#allocation20 + $0x4d8] sm:$0xff]
    %v1961 = vld [vmem:[#allocation20 + $0x4e0] sm:$0xff]
    %v1962 = vld [vmem:[#allocation20 + $0x4e8] sm:$0xff]
    %v1963 = vld [vmem:[#allocation20 + $0x4f0] sm:$0xff]
    %v1964 = vld [vmem:[#allocation20 + $0x4f8] sm:$0xff]
    %v1965 = vld [vmem:[#allocation20 + $0x500] sm:$0xff]
    %v1966 = vld [vmem:[#allocation20 + $0x508] sm:$0xff]
    %v1967 = vld [vmem:[#allocation20 + $0x510] sm:$0xff]
    %v1968 = vld [vmem:[#allocation20 + $0x518] sm:$0xff]
    %v1969 = vld [vmem:[#allocation20 + $0x520] sm:$0xff]
    %v1970 = vld [vmem:[#allocation20 + $0x528] sm:$0xff]
    %v1971 = vld [vmem:[#allocation20 + $0x530] sm:$0xff]
    %v1972 = vld [vmem:[#allocation20 + $0x538] sm:$0xff]
    %v1973 = vld [vmem:[#allocation20 + $0x540] sm:$0xff]
    %v1974 = vld [vmem:[#allocation20 + $0x548] sm:$0xff]
    %v1975 = vld [vmem:[#allocation20 + $0x550] sm:$0xff]
    %v1976 = vld [vmem:[#allocation20 + $0x558] sm:$0xff]
    %v1977 = vld [vmem:[#allocation20 + $0x560] sm:$0xff]
    %v1978 = vld [vmem:[#allocation20 + $0x568] sm:$0xff]
    %v1979 = vld [vmem:[#allocation20 + $0x570] sm:$0xff]
    %v1980 = vld [vmem:[#allocation20 + $0x578] sm:$0xff]
    %v1981 = vld [vmem:[#allocation20 + $0x580] sm:$0xff]
    %v1982 = vld [vmem:[#allocation20 + $0x588] sm:$0xff]
    %v1983 = vld [vmem:[#allocation20 + $0x590] sm:$0xff]
    %v1984 = vld [vmem:[#allocation20 + $0x598] sm:$0xff]
    %v1985 = vld [vmem:[#allocation20 + $0x5a0] sm:$0xff]
    %v1986 = vld [vmem:[#allocation20 + $0x5a8] sm:$0xff]
    %v1987 = vld [vmem:[#allocation20 + $0x5b0] sm:$0xff]
    %v1988 = vld [vmem:[#allocation20 + $0x5b8] sm:$0xff]
    %v1989 = vld [vmem:[#allocation20 + $0x5c0] sm:$0xff]
    %v1990 = vld [vmem:[#allocation20 + $0x5c8] sm:$0xff]
    %v1991 = vld [vmem:[#allocation20 + $0x5d0] sm:$0xff]
    %v1992 = vld [vmem:[#allocation20 + $0x5d8] sm:$0xff]
    %v1993 = vld [vmem:[#allocation20 + $0x5e0] sm:$0xff]
    %v1994 = vld [vmem:[#allocation20 + $0x5e8] sm:$0xff]
    %v1995 = vld [vmem:[#allocation20 + $0x5f0] sm:$0xff]
    %v1996 = vld [vmem:[#allocation20 + $0x5f8] sm:$0xff]
    %v1997 = vld [vmem:[#allocation20 + $0x600] sm:$0xff]
    %v1998 = vld [vmem:[#allocation20 + $0x608] sm:$0xff]
    %v1999 = vld [vmem:[#allocation20 + $0x610] sm:$0xff]
    %v2000 = vld [vmem:[#allocation20 + $0x618] sm:$0xff]
    %v2001 = vld [vmem:[#allocation20 + $0x620] sm:$0xff]
    %v2002 = vld [vmem:[#allocation20 + $0x628] sm:$0xff]
    %v2003 = vld [vmem:[#allocation20 + $0x630] sm:$0xff]
    %v2004 = vld [vmem:[#allocation20 + $0x638] sm:$0xff]
    %v2005 = vld [vmem:[#allocation20 + $0x640] sm:$0xff]
    %v2006 = vld [vmem:[#allocation20 + $0x648] sm:$0xff]
    %v2007 = vld [vmem:[#allocation20 + $0x650] sm:$0xff]
    %v2008 = vld [vmem:[#allocation20 + $0x658] sm:$0xff]
    %v2009 = vld [vmem:[#allocation20 + $0x660] sm:$0xff]
    %v2010 = vld [vmem:[#allocation20 + $0x668] sm:$0xff]
    %v2011 = vld [vmem:[#allocation20 + $0x670] sm:$0xff]
    %v2012 = vld [vmem:[#allocation20 + $0x678] sm:$0xff]
    %v2013 = vld [vmem:[#allocation20 + $0x680] sm:$0xff]
    %v2014 = vld [vmem:[#allocation20 + $0x688] sm:$0xff]
    %v2015 = vld [vmem:[#allocation20 + $0x690] sm:$0xff]
    %v2016 = vld [vmem:[#allocation20 + $0x698] sm:$0xff]
    %v2017 = vld [vmem:[#allocation20 + $0x6a0] sm:$0xff]
    %v2018 = vld [vmem:[#allocation20 + $0x6a8] sm:$0xff]
    %v2019 = vld [vmem:[#allocation20 + $0x6b0] sm:$0xff]
    %v2020 = vld [vmem:[#allocation20 + $0x6b8] sm:$0xff]
    %v2021 = vld [vmem:[#allocation20 + $0x6c0] sm:$0xff]
    %v2022 = vld [vmem:[#allocation20 + $0x6c8] sm:$0xff]
    %v2023 = vld [vmem:[#allocation20 + $0x6d0] sm:$0xff]
    %v2024 = vld [vmem:[#allocation20 + $0x6d8] sm:$0xff]
    %v2025 = vld [vmem:[#allocation20 + $0x6e0] sm:$0xff]
    %v2026 = vld [vmem:[#allocation20 + $0x6e8] sm:$0xff]
    %v2027 = vld [vmem:[#allocation20 + $0x6f0] sm:$0xff]
    %v2028 = vld [vmem:[#allocation20 + $0x6f8] sm:$0xff]
    %v2029 = vld [vmem:[#allocation20 + $0x700] sm:$0xff]
    %v2030 = vld [vmem:[#allocation20 + $0x708] sm:$0xff]
    %v2031 = vld [vmem:[#allocation20 + $0x710] sm:$0xff]
    %v2032 = vld [vmem:[#allocation20 + $0x718] sm:$0xff]
    %v2033 = vld [vmem:[#allocation20 + $0x720] sm:$0xff]
    %v2034 = vld [vmem:[#allocation20 + $0x728] sm:$0xff]
    %v2035 = vld [vmem:[#allocation20 + $0x730] sm:$0xff]
    %v2036 = vld [vmem:[#allocation20 + $0x738] sm:$0xff]
    %v2037 = vld [vmem:[#allocation20 + $0x740] sm:$0xff]
    %v2038 = vld [vmem:[#allocation20 + $0x748] sm:$0xff]
    %v2039 = vld [vmem:[#allocation20 + $0x750] sm:$0xff]
    %v2040 = vld [vmem:[#allocation20 + $0x758] sm:$0xff]
    %v2041 = vld [vmem:[#allocation20 + $0x760] sm:$0xff]
    %v2042 = vld [vmem:[#allocation20 + $0x768] sm:$0xff]
    %v2043 = vld [vmem:[#allocation20 + $0x770] sm:$0xff]
    %v2044 = vld [vmem:[#allocation20 + $0x778] sm:$0xff]
    %v2045 = vld [vmem:[#allocation20 + $0x780] sm:$0xff]
    %v2046 = vld [vmem:[#allocation20 + $0x788] sm:$0xff]
    %v2047 = vld [vmem:[#allocation20 + $0x790] sm:$0xff]
    %v2048 = vld [vmem:[#allocation20 + $0x798] sm:$0xff]
    %v2049 = vld [vmem:[#allocation20 + $0x7a0] sm:$0xff]
    %v2050 = vld [vmem:[#allocation20 + $0x7a8] sm:$0xff]
    %v2051 = vld [vmem:[#allocation20 + $0x7b0] sm:$0xff]
    %v2052 = vld [vmem:[#allocation20 + $0x7b8] sm:$0xff]
    %v2053 = vld [vmem:[#allocation20 + $0x7c0] sm:$0xff]
    %v2054 = vld [vmem:[#allocation20 + $0x7c8] sm:$0xff]
    %v2055 = vld [vmem:[#allocation20 + $0x7d0] sm:$0xff]
    %v2056 = vld [vmem:[#allocation20 + $0x7d8] sm:$0xff]
    %v2057 = vld [vmem:[#allocation20 + $0x7e0] sm:$0xff]
    %v2058 = vld [vmem:[#allocation20 + $0x7e8] sm:$0xff]
    %v2059 = vld [vmem:[#allocation20 + $0x7f0] sm:$0xff]
    %v2060 = vld [vmem:[#allocation20 + $0x7f8] sm:$0xff]
    %v2061 = vld [vmem:[#allocation20 + $0x800] sm:$0xff]
    %v2062 = vld [vmem:[#allocation20 + $0x808] sm:$0xff]
    %v2063 = vld [vmem:[#allocation20 + $0x810] sm:$0xff]
    %v2064 = vld [vmem:[#allocation20 + $0x818] sm:$0xff]
    %v2065 = vld [vmem:[#allocation20 + $0x820] sm:$0xff]
    %v2066 = vld [vmem:[#allocation20 + $0x828] sm:$0xff]
    %v2067 = vld [vmem:[#allocation20 + $0x830] sm:$0xff]
    %v2068 = vld [vmem:[#allocation20 + $0x838] sm:$0xff]
    %v2069 = vld [vmem:[#allocation20 + $0x840] sm:$0xff]
    %v2070 = vld [vmem:[#allocation20 + $0x848] sm:$0xff]
    %v2071 = vld [vmem:[#allocation20 + $0x850] sm:$0xff]
    %v2072 = vld [vmem:[#allocation20 + $0x858] sm:$0xff]
    %v2073 = vld [vmem:[#allocation20 + $0x860] sm:$0xff]
    %v2074 = vld [vmem:[#allocation20 + $0x868] sm:$0xff]
    %v2075 = vld [vmem:[#allocation20 + $0x870] sm:$0xff]
    %v2076 = vld [vmem:[#allocation20 + $0x878] sm:$0xff]
    %v2077 = vld [vmem:[#allocation20 + $0x880] sm:$0xff]
    %v2078 = vld [vmem:[#allocation20 + $0x888] sm:$0xff]
    %v2079 = vld [vmem:[#allocation20 + $0x890] sm:$0xff]
    %v2080 = vld [vmem:[#allocation20 + $0x898] sm:$0xff]
    %v2081 = vld [vmem:[#allocation20 + $0x8a0] sm:$0xff]
    %v2082 = vld [vmem:[#allocation20 + $0x8a8] sm:$0xff]
    %v2083 = vld [vmem:[#allocation20 + $0x8b0] sm:$0xff]
    %v2084 = vld [vmem:[#allocation20 + $0x8b8] sm:$0xff]
    %v2085 = vld [vmem:[#allocation20 + $0x8c0] sm:$0xff]
    %v2086 = vld [vmem:[#allocation20 + $0x8c8] sm:$0xff]
    %v2087 = vld [vmem:[#allocation20 + $0x8d0] sm:$0xff]
    %v2088 = vld [vmem:[#allocation20 + $0x8d8] sm:$0xff]
    %v2089 = vld [vmem:[#allocation20 + $0x8e0] sm:$0xff]
    %v2090 = vld [vmem:[#allocation20 + $0x8e8] sm:$0xff]
    %v2091 = vld [vmem:[#allocation20 + $0x8f0] sm:$0xff]
    %v2092 = vld [vmem:[#allocation20 + $0x8f8] sm:$0xff]
    %v2093 = vld [vmem:[#allocation20 + $0x900] sm:$0xff]
    %v2094 = vld [vmem:[#allocation20 + $0x908] sm:$0xff]
    %v2095 = vld [vmem:[#allocation20 + $0x910] sm:$0xff]
    %v2096 = vld [vmem:[#allocation20 + $0x918] sm:$0xff]
    %v2097 = vld [vmem:[#allocation20 + $0x920] sm:$0xff]
    %v2098 = vld [vmem:[#allocation20 + $0x928] sm:$0xff]
    %v2099 = vld [vmem:[#allocation20 + $0x930] sm:$0xff]
    %v2100 = vld [vmem:[#allocation20 + $0x938] sm:$0xff]
    %v2101 = vld [vmem:[#allocation20 + $0x940] sm:$0xff]
    %v2102 = vld [vmem:[#allocation20 + $0x948] sm:$0xff]
    %v2103 = vld [vmem:[#allocation20 + $0x950] sm:$0xff]
    %v2104 = vld [vmem:[#allocation20 + $0x958] sm:$0xff]
    %v2105 = vld [vmem:[#allocation20 + $0x960] sm:$0xff]
    %v2106 = vld [vmem:[#allocation20 + $0x968] sm:$0xff]
    %v2107 = vld [vmem:[#allocation20 + $0x970] sm:$0xff]
    %v2108 = vld [vmem:[#allocation20 + $0x978] sm:$0xff]
    %v2109 = vld [vmem:[#allocation20 + $0x980] sm:$0xff]
    %v2110 = vld [vmem:[#allocation20 + $0x988] sm:$0xff]
    %v2111 = vld [vmem:[#allocation20 + $0x990] sm:$0xff]
    %v2112 = vld [vmem:[#allocation20 + $0x998] sm:$0xff]
    %v2113 = vld [vmem:[#allocation20 + $0x9a0] sm:$0xff]
    %v2114 = vld [vmem:[#allocation20 + $0x9a8] sm:$0xff]
    %v2115 = vld [vmem:[#allocation20 + $0x9b0] sm:$0xff]
    %v2116 = vld [vmem:[#allocation20 + $0x9b8] sm:$0xff]
    %v2117 = vld [vmem:[#allocation20 + $0x9c0] sm:$0xff]
    %v2118 = vld [vmem:[#allocation20 + $0x9c8] sm:$0xff]
    %v2119 = vld [vmem:[#allocation20 + $0x9d0] sm:$0xff]
    %v2120 = vld [vmem:[#allocation20 + $0x9d8] sm:$0xff]
    %v2121 = vld [vmem:[#allocation20 + $0x9e0] sm:$0xff]
    %v2122 = vld [vmem:[#allocation20 + $0x9e8] sm:$0xff]
    %v2123 = vld [vmem:[#allocation20 + $0x9f0] sm:$0xff]
    %v2124 = vld [vmem:[#allocation20 + $0x9f8] sm:$0xff]
    %v2125 = vld [vmem:[#allocation20 + $0xa00] sm:$0xff]
    %v2126 = vld [vmem:[#allocation20 + $0xa08] sm:$0xff]
    %v2127 = vld [vmem:[#allocation20 + $0xa10] sm:$0xff]
    %v2128 = vld [vmem:[#allocation20 + $0xa18] sm:$0xff]
    %v2129 = vld [vmem:[#allocation20 + $0xa20] sm:$0xff]
    %v2130 = vld [vmem:[#allocation20 + $0xa28] sm:$0xff]
    %v2131 = vld [vmem:[#allocation20 + $0xa30] sm:$0xff]
    %v2132 = vld [vmem:[#allocation20 + $0xa38] sm:$0xff]
    %v2133 = vld [vmem:[#allocation20 + $0xa40] sm:$0xff]
    %v2134 = vld [vmem:[#allocation20 + $0xa48] sm:$0xff]
    %v2135 = vld [vmem:[#allocation20 + $0xa50] sm:$0xff]
    %v2136 = vld [vmem:[#allocation20 + $0xa58] sm:$0xff]
    %v2137 = vld [vmem:[#allocation20 + $0xa60] sm:$0xff]
    %v2138 = vld [vmem:[#allocation20 + $0xa68] sm:$0xff]
    %v2139 = vld [vmem:[#allocation20 + $0xa70] sm:$0xff]
    %v2140 = vld [vmem:[#allocation20 + $0xa78] sm:$0xff]
    %v2141 = vld [vmem:[#allocation20 + $0xa80] sm:$0xff]
    %v2142 = vld [vmem:[#allocation20 + $0xa88] sm:$0xff]
    %v2143 = vld [vmem:[#allocation20 + $0xa90] sm:$0xff]
    %v2144 = vld [vmem:[#allocation20 + $0xa98] sm:$0xff]
    %v2145 = vld [vmem:[#allocation20 + $0xaa0] sm:$0xff]
    %v2146 = vld [vmem:[#allocation20 + $0xaa8] sm:$0xff]
    %v2147 = vld [vmem:[#allocation20 + $0xab0] sm:$0xff]
    %v2148 = vld [vmem:[#allocation20 + $0xab8] sm:$0xff]
    %v2149 = vld [vmem:[#allocation20 + $0xac0] sm:$0xff]
    %v2150 = vld [vmem:[#allocation20 + $0xac8] sm:$0xff]
    %v2151 = vld [vmem:[#allocation20 + $0xad0] sm:$0xff]
    %v2152 = vld [vmem:[#allocation20 + $0xad8] sm:$0xff]
    %v2153 = vld [vmem:[#allocation20 + $0xae0] sm:$0xff]
    %v2154 = vld [vmem:[#allocation20 + $0xae8] sm:$0xff]
    %v2155 = vld [vmem:[#allocation20 + $0xaf0] sm:$0xff]
    %v2156 = vld [vmem:[#allocation20 + $0xaf8] sm:$0xff]
    %v2157 = vld [vmem:[#allocation20 + $0xb00] sm:$0xff]
    %v2158 = vld [vmem:[#allocation20 + $0xb08] sm:$0xff]
    %v2159 = vld [vmem:[#allocation20 + $0xb10] sm:$0xff]
    %v2160 = vld [vmem:[#allocation20 + $0xb18] sm:$0xff]
    %v2161 = vld [vmem:[#allocation20 + $0xb20] sm:$0xff]
    %v2162 = vld [vmem:[#allocation20 + $0xb28] sm:$0xff]
    %v2163 = vld [vmem:[#allocation20 + $0xb30] sm:$0xff]
    %v2164 = vld [vmem:[#allocation20 + $0xb38] sm:$0xff]
    %v2165 = vld [vmem:[#allocation20 + $0xb40] sm:$0xff]
    %v2166 = vld [vmem:[#allocation20 + $0xb48] sm:$0xff]
    %v2167 = vld [vmem:[#allocation20 + $0xb50] sm:$0xff]
    %v2168 = vld [vmem:[#allocation20 + $0xb58] sm:$0xff]
    %v2169 = vld [vmem:[#allocation20 + $0xb60] sm:$0xff]
    %v2170 = vld [vmem:[#allocation20 + $0xb68] sm:$0xff]
    %v2171 = vld [vmem:[#allocation20 + $0xb70] sm:$0xff]
    %v2172 = vld [vmem:[#allocation20 + $0xb78] sm:$0xff]
    %v2173 = vld [vmem:[#allocation20 + $0xb80] sm:$0xff]
    %v2174 = vld [vmem:[#allocation20 + $0xb88] sm:$0xff]
    %v2175 = vld [vmem:[#allocation20 + $0xb90] sm:$0xff]
    %v2176 = vld [vmem:[#allocation20 + $0xb98] sm:$0xff]
    %v2177 = vld [vmem:[#allocation20 + $0xba0] sm:$0xff]
    %v2178 = vld [vmem:[#allocation20 + $0xba8] sm:$0xff]
    %v2179 = vld [vmem:[#allocation20 + $0xbb0] sm:$0xff]
    %v2180 = vld [vmem:[#allocation20 + $0xbb8] sm:$0xff]
    %v2181 = vld [vmem:[#allocation20 + $0xbc0] sm:$0xff]
    %v2182 = vld [vmem:[#allocation20 + $0xbc8] sm:$0xff]
    %v2183 = vld [vmem:[#allocation20 + $0xbd0] sm:$0xff]
    %v2184 = vld [vmem:[#allocation20 + $0xbd8] sm:$0xff]
    %v2185 = vld [vmem:[#allocation20 + $0xbe0] sm:$0xff]
    %v2186 = vld [vmem:[#allocation20 + $0xbe8] sm:$0xff]
    %v2187 = vld [vmem:[#allocation20 + $0xbf0] sm:$0xff]
    %v2188 = vld [vmem:[#allocation20 + $0xbf8] sm:$0xff]
    %v2189 = vld [vmem:[#allocation20 + $0xc00] sm:$0xff]
    %v2190 = vld [vmem:[#allocation20 + $0xc08] sm:$0xff]
    %v2191 = vld [vmem:[#allocation20 + $0xc10] sm:$0xff]
    %v2192 = vld [vmem:[#allocation20 + $0xc18] sm:$0xff]
    %v2193 = vld [vmem:[#allocation20 + $0xc20] sm:$0xff]
    %v2194 = vld [vmem:[#allocation20 + $0xc28] sm:$0xff]
    %v2195 = vld [vmem:[#allocation20 + $0xc30] sm:$0xff]
    %v2196 = vld [vmem:[#allocation20 + $0xc38] sm:$0xff]
    %v2197 = vld [vmem:[#allocation20 + $0xc40] sm:$0xff]
    %v2198 = vld [vmem:[#allocation20 + $0xc48] sm:$0xff]
    %v2199 = vld [vmem:[#allocation20 + $0xc50] sm:$0xff]
    %v2200 = vld [vmem:[#allocation20 + $0xc58] sm:$0xff]
    %v2201 = vld [vmem:[#allocation20 + $0xc60] sm:$0xff]
    %v2202 = vld [vmem:[#allocation20 + $0xc68] sm:$0xff]
    %v2203 = vld [vmem:[#allocation20 + $0xc70] sm:$0xff]
    %v2204 = vld [vmem:[#allocation20 + $0xc78] sm:$0xff]
    %v2205 = vld [vmem:[#allocation20 + $0xc80] sm:$0xff]
    %v2206 = vld [vmem:[#allocation20 + $0xc88] sm:$0xff]
    %v2207 = vld [vmem:[#allocation20 + $0xc90] sm:$0xff]
    %v2208 = vld [vmem:[#allocation20 + $0xc98] sm:$0xff]
    %v2209 = vld [vmem:[#allocation20 + $0xca0] sm:$0xff]
    %v2210 = vld [vmem:[#allocation20 + $0xca8] sm:$0xff]
    %v2211 = vld [vmem:[#allocation20 + $0xcb0] sm:$0xff]
    %v2212 = vld [vmem:[#allocation20 + $0xcb8] sm:$0xff]
    %v2213 = vld [vmem:[#allocation20 + $0xcc0] sm:$0xff]
    %v2214 = vld [vmem:[#allocation20 + $0xcc8] sm:$0xff]
    %v2215 = vld [vmem:[#allocation20 + $0xcd0] sm:$0xff]
    %v2216 = vld [vmem:[#allocation20 + $0xcd8] sm:$0xff]
    %v2217 = vld [vmem:[#allocation20 + $0xce0] sm:$0xff]
    %v2218 = vld [vmem:[#allocation20 + $0xce8] sm:$0xff]
    %v2219 = vld [vmem:[#allocation20 + $0xcf0] sm:$0xff]
    %v2220 = vld [vmem:[#allocation20 + $0xcf8] sm:$0xff]
    %v2221 = vld [vmem:[#allocation20 + $0xd00] sm:$0xff]
    %v2222 = vld [vmem:[#allocation20 + $0xd08] sm:$0xff]
    %v2223 = vld [vmem:[#allocation20 + $0xd10] sm:$0xff]
    %v2224 = vld [vmem:[#allocation20 + $0xd18] sm:$0xff]
    %v2225 = vld [vmem:[#allocation20 + $0xd20] sm:$0xff]
    %v2226 = vld [vmem:[#allocation20 + $0xd28] sm:$0xff]
    %v2227 = vld [vmem:[#allocation20 + $0xd30] sm:$0xff]
    %v2228 = vld [vmem:[#allocation20 + $0xd38] sm:$0xff]
    %v2229 = vld [vmem:[#allocation20 + $0xd40] sm:$0xff]
    %v2230 = vld [vmem:[#allocation20 + $0xd48] sm:$0xff]
    %v2231 = vld [vmem:[#allocation20 + $0xd50] sm:$0xff]
    %v2232 = vld [vmem:[#allocation20 + $0xd58] sm:$0xff]
    %v2233 = vld [vmem:[#allocation20 + $0xd60] sm:$0xff]
    %v2234 = vld [vmem:[#allocation20 + $0xd68] sm:$0xff]
    %v2235 = vld [vmem:[#allocation20 + $0xd70] sm:$0xff]
    %v2236 = vld [vmem:[#allocation20 + $0xd78] sm:$0xff]
    %v2237 = vld [vmem:[#allocation20 + $0xd80] sm:$0xff]
    %v2238 = vld [vmem:[#allocation20 + $0xd88] sm:$0xff]
    %v2239 = vld [vmem:[#allocation20 + $0xd90] sm:$0xff]
    %v2240 = vld [vmem:[#allocation20 + $0xd98] sm:$0xff]
    %v2241 = vld [vmem:[#allocation20 + $0xda0] sm:$0xff]
    %v2242 = vld [vmem:[#allocation20 + $0xda8] sm:$0xff]
    %v2243 = vld [vmem:[#allocation20 + $0xdb0] sm:$0xff]
    %v2244 = vld [vmem:[#allocation20 + $0xdb8] sm:$0xff]
    %v2245 = vld [vmem:[#allocation20 + $0xdc0] sm:$0xff]
    %v2246 = vld [vmem:[#allocation20 + $0xdc8] sm:$0xff]
    %v2247 = vld [vmem:[#allocation20 + $0xdd0] sm:$0xff]
    %v2248 = vld [vmem:[#allocation20 + $0xdd8] sm:$0xff]
    %v2249 = vld [vmem:[#allocation20 + $0xde0] sm:$0xff]
    %v2250 = vld [vmem:[#allocation20 + $0xde8] sm:$0xff]
    %v2251 = vld [vmem:[#allocation20 + $0xdf0] sm:$0xff]
    %v2252 = vld [vmem:[#allocation20 + $0xdf8] sm:$0xff]
    %v2253 = vld [vmem:[#allocation20 + $0xe00] sm:$0xff]
    %v2254 = vld [vmem:[#allocation20 + $0xe08] sm:$0xff]
    %v2255 = vld [vmem:[#allocation20 + $0xe10] sm:$0xff]
    %v2256 = vld [vmem:[#allocation20 + $0xe18] sm:$0xff]
    %v2257 = vld [vmem:[#allocation20 + $0xe20] sm:$0xff]
    %v2258 = vld [vmem:[#allocation20 + $0xe28] sm:$0xff]
    %v2259 = vld [vmem:[#allocation20 + $0xe30] sm:$0xff]
    %v2260 = vld [vmem:[#allocation20 + $0xe38] sm:$0xff]
    %v2261 = vld [vmem:[#allocation20 + $0xe40] sm:$0xff]
    %v2262 = vld [vmem:[#allocation20 + $0xe48] sm:$0xff]
    %v2263 = vld [vmem:[#allocation20 + $0xe50] sm:$0xff]
    %v2264 = vld [vmem:[#allocation20 + $0xe58] sm:$0xff]
    %v2265 = vld [vmem:[#allocation20 + $0xe60] sm:$0xff]
    %v2266 = vld [vmem:[#allocation20 + $0xe68] sm:$0xff]
    %v2267 = vld [vmem:[#allocation20 + $0xe70] sm:$0xff]
    %v2268 = vld [vmem:[#allocation20 + $0xe78] sm:$0xff]
    %v2269 = vld [vmem:[#allocation20 + $0xe80] sm:$0xff]
    %v2270 = vld [vmem:[#allocation20 + $0xe88] sm:$0xff]
    %v2271 = vld [vmem:[#allocation20 + $0xe90] sm:$0xff]
    %v2272 = vld [vmem:[#allocation20 + $0xe98] sm:$0xff]
    %v2273 = vld [vmem:[#allocation20 + $0xea0] sm:$0xff]
    %v2274 = vld [vmem:[#allocation20 + $0xea8] sm:$0xff]
    %v2275 = vld [vmem:[#allocation20 + $0xeb0] sm:$0xff]
    %v2276 = vld [vmem:[#allocation20 + $0xeb8] sm:$0xff]
    %v2277 = vld [vmem:[#allocation20 + $0xec0] sm:$0xff]
    %v2278 = vld [vmem:[#allocation20 + $0xec8] sm:$0xff]
    %v2279 = vld [vmem:[#allocation20 + $0xed0] sm:$0xff]
    %v2280 = vld [vmem:[#allocation20 + $0xed8] sm:$0xff]
    %v2281 = vld [vmem:[#allocation20 + $0xee0] sm:$0xff]
    %v2282 = vld [vmem:[#allocation20 + $0xee8] sm:$0xff]
    %v2283 = vld [vmem:[#allocation20 + $0xef0] sm:$0xff]
    %v2284 = vld [vmem:[#allocation20 + $0xef8] sm:$0xff]
    %v2285 = vld [vmem:[#allocation20 + $0xf00] sm:$0xff]
    %v2286 = vld [vmem:[#allocation20 + $0xf08] sm:$0xff]
    %v2287 = vld [vmem:[#allocation20 + $0xf10] sm:$0xff]
    %v2288 = vld [vmem:[#allocation20 + $0xf18] sm:$0xff]
    %v2289 = vld [vmem:[#allocation20 + $0xf20] sm:$0xff]
    %v2290 = vld [vmem:[#allocation20 + $0xf28] sm:$0xff]
    %v2291 = vld [vmem:[#allocation20 + $0xf30] sm:$0xff]
    %v2292 = vld [vmem:[#allocation20 + $0xf38] sm:$0xff]
    %v2293 = vld [vmem:[#allocation20 + $0xf40] sm:$0xff]
    %v2294 = vld [vmem:[#allocation20 + $0xf48] sm:$0xff]
    %v2295 = vld [vmem:[#allocation20 + $0xf50] sm:$0xff]
    %v2296 = vld [vmem:[#allocation20 + $0xf58] sm:$0xff]
    %v2297 = vld [vmem:[#allocation20 + $0xf60] sm:$0xff]
    %v2298 = vld [vmem:[#allocation20 + $0xf68] sm:$0xff]
    %v2299 = vld [vmem:[#allocation20 + $0xf70] sm:$0xff]
    %v2300 = vld [vmem:[#allocation20 + $0xf78] sm:$0xff]
    %v2301 = vld [vmem:[#allocation20 + $0xf80] sm:$0xff]
    %v2302 = vld [vmem:[#allocation20 + $0xf88] sm:$0xff]
    %v2303 = vld [vmem:[#allocation20 + $0xf90] sm:$0xff]
    %v2304 = vld [vmem:[#allocation20 + $0xf98] sm:$0xff]
    %v2305 = vld [vmem:[#allocation20 + $0xfa0] sm:$0xff]
    %v2306 = vld [vmem:[#allocation20 + $0xfa8] sm:$0xff]
    %v2307 = vld [vmem:[#allocation20 + $0xfb0] sm:$0xff]
    %v2308 = vld [vmem:[#allocation20 + $0xfb8] sm:$0xff]
    %v2309 = vld [vmem:[#allocation20 + $0xfc0] sm:$0xff]
    %v2310 = vld [vmem:[#allocation20 + $0xfc8] sm:$0xff]
    %v2311 = vld [vmem:[#allocation20 + $0xfd0] sm:$0xff]
    %v2312 = vld [vmem:[#allocation20 + $0xfd8] sm:$0xff]
    %v2313 = vld [vmem:[#allocation20 + $0xfe0] sm:$0xff]
    %v2314 = vld [vmem:[#allocation20 + $0xfe8] sm:$0xff]
    %v2315 = vld [vmem:[#allocation20 + $0xff0] sm:$0xff]
    %v2316 = vld [vmem:[#allocation20 + $0xff8] sm:$0xff]
    %v2317 = vld [vmem:[#allocation20 + $0x1000] sm:$0xff]
    %v2318 = vld [vmem:[#allocation20 + $0x1008] sm:$0xff]
    %v2319 = vld [vmem:[#allocation20 + $0x1010] sm:$0xff]
    %v2320 = vld [vmem:[#allocation20 + $0x1018] sm:$0xff]
    %v2321 = vld [vmem:[#allocation20 + $0x1020] sm:$0xff]
    %v2322 = vld [vmem:[#allocation20 + $0x1028] sm:$0xff]
    %v2323 = vld [vmem:[#allocation20 + $0x1030] sm:$0xff]
    %v2324 = vld [vmem:[#allocation20 + $0x1038] sm:$0xff]
    %v2325 = vld [vmem:[#allocation20 + $0x1040] sm:$0xff]
    %v2326 = vld [vmem:[#allocation20 + $0x1048] sm:$0xff]
    %v2327 = vld [vmem:[#allocation20 + $0x1050] sm:$0xff]
    %v2328 = vld [vmem:[#allocation20 + $0x1058] sm:$0xff]
    %v2329 = vld [vmem:[#allocation20 + $0x1060] sm:$0xff]
    %v2330 = vld [vmem:[#allocation20 + $0x1068] sm:$0xff]
    %v2331 = vld [vmem:[#allocation20 + $0x1070] sm:$0xff]
    %v2332 = vld [vmem:[#allocation20 + $0x1078] sm:$0xff]
    %v2333 = vld [vmem:[#allocation20 + $0x1080] sm:$0xff]
    %v2334 = vld [vmem:[#allocation20 + $0x1088] sm:$0xff]
    %v2335 = vld [vmem:[#allocation20 + $0x1090] sm:$0xff]
    %v2336 = vld [vmem:[#allocation20 + $0x1098] sm:$0xff]
    %v2337 = vld [vmem:[#allocation20 + $0x10a0] sm:$0xff]
    %v2338 = vld [vmem:[#allocation20 + $0x10a8] sm:$0xff]
    %v2339 = vld [vmem:[#allocation20 + $0x10b0] sm:$0xff]
    %v2340 = vld [vmem:[#allocation20 + $0x10b8] sm:$0xff]
    %v2341 = vld [vmem:[#allocation20 + $0x10c0] sm:$0xff]
    %v2342 = vld [vmem:[#allocation20 + $0x10c8] sm:$0xff]
    %v2343 = vld [vmem:[#allocation20 + $0x10d0] sm:$0xff]
    %v2344 = vld [vmem:[#allocation20 + $0x10d8] sm:$0xff]
    %v2345 = vld [vmem:[#allocation20 + $0x10e0] sm:$0xff]
    %v2346 = vld [vmem:[#allocation20 + $0x10e8] sm:$0xff]
    %v2347 = vld [vmem:[#allocation20 + $0x10f0] sm:$0xff]
    %v2348 = vld [vmem:[#allocation20 + $0x10f8] sm:$0xff]
    %v2349 = vld [vmem:[#allocation20 + $0x1100] sm:$0xff]
    %v2350 = vld [vmem:[#allocation20 + $0x1108] sm:$0xff]
    %v2351 = vld [vmem:[#allocation20 + $0x1110] sm:$0xff]
    %v2352 = vld [vmem:[#allocation20 + $0x1118] sm:$0xff]
    %v2353 = vld [vmem:[#allocation20 + $0x1120] sm:$0xff]
    %v2354 = vld [vmem:[#allocation20 + $0x1128] sm:$0xff]
    %v2355 = vld [vmem:[#allocation20 + $0x1130] sm:$0xff]
    %v2356 = vld [vmem:[#allocation20 + $0x1138] sm:$0xff]
    %v2357 = vld [vmem:[#allocation20 + $0x1140] sm:$0xff]
    %v2358 = vld [vmem:[#allocation20 + $0x1148] sm:$0xff]
    %v2359 = vld [vmem:[#allocation20 + $0x1150] sm:$0xff]
    %v2360 = vld [vmem:[#allocation20 + $0x1158] sm:$0xff]
    %v2361 = vld [vmem:[#allocation20 + $0x1160] sm:$0xff]
    %v2362 = vld [vmem:[#allocation20 + $0x1168] sm:$0xff]
    %v2363 = vld [vmem:[#allocation20 + $0x1170] sm:$0xff]
    %v2364 = vld [vmem:[#allocation20 + $0x1178] sm:$0xff]
    %v2365 = vld [vmem:[#allocation20 + $0x1180] sm:$0xff]
    %v2366 = vld [vmem:[#allocation20 + $0x1188] sm:$0xff]
    %v2367 = vld [vmem:[#allocation20 + $0x1190] sm:$0xff]
    %v2368 = vld [vmem:[#allocation20 + $0x1198] sm:$0xff]
    %v2369 = vld [vmem:[#allocation20 + $0x11a0] sm:$0xff]
    %v2370 = vld [vmem:[#allocation20 + $0x11a8] sm:$0xff]
    %v2371 = vld [vmem:[#allocation20 + $0x11b0] sm:$0xff]
    %v2372 = vld [vmem:[#allocation20 + $0x11b8] sm:$0xff]
    %v2373 = vld [vmem:[#allocation20 + $0x11c0] sm:$0xff]
    %v2374 = vld [vmem:[#allocation20 + $0x11c8] sm:$0xff]
    %v2375 = vld [vmem:[#allocation20 + $0x11d0] sm:$0xff]
    %v2376 = vld [vmem:[#allocation20 + $0x11d8] sm:$0xff]
    %v2377 = vld [vmem:[#allocation20 + $0x11e0] sm:$0xff]
    %v2378 = vld [vmem:[#allocation20 + $0x11e8] sm:$0xff]
    %v2379 = vld [vmem:[#allocation20 + $0x11f0] sm:$0xff]
    %v2380 = vld [vmem:[#allocation20 + $0x11f8] sm:$0xff]
    %v2381 = vld [vmem:[#allocation20 + $0x1200] sm:$0xff]
    %v2382 = vld [vmem:[#allocation20 + $0x1208] sm:$0xff]
    %v2383 = vld [vmem:[#allocation20 + $0x1210] sm:$0xff]
    %v2384 = vld [vmem:[#allocation20 + $0x1218] sm:$0xff]
    %v2385 = vld [vmem:[#allocation20 + $0x1220] sm:$0xff]
    %v2386 = vld [vmem:[#allocation20 + $0x1228] sm:$0xff]
    %v2387 = vld [vmem:[#allocation20 + $0x1230] sm:$0xff]
    %v2388 = vld [vmem:[#allocation20 + $0x1238] sm:$0xff]
    %v2389 = vld [vmem:[#allocation20 + $0x1240] sm:$0xff]
    %v2390 = vld [vmem:[#allocation20 + $0x1248] sm:$0xff]
    %v2391 = vld [vmem:[#allocation20 + $0x1250] sm:$0xff]
    %v2392 = vld [vmem:[#allocation20 + $0x1258] sm:$0xff]
    %v2393 = vld [vmem:[#allocation20 + $0x1260] sm:$0xff]
    %v2394 = vld [vmem:[#allocation20 + $0x1268] sm:$0xff]
    %v2395 = vld [vmem:[#allocation20 + $0x1270] sm:$0xff]
    %v2396 = vld [vmem:[#allocation20 + $0x1278] sm:$0xff]
    %v2397 = vld [vmem:[#allocation20 + $0x1280] sm:$0xff]
    %v2398 = vld [vmem:[#allocation20 + $0x1288] sm:$0xff]
    %v2399 = vld [vmem:[#allocation20 + $0x1290] sm:$0xff]
    %v2400 = vld [vmem:[#allocation20 + $0x1298] sm:$0xff]
    %v2401 = vld [vmem:[#allocation20 + $0x12a0] sm:$0xff]
    %v2402 = vld [vmem:[#allocation20 + $0x12a8] sm:$0xff]
    %v2403 = vld [vmem:[#allocation20 + $0x12b0] sm:$0xff]
    %v2404 = vld [vmem:[#allocation20 + $0x12b8] sm:$0xff]
    %v2405 = vld [vmem:[#allocation20 + $0x12c0] sm:$0xff]
    %v2406 = vld [vmem:[#allocation20 + $0x12c8] sm:$0xff]
    %v2407 = vld [vmem:[#allocation20 + $0x12d0] sm:$0xff]
    %v2408 = vld [vmem:[#allocation20 + $0x12d8] sm:$0xff]
    %v2409 = vld [vmem:[#allocation20 + $0x12e0] sm:$0xff]
    %v2410 = vld [vmem:[#allocation20 + $0x12e8] sm:$0xff]
    %v2411 = vld [vmem:[#allocation20 + $0x12f0] sm:$0xff]
    %v2412 = vld [vmem:[#allocation20 + $0x12f8] sm:$0xff]
    %v2413 = vld [vmem:[#allocation20 + $0x1300] sm:$0xff]
    %v2414 = vld [vmem:[#allocation20 + $0x1308] sm:$0xff]
    %v2415 = vld [vmem:[#allocation20 + $0x1310] sm:$0xff]
    %v2416 = vld [vmem:[#allocation20 + $0x1318] sm:$0xff]
    %v2417 = vld [vmem:[#allocation20 + $0x1320] sm:$0xff]
    %v2418 = vld [vmem:[#allocation20 + $0x1328] sm:$0xff]
    %v2419 = vld [vmem:[#allocation20 + $0x1330] sm:$0xff]
    %v2420 = vld [vmem:[#allocation20 + $0x1338] sm:$0xff]
    %v2421 = vld [vmem:[#allocation20 + $0x1340] sm:$0xff]
    %v2422 = vld [vmem:[#allocation20 + $0x1348] sm:$0xff]
    %v2423 = vld [vmem:[#allocation20 + $0x1350] sm:$0xff]
    %v2424 = vld [vmem:[#allocation20 + $0x1358] sm:$0xff]
    %v2425 = vld [vmem:[#allocation20 + $0x1360] sm:$0xff]
    %v2426 = vld [vmem:[#allocation20 + $0x1368] sm:$0xff]
    %v2427 = vld [vmem:[#allocation20 + $0x1370] sm:$0xff]
    %v2428 = vld [vmem:[#allocation20 + $0x1378] sm:$0xff]
    %v2429 = vld [vmem:[#allocation20 + $0x1380] sm:$0xff]
    %v2430 = vld [vmem:[#allocation20 + $0x1388] sm:$0xff]
    %v2431 = vld [vmem:[#allocation20 + $0x1390] sm:$0xff]
    %v2432 = vld [vmem:[#allocation20 + $0x1398] sm:$0xff]
    %v2433 = vld [vmem:[#allocation20 + $0x13a0] sm:$0xff]
    %v2434 = vld [vmem:[#allocation20 + $0x13a8] sm:$0xff]
    %v2435 = vld [vmem:[#allocation20 + $0x13b0] sm:$0xff]
    %v2436 = vld [vmem:[#allocation20 + $0x13b8] sm:$0xff]
    %v2437 = vld [vmem:[#allocation20 + $0x13c0] sm:$0xff]
    %v2438 = vld [vmem:[#allocation20 + $0x13c8] sm:$0xff]
    %v2439 = vld [vmem:[#allocation20 + $0x13d0] sm:$0xff]
    %v2440 = vld [vmem:[#allocation20 + $0x13d8] sm:$0xff]
    %v2441 = vld [vmem:[#allocation20 + $0x13e0] sm:$0xff]
    %v2442 = vld [vmem:[#allocation20 + $0x13e8] sm:$0xff]
    %v2443 = vld [vmem:[#allocation20 + $0x13f0] sm:$0xff]
    %v2444 = vld [vmem:[#allocation20 + $0x13f8] sm:$0xff]
    %v2445 = vld [vmem:[#allocation20 + $0x1400] sm:$0xff]
    %v2446 = vld [vmem:[#allocation20 + $0x1408] sm:$0xff]
    %v2447 = vld [vmem:[#allocation20 + $0x1410] sm:$0xff]
    %v2448 = vld [vmem:[#allocation20 + $0x1418] sm:$0xff]
    %v2449 = vld [vmem:[#allocation20 + $0x1420] sm:$0xff]
    %v2450 = vld [vmem:[#allocation20 + $0x1428] sm:$0xff]
    %v2451 = vld [vmem:[#allocation20 + $0x1430] sm:$0xff]
    %v2452 = vld [vmem:[#allocation20 + $0x1438] sm:$0xff]
    %v2453 = vld [vmem:[#allocation20 + $0x1440] sm:$0xff]
    %v2454 = vld [vmem:[#allocation20 + $0x1448] sm:$0xff]
    %v2455 = vld [vmem:[#allocation20 + $0x1450] sm:$0xff]
    %v2456 = vld [vmem:[#allocation20 + $0x1458] sm:$0xff]
    %v2457 = vld [vmem:[#allocation20 + $0x1460] sm:$0xff]
    %v2458 = vld [vmem:[#allocation20 + $0x1468] sm:$0xff]
    %v2459 = vld [vmem:[#allocation20 + $0x1470] sm:$0xff]
    %v2460 = vld [vmem:[#allocation20 + $0x1478] sm:$0xff]
    %v2461 = vld [vmem:[#allocation20 + $0x1480] sm:$0xff]
    %v2462 = vld [vmem:[#allocation20 + $0x1488] sm:$0xff]
    %v2463 = vld [vmem:[#allocation20 + $0x1490] sm:$0xff]
    %v2464 = vld [vmem:[#allocation20 + $0x1498] sm:$0xff]
    %v2465 = vld [vmem:[#allocation20 + $0x14a0] sm:$0xff]
    %v2466 = vld [vmem:[#allocation20 + $0x14a8] sm:$0xff]
    %v2467 = vld [vmem:[#allocation20 + $0x14b0] sm:$0xff]
    %v2468 = vld [vmem:[#allocation20 + $0x14b8] sm:$0xff]
    %v2469 = vld [vmem:[#allocation20 + $0x14c0] sm:$0xff]
    %v2470 = vld [vmem:[#allocation20 + $0x14c8] sm:$0xff]
    %v2471 = vld [vmem:[#allocation20 + $0x14d0] sm:$0xff]
    %v2472 = vld [vmem:[#allocation20 + $0x14d8] sm:$0xff]
    %v2473 = vld [vmem:[#allocation20 + $0x14e0] sm:$0xff]
    %v2474 = vld [vmem:[#allocation20 + $0x14e8] sm:$0xff]
    %v2475 = vld [vmem:[#allocation20 + $0x14f0] sm:$0xff]
    %v2476 = vld [vmem:[#allocation20 + $0x14f8] sm:$0xff]
    %v2477 = vld [vmem:[#allocation20 + $0x1500] sm:$0xff]
    %v2478 = vld [vmem:[#allocation20 + $0x1508] sm:$0xff]
    %v2479 = vld [vmem:[#allocation20 + $0x1510] sm:$0xff]
    %v2480 = vld [vmem:[#allocation20 + $0x1518] sm:$0xff]
    %v2481 = vld [vmem:[#allocation20 + $0x1520] sm:$0xff]
    %v2482 = vld [vmem:[#allocation20 + $0x1528] sm:$0xff]
    %v2483 = vld [vmem:[#allocation20 + $0x1530] sm:$0xff]
    %v2484 = vld [vmem:[#allocation20 + $0x1538] sm:$0xff]
    %v2485 = vld [vmem:[#allocation20 + $0x1540] sm:$0xff]
    %v2486 = vld [vmem:[#allocation20 + $0x1548] sm:$0xff]
    %v2487 = vld [vmem:[#allocation20 + $0x1550] sm:$0xff]
    %v2488 = vld [vmem:[#allocation20 + $0x1558] sm:$0xff]
    %v2489 = vld [vmem:[#allocation20 + $0x1560] sm:$0xff]
    %v2490 = vld [vmem:[#allocation20 + $0x1568] sm:$0xff]
    %v2491 = vld [vmem:[#allocation20 + $0x1570] sm:$0xff]
    %v2492 = vld [vmem:[#allocation20 + $0x1578] sm:$0xff]
    %v2493 = vld [vmem:[#allocation20 + $0x1580] sm:$0xff]
    %v2494 = vld [vmem:[#allocation20 + $0x1588] sm:$0xff]
    %v2495 = vld [vmem:[#allocation20 + $0x1590] sm:$0xff]
    %v2496 = vld [vmem:[#allocation20 + $0x1598] sm:$0xff]
    %v2497 = vld [vmem:[#allocation20 + $0x15a0] sm:$0xff]
    %v2498 = vld [vmem:[#allocation20 + $0x15a8] sm:$0xff]
    %v2499 = vld [vmem:[#allocation20 + $0x15b0] sm:$0xff]
    %v2500 = vld [vmem:[#allocation20 + $0x15b8] sm:$0xff]
    %v2501 = vld [vmem:[#allocation20 + $0x15c0] sm:$0xff]
    %v2502 = vld [vmem:[#allocation20 + $0x15c8] sm:$0xff]
    %v2503 = vld [vmem:[#allocation20 + $0x15d0] sm:$0xff]
    %v2504 = vld [vmem:[#allocation20 + $0x15d8] sm:$0xff]
    %v2505 = vld [vmem:[#allocation20 + $0x15e0] sm:$0xff]
    %v2506 = vld [vmem:[#allocation20 + $0x15e8] sm:$0xff]
    %v2507 = vld [vmem:[#allocation20 + $0x15f0] sm:$0xff]
    %v2508 = vld [vmem:[#allocation20 + $0x15f8] sm:$0xff]
    %v2509 = vld [vmem:[#allocation20 + $0x1600] sm:$0xff]
    %v2510 = vld [vmem:[#allocation20 + $0x1608] sm:$0xff]
    %v2511 = vld [vmem:[#allocation20 + $0x1610] sm:$0xff]
    %v2512 = vld [vmem:[#allocation20 + $0x1618] sm:$0xff]
    %v2513 = vld [vmem:[#allocation20 + $0x1620] sm:$0xff]
    %v2514 = vld [vmem:[#allocation20 + $0x1628] sm:$0xff]
    %v2515 = vld [vmem:[#allocation20 + $0x1630] sm:$0xff]
    %v2516 = vld [vmem:[#allocation20 + $0x1638] sm:$0xff]
    %v2517 = vld [vmem:[#allocation20 + $0x1640] sm:$0xff]
    %v2518 = vld [vmem:[#allocation20 + $0x1648] sm:$0xff]
    %v2519 = vld [vmem:[#allocation20 + $0x1650] sm:$0xff]
    %v2520 = vld [vmem:[#allocation20 + $0x1658] sm:$0xff]
    %v2521 = vld [vmem:[#allocation20 + $0x1660] sm:$0xff]
    %v2522 = vld [vmem:[#allocation20 + $0x1668] sm:$0xff]
    %v2523 = vld [vmem:[#allocation20 + $0x1670] sm:$0xff]
    %v2524 = vld [vmem:[#allocation20 + $0x1678] sm:$0xff]
    %v2525 = vld [vmem:[#allocation20 + $0x1680] sm:$0xff]
    %v2526 = vld [vmem:[#allocation20 + $0x1688] sm:$0xff]
    %v2527 = vld [vmem:[#allocation20 + $0x1690] sm:$0xff]
    %v2528 = vld [vmem:[#allocation20 + $0x1698] sm:$0xff]
    %v2529 = vld [vmem:[#allocation20 + $0x16a0] sm:$0xff]
    %v2530 = vld [vmem:[#allocation20 + $0x16a8] sm:$0xff]
    %v2531 = vld [vmem:[#allocation20 + $0x16b0] sm:$0xff]
    %v2532 = vld [vmem:[#allocation20 + $0x16b8] sm:$0xff]
    %v2533 = vld [vmem:[#allocation20 + $0x16c0] sm:$0xff]
    %v2534 = vld [vmem:[#allocation20 + $0x16c8] sm:$0xff]
    %v2535 = vld [vmem:[#allocation20 + $0x16d0] sm:$0xff]
    %v2536 = vld [vmem:[#allocation20 + $0x16d8] sm:$0xff]
    %v2537 = vld [vmem:[#allocation20 + $0x16e0] sm:$0xff]
    %v2538 = vld [vmem:[#allocation20 + $0x16e8] sm:$0xff]
    %v2539 = vld [vmem:[#allocation20 + $0x16f0] sm:$0xff]
    %v2540 = vld [vmem:[#allocation20 + $0x16f8] sm:$0xff]
    %v2541 = vld [vmem:[#allocation20 + $0x1700] sm:$0xff]
    %v2542 = vld [vmem:[#allocation20 + $0x1708] sm:$0xff]
    %v2543 = vld [vmem:[#allocation20 + $0x1710] sm:$0xff]
    %v2544 = vld [vmem:[#allocation20 + $0x1718] sm:$0xff]
    %v2545 = vld [vmem:[#allocation20 + $0x1720] sm:$0xff]
    %v2546 = vld [vmem:[#allocation20 + $0x1728] sm:$0xff]
    %v2547 = vld [vmem:[#allocation20 + $0x1730] sm:$0xff]
    %v2548 = vld [vmem:[#allocation20 + $0x1738] sm:$0xff]
    %v2549 = vld [vmem:[#allocation20 + $0x1740] sm:$0xff]
    %v2550 = vld [vmem:[#allocation20 + $0x1748] sm:$0xff]
    %v2551 = vld [vmem:[#allocation20 + $0x1750] sm:$0xff]
    %v2552 = vld [vmem:[#allocation20 + $0x1758] sm:$0xff]
    %v2553 = vld [vmem:[#allocation20 + $0x1760] sm:$0xff]
    %v2554 = vld [vmem:[#allocation20 + $0x1768] sm:$0xff]
    %v2555 = vld [vmem:[#allocation20 + $0x1770] sm:$0xff]
    %v2556 = vld [vmem:[#allocation20 + $0x1778] sm:$0xff]
    %v2557 = vld [vmem:[#allocation20 + $0x1780] sm:$0xff]
    %v2558 = vld [vmem:[#allocation20 + $0x1788] sm:$0xff]
    %v2559 = vld [vmem:[#allocation20 + $0x1790] sm:$0xff]
    %v2560 = vld [vmem:[#allocation20 + $0x1798] sm:$0xff]
    %v2561 = vld [vmem:[#allocation20 + $0x17a0] sm:$0xff]
    %v2562 = vld [vmem:[#allocation20 + $0x17a8] sm:$0xff]
    %v2563 = vld [vmem:[#allocation20 + $0x17b0] sm:$0xff]
    %v2564 = vld [vmem:[#allocation20 + $0x17b8] sm:$0xff]
    %v2565 = vld [vmem:[#allocation20 + $0x17c0] sm:$0xff]
    %v2566 = vld [vmem:[#allocation20 + $0x17c8] sm:$0xff]
    %v2567 = vld [vmem:[#allocation20 + $0x17d0] sm:$0xff]
    %v2568 = vld [vmem:[#allocation20 + $0x17d8] sm:$0xff]
    %v2569 = vld [vmem:[#allocation20 + $0x17e0] sm:$0xff]
    %v2570 = vld [vmem:[#allocation20 + $0x17e8] sm:$0xff]
    %v2571 = vld [vmem:[#allocation20 + $0x17f0] sm:$0xff]
    %v2572 = vld [vmem:[#allocation20 + $0x17f8] sm:$0xff]
    %v2573 = vld [vmem:[#allocation20 + $0x1800] sm:$0xff]
    %v2574 = vld [vmem:[#allocation20 + $0x1808] sm:$0xff]
    %v2575 = vld [vmem:[#allocation20 + $0x1810] sm:$0xff]
    %v2576 = vld [vmem:[#allocation20 + $0x1818] sm:$0xff]
    %v2577 = vld [vmem:[#allocation20 + $0x1820] sm:$0xff]
    %v2578 = vld [vmem:[#allocation20 + $0x1828] sm:$0xff]
    %v2579 = vld [vmem:[#allocation20 + $0x1830] sm:$0xff]
    %v2580 = vld [vmem:[#allocation20 + $0x1838] sm:$0xff]
    %v2581 = vld [vmem:[#allocation20 + $0x1840] sm:$0xff]
    %v2582 = vld [vmem:[#allocation20 + $0x1848] sm:$0xff]
    %v2583 = vld [vmem:[#allocation20 + $0x1850] sm:$0xff]
    %v2584 = vld [vmem:[#allocation20 + $0x1858] sm:$0xff]
    %v2585 = vld [vmem:[#allocation20 + $0x1860] sm:$0xff]
    %v2586 = vld [vmem:[#allocation20 + $0x1868] sm:$0xff]
    %v2587 = vld [vmem:[#allocation20 + $0x1870] sm:$0xff]
    %v2588 = vld [vmem:[#allocation20 + $0x1878] sm:$0xff]
    %v2589 = vld [vmem:[#allocation20 + $0x1880] sm:$0xff]
    %v2590 = vld [vmem:[#allocation20 + $0x1888] sm:$0xff]
    %v2591 = vld [vmem:[#allocation20 + $0x1890] sm:$0xff]
    %v2592 = vld [vmem:[#allocation20 + $0x1898] sm:$0xff]
    %v2593 = vld [vmem:[#allocation20 + $0x18a0] sm:$0xff]
    %v2594 = vld [vmem:[#allocation20 + $0x18a8] sm:$0xff]
    %v2595 = vld [vmem:[#allocation20 + $0x18b0] sm:$0xff]
    %v2596 = vld [vmem:[#allocation20 + $0x18b8] sm:$0xff]
    %v2597 = vld [vmem:[#allocation20 + $0x18c0] sm:$0xff]
    %v2598 = vld [vmem:[#allocation20 + $0x18c8] sm:$0xff]
    %v2599 = vld [vmem:[#allocation20 + $0x18d0] sm:$0xff]
    %v2600 = vld [vmem:[#allocation20 + $0x18d8] sm:$0xff]
    %v2601 = vld [vmem:[#allocation20 + $0x18e0] sm:$0xff]
    %v2602 = vld [vmem:[#allocation20 + $0x18e8] sm:$0xff]
    %v2603 = vld [vmem:[#allocation20 + $0x18f0] sm:$0xff]
    %v2604 = vld [vmem:[#allocation20 + $0x18f8] sm:$0xff]
    %v2605 = vld [vmem:[#allocation20 + $0x1900] sm:$0xff]
    %v2606 = vld [vmem:[#allocation20 + $0x1908] sm:$0xff]
    %v2607 = vld [vmem:[#allocation20 + $0x1910] sm:$0xff]
    %v2608 = vld [vmem:[#allocation20 + $0x1918] sm:$0xff]
    %v2609 = vld [vmem:[#allocation20 + $0x1920] sm:$0xff]
    %v2610 = vld [vmem:[#allocation20 + $0x1928] sm:$0xff]
    %v2611 = vld [vmem:[#allocation20 + $0x1930] sm:$0xff]
    %v2612 = vld [vmem:[#allocation20 + $0x1938] sm:$0xff]
    %v2613 = vld [vmem:[#allocation20 + $0x1940] sm:$0xff]
    %v2614 = vld [vmem:[#allocation20 + $0x1948] sm:$0xff]
    %v2615 = vld [vmem:[#allocation20 + $0x1950] sm:$0xff]
    %v2616 = vld [vmem:[#allocation20 + $0x1958] sm:$0xff]
    %v2617 = vld [vmem:[#allocation20 + $0x1960] sm:$0xff]
    %v2618 = vld [vmem:[#allocation20 + $0x1968] sm:$0xff]
    %v2619 = vld [vmem:[#allocation20 + $0x1970] sm:$0xff]
    %v2620 = vld [vmem:[#allocation20 + $0x1978] sm:$0xff]
    %v2621 = vld [vmem:[#allocation20 + $0x1980] sm:$0xff]
    %v2622 = vld [vmem:[#allocation20 + $0x1988] sm:$0xff]
    %v2623 = vld [vmem:[#allocation20 + $0x1990] sm:$0xff]
    %v2624 = vld [vmem:[#allocation20 + $0x1998] sm:$0xff]
    %v2625 = vld [vmem:[#allocation20 + $0x19a0] sm:$0xff]
    %v2626 = vld [vmem:[#allocation20 + $0x19a8] sm:$0xff]
    %v2627 = vld [vmem:[#allocation20 + $0x19b0] sm:$0xff]
    %v2628 = vld [vmem:[#allocation20 + $0x19b8] sm:$0xff]
    %v2629 = vld [vmem:[#allocation20 + $0x19c0] sm:$0xff]
    %v2630 = vld [vmem:[#allocation20 + $0x19c8] sm:$0xff]
    %v2631 = vld [vmem:[#allocation20 + $0x19d0] sm:$0xff]
    %v2632 = vld [vmem:[#allocation20 + $0x19d8] sm:$0xff]
    %v2633 = vld [vmem:[#allocation20 + $0x19e0] sm:$0xff]
    %v2634 = vld [vmem:[#allocation20 + $0x19e8] sm:$0xff]
    %v2635 = vld [vmem:[#allocation20 + $0x19f0] sm:$0xff]
    %v2636 = vld [vmem:[#allocation20 + $0x19f8] sm:$0xff]
    %v2637 = vld [vmem:[#allocation20 + $0x1a00] sm:$0xff]
    %v2638 = vld [vmem:[#allocation20 + $0x1a08] sm:$0xff]
    %v2639 = vld [vmem:[#allocation20 + $0x1a10] sm:$0xff]
    %v2640 = vld [vmem:[#allocation20 + $0x1a18] sm:$0xff]
    %v2641 = vld [vmem:[#allocation20 + $0x1a20] sm:$0xff]
    %v2642 = vld [vmem:[#allocation20 + $0x1a28] sm:$0xff]
    %v2643 = vld [vmem:[#allocation20 + $0x1a30] sm:$0xff]
    %v2644 = vld [vmem:[#allocation20 + $0x1a38] sm:$0xff]
    %v2645 = vld [vmem:[#allocation20 + $0x1a40] sm:$0xff]
    %v2646 = vld [vmem:[#allocation20 + $0x1a48] sm:$0xff]
    %v2647 = vld [vmem:[#allocation20 + $0x1a50] sm:$0xff]
    %v2648 = vld [vmem:[#allocation20 + $0x1a58] sm:$0xff]
    %v2649 = vld [vmem:[#allocation20 + $0x1a60] sm:$0xff]
    %v2650 = vld [vmem:[#allocation20 + $0x1a68] sm:$0xff]
    %v2651 = vld [vmem:[#allocation20 + $0x1a70] sm:$0xff]
    %v2652 = vld [vmem:[#allocation20 + $0x1a78] sm:$0xff]
    %v2653 = vld [vmem:[#allocation20 + $0x1a80] sm:$0xff]
    %v2654 = vld [vmem:[#allocation20 + $0x1a88] sm:$0xff]
    %v2655 = vld [vmem:[#allocation20 + $0x1a90] sm:$0xff]
    %v2656 = vld [vmem:[#allocation20 + $0x1a98] sm:$0xff]
    %v2657 = vld [vmem:[#allocation20 + $0x1aa0] sm:$0xff]
    %v2658 = vld [vmem:[#allocation20 + $0x1aa8] sm:$0xff]
    %v2659 = vld [vmem:[#allocation20 + $0x1ab0] sm:$0xff]
    %v2660 = vld [vmem:[#allocation20 + $0x1ab8] sm:$0xff]
    %v2661 = vld [vmem:[#allocation20 + $0x1ac0] sm:$0xff]
    %v2662 = vld [vmem:[#allocation20 + $0x1ac8] sm:$0xff]
    %v2663 = vld [vmem:[#allocation20 + $0x1ad0] sm:$0xff]
    %v2664 = vld [vmem:[#allocation20 + $0x1ad8] sm:$0xff]
    %v2665 = vld [vmem:[#allocation20 + $0x1ae0] sm:$0xff]
    %v2666 = vld [vmem:[#allocation20 + $0x1ae8] sm:$0xff]
    %v2667 = vld [vmem:[#allocation20 + $0x1af0] sm:$0xff]
    %v2668 = vld [vmem:[#allocation20 + $0x1af8] sm:$0xff]
    %v2669 = vld [vmem:[#allocation20 + $0x1b00] sm:$0xff]
    %v2670 = vld [vmem:[#allocation20 + $0x1b08] sm:$0xff]
    %v2671 = vld [vmem:[#allocation20 + $0x1b10] sm:$0xff]
    %v2672 = vld [vmem:[#allocation20 + $0x1b18] sm:$0xff]
    %v2673 = vld [vmem:[#allocation20 + $0x1b20] sm:$0xff]
    %v2674 = vld [vmem:[#allocation20 + $0x1b28] sm:$0xff]
    %v2675 = vld [vmem:[#allocation20 + $0x1b30] sm:$0xff]
    %v2676 = vld [vmem:[#allocation20 + $0x1b38] sm:$0xff]
    %v2677 = vld [vmem:[#allocation20 + $0x1b40] sm:$0xff]
    %v2678 = vld [vmem:[#allocation20 + $0x1b48] sm:$0xff]
    %v2679 = vld [vmem:[#allocation20 + $0x1b50] sm:$0xff]
    %v2680 = vld [vmem:[#allocation20 + $0x1b58] sm:$0xff]
    %v2681 = vld [vmem:[#allocation20 + $0x1b60] sm:$0xff]
    %v2682 = vld [vmem:[#allocation20 + $0x1b68] sm:$0xff]
    %v2683 = vld [vmem:[#allocation20 + $0x1b70] sm:$0xff]
    %v2684 = vld [vmem:[#allocation20 + $0x1b78] sm:$0xff]
    %v2685 = vld [vmem:[#allocation20 + $0x1b80] sm:$0xff]
    %v2686 = vld [vmem:[#allocation20 + $0x1b88] sm:$0xff]
    %v2687 = vld [vmem:[#allocation20 + $0x1b90] sm:$0xff]
    %v2688 = vld [vmem:[#allocation20 + $0x1b98] sm:$0xff]
    %v2689 = vld [vmem:[#allocation20 + $0x1ba0] sm:$0xff]
    %v2690 = vld [vmem:[#allocation20 + $0x1ba8] sm:$0xff]
    %v2691 = vld [vmem:[#allocation20 + $0x1bb0] sm:$0xff]
    %v2692 = vld [vmem:[#allocation20 + $0x1bb8] sm:$0xff]
    %v2693 = vld [vmem:[#allocation20 + $0x1bc0] sm:$0xff]
    %v2694 = vld [vmem:[#allocation20 + $0x1bc8] sm:$0xff]
    %v2695 = vld [vmem:[#allocation20 + $0x1bd0] sm:$0xff]
    %v2696 = vld [vmem:[#allocation20 + $0x1bd8] sm:$0xff]
    %v2697 = vld [vmem:[#allocation20 + $0x1be0] sm:$0xff]
    %v2698 = vld [vmem:[#allocation20 + $0x1be8] sm:$0xff]
    %v2699 = vld [vmem:[#allocation20 + $0x1bf0] sm:$0xff]
    %v2700 = vld [vmem:[#allocation20 + $0x1bf8] sm:$0xff]
    %v2701 = vld [vmem:[#allocation20 + $0x1c00] sm:$0xff]
    %v2702 = vld [vmem:[#allocation20 + $0x1c08] sm:$0xff]
    %v2703 = vld [vmem:[#allocation20 + $0x1c10] sm:$0xff]
    %v2704 = vld [vmem:[#allocation20 + $0x1c18] sm:$0xff]
    %v2705 = vld [vmem:[#allocation20 + $0x1c20] sm:$0xff]
    %v2706 = vld [vmem:[#allocation20 + $0x1c28] sm:$0xff]
    %v2707 = vld [vmem:[#allocation20 + $0x1c30] sm:$0xff]
    %v2708 = vld [vmem:[#allocation20 + $0x1c38] sm:$0xff]
    %v2709 = vld [vmem:[#allocation20 + $0x1c40] sm:$0xff]
    %v2710 = vld [vmem:[#allocation20 + $0x1c48] sm:$0xff]
    %v2711 = vld [vmem:[#allocation20 + $0x1c50] sm:$0xff]
    %v2712 = vld [vmem:[#allocation20 + $0x1c58] sm:$0xff]
    %v2713 = vld [vmem:[#allocation20 + $0x1c60] sm:$0xff]
    %v2714 = vld [vmem:[#allocation20 + $0x1c68] sm:$0xff]
    %v2715 = vld [vmem:[#allocation20 + $0x1c70] sm:$0xff]
    %v2716 = vld [vmem:[#allocation20 + $0x1c78] sm:$0xff]
    %v2717 = vld [vmem:[#allocation20 + $0x1c80] sm:$0xff]
    %v2718 = vld [vmem:[#allocation20 + $0x1c88] sm:$0xff]
    %v2719 = vld [vmem:[#allocation20 + $0x1c90] sm:$0xff]
    %v2720 = vld [vmem:[#allocation20 + $0x1c98] sm:$0xff]
    %v2721 = vld [vmem:[#allocation20 + $0x1ca0] sm:$0xff]
    %v2722 = vld [vmem:[#allocation20 + $0x1ca8] sm:$0xff]
    %v2723 = vld [vmem:[#allocation20 + $0x1cb0] sm:$0xff]
    %v2724 = vld [vmem:[#allocation20 + $0x1cb8] sm:$0xff]
    %v2725 = vld [vmem:[#allocation20 + $0x1cc0] sm:$0xff]
    %v2726 = vld [vmem:[#allocation20 + $0x1cc8] sm:$0xff]
    %v2727 = vld [vmem:[#allocation20 + $0x1cd0] sm:$0xff]
    %v2728 = vld [vmem:[#allocation20 + $0x1cd8] sm:$0xff]
    %v2729 = vld [vmem:[#allocation20 + $0x1ce0] sm:$0xff]
    %v2730 = vld [vmem:[#allocation20 + $0x1ce8] sm:$0xff]
    %v2731 = vld [vmem:[#allocation20 + $0x1cf0] sm:$0xff]
    %v2732 = vld [vmem:[#allocation20 + $0x1cf8] sm:$0xff]
    %v2733 = vld [vmem:[#allocation20 + $0x1d00] sm:$0xff]
    %v2734 = vld [vmem:[#allocation20 + $0x1d08] sm:$0xff]
    %v2735 = vld [vmem:[#allocation20 + $0x1d10] sm:$0xff]
    %v2736 = vld [vmem:[#allocation20 + $0x1d18] sm:$0xff]
    %v2737 = vld [vmem:[#allocation20 + $0x1d20] sm:$0xff]
    %v2738 = vld [vmem:[#allocation20 + $0x1d28] sm:$0xff]
    %v2739 = vld [vmem:[#allocation20 + $0x1d30] sm:$0xff]
    %v2740 = vld [vmem:[#allocation20 + $0x1d38] sm:$0xff]
    %v2741 = vld [vmem:[#allocation20 + $0x1d40] sm:$0xff]
    %v2742 = vld [vmem:[#allocation20 + $0x1d48] sm:$0xff]
    %v2743 = vld [vmem:[#allocation20 + $0x1d50] sm:$0xff]
    %v2744 = vld [vmem:[#allocation20 + $0x1d58] sm:$0xff]
    %v2745 = vld [vmem:[#allocation20 + $0x1d60] sm:$0xff]
    %v2746 = vld [vmem:[#allocation20 + $0x1d68] sm:$0xff]
    %v2747 = vld [vmem:[#allocation20 + $0x1d70] sm:$0xff]
    %v2748 = vld [vmem:[#allocation20 + $0x1d78] sm:$0xff]
    %v2749 = vld [vmem:[#allocation20 + $0x1d80] sm:$0xff]
    %v2750 = vld [vmem:[#allocation20 + $0x1d88] sm:$0xff]
    %v2751 = vld [vmem:[#allocation20 + $0x1d90] sm:$0xff]
    %v2752 = vld [vmem:[#allocation20 + $0x1d98] sm:$0xff]
    %v2753 = vld [vmem:[#allocation20 + $0x1da0] sm:$0xff]
    %v2754 = vld [vmem:[#allocation20 + $0x1da8] sm:$0xff]
    %v2755 = vld [vmem:[#allocation20 + $0x1db0] sm:$0xff]
    %v2756 = vld [vmem:[#allocation20 + $0x1db8] sm:$0xff]
    %v2757 = vld [vmem:[#allocation20 + $0x1dc0] sm:$0xff]
    %v2758 = vld [vmem:[#allocation20 + $0x1dc8] sm:$0xff]
    %v2759 = vld [vmem:[#allocation20 + $0x1dd0] sm:$0xff]
    %v2760 = vld [vmem:[#allocation20 + $0x1dd8] sm:$0xff]
    %v2761 = vld [vmem:[#allocation20 + $0x1de0] sm:$0xff]
    %v2762 = vld [vmem:[#allocation20 + $0x1de8] sm:$0xff]
    %v2763 = vld [vmem:[#allocation20 + $0x1df0] sm:$0xff]
    %v2764 = vld [vmem:[#allocation20 + $0x1df8] sm:$0xff]
    %v2765 = vld [vmem:[#allocation20 + $0x1e00] sm:$0xff]
    %v2766 = vld [vmem:[#allocation20 + $0x1e08] sm:$0xff]
    %v2767 = vld [vmem:[#allocation20 + $0x1e10] sm:$0xff]
    %v2768 = vld [vmem:[#allocation20 + $0x1e18] sm:$0xff]
    %v2769 = vld [vmem:[#allocation20 + $0x1e20] sm:$0xff]
    %v2770 = vld [vmem:[#allocation20 + $0x1e28] sm:$0xff]
    %v2771 = vld [vmem:[#allocation20 + $0x1e30] sm:$0xff]
    %v2772 = vld [vmem:[#allocation20 + $0x1e38] sm:$0xff]
    %v2773 = vld [vmem:[#allocation20 + $0x1e40] sm:$0xff]
    %v2774 = vld [vmem:[#allocation20 + $0x1e48] sm:$0xff]
    %v2775 = vld [vmem:[#allocation20 + $0x1e50] sm:$0xff]
    %v2776 = vld [vmem:[#allocation20 + $0x1e58] sm:$0xff]
    %v2777 = vld [vmem:[#allocation20 + $0x1e60] sm:$0xff]
    %v2778 = vld [vmem:[#allocation20 + $0x1e68] sm:$0xff]
    %v2779 = vld [vmem:[#allocation20 + $0x1e70] sm:$0xff]
    %v2780 = vld [vmem:[#allocation20 + $0x1e78] sm:$0xff]
    %v2781 = vld [vmem:[#allocation20 + $0x1e80] sm:$0xff]
    %v2782 = vld [vmem:[#allocation20 + $0x1e88] sm:$0xff]
    %v2783 = vld [vmem:[#allocation20 + $0x1e90] sm:$0xff]
    %v2784 = vld [vmem:[#allocation20 + $0x1e98] sm:$0xff]
    %v2785 = vld [vmem:[#allocation20 + $0x1ea0] sm:$0xff]
    %v2786 = vld [vmem:[#allocation20 + $0x1ea8] sm:$0xff]
    %v2787 = vld [vmem:[#allocation20 + $0x1eb0] sm:$0xff]
    %v2788 = vld [vmem:[#allocation20 + $0x1eb8] sm:$0xff]
    %v2789 = vld [vmem:[#allocation20 + $0x1ec0] sm:$0xff]
    %v2790 = vld [vmem:[#allocation20 + $0x1ec8] sm:$0xff]
    %v2791 = vld [vmem:[#allocation20 + $0x1ed0] sm:$0xff]
    %v2792 = vld [vmem:[#allocation20 + $0x1ed8] sm:$0xff]
    %v2793 = vld [vmem:[#allocation20 + $0x1ee0] sm:$0xff]
    %v2794 = vld [vmem:[#allocation20 + $0x1ee8] sm:$0xff]
    %v2795 = vld [vmem:[#allocation20 + $0x1ef0] sm:$0xff]
    %v2796 = vld [vmem:[#allocation20 + $0x1ef8] sm:$0xff]
    %v2797 = vld [vmem:[#allocation20 + $0x1f00] sm:$0xff]
    %v2798 = vld [vmem:[#allocation20 + $0x1f08] sm:$0xff]
    %v2799 = vld [vmem:[#allocation20 + $0x1f10] sm:$0xff]
    %v2800 = vld [vmem:[#allocation20 + $0x1f18] sm:$0xff]
    %v2801 = vld [vmem:[#allocation20 + $0x1f20] sm:$0xff]
    %v2802 = vld [vmem:[#allocation20 + $0x1f28] sm:$0xff]
    %v2803 = vld [vmem:[#allocation20 + $0x1f30] sm:$0xff]
    %v2804 = vld [vmem:[#allocation20 + $0x1f38] sm:$0xff]
    %v2805 = vld [vmem:[#allocation20 + $0x1f40] sm:$0xff]
    %v2806 = vld [vmem:[#allocation20 + $0x1f48] sm:$0xff]
    %v2807 = vld [vmem:[#allocation20 + $0x1f50] sm:$0xff]
    %v2808 = vld [vmem:[#allocation20 + $0x1f58] sm:$0xff]
    %v2809 = vld [vmem:[#allocation20 + $0x1f60] sm:$0xff]
    %v2810 = vld [vmem:[#allocation20 + $0x1f68] sm:$0xff]
    %v2811 = vld [vmem:[#allocation20 + $0x1f70] sm:$0xff]
    %v2812 = vld [vmem:[#allocation20 + $0x1f78] sm:$0xff]
    %v2813 = vld [vmem:[#allocation20 + $0x1f80] sm:$0xff]
    %v2814 = vld [vmem:[#allocation20 + $0x1f88] sm:$0xff]
    %v2815 = vld [vmem:[#allocation20 + $0x1f90] sm:$0xff]
    %v2816 = vld [vmem:[#allocation20 + $0x1f98] sm:$0xff]
    %v2817 = vld [vmem:[#allocation20 + $0x1fa0] sm:$0xff]
    %v2818 = vld [vmem:[#allocation20 + $0x1fa8] sm:$0xff]
    %v2819 = vld [vmem:[#allocation20 + $0x1fb0] sm:$0xff]
    %v2820 = vld [vmem:[#allocation20 + $0x1fb8] sm:$0xff]
    %v2821 = vld [vmem:[#allocation20 + $0x1fc0] sm:$0xff]
    %v2822 = vld [vmem:[#allocation20 + $0x1fc8] sm:$0xff]
    %v2823 = vld [vmem:[#allocation20 + $0x1fd0] sm:$0xff]
    %v2824 = vld [vmem:[#allocation20 + $0x1fd8] sm:$0xff]
    %v2825 = vld [vmem:[#allocation20 + $0x1fe0] sm:$0xff]
    %v2826 = vld [vmem:[#allocation20 + $0x1fe8] sm:$0xff]
    %v2827 = vld [vmem:[#allocation20 + $0x1ff0] sm:$0xff]
    %v2828 = vld [vmem:[#allocation20 + $0x1ff8] sm:$0xff]
    %v2829 = vld [vmem:[#allocation22] sm:$0xff]
    %v2831 = vlaneseq
    %v2832 = vshrl.u32 %v2831, 7
    %v2833 = vsub.s32 0, %v2832
    %v2834 = vrot.slane %v2829, %v2833
    %v2835 = vlaneseq
    %v2836 = vshrl.u32 %v2835, 7
    %v2837 = vsub.s32 1, %v2836
    %v2838 = vrot.slane %v2829, %v2837
    %v2839 = vlaneseq
    %v2840 = vshrl.u32 %v2839, 7
    %v2841 = vsub.s32 2, %v2840
    %v2842 = vrot.slane %v2829, %v2841
    %v2843 = vlaneseq
    %v2844 = vshrl.u32 %v2843, 7
    %v2845 = vsub.s32 3, %v2844
    %v2846 = vrot.slane %v2829, %v2845
    %v2847 = vlaneseq
    %v2848 = vshrl.u32 %v2847, 7
    %v2849 = vsub.s32 4, %v2848
    %v2850 = vrot.slane %v2829, %v2849
    %v2851 = vlaneseq
    %v2852 = vshrl.u32 %v2851, 7
    %v2853 = vsub.s32 5, %v2852
    %v2854 = vrot.slane %v2829, %v2853
    %v2855 = vlaneseq
    %v2856 = vshrl.u32 %v2855, 7
    %v2857 = vsub.s32 6, %v2856
    %v2858 = vrot.slane %v2829, %v2857
    %v2859 = vlaneseq
    %v2860 = vshrl.u32 %v2859, 7
    %v2861 = vsub.s32 7, %v2860
    %v2862 = vrot.slane %v2829, %v2861
    %v3895 = vunpack.c.l.b16 %v1805
    %v3896 = vunpack.c.h.b16 %v1805
    %v3897 = vunpack.c.l.b16 %v1806
    %v3898 = vunpack.c.h.b16 %v1806
    %v3899 = vunpack.c.l.b16 %v1807
    %v3900 = vunpack.c.h.b16 %v1807
    %v3901 = vunpack.c.l.b16 %v1808
    %v3902 = vunpack.c.h.b16 %v1808
    %v3903 = vunpack.c.l.b16 %v1809
    %v3904 = vunpack.c.h.b16 %v1809
    %v3905 = vunpack.c.l.b16 %v1810
    %v3906 = vunpack.c.h.b16 %v1810
    %v3907 = vunpack.c.l.b16 %v1811
    %v3908 = vunpack.c.h.b16 %v1811
    %v3909 = vunpack.c.l.b16 %v1812
    %v3910 = vunpack.c.h.b16 %v1812
    %v3911 = vunpack.c.l.b16 %v1813
    %v3912 = vunpack.c.h.b16 %v1813
    %v3913 = vunpack.c.l.b16 %v1814
    %v3914 = vunpack.c.h.b16 %v1814
    %v3915 = vunpack.c.l.b16 %v1815
    %v3916 = vunpack.c.h.b16 %v1815
    %v3917 = vunpack.c.l.b16 %v1816
    %v3918 = vunpack.c.h.b16 %v1816
    %v3919 = vunpack.c.l.b16 %v1817
    %v3920 = vunpack.c.h.b16 %v1817
    %v3921 = vunpack.c.l.b16 %v1818
    %v3922 = vunpack.c.h.b16 %v1818
    %v3923 = vunpack.c.l.b16 %v1819
    %v3924 = vunpack.c.h.b16 %v1819
    %v3925 = vunpack.c.l.b16 %v1820
    %v3926 = vunpack.c.h.b16 %v1820
    %v3927 = vunpack.c.l.b16 %v1821
    %v3928 = vunpack.c.h.b16 %v1821
    %v3929 = vunpack.c.l.b16 %v1822
    %v3930 = vunpack.c.h.b16 %v1822
    %v3931 = vunpack.c.l.b16 %v1823
    %v3932 = vunpack.c.h.b16 %v1823
    %v3933 = vunpack.c.l.b16 %v1824
    %v3934 = vunpack.c.h.b16 %v1824
    %v3935 = vunpack.c.l.b16 %v1825
    %v3936 = vunpack.c.h.b16 %v1825
    %v3937 = vunpack.c.l.b16 %v1826
    %v3938 = vunpack.c.h.b16 %v1826
    %v3939 = vunpack.c.l.b16 %v1827
    %v3940 = vunpack.c.h.b16 %v1827
    %v3941 = vunpack.c.l.b16 %v1828
    %v3942 = vunpack.c.h.b16 %v1828
    %v3943 = vunpack.c.l.b16 %v1829
    %v3944 = vunpack.c.h.b16 %v1829
    %v3945 = vunpack.c.l.b16 %v1830
    %v3946 = vunpack.c.h.b16 %v1830
    %v3947 = vunpack.c.l.b16 %v1831
    %v3948 = vunpack.c.h.b16 %v1831
    %v3949 = vunpack.c.l.b16 %v1832
    %v3950 = vunpack.c.h.b16 %v1832
    %v3951 = vunpack.c.l.b16 %v1833
    %v3952 = vunpack.c.h.b16 %v1833
    %v3953 = vunpack.c.l.b16 %v1834
    %v3954 = vunpack.c.h.b16 %v1834
    %v3955 = vunpack.c.l.b16 %v1835
    %v3956 = vunpack.c.h.b16 %v1835
    %v3957 = vunpack.c.l.b16 %v1836
    %v3958 = vunpack.c.h.b16 %v1836
    %v3959 = vunpack.c.l.b16 %v1837
    %v3960 = vunpack.c.h.b16 %v1837
    %v3961 = vunpack.c.l.b16 %v1838
    %v3962 = vunpack.c.h.b16 %v1838
    %v3963 = vunpack.c.l.b16 %v1839
    %v3964 = vunpack.c.h.b16 %v1839
    %v3965 = vunpack.c.l.b16 %v1840
    %v3966 = vunpack.c.h.b16 %v1840
    %v3967 = vunpack.c.l.b16 %v1841
    %v3968 = vunpack.c.h.b16 %v1841
    %v3969 = vunpack.c.l.b16 %v1842
    %v3970 = vunpack.c.h.b16 %v1842
    %v3971 = vunpack.c.l.b16 %v1843
    %v3972 = vunpack.c.h.b16 %v1843
    %v3973 = vunpack.c.l.b16 %v1844
    %v3974 = vunpack.c.h.b16 %v1844
    %v3975 = vunpack.c.l.b16 %v1845
    %v3976 = vunpack.c.h.b16 %v1845
    %v3977 = vunpack.c.l.b16 %v1846
    %v3978 = vunpack.c.h.b16 %v1846
    %v3979 = vunpack.c.l.b16 %v1847
    %v3980 = vunpack.c.h.b16 %v1847
    %v3981 = vunpack.c.l.b16 %v1848
    %v3982 = vunpack.c.h.b16 %v1848
    %v3983 = vunpack.c.l.b16 %v1849
    %v3984 = vunpack.c.h.b16 %v1849
    %v3985 = vunpack.c.l.b16 %v1850
    %v3986 = vunpack.c.h.b16 %v1850
    %v3987 = vunpack.c.l.b16 %v1851
    %v3988 = vunpack.c.h.b16 %v1851
    %v3989 = vunpack.c.l.b16 %v1852
    %v3990 = vunpack.c.h.b16 %v1852
    %v3991 = vunpack.c.l.b16 %v1853
    %v3992 = vunpack.c.h.b16 %v1853
    %v3993 = vunpack.c.l.b16 %v1854
    %v3994 = vunpack.c.h.b16 %v1854
    %v3995 = vunpack.c.l.b16 %v1855
    %v3996 = vunpack.c.h.b16 %v1855
    %v3997 = vunpack.c.l.b16 %v1856
    %v3998 = vunpack.c.h.b16 %v1856
    %v3999 = vunpack.c.l.b16 %v1857
    %v4000 = vunpack.c.h.b16 %v1857
    %v4001 = vunpack.c.l.b16 %v1858
    %v4002 = vunpack.c.h.b16 %v1858
    %v4003 = vunpack.c.l.b16 %v1859
    %v4004 = vunpack.c.h.b16 %v1859
    %v4005 = vunpack.c.l.b16 %v1860
    %v4006 = vunpack.c.h.b16 %v1860
    %v4007 = vunpack.c.l.b16 %v1861
    %v4008 = vunpack.c.h.b16 %v1861
    %v4009 = vunpack.c.l.b16 %v1862
    %v4010 = vunpack.c.h.b16 %v1862
    %v4011 = vunpack.c.l.b16 %v1863
    %v4012 = vunpack.c.h.b16 %v1863
    %v4013 = vunpack.c.l.b16 %v1864
    %v4014 = vunpack.c.h.b16 %v1864
    %v4015 = vunpack.c.l.b16 %v1865
    %v4016 = vunpack.c.h.b16 %v1865
    %v4017 = vunpack.c.l.b16 %v1866
    %v4018 = vunpack.c.h.b16 %v1866
    %v4019 = vunpack.c.l.b16 %v1867
    %v4020 = vunpack.c.h.b16 %v1867
    %v4021 = vunpack.c.l.b16 %v1868
    %v4022 = vunpack.c.h.b16 %v1868
    %v4023 = vunpack.c.l.b16 %v1869
    %v4024 = vunpack.c.h.b16 %v1869
    %v4025 = vunpack.c.l.b16 %v1870
    %v4026 = vunpack.c.h.b16 %v1870
    %v4027 = vunpack.c.l.b16 %v1871
    %v4028 = vunpack.c.h.b16 %v1871
    %v4029 = vunpack.c.l.b16 %v1872
    %v4030 = vunpack.c.h.b16 %v1872
    %v4031 = vunpack.c.l.b16 %v1873
    %v4032 = vunpack.c.h.b16 %v1873
    %v4033 = vunpack.c.l.b16 %v1874
    %v4034 = vunpack.c.h.b16 %v1874
    %v4035 = vunpack.c.l.b16 %v1875
    %v4036 = vunpack.c.h.b16 %v1875
    %v4037 = vunpack.c.l.b16 %v1876
    %v4038 = vunpack.c.h.b16 %v1876
    %v4039 = vunpack.c.l.b16 %v1877
    %v4040 = vunpack.c.h.b16 %v1877
    %v4041 = vunpack.c.l.b16 %v1878
    %v4042 = vunpack.c.h.b16 %v1878
    %v4043 = vunpack.c.l.b16 %v1879
    %v4044 = vunpack.c.h.b16 %v1879
    %v4045 = vunpack.c.l.b16 %v1880
    %v4046 = vunpack.c.h.b16 %v1880
    %v4047 = vunpack.c.l.b16 %v1881
    %v4048 = vunpack.c.h.b16 %v1881
    %v4049 = vunpack.c.l.b16 %v1882
    %v4050 = vunpack.c.h.b16 %v1882
    %v4051 = vunpack.c.l.b16 %v1883
    %v4052 = vunpack.c.h.b16 %v1883
    %v4053 = vunpack.c.l.b16 %v1884
    %v4054 = vunpack.c.h.b16 %v1884
    %v4055 = vunpack.c.l.b16 %v1885
    %v4056 = vunpack.c.h.b16 %v1885
    %v4057 = vunpack.c.l.b16 %v1886
    %v4058 = vunpack.c.h.b16 %v1886
    %v4059 = vunpack.c.l.b16 %v1887
    %v4060 = vunpack.c.h.b16 %v1887
    %v4061 = vunpack.c.l.b16 %v1888
    %v4062 = vunpack.c.h.b16 %v1888
    %v4063 = vunpack.c.l.b16 %v1889
    %v4064 = vunpack.c.h.b16 %v1889
    %v4065 = vunpack.c.l.b16 %v1890
    %v4066 = vunpack.c.h.b16 %v1890
    %v4067 = vunpack.c.l.b16 %v1891
    %v4068 = vunpack.c.h.b16 %v1891
    %v4069 = vunpack.c.l.b16 %v1892
    %v4070 = vunpack.c.h.b16 %v1892
    %v4071 = vunpack.c.l.b16 %v1893
    %v4072 = vunpack.c.h.b16 %v1893
    %v4073 = vunpack.c.l.b16 %v1894
    %v4074 = vunpack.c.h.b16 %v1894
    %v4075 = vunpack.c.l.b16 %v1895
    %v4076 = vunpack.c.h.b16 %v1895
    %v4077 = vunpack.c.l.b16 %v1896
    %v4078 = vunpack.c.h.b16 %v1896
    %v4079 = vunpack.c.l.b16 %v1897
    %v4080 = vunpack.c.h.b16 %v1897
    %v4081 = vunpack.c.l.b16 %v1898
    %v4082 = vunpack.c.h.b16 %v1898
    %v4083 = vunpack.c.l.b16 %v1899
    %v4084 = vunpack.c.h.b16 %v1899
    %v4085 = vunpack.c.l.b16 %v1900
    %v4086 = vunpack.c.h.b16 %v1900
    %v4087 = vunpack.c.l.b16 %v1901
    %v4088 = vunpack.c.h.b16 %v1901
    %v4089 = vunpack.c.l.b16 %v1902
    %v4090 = vunpack.c.h.b16 %v1902
    %v4091 = vunpack.c.l.b16 %v1903
    %v4092 = vunpack.c.h.b16 %v1903
    %v4093 = vunpack.c.l.b16 %v1904
    %v4094 = vunpack.c.h.b16 %v1904
    %v4095 = vunpack.c.l.b16 %v1905
    %v4096 = vunpack.c.h.b16 %v1905
    %v4097 = vunpack.c.l.b16 %v1906
    %v4098 = vunpack.c.h.b16 %v1906
    %v4099 = vunpack.c.l.b16 %v1907
    %v4100 = vunpack.c.h.b16 %v1907
    %v4101 = vunpack.c.l.b16 %v1908
    %v4102 = vunpack.c.h.b16 %v1908
    %v4103 = vunpack.c.l.b16 %v1909
    %v4104 = vunpack.c.h.b16 %v1909
    %v4105 = vunpack.c.l.b16 %v1910
    %v4106 = vunpack.c.h.b16 %v1910
    %v4107 = vunpack.c.l.b16 %v1911
    %v4108 = vunpack.c.h.b16 %v1911
    %v4109 = vunpack.c.l.b16 %v1912
    %v4110 = vunpack.c.h.b16 %v1912
    %v4111 = vunpack.c.l.b16 %v1913
    %v4112 = vunpack.c.h.b16 %v1913
    %v4113 = vunpack.c.l.b16 %v1914
    %v4114 = vunpack.c.h.b16 %v1914
    %v4115 = vunpack.c.l.b16 %v1915
    %v4116 = vunpack.c.h.b16 %v1915
    %v4117 = vunpack.c.l.b16 %v1916
    %v4118 = vunpack.c.h.b16 %v1916
    %v4119 = vunpack.c.l.b16 %v1917
    %v4120 = vunpack.c.h.b16 %v1917
    %v4121 = vunpack.c.l.b16 %v1918
    %v4122 = vunpack.c.h.b16 %v1918
    %v4123 = vunpack.c.l.b16 %v1919
    %v4124 = vunpack.c.h.b16 %v1919
    %v4125 = vunpack.c.l.b16 %v1920
    %v4126 = vunpack.c.h.b16 %v1920
    %v4127 = vunpack.c.l.b16 %v1921
    %v4128 = vunpack.c.h.b16 %v1921
    %v4129 = vunpack.c.l.b16 %v1922
    %v4130 = vunpack.c.h.b16 %v1922
    %v4131 = vunpack.c.l.b16 %v1923
    %v4132 = vunpack.c.h.b16 %v1923
    %v4133 = vunpack.c.l.b16 %v1924
    %v4134 = vunpack.c.h.b16 %v1924
    %v4135 = vunpack.c.l.b16 %v1925
    %v4136 = vunpack.c.h.b16 %v1925
    %v4137 = vunpack.c.l.b16 %v1926
    %v4138 = vunpack.c.h.b16 %v1926
    %v4139 = vunpack.c.l.b16 %v1927
    %v4140 = vunpack.c.h.b16 %v1927
    %v4141 = vunpack.c.l.b16 %v1928
    %v4142 = vunpack.c.h.b16 %v1928
    %v4143 = vunpack.c.l.b16 %v1929
    %v4144 = vunpack.c.h.b16 %v1929
    %v4145 = vunpack.c.l.b16 %v1930
    %v4146 = vunpack.c.h.b16 %v1930
    %v4147 = vunpack.c.l.b16 %v1931
    %v4148 = vunpack.c.h.b16 %v1931
    %v4149 = vunpack.c.l.b16 %v1932
    %v4150 = vunpack.c.h.b16 %v1932
    %v4151 = vunpack.c.l.b16 %v1933
    %v4152 = vunpack.c.h.b16 %v1933
    %v4153 = vunpack.c.l.b16 %v1934
    %v4154 = vunpack.c.h.b16 %v1934
    %v4155 = vunpack.c.l.b16 %v1935
    %v4156 = vunpack.c.h.b16 %v1935
    %v4157 = vunpack.c.l.b16 %v1936
    %v4158 = vunpack.c.h.b16 %v1936
    %v4159 = vunpack.c.l.b16 %v1937
    %v4160 = vunpack.c.h.b16 %v1937
    %v4161 = vunpack.c.l.b16 %v1938
    %v4162 = vunpack.c.h.b16 %v1938
    %v4163 = vunpack.c.l.b16 %v1939
    %v4164 = vunpack.c.h.b16 %v1939
    %v4165 = vunpack.c.l.b16 %v1940
    %v4166 = vunpack.c.h.b16 %v1940
    %v4167 = vunpack.c.l.b16 %v1941
    %v4168 = vunpack.c.h.b16 %v1941
    %v4169 = vunpack.c.l.b16 %v1942
    %v4170 = vunpack.c.h.b16 %v1942
    %v4171 = vunpack.c.l.b16 %v1943
    %v4172 = vunpack.c.h.b16 %v1943
    %v4173 = vunpack.c.l.b16 %v1944
    %v4174 = vunpack.c.h.b16 %v1944
    %v4175 = vunpack.c.l.b16 %v1945
    %v4176 = vunpack.c.h.b16 %v1945
    %v4177 = vunpack.c.l.b16 %v1946
    %v4178 = vunpack.c.h.b16 %v1946
    %v4179 = vunpack.c.l.b16 %v1947
    %v4180 = vunpack.c.h.b16 %v1947
    %v4181 = vunpack.c.l.b16 %v1948
    %v4182 = vunpack.c.h.b16 %v1948
    %v4183 = vunpack.c.l.b16 %v1949
    %v4184 = vunpack.c.h.b16 %v1949
    %v4185 = vunpack.c.l.b16 %v1950
    %v4186 = vunpack.c.h.b16 %v1950
    %v4187 = vunpack.c.l.b16 %v1951
    %v4188 = vunpack.c.h.b16 %v1951
    %v4189 = vunpack.c.l.b16 %v1952
    %v4190 = vunpack.c.h.b16 %v1952
    %v4191 = vunpack.c.l.b16 %v1953
    %v4192 = vunpack.c.h.b16 %v1953
    %v4193 = vunpack.c.l.b16 %v1954
    %v4194 = vunpack.c.h.b16 %v1954
    %v4195 = vunpack.c.l.b16 %v1955
    %v4196 = vunpack.c.h.b16 %v1955
    %v4197 = vunpack.c.l.b16 %v1956
    %v4198 = vunpack.c.h.b16 %v1956
    %v4199 = vunpack.c.l.b16 %v1957
    %v4200 = vunpack.c.h.b16 %v1957
    %v4201 = vunpack.c.l.b16 %v1958
    %v4202 = vunpack.c.h.b16 %v1958
    %v4203 = vunpack.c.l.b16 %v1959
    %v4204 = vunpack.c.h.b16 %v1959
    %v4205 = vunpack.c.l.b16 %v1960
    %v4206 = vunpack.c.h.b16 %v1960
    %v4207 = vunpack.c.l.b16 %v1961
    %v4208 = vunpack.c.h.b16 %v1961
    %v4209 = vunpack.c.l.b16 %v1962
    %v4210 = vunpack.c.h.b16 %v1962
    %v4211 = vunpack.c.l.b16 %v1963
    %v4212 = vunpack.c.h.b16 %v1963
    %v4213 = vunpack.c.l.b16 %v1964
    %v4214 = vunpack.c.h.b16 %v1964
    %v4215 = vunpack.c.l.b16 %v1965
    %v4216 = vunpack.c.h.b16 %v1965
    %v4217 = vunpack.c.l.b16 %v1966
    %v4218 = vunpack.c.h.b16 %v1966
    %v4219 = vunpack.c.l.b16 %v1967
    %v4220 = vunpack.c.h.b16 %v1967
    %v4221 = vunpack.c.l.b16 %v1968
    %v4222 = vunpack.c.h.b16 %v1968
    %v4223 = vunpack.c.l.b16 %v1969
    %v4224 = vunpack.c.h.b16 %v1969
    %v4225 = vunpack.c.l.b16 %v1970
    %v4226 = vunpack.c.h.b16 %v1970
    %v4227 = vunpack.c.l.b16 %v1971
    %v4228 = vunpack.c.h.b16 %v1971
    %v4229 = vunpack.c.l.b16 %v1972
    %v4230 = vunpack.c.h.b16 %v1972
    %v4231 = vunpack.c.l.b16 %v1973
    %v4232 = vunpack.c.h.b16 %v1973
    %v4233 = vunpack.c.l.b16 %v1974
    %v4234 = vunpack.c.h.b16 %v1974
    %v4235 = vunpack.c.l.b16 %v1975
    %v4236 = vunpack.c.h.b16 %v1975
    %v4237 = vunpack.c.l.b16 %v1976
    %v4238 = vunpack.c.h.b16 %v1976
    %v4239 = vunpack.c.l.b16 %v1977
    %v4240 = vunpack.c.h.b16 %v1977
    %v4241 = vunpack.c.l.b16 %v1978
    %v4242 = vunpack.c.h.b16 %v1978
    %v4243 = vunpack.c.l.b16 %v1979
    %v4244 = vunpack.c.h.b16 %v1979
    %v4245 = vunpack.c.l.b16 %v1980
    %v4246 = vunpack.c.h.b16 %v1980
    %v4247 = vunpack.c.l.b16 %v1981
    %v4248 = vunpack.c.h.b16 %v1981
    %v4249 = vunpack.c.l.b16 %v1982
    %v4250 = vunpack.c.h.b16 %v1982
    %v4251 = vunpack.c.l.b16 %v1983
    %v4252 = vunpack.c.h.b16 %v1983
    %v4253 = vunpack.c.l.b16 %v1984
    %v4254 = vunpack.c.h.b16 %v1984
    %v4255 = vunpack.c.l.b16 %v1985
    %v4256 = vunpack.c.h.b16 %v1985
    %v4257 = vunpack.c.l.b16 %v1986
    %v4258 = vunpack.c.h.b16 %v1986
    %v4259 = vunpack.c.l.b16 %v1987
    %v4260 = vunpack.c.h.b16 %v1987
    %v4261 = vunpack.c.l.b16 %v1988
    %v4262 = vunpack.c.h.b16 %v1988
    %v4263 = vunpack.c.l.b16 %v1989
    %v4264 = vunpack.c.h.b16 %v1989
    %v4265 = vunpack.c.l.b16 %v1990
    %v4266 = vunpack.c.h.b16 %v1990
    %v4267 = vunpack.c.l.b16 %v1991
    %v4268 = vunpack.c.h.b16 %v1991
    %v4269 = vunpack.c.l.b16 %v1992
    %v4270 = vunpack.c.h.b16 %v1992
    %v4271 = vunpack.c.l.b16 %v1993
    %v4272 = vunpack.c.h.b16 %v1993
    %v4273 = vunpack.c.l.b16 %v1994
    %v4274 = vunpack.c.h.b16 %v1994
    %v4275 = vunpack.c.l.b16 %v1995
    %v4276 = vunpack.c.h.b16 %v1995
    %v4277 = vunpack.c.l.b16 %v1996
    %v4278 = vunpack.c.h.b16 %v1996
    %v4279 = vunpack.c.l.b16 %v1997
    %v4280 = vunpack.c.h.b16 %v1997
    %v4281 = vunpack.c.l.b16 %v1998
    %v4282 = vunpack.c.h.b16 %v1998
    %v4283 = vunpack.c.l.b16 %v1999
    %v4284 = vunpack.c.h.b16 %v1999
    %v4285 = vunpack.c.l.b16 %v2000
    %v4286 = vunpack.c.h.b16 %v2000
    %v4287 = vunpack.c.l.b16 %v2001
    %v4288 = vunpack.c.h.b16 %v2001
    %v4289 = vunpack.c.l.b16 %v2002
    %v4290 = vunpack.c.h.b16 %v2002
    %v4291 = vunpack.c.l.b16 %v2003
    %v4292 = vunpack.c.h.b16 %v2003
    %v4293 = vunpack.c.l.b16 %v2004
    %v4294 = vunpack.c.h.b16 %v2004
    %v4295 = vunpack.c.l.b16 %v2005
    %v4296 = vunpack.c.h.b16 %v2005
    %v4297 = vunpack.c.l.b16 %v2006
    %v4298 = vunpack.c.h.b16 %v2006
    %v4299 = vunpack.c.l.b16 %v2007
    %v4300 = vunpack.c.h.b16 %v2007
    %v4301 = vunpack.c.l.b16 %v2008
    %v4302 = vunpack.c.h.b16 %v2008
    %v4303 = vunpack.c.l.b16 %v2009
    %v4304 = vunpack.c.h.b16 %v2009
    %v4305 = vunpack.c.l.b16 %v2010
    %v4306 = vunpack.c.h.b16 %v2010
    %v4307 = vunpack.c.l.b16 %v2011
    %v4308 = vunpack.c.h.b16 %v2011
    %v4309 = vunpack.c.l.b16 %v2012
    %v4310 = vunpack.c.h.b16 %v2012
    %v4311 = vunpack.c.l.b16 %v2013
    %v4312 = vunpack.c.h.b16 %v2013
    %v4313 = vunpack.c.l.b16 %v2014
    %v4314 = vunpack.c.h.b16 %v2014
    %v4315 = vunpack.c.l.b16 %v2015
    %v4316 = vunpack.c.h.b16 %v2015
    %v4317 = vunpack.c.l.b16 %v2016
    %v4318 = vunpack.c.h.b16 %v2016
    %v4319 = vunpack.c.l.b16 %v2017
    %v4320 = vunpack.c.h.b16 %v2017
    %v4321 = vunpack.c.l.b16 %v2018
    %v4322 = vunpack.c.h.b16 %v2018
    %v4323 = vunpack.c.l.b16 %v2019
    %v4324 = vunpack.c.h.b16 %v2019
    %v4325 = vunpack.c.l.b16 %v2020
    %v4326 = vunpack.c.h.b16 %v2020
    %v4327 = vunpack.c.l.b16 %v2021
    %v4328 = vunpack.c.h.b16 %v2021
    %v4329 = vunpack.c.l.b16 %v2022
    %v4330 = vunpack.c.h.b16 %v2022
    %v4331 = vunpack.c.l.b16 %v2023
    %v4332 = vunpack.c.h.b16 %v2023
    %v4333 = vunpack.c.l.b16 %v2024
    %v4334 = vunpack.c.h.b16 %v2024
    %v4335 = vunpack.c.l.b16 %v2025
    %v4336 = vunpack.c.h.b16 %v2025
    %v4337 = vunpack.c.l.b16 %v2026
    %v4338 = vunpack.c.h.b16 %v2026
    %v4339 = vunpack.c.l.b16 %v2027
    %v4340 = vunpack.c.h.b16 %v2027
    %v4341 = vunpack.c.l.b16 %v2028
    %v4342 = vunpack.c.h.b16 %v2028
    %v4343 = vunpack.c.l.b16 %v2029
    %v4344 = vunpack.c.h.b16 %v2029
    %v4345 = vunpack.c.l.b16 %v2030
    %v4346 = vunpack.c.h.b16 %v2030
    %v4347 = vunpack.c.l.b16 %v2031
    %v4348 = vunpack.c.h.b16 %v2031
    %v4349 = vunpack.c.l.b16 %v2032
    %v4350 = vunpack.c.h.b16 %v2032
    %v4351 = vunpack.c.l.b16 %v2033
    %v4352 = vunpack.c.h.b16 %v2033
    %v4353 = vunpack.c.l.b16 %v2034
    %v4354 = vunpack.c.h.b16 %v2034
    %v4355 = vunpack.c.l.b16 %v2035
    %v4356 = vunpack.c.h.b16 %v2035
    %v4357 = vunpack.c.l.b16 %v2036
    %v4358 = vunpack.c.h.b16 %v2036
    %v4359 = vunpack.c.l.b16 %v2037
    %v4360 = vunpack.c.h.b16 %v2037
    %v4361 = vunpack.c.l.b16 %v2038
    %v4362 = vunpack.c.h.b16 %v2038
    %v4363 = vunpack.c.l.b16 %v2039
    %v4364 = vunpack.c.h.b16 %v2039
    %v4365 = vunpack.c.l.b16 %v2040
    %v4366 = vunpack.c.h.b16 %v2040
    %v4367 = vunpack.c.l.b16 %v2041
    %v4368 = vunpack.c.h.b16 %v2041
    %v4369 = vunpack.c.l.b16 %v2042
    %v4370 = vunpack.c.h.b16 %v2042
    %v4371 = vunpack.c.l.b16 %v2043
    %v4372 = vunpack.c.h.b16 %v2043
    %v4373 = vunpack.c.l.b16 %v2044
    %v4374 = vunpack.c.h.b16 %v2044
    %v4375 = vunpack.c.l.b16 %v2045
    %v4376 = vunpack.c.h.b16 %v2045
    %v4377 = vunpack.c.l.b16 %v2046
    %v4378 = vunpack.c.h.b16 %v2046
    %v4379 = vunpack.c.l.b16 %v2047
    %v4380 = vunpack.c.h.b16 %v2047
    %v4381 = vunpack.c.l.b16 %v2048
    %v4382 = vunpack.c.h.b16 %v2048
    %v4383 = vunpack.c.l.b16 %v2049
    %v4384 = vunpack.c.h.b16 %v2049
    %v4385 = vunpack.c.l.b16 %v2050
    %v4386 = vunpack.c.h.b16 %v2050
    %v4387 = vunpack.c.l.b16 %v2051
    %v4388 = vunpack.c.h.b16 %v2051
    %v4389 = vunpack.c.l.b16 %v2052
    %v4390 = vunpack.c.h.b16 %v2052
    %v4391 = vunpack.c.l.b16 %v2053
    %v4392 = vunpack.c.h.b16 %v2053
    %v4393 = vunpack.c.l.b16 %v2054
    %v4394 = vunpack.c.h.b16 %v2054
    %v4395 = vunpack.c.l.b16 %v2055
    %v4396 = vunpack.c.h.b16 %v2055
    %v4397 = vunpack.c.l.b16 %v2056
    %v4398 = vunpack.c.h.b16 %v2056
    %v4399 = vunpack.c.l.b16 %v2057
    %v4400 = vunpack.c.h.b16 %v2057
    %v4401 = vunpack.c.l.b16 %v2058
    %v4402 = vunpack.c.h.b16 %v2058
    %v4403 = vunpack.c.l.b16 %v2059
    %v4404 = vunpack.c.h.b16 %v2059
    %v4405 = vunpack.c.l.b16 %v2060
    %v4406 = vunpack.c.h.b16 %v2060
    %v4407 = vunpack.c.l.b16 %v2061
    %v4408 = vunpack.c.h.b16 %v2061
    %v4409 = vunpack.c.l.b16 %v2062
    %v4410 = vunpack.c.h.b16 %v2062
    %v4411 = vunpack.c.l.b16 %v2063
    %v4412 = vunpack.c.h.b16 %v2063
    %v4413 = vunpack.c.l.b16 %v2064
    %v4414 = vunpack.c.h.b16 %v2064
    %v4415 = vunpack.c.l.b16 %v2065
    %v4416 = vunpack.c.h.b16 %v2065
    %v4417 = vunpack.c.l.b16 %v2066
    %v4418 = vunpack.c.h.b16 %v2066
    %v4419 = vunpack.c.l.b16 %v2067
    %v4420 = vunpack.c.h.b16 %v2067
    %v4421 = vunpack.c.l.b16 %v2068
    %v4422 = vunpack.c.h.b16 %v2068
    %v4423 = vunpack.c.l.b16 %v2069
    %v4424 = vunpack.c.h.b16 %v2069
    %v4425 = vunpack.c.l.b16 %v2070
    %v4426 = vunpack.c.h.b16 %v2070
    %v4427 = vunpack.c.l.b16 %v2071
    %v4428 = vunpack.c.h.b16 %v2071
    %v4429 = vunpack.c.l.b16 %v2072
    %v4430 = vunpack.c.h.b16 %v2072
    %v4431 = vunpack.c.l.b16 %v2073
    %v4432 = vunpack.c.h.b16 %v2073
    %v4433 = vunpack.c.l.b16 %v2074
    %v4434 = vunpack.c.h.b16 %v2074
    %v4435 = vunpack.c.l.b16 %v2075
    %v4436 = vunpack.c.h.b16 %v2075
    %v4437 = vunpack.c.l.b16 %v2076
    %v4438 = vunpack.c.h.b16 %v2076
    %v4439 = vunpack.c.l.b16 %v2077
    %v4440 = vunpack.c.h.b16 %v2077
    %v4441 = vunpack.c.l.b16 %v2078
    %v4442 = vunpack.c.h.b16 %v2078
    %v4443 = vunpack.c.l.b16 %v2079
    %v4444 = vunpack.c.h.b16 %v2079
    %v4445 = vunpack.c.l.b16 %v2080
    %v4446 = vunpack.c.h.b16 %v2080
    %v4447 = vunpack.c.l.b16 %v2081
    %v4448 = vunpack.c.h.b16 %v2081
    %v4449 = vunpack.c.l.b16 %v2082
    %v4450 = vunpack.c.h.b16 %v2082
    %v4451 = vunpack.c.l.b16 %v2083
    %v4452 = vunpack.c.h.b16 %v2083
    %v4453 = vunpack.c.l.b16 %v2084
    %v4454 = vunpack.c.h.b16 %v2084
    %v4455 = vunpack.c.l.b16 %v2085
    %v4456 = vunpack.c.h.b16 %v2085
    %v4457 = vunpack.c.l.b16 %v2086
    %v4458 = vunpack.c.h.b16 %v2086
    %v4459 = vunpack.c.l.b16 %v2087
    %v4460 = vunpack.c.h.b16 %v2087
    %v4461 = vunpack.c.l.b16 %v2088
    %v4462 = vunpack.c.h.b16 %v2088
    %v4463 = vunpack.c.l.b16 %v2089
    %v4464 = vunpack.c.h.b16 %v2089
    %v4465 = vunpack.c.l.b16 %v2090
    %v4466 = vunpack.c.h.b16 %v2090
    %v4467 = vunpack.c.l.b16 %v2091
    %v4468 = vunpack.c.h.b16 %v2091
    %v4469 = vunpack.c.l.b16 %v2092
    %v4470 = vunpack.c.h.b16 %v2092
    %v4471 = vunpack.c.l.b16 %v2093
    %v4472 = vunpack.c.h.b16 %v2093
    %v4473 = vunpack.c.l.b16 %v2094
    %v4474 = vunpack.c.h.b16 %v2094
    %v4475 = vunpack.c.l.b16 %v2095
    %v4476 = vunpack.c.h.b16 %v2095
    %v4477 = vunpack.c.l.b16 %v2096
    %v4478 = vunpack.c.h.b16 %v2096
    %v4479 = vunpack.c.l.b16 %v2097
    %v4480 = vunpack.c.h.b16 %v2097
    %v4481 = vunpack.c.l.b16 %v2098
    %v4482 = vunpack.c.h.b16 %v2098
    %v4483 = vunpack.c.l.b16 %v2099
    %v4484 = vunpack.c.h.b16 %v2099
    %v4485 = vunpack.c.l.b16 %v2100
    %v4486 = vunpack.c.h.b16 %v2100
    %v4487 = vunpack.c.l.b16 %v2101
    %v4488 = vunpack.c.h.b16 %v2101
    %v4489 = vunpack.c.l.b16 %v2102
    %v4490 = vunpack.c.h.b16 %v2102
    %v4491 = vunpack.c.l.b16 %v2103
    %v4492 = vunpack.c.h.b16 %v2103
    %v4493 = vunpack.c.l.b16 %v2104
    %v4494 = vunpack.c.h.b16 %v2104
    %v4495 = vunpack.c.l.b16 %v2105
    %v4496 = vunpack.c.h.b16 %v2105
    %v4497 = vunpack.c.l.b16 %v2106
    %v4498 = vunpack.c.h.b16 %v2106
    %v4499 = vunpack.c.l.b16 %v2107
    %v4500 = vunpack.c.h.b16 %v2107
    %v4501 = vunpack.c.l.b16 %v2108
    %v4502 = vunpack.c.h.b16 %v2108
    %v4503 = vunpack.c.l.b16 %v2109
    %v4504 = vunpack.c.h.b16 %v2109
    %v4505 = vunpack.c.l.b16 %v2110
    %v4506 = vunpack.c.h.b16 %v2110
    %v4507 = vunpack.c.l.b16 %v2111
    %v4508 = vunpack.c.h.b16 %v2111
    %v4509 = vunpack.c.l.b16 %v2112
    %v4510 = vunpack.c.h.b16 %v2112
    %v4511 = vunpack.c.l.b16 %v2113
    %v4512 = vunpack.c.h.b16 %v2113
    %v4513 = vunpack.c.l.b16 %v2114
    %v4514 = vunpack.c.h.b16 %v2114
    %v4515 = vunpack.c.l.b16 %v2115
    %v4516 = vunpack.c.h.b16 %v2115
    %v4517 = vunpack.c.l.b16 %v2116
    %v4518 = vunpack.c.h.b16 %v2116
    %v4519 = vunpack.c.l.b16 %v2117
    %v4520 = vunpack.c.h.b16 %v2117
    %v4521 = vunpack.c.l.b16 %v2118
    %v4522 = vunpack.c.h.b16 %v2118
    %v4523 = vunpack.c.l.b16 %v2119
    %v4524 = vunpack.c.h.b16 %v2119
    %v4525 = vunpack.c.l.b16 %v2120
    %v4526 = vunpack.c.h.b16 %v2120
    %v4527 = vunpack.c.l.b16 %v2121
    %v4528 = vunpack.c.h.b16 %v2121
    %v4529 = vunpack.c.l.b16 %v2122
    %v4530 = vunpack.c.h.b16 %v2122
    %v4531 = vunpack.c.l.b16 %v2123
    %v4532 = vunpack.c.h.b16 %v2123
    %v4533 = vunpack.c.l.b16 %v2124
    %v4534 = vunpack.c.h.b16 %v2124
    %v4535 = vunpack.c.l.b16 %v2125
    %v4536 = vunpack.c.h.b16 %v2125
    %v4537 = vunpack.c.l.b16 %v2126
    %v4538 = vunpack.c.h.b16 %v2126
    %v4539 = vunpack.c.l.b16 %v2127
    %v4540 = vunpack.c.h.b16 %v2127
    %v4541 = vunpack.c.l.b16 %v2128
    %v4542 = vunpack.c.h.b16 %v2128
    %v4543 = vunpack.c.l.b16 %v2129
    %v4544 = vunpack.c.h.b16 %v2129
    %v4545 = vunpack.c.l.b16 %v2130
    %v4546 = vunpack.c.h.b16 %v2130
    %v4547 = vunpack.c.l.b16 %v2131
    %v4548 = vunpack.c.h.b16 %v2131
    %v4549 = vunpack.c.l.b16 %v2132
    %v4550 = vunpack.c.h.b16 %v2132
    %v4551 = vunpack.c.l.b16 %v2133
    %v4552 = vunpack.c.h.b16 %v2133
    %v4553 = vunpack.c.l.b16 %v2134
    %v4554 = vunpack.c.h.b16 %v2134
    %v4555 = vunpack.c.l.b16 %v2135
    %v4556 = vunpack.c.h.b16 %v2135
    %v4557 = vunpack.c.l.b16 %v2136
    %v4558 = vunpack.c.h.b16 %v2136
    %v4559 = vunpack.c.l.b16 %v2137
    %v4560 = vunpack.c.h.b16 %v2137
    %v4561 = vunpack.c.l.b16 %v2138
    %v4562 = vunpack.c.h.b16 %v2138
    %v4563 = vunpack.c.l.b16 %v2139
    %v4564 = vunpack.c.h.b16 %v2139
    %v4565 = vunpack.c.l.b16 %v2140
    %v4566 = vunpack.c.h.b16 %v2140
    %v4567 = vunpack.c.l.b16 %v2141
    %v4568 = vunpack.c.h.b16 %v2141
    %v4569 = vunpack.c.l.b16 %v2142
    %v4570 = vunpack.c.h.b16 %v2142
    %v4571 = vunpack.c.l.b16 %v2143
    %v4572 = vunpack.c.h.b16 %v2143
    %v4573 = vunpack.c.l.b16 %v2144
    %v4574 = vunpack.c.h.b16 %v2144
    %v4575 = vunpack.c.l.b16 %v2145
    %v4576 = vunpack.c.h.b16 %v2145
    %v4577 = vunpack.c.l.b16 %v2146
    %v4578 = vunpack.c.h.b16 %v2146
    %v4579 = vunpack.c.l.b16 %v2147
    %v4580 = vunpack.c.h.b16 %v2147
    %v4581 = vunpack.c.l.b16 %v2148
    %v4582 = vunpack.c.h.b16 %v2148
    %v4583 = vunpack.c.l.b16 %v2149
    %v4584 = vunpack.c.h.b16 %v2149
    %v4585 = vunpack.c.l.b16 %v2150
    %v4586 = vunpack.c.h.b16 %v2150
    %v4587 = vunpack.c.l.b16 %v2151
    %v4588 = vunpack.c.h.b16 %v2151
    %v4589 = vunpack.c.l.b16 %v2152
    %v4590 = vunpack.c.h.b16 %v2152
    %v4591 = vunpack.c.l.b16 %v2153
    %v4592 = vunpack.c.h.b16 %v2153
    %v4593 = vunpack.c.l.b16 %v2154
    %v4594 = vunpack.c.h.b16 %v2154
    %v4595 = vunpack.c.l.b16 %v2155
    %v4596 = vunpack.c.h.b16 %v2155
    %v4597 = vunpack.c.l.b16 %v2156
    %v4598 = vunpack.c.h.b16 %v2156
    %v4599 = vunpack.c.l.b16 %v2157
    %v4600 = vunpack.c.h.b16 %v2157
    %v4601 = vunpack.c.l.b16 %v2158
    %v4602 = vunpack.c.h.b16 %v2158
    %v4603 = vunpack.c.l.b16 %v2159
    %v4604 = vunpack.c.h.b16 %v2159
    %v4605 = vunpack.c.l.b16 %v2160
    %v4606 = vunpack.c.h.b16 %v2160
    %v4607 = vunpack.c.l.b16 %v2161
    %v4608 = vunpack.c.h.b16 %v2161
    %v4609 = vunpack.c.l.b16 %v2162
    %v4610 = vunpack.c.h.b16 %v2162
    %v4611 = vunpack.c.l.b16 %v2163
    %v4612 = vunpack.c.h.b16 %v2163
    %v4613 = vunpack.c.l.b16 %v2164
    %v4614 = vunpack.c.h.b16 %v2164
    %v4615 = vunpack.c.l.b16 %v2165
    %v4616 = vunpack.c.h.b16 %v2165
    %v4617 = vunpack.c.l.b16 %v2166
    %v4618 = vunpack.c.h.b16 %v2166
    %v4619 = vunpack.c.l.b16 %v2167
    %v4620 = vunpack.c.h.b16 %v2167
    %v4621 = vunpack.c.l.b16 %v2168
    %v4622 = vunpack.c.h.b16 %v2168
    %v4623 = vunpack.c.l.b16 %v2169
    %v4624 = vunpack.c.h.b16 %v2169
    %v4625 = vunpack.c.l.b16 %v2170
    %v4626 = vunpack.c.h.b16 %v2170
    %v4627 = vunpack.c.l.b16 %v2171
    %v4628 = vunpack.c.h.b16 %v2171
    %v4629 = vunpack.c.l.b16 %v2172
    %v4630 = vunpack.c.h.b16 %v2172
    %v4631 = vunpack.c.l.b16 %v2173
    %v4632 = vunpack.c.h.b16 %v2173
    %v4633 = vunpack.c.l.b16 %v2174
    %v4634 = vunpack.c.h.b16 %v2174
    %v4635 = vunpack.c.l.b16 %v2175
    %v4636 = vunpack.c.h.b16 %v2175
    %v4637 = vunpack.c.l.b16 %v2176
    %v4638 = vunpack.c.h.b16 %v2176
    %v4639 = vunpack.c.l.b16 %v2177
    %v4640 = vunpack.c.h.b16 %v2177
    %v4641 = vunpack.c.l.b16 %v2178
    %v4642 = vunpack.c.h.b16 %v2178
    %v4643 = vunpack.c.l.b16 %v2179
    %v4644 = vunpack.c.h.b16 %v2179
    %v4645 = vunpack.c.l.b16 %v2180
    %v4646 = vunpack.c.h.b16 %v2180
    %v4647 = vunpack.c.l.b16 %v2181
    %v4648 = vunpack.c.h.b16 %v2181
    %v4649 = vunpack.c.l.b16 %v2182
    %v4650 = vunpack.c.h.b16 %v2182
    %v4651 = vunpack.c.l.b16 %v2183
    %v4652 = vunpack.c.h.b16 %v2183
    %v4653 = vunpack.c.l.b16 %v2184
    %v4654 = vunpack.c.h.b16 %v2184
    %v4655 = vunpack.c.l.b16 %v2185
    %v4656 = vunpack.c.h.b16 %v2185
    %v4657 = vunpack.c.l.b16 %v2186
    %v4658 = vunpack.c.h.b16 %v2186
    %v4659 = vunpack.c.l.b16 %v2187
    %v4660 = vunpack.c.h.b16 %v2187
    %v4661 = vunpack.c.l.b16 %v2188
    %v4662 = vunpack.c.h.b16 %v2188
    %v4663 = vunpack.c.l.b16 %v2189
    %v4664 = vunpack.c.h.b16 %v2189
    %v4665 = vunpack.c.l.b16 %v2190
    %v4666 = vunpack.c.h.b16 %v2190
    %v4667 = vunpack.c.l.b16 %v2191
    %v4668 = vunpack.c.h.b16 %v2191
    %v4669 = vunpack.c.l.b16 %v2192
    %v4670 = vunpack.c.h.b16 %v2192
    %v4671 = vunpack.c.l.b16 %v2193
    %v4672 = vunpack.c.h.b16 %v2193
    %v4673 = vunpack.c.l.b16 %v2194
    %v4674 = vunpack.c.h.b16 %v2194
    %v4675 = vunpack.c.l.b16 %v2195
    %v4676 = vunpack.c.h.b16 %v2195
    %v4677 = vunpack.c.l.b16 %v2196
    %v4678 = vunpack.c.h.b16 %v2196
    %v4679 = vunpack.c.l.b16 %v2197
    %v4680 = vunpack.c.h.b16 %v2197
    %v4681 = vunpack.c.l.b16 %v2198
    %v4682 = vunpack.c.h.b16 %v2198
    %v4683 = vunpack.c.l.b16 %v2199
    %v4684 = vunpack.c.h.b16 %v2199
    %v4685 = vunpack.c.l.b16 %v2200
    %v4686 = vunpack.c.h.b16 %v2200
    %v4687 = vunpack.c.l.b16 %v2201
    %v4688 = vunpack.c.h.b16 %v2201
    %v4689 = vunpack.c.l.b16 %v2202
    %v4690 = vunpack.c.h.b16 %v2202
    %v4691 = vunpack.c.l.b16 %v2203
    %v4692 = vunpack.c.h.b16 %v2203
    %v4693 = vunpack.c.l.b16 %v2204
    %v4694 = vunpack.c.h.b16 %v2204
    %v4695 = vunpack.c.l.b16 %v2205
    %v4696 = vunpack.c.h.b16 %v2205
    %v4697 = vunpack.c.l.b16 %v2206
    %v4698 = vunpack.c.h.b16 %v2206
    %v4699 = vunpack.c.l.b16 %v2207
    %v4700 = vunpack.c.h.b16 %v2207
    %v4701 = vunpack.c.l.b16 %v2208
    %v4702 = vunpack.c.h.b16 %v2208
    %v4703 = vunpack.c.l.b16 %v2209
    %v4704 = vunpack.c.h.b16 %v2209
    %v4705 = vunpack.c.l.b16 %v2210
    %v4706 = vunpack.c.h.b16 %v2210
    %v4707 = vunpack.c.l.b16 %v2211
    %v4708 = vunpack.c.h.b16 %v2211
    %v4709 = vunpack.c.l.b16 %v2212
    %v4710 = vunpack.c.h.b16 %v2212
    %v4711 = vunpack.c.l.b16 %v2213
    %v4712 = vunpack.c.h.b16 %v2213
    %v4713 = vunpack.c.l.b16 %v2214
    %v4714 = vunpack.c.h.b16 %v2214
    %v4715 = vunpack.c.l.b16 %v2215
    %v4716 = vunpack.c.h.b16 %v2215
    %v4717 = vunpack.c.l.b16 %v2216
    %v4718 = vunpack.c.h.b16 %v2216
    %v4719 = vunpack.c.l.b16 %v2217
    %v4720 = vunpack.c.h.b16 %v2217
    %v4721 = vunpack.c.l.b16 %v2218
    %v4722 = vunpack.c.h.b16 %v2218
    %v4723 = vunpack.c.l.b16 %v2219
    %v4724 = vunpack.c.h.b16 %v2219
    %v4725 = vunpack.c.l.b16 %v2220
    %v4726 = vunpack.c.h.b16 %v2220
    %v4727 = vunpack.c.l.b16 %v2221
    %v4728 = vunpack.c.h.b16 %v2221
    %v4729 = vunpack.c.l.b16 %v2222
    %v4730 = vunpack.c.h.b16 %v2222
    %v4731 = vunpack.c.l.b16 %v2223
    %v4732 = vunpack.c.h.b16 %v2223
    %v4733 = vunpack.c.l.b16 %v2224
    %v4734 = vunpack.c.h.b16 %v2224
    %v4735 = vunpack.c.l.b16 %v2225
    %v4736 = vunpack.c.h.b16 %v2225
    %v4737 = vunpack.c.l.b16 %v2226
    %v4738 = vunpack.c.h.b16 %v2226
    %v4739 = vunpack.c.l.b16 %v2227
    %v4740 = vunpack.c.h.b16 %v2227
    %v4741 = vunpack.c.l.b16 %v2228
    %v4742 = vunpack.c.h.b16 %v2228
    %v4743 = vunpack.c.l.b16 %v2229
    %v4744 = vunpack.c.h.b16 %v2229
    %v4745 = vunpack.c.l.b16 %v2230
    %v4746 = vunpack.c.h.b16 %v2230
    %v4747 = vunpack.c.l.b16 %v2231
    %v4748 = vunpack.c.h.b16 %v2231
    %v4749 = vunpack.c.l.b16 %v2232
    %v4750 = vunpack.c.h.b16 %v2232
    %v4751 = vunpack.c.l.b16 %v2233
    %v4752 = vunpack.c.h.b16 %v2233
    %v4753 = vunpack.c.l.b16 %v2234
    %v4754 = vunpack.c.h.b16 %v2234
    %v4755 = vunpack.c.l.b16 %v2235
    %v4756 = vunpack.c.h.b16 %v2235
    %v4757 = vunpack.c.l.b16 %v2236
    %v4758 = vunpack.c.h.b16 %v2236
    %v4759 = vunpack.c.l.b16 %v2237
    %v4760 = vunpack.c.h.b16 %v2237
    %v4761 = vunpack.c.l.b16 %v2238
    %v4762 = vunpack.c.h.b16 %v2238
    %v4763 = vunpack.c.l.b16 %v2239
    %v4764 = vunpack.c.h.b16 %v2239
    %v4765 = vunpack.c.l.b16 %v2240
    %v4766 = vunpack.c.h.b16 %v2240
    %v4767 = vunpack.c.l.b16 %v2241
    %v4768 = vunpack.c.h.b16 %v2241
    %v4769 = vunpack.c.l.b16 %v2242
    %v4770 = vunpack.c.h.b16 %v2242
    %v4771 = vunpack.c.l.b16 %v2243
    %v4772 = vunpack.c.h.b16 %v2243
    %v4773 = vunpack.c.l.b16 %v2244
    %v4774 = vunpack.c.h.b16 %v2244
    %v4775 = vunpack.c.l.b16 %v2245
    %v4776 = vunpack.c.h.b16 %v2245
    %v4777 = vunpack.c.l.b16 %v2246
    %v4778 = vunpack.c.h.b16 %v2246
    %v4779 = vunpack.c.l.b16 %v2247
    %v4780 = vunpack.c.h.b16 %v2247
    %v4781 = vunpack.c.l.b16 %v2248
    %v4782 = vunpack.c.h.b16 %v2248
    %v4783 = vunpack.c.l.b16 %v2249
    %v4784 = vunpack.c.h.b16 %v2249
    %v4785 = vunpack.c.l.b16 %v2250
    %v4786 = vunpack.c.h.b16 %v2250
    %v4787 = vunpack.c.l.b16 %v2251
    %v4788 = vunpack.c.h.b16 %v2251
    %v4789 = vunpack.c.l.b16 %v2252
    %v4790 = vunpack.c.h.b16 %v2252
    %v4791 = vunpack.c.l.b16 %v2253
    %v4792 = vunpack.c.h.b16 %v2253
    %v4793 = vunpack.c.l.b16 %v2254
    %v4794 = vunpack.c.h.b16 %v2254
    %v4795 = vunpack.c.l.b16 %v2255
    %v4796 = vunpack.c.h.b16 %v2255
    %v4797 = vunpack.c.l.b16 %v2256
    %v4798 = vunpack.c.h.b16 %v2256
    %v4799 = vunpack.c.l.b16 %v2257
    %v4800 = vunpack.c.h.b16 %v2257
    %v4801 = vunpack.c.l.b16 %v2258
    %v4802 = vunpack.c.h.b16 %v2258
    %v4803 = vunpack.c.l.b16 %v2259
    %v4804 = vunpack.c.h.b16 %v2259
    %v4805 = vunpack.c.l.b16 %v2260
    %v4806 = vunpack.c.h.b16 %v2260
    %v4807 = vunpack.c.l.b16 %v2261
    %v4808 = vunpack.c.h.b16 %v2261
    %v4809 = vunpack.c.l.b16 %v2262
    %v4810 = vunpack.c.h.b16 %v2262
    %v4811 = vunpack.c.l.b16 %v2263
    %v4812 = vunpack.c.h.b16 %v2263
    %v4813 = vunpack.c.l.b16 %v2264
    %v4814 = vunpack.c.h.b16 %v2264
    %v4815 = vunpack.c.l.b16 %v2265
    %v4816 = vunpack.c.h.b16 %v2265
    %v4817 = vunpack.c.l.b16 %v2266
    %v4818 = vunpack.c.h.b16 %v2266
    %v4819 = vunpack.c.l.b16 %v2267
    %v4820 = vunpack.c.h.b16 %v2267
    %v4821 = vunpack.c.l.b16 %v2268
    %v4822 = vunpack.c.h.b16 %v2268
    %v4823 = vunpack.c.l.b16 %v2269
    %v4824 = vunpack.c.h.b16 %v2269
    %v4825 = vunpack.c.l.b16 %v2270
    %v4826 = vunpack.c.h.b16 %v2270
    %v4827 = vunpack.c.l.b16 %v2271
    %v4828 = vunpack.c.h.b16 %v2271
    %v4829 = vunpack.c.l.b16 %v2272
    %v4830 = vunpack.c.h.b16 %v2272
    %v4831 = vunpack.c.l.b16 %v2273
    %v4832 = vunpack.c.h.b16 %v2273
    %v4833 = vunpack.c.l.b16 %v2274
    %v4834 = vunpack.c.h.b16 %v2274
    %v4835 = vunpack.c.l.b16 %v2275
    %v4836 = vunpack.c.h.b16 %v2275
    %v4837 = vunpack.c.l.b16 %v2276
    %v4838 = vunpack.c.h.b16 %v2276
    %v4839 = vunpack.c.l.b16 %v2277
    %v4840 = vunpack.c.h.b16 %v2277
    %v4841 = vunpack.c.l.b16 %v2278
    %v4842 = vunpack.c.h.b16 %v2278
    %v4843 = vunpack.c.l.b16 %v2279
    %v4844 = vunpack.c.h.b16 %v2279
    %v4845 = vunpack.c.l.b16 %v2280
    %v4846 = vunpack.c.h.b16 %v2280
    %v4847 = vunpack.c.l.b16 %v2281
    %v4848 = vunpack.c.h.b16 %v2281
    %v4849 = vunpack.c.l.b16 %v2282
    %v4850 = vunpack.c.h.b16 %v2282
    %v4851 = vunpack.c.l.b16 %v2283
    %v4852 = vunpack.c.h.b16 %v2283
    %v4853 = vunpack.c.l.b16 %v2284
    %v4854 = vunpack.c.h.b16 %v2284
    %v4855 = vunpack.c.l.b16 %v2285
    %v4856 = vunpack.c.h.b16 %v2285
    %v4857 = vunpack.c.l.b16 %v2286
    %v4858 = vunpack.c.h.b16 %v2286
    %v4859 = vunpack.c.l.b16 %v2287
    %v4860 = vunpack.c.h.b16 %v2287
    %v4861 = vunpack.c.l.b16 %v2288
    %v4862 = vunpack.c.h.b16 %v2288
    %v4863 = vunpack.c.l.b16 %v2289
    %v4864 = vunpack.c.h.b16 %v2289
    %v4865 = vunpack.c.l.b16 %v2290
    %v4866 = vunpack.c.h.b16 %v2290
    %v4867 = vunpack.c.l.b16 %v2291
    %v4868 = vunpack.c.h.b16 %v2291
    %v4869 = vunpack.c.l.b16 %v2292
    %v4870 = vunpack.c.h.b16 %v2292
    %v4871 = vunpack.c.l.b16 %v2293
    %v4872 = vunpack.c.h.b16 %v2293
    %v4873 = vunpack.c.l.b16 %v2294
    %v4874 = vunpack.c.h.b16 %v2294
    %v4875 = vunpack.c.l.b16 %v2295
    %v4876 = vunpack.c.h.b16 %v2295
    %v4877 = vunpack.c.l.b16 %v2296
    %v4878 = vunpack.c.h.b16 %v2296
    %v4879 = vunpack.c.l.b16 %v2297
    %v4880 = vunpack.c.h.b16 %v2297
    %v4881 = vunpack.c.l.b16 %v2298
    %v4882 = vunpack.c.h.b16 %v2298
    %v4883 = vunpack.c.l.b16 %v2299
    %v4884 = vunpack.c.h.b16 %v2299
    %v4885 = vunpack.c.l.b16 %v2300
    %v4886 = vunpack.c.h.b16 %v2300
    %v4887 = vunpack.c.l.b16 %v2301
    %v4888 = vunpack.c.h.b16 %v2301
    %v4889 = vunpack.c.l.b16 %v2302
    %v4890 = vunpack.c.h.b16 %v2302
    %v4891 = vunpack.c.l.b16 %v2303
    %v4892 = vunpack.c.h.b16 %v2303
    %v4893 = vunpack.c.l.b16 %v2304
    %v4894 = vunpack.c.h.b16 %v2304
    %v4895 = vunpack.c.l.b16 %v2305
    %v4896 = vunpack.c.h.b16 %v2305
    %v4897 = vunpack.c.l.b16 %v2306
    %v4898 = vunpack.c.h.b16 %v2306
    %v4899 = vunpack.c.l.b16 %v2307
    %v4900 = vunpack.c.h.b16 %v2307
    %v4901 = vunpack.c.l.b16 %v2308
    %v4902 = vunpack.c.h.b16 %v2308
    %v4903 = vunpack.c.l.b16 %v2309
    %v4904 = vunpack.c.h.b16 %v2309
    %v4905 = vunpack.c.l.b16 %v2310
    %v4906 = vunpack.c.h.b16 %v2310
    %v4907 = vunpack.c.l.b16 %v2311
    %v4908 = vunpack.c.h.b16 %v2311
    %v4909 = vunpack.c.l.b16 %v2312
    %v4910 = vunpack.c.h.b16 %v2312
    %v4911 = vunpack.c.l.b16 %v2313
    %v4912 = vunpack.c.h.b16 %v2313
    %v4913 = vunpack.c.l.b16 %v2314
    %v4914 = vunpack.c.h.b16 %v2314
    %v4915 = vunpack.c.l.b16 %v2315
    %v4916 = vunpack.c.h.b16 %v2315
    %v4917 = vunpack.c.l.b16 %v2316
    %v4918 = vunpack.c.h.b16 %v2316
    %v4919 = vunpack.c.l.b16 %v2317
    %v4920 = vunpack.c.h.b16 %v2317
    %v4921 = vunpack.c.l.b16 %v2318
    %v4922 = vunpack.c.h.b16 %v2318
    %v4923 = vunpack.c.l.b16 %v2319
    %v4924 = vunpack.c.h.b16 %v2319
    %v4925 = vunpack.c.l.b16 %v2320
    %v4926 = vunpack.c.h.b16 %v2320
    %v4927 = vunpack.c.l.b16 %v2321
    %v4928 = vunpack.c.h.b16 %v2321
    %v4929 = vunpack.c.l.b16 %v2322
    %v4930 = vunpack.c.h.b16 %v2322
    %v4931 = vunpack.c.l.b16 %v2323
    %v4932 = vunpack.c.h.b16 %v2323
    %v4933 = vunpack.c.l.b16 %v2324
    %v4934 = vunpack.c.h.b16 %v2324
    %v4935 = vunpack.c.l.b16 %v2325
    %v4936 = vunpack.c.h.b16 %v2325
    %v4937 = vunpack.c.l.b16 %v2326
    %v4938 = vunpack.c.h.b16 %v2326
    %v4939 = vunpack.c.l.b16 %v2327
    %v4940 = vunpack.c.h.b16 %v2327
    %v4941 = vunpack.c.l.b16 %v2328
    %v4942 = vunpack.c.h.b16 %v2328
    %v4943 = vunpack.c.l.b16 %v2329
    %v4944 = vunpack.c.h.b16 %v2329
    %v4945 = vunpack.c.l.b16 %v2330
    %v4946 = vunpack.c.h.b16 %v2330
    %v4947 = vunpack.c.l.b16 %v2331
    %v4948 = vunpack.c.h.b16 %v2331
    %v4949 = vunpack.c.l.b16 %v2332
    %v4950 = vunpack.c.h.b16 %v2332
    %v4951 = vunpack.c.l.b16 %v2333
    %v4952 = vunpack.c.h.b16 %v2333
    %v4953 = vunpack.c.l.b16 %v2334
    %v4954 = vunpack.c.h.b16 %v2334
    %v4955 = vunpack.c.l.b16 %v2335
    %v4956 = vunpack.c.h.b16 %v2335
    %v4957 = vunpack.c.l.b16 %v2336
    %v4958 = vunpack.c.h.b16 %v2336
    %v4959 = vunpack.c.l.b16 %v2337
    %v4960 = vunpack.c.h.b16 %v2337
    %v4961 = vunpack.c.l.b16 %v2338
    %v4962 = vunpack.c.h.b16 %v2338
    %v4963 = vunpack.c.l.b16 %v2339
    %v4964 = vunpack.c.h.b16 %v2339
    %v4965 = vunpack.c.l.b16 %v2340
    %v4966 = vunpack.c.h.b16 %v2340
    %v4967 = vunpack.c.l.b16 %v2341
    %v4968 = vunpack.c.h.b16 %v2341
    %v4969 = vunpack.c.l.b16 %v2342
    %v4970 = vunpack.c.h.b16 %v2342
    %v4971 = vunpack.c.l.b16 %v2343
    %v4972 = vunpack.c.h.b16 %v2343
    %v4973 = vunpack.c.l.b16 %v2344
    %v4974 = vunpack.c.h.b16 %v2344
    %v4975 = vunpack.c.l.b16 %v2345
    %v4976 = vunpack.c.h.b16 %v2345
    %v4977 = vunpack.c.l.b16 %v2346
    %v4978 = vunpack.c.h.b16 %v2346
    %v4979 = vunpack.c.l.b16 %v2347
    %v4980 = vunpack.c.h.b16 %v2347
    %v4981 = vunpack.c.l.b16 %v2348
    %v4982 = vunpack.c.h.b16 %v2348
    %v4983 = vunpack.c.l.b16 %v2349
    %v4984 = vunpack.c.h.b16 %v2349
    %v4985 = vunpack.c.l.b16 %v2350
    %v4986 = vunpack.c.h.b16 %v2350
    %v4987 = vunpack.c.l.b16 %v2351
    %v4988 = vunpack.c.h.b16 %v2351
    %v4989 = vunpack.c.l.b16 %v2352
    %v4990 = vunpack.c.h.b16 %v2352
    %v4991 = vunpack.c.l.b16 %v2353
    %v4992 = vunpack.c.h.b16 %v2353
    %v4993 = vunpack.c.l.b16 %v2354
    %v4994 = vunpack.c.h.b16 %v2354
    %v4995 = vunpack.c.l.b16 %v2355
    %v4996 = vunpack.c.h.b16 %v2355
    %v4997 = vunpack.c.l.b16 %v2356
    %v4998 = vunpack.c.h.b16 %v2356
    %v4999 = vunpack.c.l.b16 %v2357
    %v5000 = vunpack.c.h.b16 %v2357
    %v5001 = vunpack.c.l.b16 %v2358
    %v5002 = vunpack.c.h.b16 %v2358
    %v5003 = vunpack.c.l.b16 %v2359
    %v5004 = vunpack.c.h.b16 %v2359
    %v5005 = vunpack.c.l.b16 %v2360
    %v5006 = vunpack.c.h.b16 %v2360
    %v5007 = vunpack.c.l.b16 %v2361
    %v5008 = vunpack.c.h.b16 %v2361
    %v5009 = vunpack.c.l.b16 %v2362
    %v5010 = vunpack.c.h.b16 %v2362
    %v5011 = vunpack.c.l.b16 %v2363
    %v5012 = vunpack.c.h.b16 %v2363
    %v5013 = vunpack.c.l.b16 %v2364
    %v5014 = vunpack.c.h.b16 %v2364
    %v5015 = vunpack.c.l.b16 %v2365
    %v5016 = vunpack.c.h.b16 %v2365
    %v5017 = vunpack.c.l.b16 %v2366
    %v5018 = vunpack.c.h.b16 %v2366
    %v5019 = vunpack.c.l.b16 %v2367
    %v5020 = vunpack.c.h.b16 %v2367
    %v5021 = vunpack.c.l.b16 %v2368
    %v5022 = vunpack.c.h.b16 %v2368
    %v5023 = vunpack.c.l.b16 %v2369
    %v5024 = vunpack.c.h.b16 %v2369
    %v5025 = vunpack.c.l.b16 %v2370
    %v5026 = vunpack.c.h.b16 %v2370
    %v5027 = vunpack.c.l.b16 %v2371
    %v5028 = vunpack.c.h.b16 %v2371
    %v5029 = vunpack.c.l.b16 %v2372
    %v5030 = vunpack.c.h.b16 %v2372
    %v5031 = vunpack.c.l.b16 %v2373
    %v5032 = vunpack.c.h.b16 %v2373
    %v5033 = vunpack.c.l.b16 %v2374
    %v5034 = vunpack.c.h.b16 %v2374
    %v5035 = vunpack.c.l.b16 %v2375
    %v5036 = vunpack.c.h.b16 %v2375
    %v5037 = vunpack.c.l.b16 %v2376
    %v5038 = vunpack.c.h.b16 %v2376
    %v5039 = vunpack.c.l.b16 %v2377
    %v5040 = vunpack.c.h.b16 %v2377
    %v5041 = vunpack.c.l.b16 %v2378
    %v5042 = vunpack.c.h.b16 %v2378
    %v5043 = vunpack.c.l.b16 %v2379
    %v5044 = vunpack.c.h.b16 %v2379
    %v5045 = vunpack.c.l.b16 %v2380
    %v5046 = vunpack.c.h.b16 %v2380
    %v5047 = vunpack.c.l.b16 %v2381
    %v5048 = vunpack.c.h.b16 %v2381
    %v5049 = vunpack.c.l.b16 %v2382
    %v5050 = vunpack.c.h.b16 %v2382
    %v5051 = vunpack.c.l.b16 %v2383
    %v5052 = vunpack.c.h.b16 %v2383
    %v5053 = vunpack.c.l.b16 %v2384
    %v5054 = vunpack.c.h.b16 %v2384
    %v5055 = vunpack.c.l.b16 %v2385
    %v5056 = vunpack.c.h.b16 %v2385
    %v5057 = vunpack.c.l.b16 %v2386
    %v5058 = vunpack.c.h.b16 %v2386
    %v5059 = vunpack.c.l.b16 %v2387
    %v5060 = vunpack.c.h.b16 %v2387
    %v5061 = vunpack.c.l.b16 %v2388
    %v5062 = vunpack.c.h.b16 %v2388
    %v5063 = vunpack.c.l.b16 %v2389
    %v5064 = vunpack.c.h.b16 %v2389
    %v5065 = vunpack.c.l.b16 %v2390
    %v5066 = vunpack.c.h.b16 %v2390
    %v5067 = vunpack.c.l.b16 %v2391
    %v5068 = vunpack.c.h.b16 %v2391
    %v5069 = vunpack.c.l.b16 %v2392
    %v5070 = vunpack.c.h.b16 %v2392
    %v5071 = vunpack.c.l.b16 %v2393
    %v5072 = vunpack.c.h.b16 %v2393
    %v5073 = vunpack.c.l.b16 %v2394
    %v5074 = vunpack.c.h.b16 %v2394
    %v5075 = vunpack.c.l.b16 %v2395
    %v5076 = vunpack.c.h.b16 %v2395
    %v5077 = vunpack.c.l.b16 %v2396
    %v5078 = vunpack.c.h.b16 %v2396
    %v5079 = vunpack.c.l.b16 %v2397
    %v5080 = vunpack.c.h.b16 %v2397
    %v5081 = vunpack.c.l.b16 %v2398
    %v5082 = vunpack.c.h.b16 %v2398
    %v5083 = vunpack.c.l.b16 %v2399
    %v5084 = vunpack.c.h.b16 %v2399
    %v5085 = vunpack.c.l.b16 %v2400
    %v5086 = vunpack.c.h.b16 %v2400
    %v5087 = vunpack.c.l.b16 %v2401
    %v5088 = vunpack.c.h.b16 %v2401
    %v5089 = vunpack.c.l.b16 %v2402
    %v5090 = vunpack.c.h.b16 %v2402
    %v5091 = vunpack.c.l.b16 %v2403
    %v5092 = vunpack.c.h.b16 %v2403
    %v5093 = vunpack.c.l.b16 %v2404
    %v5094 = vunpack.c.h.b16 %v2404
    %v5095 = vunpack.c.l.b16 %v2405
    %v5096 = vunpack.c.h.b16 %v2405
    %v5097 = vunpack.c.l.b16 %v2406
    %v5098 = vunpack.c.h.b16 %v2406
    %v5099 = vunpack.c.l.b16 %v2407
    %v5100 = vunpack.c.h.b16 %v2407
    %v5101 = vunpack.c.l.b16 %v2408
    %v5102 = vunpack.c.h.b16 %v2408
    %v5103 = vunpack.c.l.b16 %v2409
    %v5104 = vunpack.c.h.b16 %v2409
    %v5105 = vunpack.c.l.b16 %v2410
    %v5106 = vunpack.c.h.b16 %v2410
    %v5107 = vunpack.c.l.b16 %v2411
    %v5108 = vunpack.c.h.b16 %v2411
    %v5109 = vunpack.c.l.b16 %v2412
    %v5110 = vunpack.c.h.b16 %v2412
    %v5111 = vunpack.c.l.b16 %v2413
    %v5112 = vunpack.c.h.b16 %v2413
    %v5113 = vunpack.c.l.b16 %v2414
    %v5114 = vunpack.c.h.b16 %v2414
    %v5115 = vunpack.c.l.b16 %v2415
    %v5116 = vunpack.c.h.b16 %v2415
    %v5117 = vunpack.c.l.b16 %v2416
    %v5118 = vunpack.c.h.b16 %v2416
    %v5119 = vunpack.c.l.b16 %v2417
    %v5120 = vunpack.c.h.b16 %v2417
    %v5121 = vunpack.c.l.b16 %v2418
    %v5122 = vunpack.c.h.b16 %v2418
    %v5123 = vunpack.c.l.b16 %v2419
    %v5124 = vunpack.c.h.b16 %v2419
    %v5125 = vunpack.c.l.b16 %v2420
    %v5126 = vunpack.c.h.b16 %v2420
    %v5127 = vunpack.c.l.b16 %v2421
    %v5128 = vunpack.c.h.b16 %v2421
    %v5129 = vunpack.c.l.b16 %v2422
    %v5130 = vunpack.c.h.b16 %v2422
    %v5131 = vunpack.c.l.b16 %v2423
    %v5132 = vunpack.c.h.b16 %v2423
    %v5133 = vunpack.c.l.b16 %v2424
    %v5134 = vunpack.c.h.b16 %v2424
    %v5135 = vunpack.c.l.b16 %v2425
    %v5136 = vunpack.c.h.b16 %v2425
    %v5137 = vunpack.c.l.b16 %v2426
    %v5138 = vunpack.c.h.b16 %v2426
    %v5139 = vunpack.c.l.b16 %v2427
    %v5140 = vunpack.c.h.b16 %v2427
    %v5141 = vunpack.c.l.b16 %v2428
    %v5142 = vunpack.c.h.b16 %v2428
    %v5143 = vunpack.c.l.b16 %v2429
    %v5144 = vunpack.c.h.b16 %v2429
    %v5145 = vunpack.c.l.b16 %v2430
    %v5146 = vunpack.c.h.b16 %v2430
    %v5147 = vunpack.c.l.b16 %v2431
    %v5148 = vunpack.c.h.b16 %v2431
    %v5149 = vunpack.c.l.b16 %v2432
    %v5150 = vunpack.c.h.b16 %v2432
    %v5151 = vunpack.c.l.b16 %v2433
    %v5152 = vunpack.c.h.b16 %v2433
    %v5153 = vunpack.c.l.b16 %v2434
    %v5154 = vunpack.c.h.b16 %v2434
    %v5155 = vunpack.c.l.b16 %v2435
    %v5156 = vunpack.c.h.b16 %v2435
    %v5157 = vunpack.c.l.b16 %v2436
    %v5158 = vunpack.c.h.b16 %v2436
    %v5159 = vunpack.c.l.b16 %v2437
    %v5160 = vunpack.c.h.b16 %v2437
    %v5161 = vunpack.c.l.b16 %v2438
    %v5162 = vunpack.c.h.b16 %v2438
    %v5163 = vunpack.c.l.b16 %v2439
    %v5164 = vunpack.c.h.b16 %v2439
    %v5165 = vunpack.c.l.b16 %v2440
    %v5166 = vunpack.c.h.b16 %v2440
    %v5167 = vunpack.c.l.b16 %v2441
    %v5168 = vunpack.c.h.b16 %v2441
    %v5169 = vunpack.c.l.b16 %v2442
    %v5170 = vunpack.c.h.b16 %v2442
    %v5171 = vunpack.c.l.b16 %v2443
    %v5172 = vunpack.c.h.b16 %v2443
    %v5173 = vunpack.c.l.b16 %v2444
    %v5174 = vunpack.c.h.b16 %v2444
    %v5175 = vunpack.c.l.b16 %v2445
    %v5176 = vunpack.c.h.b16 %v2445
    %v5177 = vunpack.c.l.b16 %v2446
    %v5178 = vunpack.c.h.b16 %v2446
    %v5179 = vunpack.c.l.b16 %v2447
    %v5180 = vunpack.c.h.b16 %v2447
    %v5181 = vunpack.c.l.b16 %v2448
    %v5182 = vunpack.c.h.b16 %v2448
    %v5183 = vunpack.c.l.b16 %v2449
    %v5184 = vunpack.c.h.b16 %v2449
    %v5185 = vunpack.c.l.b16 %v2450
    %v5186 = vunpack.c.h.b16 %v2450
    %v5187 = vunpack.c.l.b16 %v2451
    %v5188 = vunpack.c.h.b16 %v2451
    %v5189 = vunpack.c.l.b16 %v2452
    %v5190 = vunpack.c.h.b16 %v2452
    %v5191 = vunpack.c.l.b16 %v2453
    %v5192 = vunpack.c.h.b16 %v2453
    %v5193 = vunpack.c.l.b16 %v2454
    %v5194 = vunpack.c.h.b16 %v2454
    %v5195 = vunpack.c.l.b16 %v2455
    %v5196 = vunpack.c.h.b16 %v2455
    %v5197 = vunpack.c.l.b16 %v2456
    %v5198 = vunpack.c.h.b16 %v2456
    %v5199 = vunpack.c.l.b16 %v2457
    %v5200 = vunpack.c.h.b16 %v2457
    %v5201 = vunpack.c.l.b16 %v2458
    %v5202 = vunpack.c.h.b16 %v2458
    %v5203 = vunpack.c.l.b16 %v2459
    %v5204 = vunpack.c.h.b16 %v2459
    %v5205 = vunpack.c.l.b16 %v2460
    %v5206 = vunpack.c.h.b16 %v2460
    %v5207 = vunpack.c.l.b16 %v2461
    %v5208 = vunpack.c.h.b16 %v2461
    %v5209 = vunpack.c.l.b16 %v2462
    %v5210 = vunpack.c.h.b16 %v2462
    %v5211 = vunpack.c.l.b16 %v2463
    %v5212 = vunpack.c.h.b16 %v2463
    %v5213 = vunpack.c.l.b16 %v2464
    %v5214 = vunpack.c.h.b16 %v2464
    %v5215 = vunpack.c.l.b16 %v2465
    %v5216 = vunpack.c.h.b16 %v2465
    %v5217 = vunpack.c.l.b16 %v2466
    %v5218 = vunpack.c.h.b16 %v2466
    %v5219 = vunpack.c.l.b16 %v2467
    %v5220 = vunpack.c.h.b16 %v2467
    %v5221 = vunpack.c.l.b16 %v2468
    %v5222 = vunpack.c.h.b16 %v2468
    %v5223 = vunpack.c.l.b16 %v2469
    %v5224 = vunpack.c.h.b16 %v2469
    %v5225 = vunpack.c.l.b16 %v2470
    %v5226 = vunpack.c.h.b16 %v2470
    %v5227 = vunpack.c.l.b16 %v2471
    %v5228 = vunpack.c.h.b16 %v2471
    %v5229 = vunpack.c.l.b16 %v2472
    %v5230 = vunpack.c.h.b16 %v2472
    %v5231 = vunpack.c.l.b16 %v2473
    %v5232 = vunpack.c.h.b16 %v2473
    %v5233 = vunpack.c.l.b16 %v2474
    %v5234 = vunpack.c.h.b16 %v2474
    %v5235 = vunpack.c.l.b16 %v2475
    %v5236 = vunpack.c.h.b16 %v2475
    %v5237 = vunpack.c.l.b16 %v2476
    %v5238 = vunpack.c.h.b16 %v2476
    %v5239 = vunpack.c.l.b16 %v2477
    %v5240 = vunpack.c.h.b16 %v2477
    %v5241 = vunpack.c.l.b16 %v2478
    %v5242 = vunpack.c.h.b16 %v2478
    %v5243 = vunpack.c.l.b16 %v2479
    %v5244 = vunpack.c.h.b16 %v2479
    %v5245 = vunpack.c.l.b16 %v2480
    %v5246 = vunpack.c.h.b16 %v2480
    %v5247 = vunpack.c.l.b16 %v2481
    %v5248 = vunpack.c.h.b16 %v2481
    %v5249 = vunpack.c.l.b16 %v2482
    %v5250 = vunpack.c.h.b16 %v2482
    %v5251 = vunpack.c.l.b16 %v2483
    %v5252 = vunpack.c.h.b16 %v2483
    %v5253 = vunpack.c.l.b16 %v2484
    %v5254 = vunpack.c.h.b16 %v2484
    %v5255 = vunpack.c.l.b16 %v2485
    %v5256 = vunpack.c.h.b16 %v2485
    %v5257 = vunpack.c.l.b16 %v2486
    %v5258 = vunpack.c.h.b16 %v2486
    %v5259 = vunpack.c.l.b16 %v2487
    %v5260 = vunpack.c.h.b16 %v2487
    %v5261 = vunpack.c.l.b16 %v2488
    %v5262 = vunpack.c.h.b16 %v2488
    %v5263 = vunpack.c.l.b16 %v2489
    %v5264 = vunpack.c.h.b16 %v2489
    %v5265 = vunpack.c.l.b16 %v2490
    %v5266 = vunpack.c.h.b16 %v2490
    %v5267 = vunpack.c.l.b16 %v2491
    %v5268 = vunpack.c.h.b16 %v2491
    %v5269 = vunpack.c.l.b16 %v2492
    %v5270 = vunpack.c.h.b16 %v2492
    %v5271 = vunpack.c.l.b16 %v2493
    %v5272 = vunpack.c.h.b16 %v2493
    %v5273 = vunpack.c.l.b16 %v2494
    %v5274 = vunpack.c.h.b16 %v2494
    %v5275 = vunpack.c.l.b16 %v2495
    %v5276 = vunpack.c.h.b16 %v2495
    %v5277 = vunpack.c.l.b16 %v2496
    %v5278 = vunpack.c.h.b16 %v2496
    %v5279 = vunpack.c.l.b16 %v2497
    %v5280 = vunpack.c.h.b16 %v2497
    %v5281 = vunpack.c.l.b16 %v2498
    %v5282 = vunpack.c.h.b16 %v2498
    %v5283 = vunpack.c.l.b16 %v2499
    %v5284 = vunpack.c.h.b16 %v2499
    %v5285 = vunpack.c.l.b16 %v2500
    %v5286 = vunpack.c.h.b16 %v2500
    %v5287 = vunpack.c.l.b16 %v2501
    %v5288 = vunpack.c.h.b16 %v2501
    %v5289 = vunpack.c.l.b16 %v2502
    %v5290 = vunpack.c.h.b16 %v2502
    %v5291 = vunpack.c.l.b16 %v2503
    %v5292 = vunpack.c.h.b16 %v2503
    %v5293 = vunpack.c.l.b16 %v2504
    %v5294 = vunpack.c.h.b16 %v2504
    %v5295 = vunpack.c.l.b16 %v2505
    %v5296 = vunpack.c.h.b16 %v2505
    %v5297 = vunpack.c.l.b16 %v2506
    %v5298 = vunpack.c.h.b16 %v2506
    %v5299 = vunpack.c.l.b16 %v2507
    %v5300 = vunpack.c.h.b16 %v2507
    %v5301 = vunpack.c.l.b16 %v2508
    %v5302 = vunpack.c.h.b16 %v2508
    %v5303 = vunpack.c.l.b16 %v2509
    %v5304 = vunpack.c.h.b16 %v2509
    %v5305 = vunpack.c.l.b16 %v2510
    %v5306 = vunpack.c.h.b16 %v2510
    %v5307 = vunpack.c.l.b16 %v2511
    %v5308 = vunpack.c.h.b16 %v2511
    %v5309 = vunpack.c.l.b16 %v2512
    %v5310 = vunpack.c.h.b16 %v2512
    %v5311 = vunpack.c.l.b16 %v2513
    %v5312 = vunpack.c.h.b16 %v2513
    %v5313 = vunpack.c.l.b16 %v2514
    %v5314 = vunpack.c.h.b16 %v2514
    %v5315 = vunpack.c.l.b16 %v2515
    %v5316 = vunpack.c.h.b16 %v2515
    %v5317 = vunpack.c.l.b16 %v2516
    %v5318 = vunpack.c.h.b16 %v2516
    %v5319 = vunpack.c.l.b16 %v2517
    %v5320 = vunpack.c.h.b16 %v2517
    %v5321 = vunpack.c.l.b16 %v2518
    %v5322 = vunpack.c.h.b16 %v2518
    %v5323 = vunpack.c.l.b16 %v2519
    %v5324 = vunpack.c.h.b16 %v2519
    %v5325 = vunpack.c.l.b16 %v2520
    %v5326 = vunpack.c.h.b16 %v2520
    %v5327 = vunpack.c.l.b16 %v2521
    %v5328 = vunpack.c.h.b16 %v2521
    %v5329 = vunpack.c.l.b16 %v2522
    %v5330 = vunpack.c.h.b16 %v2522
    %v5331 = vunpack.c.l.b16 %v2523
    %v5332 = vunpack.c.h.b16 %v2523
    %v5333 = vunpack.c.l.b16 %v2524
    %v5334 = vunpack.c.h.b16 %v2524
    %v5335 = vunpack.c.l.b16 %v2525
    %v5336 = vunpack.c.h.b16 %v2525
    %v5337 = vunpack.c.l.b16 %v2526
    %v5338 = vunpack.c.h.b16 %v2526
    %v5339 = vunpack.c.l.b16 %v2527
    %v5340 = vunpack.c.h.b16 %v2527
    %v5341 = vunpack.c.l.b16 %v2528
    %v5342 = vunpack.c.h.b16 %v2528
    %v5343 = vunpack.c.l.b16 %v2529
    %v5344 = vunpack.c.h.b16 %v2529
    %v5345 = vunpack.c.l.b16 %v2530
    %v5346 = vunpack.c.h.b16 %v2530
    %v5347 = vunpack.c.l.b16 %v2531
    %v5348 = vunpack.c.h.b16 %v2531
    %v5349 = vunpack.c.l.b16 %v2532
    %v5350 = vunpack.c.h.b16 %v2532
    %v5351 = vunpack.c.l.b16 %v2533
    %v5352 = vunpack.c.h.b16 %v2533
    %v5353 = vunpack.c.l.b16 %v2534
    %v5354 = vunpack.c.h.b16 %v2534
    %v5355 = vunpack.c.l.b16 %v2535
    %v5356 = vunpack.c.h.b16 %v2535
    %v5357 = vunpack.c.l.b16 %v2536
    %v5358 = vunpack.c.h.b16 %v2536
    %v5359 = vunpack.c.l.b16 %v2537
    %v5360 = vunpack.c.h.b16 %v2537
    %v5361 = vunpack.c.l.b16 %v2538
    %v5362 = vunpack.c.h.b16 %v2538
    %v5363 = vunpack.c.l.b16 %v2539
    %v5364 = vunpack.c.h.b16 %v2539
    %v5365 = vunpack.c.l.b16 %v2540
    %v5366 = vunpack.c.h.b16 %v2540
    %v5367 = vunpack.c.l.b16 %v2541
    %v5368 = vunpack.c.h.b16 %v2541
    %v5369 = vunpack.c.l.b16 %v2542
    %v5370 = vunpack.c.h.b16 %v2542
    %v5371 = vunpack.c.l.b16 %v2543
    %v5372 = vunpack.c.h.b16 %v2543
    %v5373 = vunpack.c.l.b16 %v2544
    %v5374 = vunpack.c.h.b16 %v2544
    %v5375 = vunpack.c.l.b16 %v2545
    %v5376 = vunpack.c.h.b16 %v2545
    %v5377 = vunpack.c.l.b16 %v2546
    %v5378 = vunpack.c.h.b16 %v2546
    %v5379 = vunpack.c.l.b16 %v2547
    %v5380 = vunpack.c.h.b16 %v2547
    %v5381 = vunpack.c.l.b16 %v2548
    %v5382 = vunpack.c.h.b16 %v2548
    %v5383 = vunpack.c.l.b16 %v2549
    %v5384 = vunpack.c.h.b16 %v2549
    %v5385 = vunpack.c.l.b16 %v2550
    %v5386 = vunpack.c.h.b16 %v2550
    %v5387 = vunpack.c.l.b16 %v2551
    %v5388 = vunpack.c.h.b16 %v2551
    %v5389 = vunpack.c.l.b16 %v2552
    %v5390 = vunpack.c.h.b16 %v2552
    %v5391 = vunpack.c.l.b16 %v2553
    %v5392 = vunpack.c.h.b16 %v2553
    %v5393 = vunpack.c.l.b16 %v2554
    %v5394 = vunpack.c.h.b16 %v2554
    %v5395 = vunpack.c.l.b16 %v2555
    %v5396 = vunpack.c.h.b16 %v2555
    %v5397 = vunpack.c.l.b16 %v2556
    %v5398 = vunpack.c.h.b16 %v2556
    %v5399 = vunpack.c.l.b16 %v2557
    %v5400 = vunpack.c.h.b16 %v2557
    %v5401 = vunpack.c.l.b16 %v2558
    %v5402 = vunpack.c.h.b16 %v2558
    %v5403 = vunpack.c.l.b16 %v2559
    %v5404 = vunpack.c.h.b16 %v2559
    %v5405 = vunpack.c.l.b16 %v2560
    %v5406 = vunpack.c.h.b16 %v2560
    %v5407 = vunpack.c.l.b16 %v2561
    %v5408 = vunpack.c.h.b16 %v2561
    %v5409 = vunpack.c.l.b16 %v2562
    %v5410 = vunpack.c.h.b16 %v2562
    %v5411 = vunpack.c.l.b16 %v2563
    %v5412 = vunpack.c.h.b16 %v2563
    %v5413 = vunpack.c.l.b16 %v2564
    %v5414 = vunpack.c.h.b16 %v2564
    %v5415 = vunpack.c.l.b16 %v2565
    %v5416 = vunpack.c.h.b16 %v2565
    %v5417 = vunpack.c.l.b16 %v2566
    %v5418 = vunpack.c.h.b16 %v2566
    %v5419 = vunpack.c.l.b16 %v2567
    %v5420 = vunpack.c.h.b16 %v2567
    %v5421 = vunpack.c.l.b16 %v2568
    %v5422 = vunpack.c.h.b16 %v2568
    %v5423 = vunpack.c.l.b16 %v2569
    %v5424 = vunpack.c.h.b16 %v2569
    %v5425 = vunpack.c.l.b16 %v2570
    %v5426 = vunpack.c.h.b16 %v2570
    %v5427 = vunpack.c.l.b16 %v2571
    %v5428 = vunpack.c.h.b16 %v2571
    %v5429 = vunpack.c.l.b16 %v2572
    %v5430 = vunpack.c.h.b16 %v2572
    %v5431 = vunpack.c.l.b16 %v2573
    %v5432 = vunpack.c.h.b16 %v2573
    %v5433 = vunpack.c.l.b16 %v2574
    %v5434 = vunpack.c.h.b16 %v2574
    %v5435 = vunpack.c.l.b16 %v2575
    %v5436 = vunpack.c.h.b16 %v2575
    %v5437 = vunpack.c.l.b16 %v2576
    %v5438 = vunpack.c.h.b16 %v2576
    %v5439 = vunpack.c.l.b16 %v2577
    %v5440 = vunpack.c.h.b16 %v2577
    %v5441 = vunpack.c.l.b16 %v2578
    %v5442 = vunpack.c.h.b16 %v2578
    %v5443 = vunpack.c.l.b16 %v2579
    %v5444 = vunpack.c.h.b16 %v2579
    %v5445 = vunpack.c.l.b16 %v2580
    %v5446 = vunpack.c.h.b16 %v2580
    %v5447 = vunpack.c.l.b16 %v2581
    %v5448 = vunpack.c.h.b16 %v2581
    %v5449 = vunpack.c.l.b16 %v2582
    %v5450 = vunpack.c.h.b16 %v2582
    %v5451 = vunpack.c.l.b16 %v2583
    %v5452 = vunpack.c.h.b16 %v2583
    %v5453 = vunpack.c.l.b16 %v2584
    %v5454 = vunpack.c.h.b16 %v2584
    %v5455 = vunpack.c.l.b16 %v2585
    %v5456 = vunpack.c.h.b16 %v2585
    %v5457 = vunpack.c.l.b16 %v2586
    %v5458 = vunpack.c.h.b16 %v2586
    %v5459 = vunpack.c.l.b16 %v2587
    %v5460 = vunpack.c.h.b16 %v2587
    %v5461 = vunpack.c.l.b16 %v2588
    %v5462 = vunpack.c.h.b16 %v2588
    %v5463 = vunpack.c.l.b16 %v2589
    %v5464 = vunpack.c.h.b16 %v2589
    %v5465 = vunpack.c.l.b16 %v2590
    %v5466 = vunpack.c.h.b16 %v2590
    %v5467 = vunpack.c.l.b16 %v2591
    %v5468 = vunpack.c.h.b16 %v2591
    %v5469 = vunpack.c.l.b16 %v2592
    %v5470 = vunpack.c.h.b16 %v2592
    %v5471 = vunpack.c.l.b16 %v2593
    %v5472 = vunpack.c.h.b16 %v2593
    %v5473 = vunpack.c.l.b16 %v2594
    %v5474 = vunpack.c.h.b16 %v2594
    %v5475 = vunpack.c.l.b16 %v2595
    %v5476 = vunpack.c.h.b16 %v2595
    %v5477 = vunpack.c.l.b16 %v2596
    %v5478 = vunpack.c.h.b16 %v2596
    %v5479 = vunpack.c.l.b16 %v2597
    %v5480 = vunpack.c.h.b16 %v2597
    %v5481 = vunpack.c.l.b16 %v2598
    %v5482 = vunpack.c.h.b16 %v2598
    %v5483 = vunpack.c.l.b16 %v2599
    %v5484 = vunpack.c.h.b16 %v2599
    %v5485 = vunpack.c.l.b16 %v2600
    %v5486 = vunpack.c.h.b16 %v2600
    %v5487 = vunpack.c.l.b16 %v2601
    %v5488 = vunpack.c.h.b16 %v2601
    %v5489 = vunpack.c.l.b16 %v2602
    %v5490 = vunpack.c.h.b16 %v2602
    %v5491 = vunpack.c.l.b16 %v2603
    %v5492 = vunpack.c.h.b16 %v2603
    %v5493 = vunpack.c.l.b16 %v2604
    %v5494 = vunpack.c.h.b16 %v2604
    %v5495 = vunpack.c.l.b16 %v2605
    %v5496 = vunpack.c.h.b16 %v2605
    %v5497 = vunpack.c.l.b16 %v2606
    %v5498 = vunpack.c.h.b16 %v2606
    %v5499 = vunpack.c.l.b16 %v2607
    %v5500 = vunpack.c.h.b16 %v2607
    %v5501 = vunpack.c.l.b16 %v2608
    %v5502 = vunpack.c.h.b16 %v2608
    %v5503 = vunpack.c.l.b16 %v2609
    %v5504 = vunpack.c.h.b16 %v2609
    %v5505 = vunpack.c.l.b16 %v2610
    %v5506 = vunpack.c.h.b16 %v2610
    %v5507 = vunpack.c.l.b16 %v2611
    %v5508 = vunpack.c.h.b16 %v2611
    %v5509 = vunpack.c.l.b16 %v2612
    %v5510 = vunpack.c.h.b16 %v2612
    %v5511 = vunpack.c.l.b16 %v2613
    %v5512 = vunpack.c.h.b16 %v2613
    %v5513 = vunpack.c.l.b16 %v2614
    %v5514 = vunpack.c.h.b16 %v2614
    %v5515 = vunpack.c.l.b16 %v2615
    %v5516 = vunpack.c.h.b16 %v2615
    %v5517 = vunpack.c.l.b16 %v2616
    %v5518 = vunpack.c.h.b16 %v2616
    %v5519 = vunpack.c.l.b16 %v2617
    %v5520 = vunpack.c.h.b16 %v2617
    %v5521 = vunpack.c.l.b16 %v2618
    %v5522 = vunpack.c.h.b16 %v2618
    %v5523 = vunpack.c.l.b16 %v2619
    %v5524 = vunpack.c.h.b16 %v2619
    %v5525 = vunpack.c.l.b16 %v2620
    %v5526 = vunpack.c.h.b16 %v2620
    %v5527 = vunpack.c.l.b16 %v2621
    %v5528 = vunpack.c.h.b16 %v2621
    %v5529 = vunpack.c.l.b16 %v2622
    %v5530 = vunpack.c.h.b16 %v2622
    %v5531 = vunpack.c.l.b16 %v2623
    %v5532 = vunpack.c.h.b16 %v2623
    %v5533 = vunpack.c.l.b16 %v2624
    %v5534 = vunpack.c.h.b16 %v2624
    %v5535 = vunpack.c.l.b16 %v2625
    %v5536 = vunpack.c.h.b16 %v2625
    %v5537 = vunpack.c.l.b16 %v2626
    %v5538 = vunpack.c.h.b16 %v2626
    %v5539 = vunpack.c.l.b16 %v2627
    %v5540 = vunpack.c.h.b16 %v2627
    %v5541 = vunpack.c.l.b16 %v2628
    %v5542 = vunpack.c.h.b16 %v2628
    %v5543 = vunpack.c.l.b16 %v2629
    %v5544 = vunpack.c.h.b16 %v2629
    %v5545 = vunpack.c.l.b16 %v2630
    %v5546 = vunpack.c.h.b16 %v2630
    %v5547 = vunpack.c.l.b16 %v2631
    %v5548 = vunpack.c.h.b16 %v2631
    %v5549 = vunpack.c.l.b16 %v2632
    %v5550 = vunpack.c.h.b16 %v2632
    %v5551 = vunpack.c.l.b16 %v2633
    %v5552 = vunpack.c.h.b16 %v2633
    %v5553 = vunpack.c.l.b16 %v2634
    %v5554 = vunpack.c.h.b16 %v2634
    %v5555 = vunpack.c.l.b16 %v2635
    %v5556 = vunpack.c.h.b16 %v2635
    %v5557 = vunpack.c.l.b16 %v2636
    %v5558 = vunpack.c.h.b16 %v2636
    %v5559 = vunpack.c.l.b16 %v2637
    %v5560 = vunpack.c.h.b16 %v2637
    %v5561 = vunpack.c.l.b16 %v2638
    %v5562 = vunpack.c.h.b16 %v2638
    %v5563 = vunpack.c.l.b16 %v2639
    %v5564 = vunpack.c.h.b16 %v2639
    %v5565 = vunpack.c.l.b16 %v2640
    %v5566 = vunpack.c.h.b16 %v2640
    %v5567 = vunpack.c.l.b16 %v2641
    %v5568 = vunpack.c.h.b16 %v2641
    %v5569 = vunpack.c.l.b16 %v2642
    %v5570 = vunpack.c.h.b16 %v2642
    %v5571 = vunpack.c.l.b16 %v2643
    %v5572 = vunpack.c.h.b16 %v2643
    %v5573 = vunpack.c.l.b16 %v2644
    %v5574 = vunpack.c.h.b16 %v2644
    %v5575 = vunpack.c.l.b16 %v2645
    %v5576 = vunpack.c.h.b16 %v2645
    %v5577 = vunpack.c.l.b16 %v2646
    %v5578 = vunpack.c.h.b16 %v2646
    %v5579 = vunpack.c.l.b16 %v2647
    %v5580 = vunpack.c.h.b16 %v2647
    %v5581 = vunpack.c.l.b16 %v2648
    %v5582 = vunpack.c.h.b16 %v2648
    %v5583 = vunpack.c.l.b16 %v2649
    %v5584 = vunpack.c.h.b16 %v2649
    %v5585 = vunpack.c.l.b16 %v2650
    %v5586 = vunpack.c.h.b16 %v2650
    %v5587 = vunpack.c.l.b16 %v2651
    %v5588 = vunpack.c.h.b16 %v2651
    %v5589 = vunpack.c.l.b16 %v2652
    %v5590 = vunpack.c.h.b16 %v2652
    %v5591 = vunpack.c.l.b16 %v2653
    %v5592 = vunpack.c.h.b16 %v2653
    %v5593 = vunpack.c.l.b16 %v2654
    %v5594 = vunpack.c.h.b16 %v2654
    %v5595 = vunpack.c.l.b16 %v2655
    %v5596 = vunpack.c.h.b16 %v2655
    %v5597 = vunpack.c.l.b16 %v2656
    %v5598 = vunpack.c.h.b16 %v2656
    %v5599 = vunpack.c.l.b16 %v2657
    %v5600 = vunpack.c.h.b16 %v2657
    %v5601 = vunpack.c.l.b16 %v2658
    %v5602 = vunpack.c.h.b16 %v2658
    %v5603 = vunpack.c.l.b16 %v2659
    %v5604 = vunpack.c.h.b16 %v2659
    %v5605 = vunpack.c.l.b16 %v2660
    %v5606 = vunpack.c.h.b16 %v2660
    %v5607 = vunpack.c.l.b16 %v2661
    %v5608 = vunpack.c.h.b16 %v2661
    %v5609 = vunpack.c.l.b16 %v2662
    %v5610 = vunpack.c.h.b16 %v2662
    %v5611 = vunpack.c.l.b16 %v2663
    %v5612 = vunpack.c.h.b16 %v2663
    %v5613 = vunpack.c.l.b16 %v2664
    %v5614 = vunpack.c.h.b16 %v2664
    %v5615 = vunpack.c.l.b16 %v2665
    %v5616 = vunpack.c.h.b16 %v2665
    %v5617 = vunpack.c.l.b16 %v2666
    %v5618 = vunpack.c.h.b16 %v2666
    %v5619 = vunpack.c.l.b16 %v2667
    %v5620 = vunpack.c.h.b16 %v2667
    %v5621 = vunpack.c.l.b16 %v2668
    %v5622 = vunpack.c.h.b16 %v2668
    %v5623 = vunpack.c.l.b16 %v2669
    %v5624 = vunpack.c.h.b16 %v2669
    %v5625 = vunpack.c.l.b16 %v2670
    %v5626 = vunpack.c.h.b16 %v2670
    %v5627 = vunpack.c.l.b16 %v2671
    %v5628 = vunpack.c.h.b16 %v2671
    %v5629 = vunpack.c.l.b16 %v2672
    %v5630 = vunpack.c.h.b16 %v2672
    %v5631 = vunpack.c.l.b16 %v2673
    %v5632 = vunpack.c.h.b16 %v2673
    %v5633 = vunpack.c.l.b16 %v2674
    %v5634 = vunpack.c.h.b16 %v2674
    %v5635 = vunpack.c.l.b16 %v2675
    %v5636 = vunpack.c.h.b16 %v2675
    %v5637 = vunpack.c.l.b16 %v2676
    %v5638 = vunpack.c.h.b16 %v2676
    %v5639 = vunpack.c.l.b16 %v2677
    %v5640 = vunpack.c.h.b16 %v2677
    %v5641 = vunpack.c.l.b16 %v2678
    %v5642 = vunpack.c.h.b16 %v2678
    %v5643 = vunpack.c.l.b16 %v2679
    %v5644 = vunpack.c.h.b16 %v2679
    %v5645 = vunpack.c.l.b16 %v2680
    %v5646 = vunpack.c.h.b16 %v2680
    %v5647 = vunpack.c.l.b16 %v2681
    %v5648 = vunpack.c.h.b16 %v2681
    %v5649 = vunpack.c.l.b16 %v2682
    %v5650 = vunpack.c.h.b16 %v2682
    %v5651 = vunpack.c.l.b16 %v2683
    %v5652 = vunpack.c.h.b16 %v2683
    %v5653 = vunpack.c.l.b16 %v2684
    %v5654 = vunpack.c.h.b16 %v2684
    %v5655 = vunpack.c.l.b16 %v2685
    %v5656 = vunpack.c.h.b16 %v2685
    %v5657 = vunpack.c.l.b16 %v2686
    %v5658 = vunpack.c.h.b16 %v2686
    %v5659 = vunpack.c.l.b16 %v2687
    %v5660 = vunpack.c.h.b16 %v2687
    %v5661 = vunpack.c.l.b16 %v2688
    %v5662 = vunpack.c.h.b16 %v2688
    %v5663 = vunpack.c.l.b16 %v2689
    %v5664 = vunpack.c.h.b16 %v2689
    %v5665 = vunpack.c.l.b16 %v2690
    %v5666 = vunpack.c.h.b16 %v2690
    %v5667 = vunpack.c.l.b16 %v2691
    %v5668 = vunpack.c.h.b16 %v2691
    %v5669 = vunpack.c.l.b16 %v2692
    %v5670 = vunpack.c.h.b16 %v2692
    %v5671 = vunpack.c.l.b16 %v2693
    %v5672 = vunpack.c.h.b16 %v2693
    %v5673 = vunpack.c.l.b16 %v2694
    %v5674 = vunpack.c.h.b16 %v2694
    %v5675 = vunpack.c.l.b16 %v2695
    %v5676 = vunpack.c.h.b16 %v2695
    %v5677 = vunpack.c.l.b16 %v2696
    %v5678 = vunpack.c.h.b16 %v2696
    %v5679 = vunpack.c.l.b16 %v2697
    %v5680 = vunpack.c.h.b16 %v2697
    %v5681 = vunpack.c.l.b16 %v2698
    %v5682 = vunpack.c.h.b16 %v2698
    %v5683 = vunpack.c.l.b16 %v2699
    %v5684 = vunpack.c.h.b16 %v2699
    %v5685 = vunpack.c.l.b16 %v2700
    %v5686 = vunpack.c.h.b16 %v2700
    %v5687 = vunpack.c.l.b16 %v2701
    %v5688 = vunpack.c.h.b16 %v2701
    %v5689 = vunpack.c.l.b16 %v2702
    %v5690 = vunpack.c.h.b16 %v2702
    %v5691 = vunpack.c.l.b16 %v2703
    %v5692 = vunpack.c.h.b16 %v2703
    %v5693 = vunpack.c.l.b16 %v2704
    %v5694 = vunpack.c.h.b16 %v2704
    %v5695 = vunpack.c.l.b16 %v2705
    %v5696 = vunpack.c.h.b16 %v2705
    %v5697 = vunpack.c.l.b16 %v2706
    %v5698 = vunpack.c.h.b16 %v2706
    %v5699 = vunpack.c.l.b16 %v2707
    %v5700 = vunpack.c.h.b16 %v2707
    %v5701 = vunpack.c.l.b16 %v2708
    %v5702 = vunpack.c.h.b16 %v2708
    %v5703 = vunpack.c.l.b16 %v2709
    %v5704 = vunpack.c.h.b16 %v2709
    %v5705 = vunpack.c.l.b16 %v2710
    %v5706 = vunpack.c.h.b16 %v2710
    %v5707 = vunpack.c.l.b16 %v2711
    %v5708 = vunpack.c.h.b16 %v2711
    %v5709 = vunpack.c.l.b16 %v2712
    %v5710 = vunpack.c.h.b16 %v2712
    %v5711 = vunpack.c.l.b16 %v2713
    %v5712 = vunpack.c.h.b16 %v2713
    %v5713 = vunpack.c.l.b16 %v2714
    %v5714 = vunpack.c.h.b16 %v2714
    %v5715 = vunpack.c.l.b16 %v2715
    %v5716 = vunpack.c.h.b16 %v2715
    %v5717 = vunpack.c.l.b16 %v2716
    %v5718 = vunpack.c.h.b16 %v2716
    %v5719 = vunpack.c.l.b16 %v2717
    %v5720 = vunpack.c.h.b16 %v2717
    %v5721 = vunpack.c.l.b16 %v2718
    %v5722 = vunpack.c.h.b16 %v2718
    %v5723 = vunpack.c.l.b16 %v2719
    %v5724 = vunpack.c.h.b16 %v2719
    %v5725 = vunpack.c.l.b16 %v2720
    %v5726 = vunpack.c.h.b16 %v2720
    %v5727 = vunpack.c.l.b16 %v2721
    %v5728 = vunpack.c.h.b16 %v2721
    %v5729 = vunpack.c.l.b16 %v2722
    %v5730 = vunpack.c.h.b16 %v2722
    %v5731 = vunpack.c.l.b16 %v2723
    %v5732 = vunpack.c.h.b16 %v2723
    %v5733 = vunpack.c.l.b16 %v2724
    %v5734 = vunpack.c.h.b16 %v2724
    %v5735 = vunpack.c.l.b16 %v2725
    %v5736 = vunpack.c.h.b16 %v2725
    %v5737 = vunpack.c.l.b16 %v2726
    %v5738 = vunpack.c.h.b16 %v2726
    %v5739 = vunpack.c.l.b16 %v2727
    %v5740 = vunpack.c.h.b16 %v2727
    %v5741 = vunpack.c.l.b16 %v2728
    %v5742 = vunpack.c.h.b16 %v2728
    %v5743 = vunpack.c.l.b16 %v2729
    %v5744 = vunpack.c.h.b16 %v2729
    %v5745 = vunpack.c.l.b16 %v2730
    %v5746 = vunpack.c.h.b16 %v2730
    %v5747 = vunpack.c.l.b16 %v2731
    %v5748 = vunpack.c.h.b16 %v2731
    %v5749 = vunpack.c.l.b16 %v2732
    %v5750 = vunpack.c.h.b16 %v2732
    %v5751 = vunpack.c.l.b16 %v2733
    %v5752 = vunpack.c.h.b16 %v2733
    %v5753 = vunpack.c.l.b16 %v2734
    %v5754 = vunpack.c.h.b16 %v2734
    %v5755 = vunpack.c.l.b16 %v2735
    %v5756 = vunpack.c.h.b16 %v2735
    %v5757 = vunpack.c.l.b16 %v2736
    %v5758 = vunpack.c.h.b16 %v2736
    %v5759 = vunpack.c.l.b16 %v2737
    %v5760 = vunpack.c.h.b16 %v2737
    %v5761 = vunpack.c.l.b16 %v2738
    %v5762 = vunpack.c.h.b16 %v2738
    %v5763 = vunpack.c.l.b16 %v2739
    %v5764 = vunpack.c.h.b16 %v2739
    %v5765 = vunpack.c.l.b16 %v2740
    %v5766 = vunpack.c.h.b16 %v2740
    %v5767 = vunpack.c.l.b16 %v2741
    %v5768 = vunpack.c.h.b16 %v2741
    %v5769 = vunpack.c.l.b16 %v2742
    %v5770 = vunpack.c.h.b16 %v2742
    %v5771 = vunpack.c.l.b16 %v2743
    %v5772 = vunpack.c.h.b16 %v2743
    %v5773 = vunpack.c.l.b16 %v2744
    %v5774 = vunpack.c.h.b16 %v2744
    %v5775 = vunpack.c.l.b16 %v2745
    %v5776 = vunpack.c.h.b16 %v2745
    %v5777 = vunpack.c.l.b16 %v2746
    %v5778 = vunpack.c.h.b16 %v2746
    %v5779 = vunpack.c.l.b16 %v2747
    %v5780 = vunpack.c.h.b16 %v2747
    %v5781 = vunpack.c.l.b16 %v2748
    %v5782 = vunpack.c.h.b16 %v2748
    %v5783 = vunpack.c.l.b16 %v2749
    %v5784 = vunpack.c.h.b16 %v2749
    %v5785 = vunpack.c.l.b16 %v2750
    %v5786 = vunpack.c.h.b16 %v2750
    %v5787 = vunpack.c.l.b16 %v2751
    %v5788 = vunpack.c.h.b16 %v2751
    %v5789 = vunpack.c.l.b16 %v2752
    %v5790 = vunpack.c.h.b16 %v2752
    %v5791 = vunpack.c.l.b16 %v2753
    %v5792 = vunpack.c.h.b16 %v2753
    %v5793 = vunpack.c.l.b16 %v2754
    %v5794 = vunpack.c.h.b16 %v2754
    %v5795 = vunpack.c.l.b16 %v2755
    %v5796 = vunpack.c.h.b16 %v2755
    %v5797 = vunpack.c.l.b16 %v2756
    %v5798 = vunpack.c.h.b16 %v2756
    %v5799 = vunpack.c.l.b16 %v2757
    %v5800 = vunpack.c.h.b16 %v2757
    %v5801 = vunpack.c.l.b16 %v2758
    %v5802 = vunpack.c.h.b16 %v2758
    %v5803 = vunpack.c.l.b16 %v2759
    %v5804 = vunpack.c.h.b16 %v2759
    %v5805 = vunpack.c.l.b16 %v2760
    %v5806 = vunpack.c.h.b16 %v2760
    %v5807 = vunpack.c.l.b16 %v2761
    %v5808 = vunpack.c.h.b16 %v2761
    %v5809 = vunpack.c.l.b16 %v2762
    %v5810 = vunpack.c.h.b16 %v2762
    %v5811 = vunpack.c.l.b16 %v2763
    %v5812 = vunpack.c.h.b16 %v2763
    %v5813 = vunpack.c.l.b16 %v2764
    %v5814 = vunpack.c.h.b16 %v2764
    %v5815 = vunpack.c.l.b16 %v2765
    %v5816 = vunpack.c.h.b16 %v2765
    %v5817 = vunpack.c.l.b16 %v2766
    %v5818 = vunpack.c.h.b16 %v2766
    %v5819 = vunpack.c.l.b16 %v2767
    %v5820 = vunpack.c.h.b16 %v2767
    %v5821 = vunpack.c.l.b16 %v2768
    %v5822 = vunpack.c.h.b16 %v2768
    %v5823 = vunpack.c.l.b16 %v2769
    %v5824 = vunpack.c.h.b16 %v2769
    %v5825 = vunpack.c.l.b16 %v2770
    %v5826 = vunpack.c.h.b16 %v2770
    %v5827 = vunpack.c.l.b16 %v2771
    %v5828 = vunpack.c.h.b16 %v2771
    %v5829 = vunpack.c.l.b16 %v2772
    %v5830 = vunpack.c.h.b16 %v2772
    %v5831 = vunpack.c.l.b16 %v2773
    %v5832 = vunpack.c.h.b16 %v2773
    %v5833 = vunpack.c.l.b16 %v2774
    %v5834 = vunpack.c.h.b16 %v2774
    %v5835 = vunpack.c.l.b16 %v2775
    %v5836 = vunpack.c.h.b16 %v2775
    %v5837 = vunpack.c.l.b16 %v2776
    %v5838 = vunpack.c.h.b16 %v2776
    %v5839 = vunpack.c.l.b16 %v2777
    %v5840 = vunpack.c.h.b16 %v2777
    %v5841 = vunpack.c.l.b16 %v2778
    %v5842 = vunpack.c.h.b16 %v2778
    %v5843 = vunpack.c.l.b16 %v2779
    %v5844 = vunpack.c.h.b16 %v2779
    %v5845 = vunpack.c.l.b16 %v2780
    %v5846 = vunpack.c.h.b16 %v2780
    %v5847 = vunpack.c.l.b16 %v2781
    %v5848 = vunpack.c.h.b16 %v2781
    %v5849 = vunpack.c.l.b16 %v2782
    %v5850 = vunpack.c.h.b16 %v2782
    %v5851 = vunpack.c.l.b16 %v2783
    %v5852 = vunpack.c.h.b16 %v2783
    %v5853 = vunpack.c.l.b16 %v2784
    %v5854 = vunpack.c.h.b16 %v2784
    %v5855 = vunpack.c.l.b16 %v2785
    %v5856 = vunpack.c.h.b16 %v2785
    %v5857 = vunpack.c.l.b16 %v2786
    %v5858 = vunpack.c.h.b16 %v2786
    %v5859 = vunpack.c.l.b16 %v2787
    %v5860 = vunpack.c.h.b16 %v2787
    %v5861 = vunpack.c.l.b16 %v2788
    %v5862 = vunpack.c.h.b16 %v2788
    %v5863 = vunpack.c.l.b16 %v2789
    %v5864 = vunpack.c.h.b16 %v2789
    %v5865 = vunpack.c.l.b16 %v2790
    %v5866 = vunpack.c.h.b16 %v2790
    %v5867 = vunpack.c.l.b16 %v2791
    %v5868 = vunpack.c.h.b16 %v2791
    %v5869 = vunpack.c.l.b16 %v2792
    %v5870 = vunpack.c.h.b16 %v2792
    %v5871 = vunpack.c.l.b16 %v2793
    %v5872 = vunpack.c.h.b16 %v2793
    %v5873 = vunpack.c.l.b16 %v2794
    %v5874 = vunpack.c.h.b16 %v2794
    %v5875 = vunpack.c.l.b16 %v2795
    %v5876 = vunpack.c.h.b16 %v2795
    %v5877 = vunpack.c.l.b16 %v2796
    %v5878 = vunpack.c.h.b16 %v2796
    %v5879 = vunpack.c.l.b16 %v2797
    %v5880 = vunpack.c.h.b16 %v2797
    %v5881 = vunpack.c.l.b16 %v2798
    %v5882 = vunpack.c.h.b16 %v2798
    %v5883 = vunpack.c.l.b16 %v2799
    %v5884 = vunpack.c.h.b16 %v2799
    %v5885 = vunpack.c.l.b16 %v2800
    %v5886 = vunpack.c.h.b16 %v2800
    %v5887 = vunpack.c.l.b16 %v2801
    %v5888 = vunpack.c.h.b16 %v2801
    %v5889 = vunpack.c.l.b16 %v2802
    %v5890 = vunpack.c.h.b16 %v2802
    %v5891 = vunpack.c.l.b16 %v2803
    %v5892 = vunpack.c.h.b16 %v2803
    %v5893 = vunpack.c.l.b16 %v2804
    %v5894 = vunpack.c.h.b16 %v2804
    %v5895 = vunpack.c.l.b16 %v2805
    %v5896 = vunpack.c.h.b16 %v2805
    %v5897 = vunpack.c.l.b16 %v2806
    %v5898 = vunpack.c.h.b16 %v2806
    %v5899 = vunpack.c.l.b16 %v2807
    %v5900 = vunpack.c.h.b16 %v2807
    %v5901 = vunpack.c.l.b16 %v2808
    %v5902 = vunpack.c.h.b16 %v2808
    %v5903 = vunpack.c.l.b16 %v2809
    %v5904 = vunpack.c.h.b16 %v2809
    %v5905 = vunpack.c.l.b16 %v2810
    %v5906 = vunpack.c.h.b16 %v2810
    %v5907 = vunpack.c.l.b16 %v2811
    %v5908 = vunpack.c.h.b16 %v2811
    %v5909 = vunpack.c.l.b16 %v2812
    %v5910 = vunpack.c.h.b16 %v2812
    %v5911 = vunpack.c.l.b16 %v2813
    %v5912 = vunpack.c.h.b16 %v2813
    %v5913 = vunpack.c.l.b16 %v2814
    %v5914 = vunpack.c.h.b16 %v2814
    %v5915 = vunpack.c.l.b16 %v2815
    %v5916 = vunpack.c.h.b16 %v2815
    %v5917 = vunpack.c.l.b16 %v2816
    %v5918 = vunpack.c.h.b16 %v2816
    %v5919 = vunpack.c.l.b16 %v2817
    %v5920 = vunpack.c.h.b16 %v2817
    %v5921 = vunpack.c.l.b16 %v2818
    %v5922 = vunpack.c.h.b16 %v2818
    %v5923 = vunpack.c.l.b16 %v2819
    %v5924 = vunpack.c.h.b16 %v2819
    %v5925 = vunpack.c.l.b16 %v2820
    %v5926 = vunpack.c.h.b16 %v2820
    %v5927 = vunpack.c.l.b16 %v2821
    %v5928 = vunpack.c.h.b16 %v2821
    %v5929 = vunpack.c.l.b16 %v2822
    %v5930 = vunpack.c.h.b16 %v2822
    %v5931 = vunpack.c.l.b16 %v2823
    %v5932 = vunpack.c.h.b16 %v2823
    %v5933 = vunpack.c.l.b16 %v2824
    %v5934 = vunpack.c.h.b16 %v2824
    %v5935 = vunpack.c.l.b16 %v2825
    %v5936 = vunpack.c.h.b16 %v2825
    %v5937 = vunpack.c.l.b16 %v2826
    %v5938 = vunpack.c.h.b16 %v2826
    %v5939 = vunpack.c.l.b16 %v2827
    %v5940 = vunpack.c.h.b16 %v2827
    %v5941 = vunpack.c.l.b16 %v2828
    %v5942 = vunpack.c.h.b16 %v2828
    %v5943 = vpack.c.b16 %v3903, %v3895
    %v5944 = vpack.c.b16 %v3904, %v3896
    %v5945 = vpack.c.b16 %v3905, %v3897
    %v5946 = vpack.c.b16 %v3906, %v3898
    %v5947 = vpack.c.b16 %v3907, %v3899
    %v5948 = vpack.c.b16 %v3908, %v3900
    %v5949 = vpack.c.b16 %v3909, %v3901
    %v5950 = vpack.c.b16 %v3910, %v3902
    %v5951 = vpack.c.b16 %v3919, %v3911
    %v5952 = vpack.c.b16 %v3920, %v3912
    %v5953 = vpack.c.b16 %v3921, %v3913
    %v5954 = vpack.c.b16 %v3922, %v3914
    %v5955 = vpack.c.b16 %v3923, %v3915
    %v5956 = vpack.c.b16 %v3924, %v3916
    %v5957 = vpack.c.b16 %v3925, %v3917
    %v5958 = vpack.c.b16 %v3926, %v3918
    %v5959 = vpack.c.b16 %v3935, %v3927
    %v5960 = vpack.c.b16 %v3936, %v3928
    %v5961 = vpack.c.b16 %v3937, %v3929
    %v5962 = vpack.c.b16 %v3938, %v3930
    %v5963 = vpack.c.b16 %v3939, %v3931
    %v5964 = vpack.c.b16 %v3940, %v3932
    %v5965 = vpack.c.b16 %v3941, %v3933
    %v5966 = vpack.c.b16 %v3942, %v3934
    %v5967 = vpack.c.b16 %v3951, %v3943
    %v5968 = vpack.c.b16 %v3952, %v3944
    %v5969 = vpack.c.b16 %v3953, %v3945
    %v5970 = vpack.c.b16 %v3954, %v3946
    %v5971 = vpack.c.b16 %v3955, %v3947
    %v5972 = vpack.c.b16 %v3956, %v3948
    %v5973 = vpack.c.b16 %v3957, %v3949
    %v5974 = vpack.c.b16 %v3958, %v3950
    %v5975 = vpack.c.b16 %v3967, %v3959
    %v5976 = vpack.c.b16 %v3968, %v3960
    %v5977 = vpack.c.b16 %v3969, %v3961
    %v5978 = vpack.c.b16 %v3970, %v3962
    %v5979 = vpack.c.b16 %v3971, %v3963
    %v5980 = vpack.c.b16 %v3972, %v3964
    %v5981 = vpack.c.b16 %v3973, %v3965
    %v5982 = vpack.c.b16 %v3974, %v3966
    %v5983 = vpack.c.b16 %v3983, %v3975
    %v5984 = vpack.c.b16 %v3984, %v3976
    %v5985 = vpack.c.b16 %v3985, %v3977
    %v5986 = vpack.c.b16 %v3986, %v3978
    %v5987 = vpack.c.b16 %v3987, %v3979
    %v5988 = vpack.c.b16 %v3988, %v3980
    %v5989 = vpack.c.b16 %v3989, %v3981
    %v5990 = vpack.c.b16 %v3990, %v3982
    %v5991 = vpack.c.b16 %v3999, %v3991
    %v5992 = vpack.c.b16 %v4000, %v3992
    %v5993 = vpack.c.b16 %v4001, %v3993
    %v5994 = vpack.c.b16 %v4002, %v3994
    %v5995 = vpack.c.b16 %v4003, %v3995
    %v5996 = vpack.c.b16 %v4004, %v3996
    %v5997 = vpack.c.b16 %v4005, %v3997
    %v5998 = vpack.c.b16 %v4006, %v3998
    %v5999 = vpack.c.b16 %v4015, %v4007
    %v6000 = vpack.c.b16 %v4016, %v4008
    %v6001 = vpack.c.b16 %v4017, %v4009
    %v6002 = vpack.c.b16 %v4018, %v4010
    %v6003 = vpack.c.b16 %v4019, %v4011
    %v6004 = vpack.c.b16 %v4020, %v4012
    %v6005 = vpack.c.b16 %v4021, %v4013
    %v6006 = vpack.c.b16 %v4022, %v4014
    %v6007 = vpack.c.b16 %v4031, %v4023
    %v6008 = vpack.c.b16 %v4032, %v4024
    %v6009 = vpack.c.b16 %v4033, %v4025
    %v6010 = vpack.c.b16 %v4034, %v4026
    %v6011 = vpack.c.b16 %v4035, %v4027
    %v6012 = vpack.c.b16 %v4036, %v4028
    %v6013 = vpack.c.b16 %v4037, %v4029
    %v6014 = vpack.c.b16 %v4038, %v4030
    %v6015 = vpack.c.b16 %v4047, %v4039
    %v6016 = vpack.c.b16 %v4048, %v4040
    %v6017 = vpack.c.b16 %v4049, %v4041
    %v6018 = vpack.c.b16 %v4050, %v4042
    %v6019 = vpack.c.b16 %v4051, %v4043
    %v6020 = vpack.c.b16 %v4052, %v4044
    %v6021 = vpack.c.b16 %v4053, %v4045
    %v6022 = vpack.c.b16 %v4054, %v4046
    %v6023 = vpack.c.b16 %v4063, %v4055
    %v6024 = vpack.c.b16 %v4064, %v4056
    %v6025 = vpack.c.b16 %v4065, %v4057
    %v6026 = vpack.c.b16 %v4066, %v4058
    %v6027 = vpack.c.b16 %v4067, %v4059
    %v6028 = vpack.c.b16 %v4068, %v4060
    %v6029 = vpack.c.b16 %v4069, %v4061
    %v6030 = vpack.c.b16 %v4070, %v4062
    %v6031 = vpack.c.b16 %v4079, %v4071
    %v6032 = vpack.c.b16 %v4080, %v4072
    %v6033 = vpack.c.b16 %v4081, %v4073
    %v6034 = vpack.c.b16 %v4082, %v4074
    %v6035 = vpack.c.b16 %v4083, %v4075
    %v6036 = vpack.c.b16 %v4084, %v4076
    %v6037 = vpack.c.b16 %v4085, %v4077
    %v6038 = vpack.c.b16 %v4086, %v4078
    %v6039 = vpack.c.b16 %v4095, %v4087
    %v6040 = vpack.c.b16 %v4096, %v4088
    %v6041 = vpack.c.b16 %v4097, %v4089
    %v6042 = vpack.c.b16 %v4098, %v4090
    %v6043 = vpack.c.b16 %v4099, %v4091
    %v6044 = vpack.c.b16 %v4100, %v4092
    %v6045 = vpack.c.b16 %v4101, %v4093
    %v6046 = vpack.c.b16 %v4102, %v4094
    %v6047 = vpack.c.b16 %v4111, %v4103
    %v6048 = vpack.c.b16 %v4112, %v4104
    %v6049 = vpack.c.b16 %v4113, %v4105
    %v6050 = vpack.c.b16 %v4114, %v4106
    %v6051 = vpack.c.b16 %v4115, %v4107
    %v6052 = vpack.c.b16 %v4116, %v4108
    %v6053 = vpack.c.b16 %v4117, %v4109
    %v6054 = vpack.c.b16 %v4118, %v4110
    %v6055 = vpack.c.b16 %v4127, %v4119
    %v6056 = vpack.c.b16 %v4128, %v4120
    %v6057 = vpack.c.b16 %v4129, %v4121
    %v6058 = vpack.c.b16 %v4130, %v4122
    %v6059 = vpack.c.b16 %v4131, %v4123
    %v6060 = vpack.c.b16 %v4132, %v4124
    %v6061 = vpack.c.b16 %v4133, %v4125
    %v6062 = vpack.c.b16 %v4134, %v4126
    %v6063 = vpack.c.b16 %v4143, %v4135
    %v6064 = vpack.c.b16 %v4144, %v4136
    %v6065 = vpack.c.b16 %v4145, %v4137
    %v6066 = vpack.c.b16 %v4146, %v4138
    %v6067 = vpack.c.b16 %v4147, %v4139
    %v6068 = vpack.c.b16 %v4148, %v4140
    %v6069 = vpack.c.b16 %v4149, %v4141
    %v6070 = vpack.c.b16 %v4150, %v4142
    %v6071 = vpack.c.b16 %v4159, %v4151
    %v6072 = vpack.c.b16 %v4160, %v4152
    %v6073 = vpack.c.b16 %v4161, %v4153
    %v6074 = vpack.c.b16 %v4162, %v4154
    %v6075 = vpack.c.b16 %v4163, %v4155
    %v6076 = vpack.c.b16 %v4164, %v4156
    %v6077 = vpack.c.b16 %v4165, %v4157
    %v6078 = vpack.c.b16 %v4166, %v4158
    %v6079 = vpack.c.b16 %v4175, %v4167
    %v6080 = vpack.c.b16 %v4176, %v4168
    %v6081 = vpack.c.b16 %v4177, %v4169
    %v6082 = vpack.c.b16 %v4178, %v4170
    %v6083 = vpack.c.b16 %v4179, %v4171
    %v6084 = vpack.c.b16 %v4180, %v4172
    %v6085 = vpack.c.b16 %v4181, %v4173
    %v6086 = vpack.c.b16 %v4182, %v4174
    %v6087 = vpack.c.b16 %v4191, %v4183
    %v6088 = vpack.c.b16 %v4192, %v4184
    %v6089 = vpack.c.b16 %v4193, %v4185
    %v6090 = vpack.c.b16 %v4194, %v4186
    %v6091 = vpack.c.b16 %v4195, %v4187
    %v6092 = vpack.c.b16 %v4196, %v4188
    %v6093 = vpack.c.b16 %v4197, %v4189
    %v6094 = vpack.c.b16 %v4198, %v4190
    %v6095 = vpack.c.b16 %v4207, %v4199
    %v6096 = vpack.c.b16 %v4208, %v4200
    %v6097 = vpack.c.b16 %v4209, %v4201
    %v6098 = vpack.c.b16 %v4210, %v4202
    %v6099 = vpack.c.b16 %v4211, %v4203
    %v6100 = vpack.c.b16 %v4212, %v4204
    %v6101 = vpack.c.b16 %v4213, %v4205
    %v6102 = vpack.c.b16 %v4214, %v4206
    %v6103 = vpack.c.b16 %v4223, %v4215
    %v6104 = vpack.c.b16 %v4224, %v4216
    %v6105 = vpack.c.b16 %v4225, %v4217
    %v6106 = vpack.c.b16 %v4226, %v4218
    %v6107 = vpack.c.b16 %v4227, %v4219
    %v6108 = vpack.c.b16 %v4228, %v4220
    %v6109 = vpack.c.b16 %v4229, %v4221
    %v6110 = vpack.c.b16 %v4230, %v4222
    %v6111 = vpack.c.b16 %v4239, %v4231
    %v6112 = vpack.c.b16 %v4240, %v4232
    %v6113 = vpack.c.b16 %v4241, %v4233
    %v6114 = vpack.c.b16 %v4242, %v4234
    %v6115 = vpack.c.b16 %v4243, %v4235
    %v6116 = vpack.c.b16 %v4244, %v4236
    %v6117 = vpack.c.b16 %v4245, %v4237
    %v6118 = vpack.c.b16 %v4246, %v4238
    %v6119 = vpack.c.b16 %v4255, %v4247
    %v6120 = vpack.c.b16 %v4256, %v4248
    %v6121 = vpack.c.b16 %v4257, %v4249
    %v6122 = vpack.c.b16 %v4258, %v4250
    %v6123 = vpack.c.b16 %v4259, %v4251
    %v6124 = vpack.c.b16 %v4260, %v4252
    %v6125 = vpack.c.b16 %v4261, %v4253
    %v6126 = vpack.c.b16 %v4262, %v4254
    %v6127 = vpack.c.b16 %v4271, %v4263
    %v6128 = vpack.c.b16 %v4272, %v4264
    %v6129 = vpack.c.b16 %v4273, %v4265
    %v6130 = vpack.c.b16 %v4274, %v4266
    %v6131 = vpack.c.b16 %v4275, %v4267
    %v6132 = vpack.c.b16 %v4276, %v4268
    %v6133 = vpack.c.b16 %v4277, %v4269
    %v6134 = vpack.c.b16 %v4278, %v4270
    %v6135 = vpack.c.b16 %v4287, %v4279
    %v6136 = vpack.c.b16 %v4288, %v4280
    %v6137 = vpack.c.b16 %v4289, %v4281
    %v6138 = vpack.c.b16 %v4290, %v4282
    %v6139 = vpack.c.b16 %v4291, %v4283
    %v6140 = vpack.c.b16 %v4292, %v4284
    %v6141 = vpack.c.b16 %v4293, %v4285
    %v6142 = vpack.c.b16 %v4294, %v4286
    %v6143 = vpack.c.b16 %v4303, %v4295
    %v6144 = vpack.c.b16 %v4304, %v4296
    %v6145 = vpack.c.b16 %v4305, %v4297
    %v6146 = vpack.c.b16 %v4306, %v4298
    %v6147 = vpack.c.b16 %v4307, %v4299
    %v6148 = vpack.c.b16 %v4308, %v4300
    %v6149 = vpack.c.b16 %v4309, %v4301
    %v6150 = vpack.c.b16 %v4310, %v4302
    %v6151 = vpack.c.b16 %v4319, %v4311
    %v6152 = vpack.c.b16 %v4320, %v4312
    %v6153 = vpack.c.b16 %v4321, %v4313
    %v6154 = vpack.c.b16 %v4322, %v4314
    %v6155 = vpack.c.b16 %v4323, %v4315
    %v6156 = vpack.c.b16 %v4324, %v4316
    %v6157 = vpack.c.b16 %v4325, %v4317
    %v6158 = vpack.c.b16 %v4326, %v4318
    %v6159 = vpack.c.b16 %v4335, %v4327
    %v6160 = vpack.c.b16 %v4336, %v4328
    %v6161 = vpack.c.b16 %v4337, %v4329
    %v6162 = vpack.c.b16 %v4338, %v4330
    %v6163 = vpack.c.b16 %v4339, %v4331
    %v6164 = vpack.c.b16 %v4340, %v4332
    %v6165 = vpack.c.b16 %v4341, %v4333
    %v6166 = vpack.c.b16 %v4342, %v4334
    %v6167 = vpack.c.b16 %v4351, %v4343
    %v6168 = vpack.c.b16 %v4352, %v4344
    %v6169 = vpack.c.b16 %v4353, %v4345
    %v6170 = vpack.c.b16 %v4354, %v4346
    %v6171 = vpack.c.b16 %v4355, %v4347
    %v6172 = vpack.c.b16 %v4356, %v4348
    %v6173 = vpack.c.b16 %v4357, %v4349
    %v6174 = vpack.c.b16 %v4358, %v4350
    %v6175 = vpack.c.b16 %v4367, %v4359
    %v6176 = vpack.c.b16 %v4368, %v4360
    %v6177 = vpack.c.b16 %v4369, %v4361
    %v6178 = vpack.c.b16 %v4370, %v4362
    %v6179 = vpack.c.b16 %v4371, %v4363
    %v6180 = vpack.c.b16 %v4372, %v4364
    %v6181 = vpack.c.b16 %v4373, %v4365
    %v6182 = vpack.c.b16 %v4374, %v4366
    %v6183 = vpack.c.b16 %v4383, %v4375
    %v6184 = vpack.c.b16 %v4384, %v4376
    %v6185 = vpack.c.b16 %v4385, %v4377
    %v6186 = vpack.c.b16 %v4386, %v4378
    %v6187 = vpack.c.b16 %v4387, %v4379
    %v6188 = vpack.c.b16 %v4388, %v4380
    %v6189 = vpack.c.b16 %v4389, %v4381
    %v6190 = vpack.c.b16 %v4390, %v4382
    %v6191 = vpack.c.b16 %v4399, %v4391
    %v6192 = vpack.c.b16 %v4400, %v4392
    %v6193 = vpack.c.b16 %v4401, %v4393
    %v6194 = vpack.c.b16 %v4402, %v4394
    %v6195 = vpack.c.b16 %v4403, %v4395
    %v6196 = vpack.c.b16 %v4404, %v4396
    %v6197 = vpack.c.b16 %v4405, %v4397
    %v6198 = vpack.c.b16 %v4406, %v4398
    %v6199 = vpack.c.b16 %v4415, %v4407
    %v6200 = vpack.c.b16 %v4416, %v4408
    %v6201 = vpack.c.b16 %v4417, %v4409
    %v6202 = vpack.c.b16 %v4418, %v4410
    %v6203 = vpack.c.b16 %v4419, %v4411
    %v6204 = vpack.c.b16 %v4420, %v4412
    %v6205 = vpack.c.b16 %v4421, %v4413
    %v6206 = vpack.c.b16 %v4422, %v4414
    %v6207 = vpack.c.b16 %v4431, %v4423
    %v6208 = vpack.c.b16 %v4432, %v4424
    %v6209 = vpack.c.b16 %v4433, %v4425
    %v6210 = vpack.c.b16 %v4434, %v4426
    %v6211 = vpack.c.b16 %v4435, %v4427
    %v6212 = vpack.c.b16 %v4436, %v4428
    %v6213 = vpack.c.b16 %v4437, %v4429
    %v6214 = vpack.c.b16 %v4438, %v4430
    %v6215 = vpack.c.b16 %v4447, %v4439
    %v6216 = vpack.c.b16 %v4448, %v4440
    %v6217 = vpack.c.b16 %v4449, %v4441
    %v6218 = vpack.c.b16 %v4450, %v4442
    %v6219 = vpack.c.b16 %v4451, %v4443
    %v6220 = vpack.c.b16 %v4452, %v4444
    %v6221 = vpack.c.b16 %v4453, %v4445
    %v6222 = vpack.c.b16 %v4454, %v4446
    %v6223 = vpack.c.b16 %v4463, %v4455
    %v6224 = vpack.c.b16 %v4464, %v4456
    %v6225 = vpack.c.b16 %v4465, %v4457
    %v6226 = vpack.c.b16 %v4466, %v4458
    %v6227 = vpack.c.b16 %v4467, %v4459
    %v6228 = vpack.c.b16 %v4468, %v4460
    %v6229 = vpack.c.b16 %v4469, %v4461
    %v6230 = vpack.c.b16 %v4470, %v4462
    %v6231 = vpack.c.b16 %v4479, %v4471
    %v6232 = vpack.c.b16 %v4480, %v4472
    %v6233 = vpack.c.b16 %v4481, %v4473
    %v6234 = vpack.c.b16 %v4482, %v4474
    %v6235 = vpack.c.b16 %v4483, %v4475
    %v6236 = vpack.c.b16 %v4484, %v4476
    %v6237 = vpack.c.b16 %v4485, %v4477
    %v6238 = vpack.c.b16 %v4486, %v4478
    %v6239 = vpack.c.b16 %v4495, %v4487
    %v6240 = vpack.c.b16 %v4496, %v4488
    %v6241 = vpack.c.b16 %v4497, %v4489
    %v6242 = vpack.c.b16 %v4498, %v4490
    %v6243 = vpack.c.b16 %v4499, %v4491
    %v6244 = vpack.c.b16 %v4500, %v4492
    %v6245 = vpack.c.b16 %v4501, %v4493
    %v6246 = vpack.c.b16 %v4502, %v4494
    %v6247 = vpack.c.b16 %v4511, %v4503
    %v6248 = vpack.c.b16 %v4512, %v4504
    %v6249 = vpack.c.b16 %v4513, %v4505
    %v6250 = vpack.c.b16 %v4514, %v4506
    %v6251 = vpack.c.b16 %v4515, %v4507
    %v6252 = vpack.c.b16 %v4516, %v4508
    %v6253 = vpack.c.b16 %v4517, %v4509
    %v6254 = vpack.c.b16 %v4518, %v4510
    %v6255 = vpack.c.b16 %v4527, %v4519
    %v6256 = vpack.c.b16 %v4528, %v4520
    %v6257 = vpack.c.b16 %v4529, %v4521
    %v6258 = vpack.c.b16 %v4530, %v4522
    %v6259 = vpack.c.b16 %v4531, %v4523
    %v6260 = vpack.c.b16 %v4532, %v4524
    %v6261 = vpack.c.b16 %v4533, %v4525
    %v6262 = vpack.c.b16 %v4534, %v4526
    %v6263 = vpack.c.b16 %v4543, %v4535
    %v6264 = vpack.c.b16 %v4544, %v4536
    %v6265 = vpack.c.b16 %v4545, %v4537
    %v6266 = vpack.c.b16 %v4546, %v4538
    %v6267 = vpack.c.b16 %v4547, %v4539
    %v6268 = vpack.c.b16 %v4548, %v4540
    %v6269 = vpack.c.b16 %v4549, %v4541
    %v6270 = vpack.c.b16 %v4550, %v4542
    %v6271 = vpack.c.b16 %v4559, %v4551
    %v6272 = vpack.c.b16 %v4560, %v4552
    %v6273 = vpack.c.b16 %v4561, %v4553
    %v6274 = vpack.c.b16 %v4562, %v4554
    %v6275 = vpack.c.b16 %v4563, %v4555
    %v6276 = vpack.c.b16 %v4564, %v4556
    %v6277 = vpack.c.b16 %v4565, %v4557
    %v6278 = vpack.c.b16 %v4566, %v4558
    %v6279 = vpack.c.b16 %v4575, %v4567
    %v6280 = vpack.c.b16 %v4576, %v4568
    %v6281 = vpack.c.b16 %v4577, %v4569
    %v6282 = vpack.c.b16 %v4578, %v4570
    %v6283 = vpack.c.b16 %v4579, %v4571
    %v6284 = vpack.c.b16 %v4580, %v4572
    %v6285 = vpack.c.b16 %v4581, %v4573
    %v6286 = vpack.c.b16 %v4582, %v4574
    %v6287 = vpack.c.b16 %v4591, %v4583
    %v6288 = vpack.c.b16 %v4592, %v4584
    %v6289 = vpack.c.b16 %v4593, %v4585
    %v6290 = vpack.c.b16 %v4594, %v4586
    %v6291 = vpack.c.b16 %v4595, %v4587
    %v6292 = vpack.c.b16 %v4596, %v4588
    %v6293 = vpack.c.b16 %v4597, %v4589
    %v6294 = vpack.c.b16 %v4598, %v4590
    %v6295 = vpack.c.b16 %v4607, %v4599
    %v6296 = vpack.c.b16 %v4608, %v4600
    %v6297 = vpack.c.b16 %v4609, %v4601
    %v6298 = vpack.c.b16 %v4610, %v4602
    %v6299 = vpack.c.b16 %v4611, %v4603
    %v6300 = vpack.c.b16 %v4612, %v4604
    %v6301 = vpack.c.b16 %v4613, %v4605
    %v6302 = vpack.c.b16 %v4614, %v4606
    %v6303 = vpack.c.b16 %v4623, %v4615
    %v6304 = vpack.c.b16 %v4624, %v4616
    %v6305 = vpack.c.b16 %v4625, %v4617
    %v6306 = vpack.c.b16 %v4626, %v4618
    %v6307 = vpack.c.b16 %v4627, %v4619
    %v6308 = vpack.c.b16 %v4628, %v4620
    %v6309 = vpack.c.b16 %v4629, %v4621
    %v6310 = vpack.c.b16 %v4630, %v4622
    %v6311 = vpack.c.b16 %v4639, %v4631
    %v6312 = vpack.c.b16 %v4640, %v4632
    %v6313 = vpack.c.b16 %v4641, %v4633
    %v6314 = vpack.c.b16 %v4642, %v4634
    %v6315 = vpack.c.b16 %v4643, %v4635
    %v6316 = vpack.c.b16 %v4644, %v4636
    %v6317 = vpack.c.b16 %v4645, %v4637
    %v6318 = vpack.c.b16 %v4646, %v4638
    %v6319 = vpack.c.b16 %v4655, %v4647
    %v6320 = vpack.c.b16 %v4656, %v4648
    %v6321 = vpack.c.b16 %v4657, %v4649
    %v6322 = vpack.c.b16 %v4658, %v4650
    %v6323 = vpack.c.b16 %v4659, %v4651
    %v6324 = vpack.c.b16 %v4660, %v4652
    %v6325 = vpack.c.b16 %v4661, %v4653
    %v6326 = vpack.c.b16 %v4662, %v4654
    %v6327 = vpack.c.b16 %v4671, %v4663
    %v6328 = vpack.c.b16 %v4672, %v4664
    %v6329 = vpack.c.b16 %v4673, %v4665
    %v6330 = vpack.c.b16 %v4674, %v4666
    %v6331 = vpack.c.b16 %v4675, %v4667
    %v6332 = vpack.c.b16 %v4676, %v4668
    %v6333 = vpack.c.b16 %v4677, %v4669
    %v6334 = vpack.c.b16 %v4678, %v4670
    %v6335 = vpack.c.b16 %v4687, %v4679
    %v6336 = vpack.c.b16 %v4688, %v4680
    %v6337 = vpack.c.b16 %v4689, %v4681
    %v6338 = vpack.c.b16 %v4690, %v4682
    %v6339 = vpack.c.b16 %v4691, %v4683
    %v6340 = vpack.c.b16 %v4692, %v4684
    %v6341 = vpack.c.b16 %v4693, %v4685
    %v6342 = vpack.c.b16 %v4694, %v4686
    %v6343 = vpack.c.b16 %v4703, %v4695
    %v6344 = vpack.c.b16 %v4704, %v4696
    %v6345 = vpack.c.b16 %v4705, %v4697
    %v6346 = vpack.c.b16 %v4706, %v4698
    %v6347 = vpack.c.b16 %v4707, %v4699
    %v6348 = vpack.c.b16 %v4708, %v4700
    %v6349 = vpack.c.b16 %v4709, %v4701
    %v6350 = vpack.c.b16 %v4710, %v4702
    %v6351 = vpack.c.b16 %v4719, %v4711
    %v6352 = vpack.c.b16 %v4720, %v4712
    %v6353 = vpack.c.b16 %v4721, %v4713
    %v6354 = vpack.c.b16 %v4722, %v4714
    %v6355 = vpack.c.b16 %v4723, %v4715
    %v6356 = vpack.c.b16 %v4724, %v4716
    %v6357 = vpack.c.b16 %v4725, %v4717
    %v6358 = vpack.c.b16 %v4726, %v4718
    %v6359 = vpack.c.b16 %v4735, %v4727
    %v6360 = vpack.c.b16 %v4736, %v4728
    %v6361 = vpack.c.b16 %v4737, %v4729
    %v6362 = vpack.c.b16 %v4738, %v4730
    %v6363 = vpack.c.b16 %v4739, %v4731
    %v6364 = vpack.c.b16 %v4740, %v4732
    %v6365 = vpack.c.b16 %v4741, %v4733
    %v6366 = vpack.c.b16 %v4742, %v4734
    %v6367 = vpack.c.b16 %v4751, %v4743
    %v6368 = vpack.c.b16 %v4752, %v4744
    %v6369 = vpack.c.b16 %v4753, %v4745
    %v6370 = vpack.c.b16 %v4754, %v4746
    %v6371 = vpack.c.b16 %v4755, %v4747
    %v6372 = vpack.c.b16 %v4756, %v4748
    %v6373 = vpack.c.b16 %v4757, %v4749
    %v6374 = vpack.c.b16 %v4758, %v4750
    %v6375 = vpack.c.b16 %v4767, %v4759
    %v6376 = vpack.c.b16 %v4768, %v4760
    %v6377 = vpack.c.b16 %v4769, %v4761
    %v6378 = vpack.c.b16 %v4770, %v4762
    %v6379 = vpack.c.b16 %v4771, %v4763
    %v6380 = vpack.c.b16 %v4772, %v4764
    %v6381 = vpack.c.b16 %v4773, %v4765
    %v6382 = vpack.c.b16 %v4774, %v4766
    %v6383 = vpack.c.b16 %v4783, %v4775
    %v6384 = vpack.c.b16 %v4784, %v4776
    %v6385 = vpack.c.b16 %v4785, %v4777
    %v6386 = vpack.c.b16 %v4786, %v4778
    %v6387 = vpack.c.b16 %v4787, %v4779
    %v6388 = vpack.c.b16 %v4788, %v4780
    %v6389 = vpack.c.b16 %v4789, %v4781
    %v6390 = vpack.c.b16 %v4790, %v4782
    %v6391 = vpack.c.b16 %v4799, %v4791
    %v6392 = vpack.c.b16 %v4800, %v4792
    %v6393 = vpack.c.b16 %v4801, %v4793
    %v6394 = vpack.c.b16 %v4802, %v4794
    %v6395 = vpack.c.b16 %v4803, %v4795
    %v6396 = vpack.c.b16 %v4804, %v4796
    %v6397 = vpack.c.b16 %v4805, %v4797
    %v6398 = vpack.c.b16 %v4806, %v4798
    %v6399 = vpack.c.b16 %v4815, %v4807
    %v6400 = vpack.c.b16 %v4816, %v4808
    %v6401 = vpack.c.b16 %v4817, %v4809
    %v6402 = vpack.c.b16 %v4818, %v4810
    %v6403 = vpack.c.b16 %v4819, %v4811
    %v6404 = vpack.c.b16 %v4820, %v4812
    %v6405 = vpack.c.b16 %v4821, %v4813
    %v6406 = vpack.c.b16 %v4822, %v4814
    %v6407 = vpack.c.b16 %v4831, %v4823
    %v6408 = vpack.c.b16 %v4832, %v4824
    %v6409 = vpack.c.b16 %v4833, %v4825
    %v6410 = vpack.c.b16 %v4834, %v4826
    %v6411 = vpack.c.b16 %v4835, %v4827
    %v6412 = vpack.c.b16 %v4836, %v4828
    %v6413 = vpack.c.b16 %v4837, %v4829
    %v6414 = vpack.c.b16 %v4838, %v4830
    %v6415 = vpack.c.b16 %v4847, %v4839
    %v6416 = vpack.c.b16 %v4848, %v4840
    %v6417 = vpack.c.b16 %v4849, %v4841
    %v6418 = vpack.c.b16 %v4850, %v4842
    %v6419 = vpack.c.b16 %v4851, %v4843
    %v6420 = vpack.c.b16 %v4852, %v4844
    %v6421 = vpack.c.b16 %v4853, %v4845
    %v6422 = vpack.c.b16 %v4854, %v4846
    %v6423 = vpack.c.b16 %v4863, %v4855
    %v6424 = vpack.c.b16 %v4864, %v4856
    %v6425 = vpack.c.b16 %v4865, %v4857
    %v6426 = vpack.c.b16 %v4866, %v4858
    %v6427 = vpack.c.b16 %v4867, %v4859
    %v6428 = vpack.c.b16 %v4868, %v4860
    %v6429 = vpack.c.b16 %v4869, %v4861
    %v6430 = vpack.c.b16 %v4870, %v4862
    %v6431 = vpack.c.b16 %v4879, %v4871
    %v6432 = vpack.c.b16 %v4880, %v4872
    %v6433 = vpack.c.b16 %v4881, %v4873
    %v6434 = vpack.c.b16 %v4882, %v4874
    %v6435 = vpack.c.b16 %v4883, %v4875
    %v6436 = vpack.c.b16 %v4884, %v4876
    %v6437 = vpack.c.b16 %v4885, %v4877
    %v6438 = vpack.c.b16 %v4886, %v4878
    %v6439 = vpack.c.b16 %v4895, %v4887
    %v6440 = vpack.c.b16 %v4896, %v4888
    %v6441 = vpack.c.b16 %v4897, %v4889
    %v6442 = vpack.c.b16 %v4898, %v4890
    %v6443 = vpack.c.b16 %v4899, %v4891
    %v6444 = vpack.c.b16 %v4900, %v4892
    %v6445 = vpack.c.b16 %v4901, %v4893
    %v6446 = vpack.c.b16 %v4902, %v4894
    %v6447 = vpack.c.b16 %v4911, %v4903
    %v6448 = vpack.c.b16 %v4912, %v4904
    %v6449 = vpack.c.b16 %v4913, %v4905
    %v6450 = vpack.c.b16 %v4914, %v4906
    %v6451 = vpack.c.b16 %v4915, %v4907
    %v6452 = vpack.c.b16 %v4916, %v4908
    %v6453 = vpack.c.b16 %v4917, %v4909
    %v6454 = vpack.c.b16 %v4918, %v4910
    %v6455 = vpack.c.b16 %v4927, %v4919
    %v6456 = vpack.c.b16 %v4928, %v4920
    %v6457 = vpack.c.b16 %v4929, %v4921
    %v6458 = vpack.c.b16 %v4930, %v4922
    %v6459 = vpack.c.b16 %v4931, %v4923
    %v6460 = vpack.c.b16 %v4932, %v4924
    %v6461 = vpack.c.b16 %v4933, %v4925
    %v6462 = vpack.c.b16 %v4934, %v4926
    %v6463 = vpack.c.b16 %v4943, %v4935
    %v6464 = vpack.c.b16 %v4944, %v4936
    %v6465 = vpack.c.b16 %v4945, %v4937
    %v6466 = vpack.c.b16 %v4946, %v4938
    %v6467 = vpack.c.b16 %v4947, %v4939
    %v6468 = vpack.c.b16 %v4948, %v4940
    %v6469 = vpack.c.b16 %v4949, %v4941
    %v6470 = vpack.c.b16 %v4950, %v4942
    %v6471 = vpack.c.b16 %v4959, %v4951
    %v6472 = vpack.c.b16 %v4960, %v4952
    %v6473 = vpack.c.b16 %v4961, %v4953
    %v6474 = vpack.c.b16 %v4962, %v4954
    %v6475 = vpack.c.b16 %v4963, %v4955
    %v6476 = vpack.c.b16 %v4964, %v4956
    %v6477 = vpack.c.b16 %v4965, %v4957
    %v6478 = vpack.c.b16 %v4966, %v4958
    %v6479 = vpack.c.b16 %v4975, %v4967
    %v6480 = vpack.c.b16 %v4976, %v4968
    %v6481 = vpack.c.b16 %v4977, %v4969
    %v6482 = vpack.c.b16 %v4978, %v4970
    %v6483 = vpack.c.b16 %v4979, %v4971
    %v6484 = vpack.c.b16 %v4980, %v4972
    %v6485 = vpack.c.b16 %v4981, %v4973
    %v6486 = vpack.c.b16 %v4982, %v4974
    %v6487 = vpack.c.b16 %v4991, %v4983
    %v6488 = vpack.c.b16 %v4992, %v4984
    %v6489 = vpack.c.b16 %v4993, %v4985
    %v6490 = vpack.c.b16 %v4994, %v4986
    %v6491 = vpack.c.b16 %v4995, %v4987
    %v6492 = vpack.c.b16 %v4996, %v4988
    %v6493 = vpack.c.b16 %v4997, %v4989
    %v6494 = vpack.c.b16 %v4998, %v4990
    %v6495 = vpack.c.b16 %v5007, %v4999
    %v6496 = vpack.c.b16 %v5008, %v5000
    %v6497 = vpack.c.b16 %v5009, %v5001
    %v6498 = vpack.c.b16 %v5010, %v5002
    %v6499 = vpack.c.b16 %v5011, %v5003
    %v6500 = vpack.c.b16 %v5012, %v5004
    %v6501 = vpack.c.b16 %v5013, %v5005
    %v6502 = vpack.c.b16 %v5014, %v5006
    %v6503 = vpack.c.b16 %v5023, %v5015
    %v6504 = vpack.c.b16 %v5024, %v5016
    %v6505 = vpack.c.b16 %v5025, %v5017
    %v6506 = vpack.c.b16 %v5026, %v5018
    %v6507 = vpack.c.b16 %v5027, %v5019
    %v6508 = vpack.c.b16 %v5028, %v5020
    %v6509 = vpack.c.b16 %v5029, %v5021
    %v6510 = vpack.c.b16 %v5030, %v5022
    %v6511 = vpack.c.b16 %v5039, %v5031
    %v6512 = vpack.c.b16 %v5040, %v5032
    %v6513 = vpack.c.b16 %v5041, %v5033
    %v6514 = vpack.c.b16 %v5042, %v5034
    %v6515 = vpack.c.b16 %v5043, %v5035
    %v6516 = vpack.c.b16 %v5044, %v5036
    %v6517 = vpack.c.b16 %v5045, %v5037
    %v6518 = vpack.c.b16 %v5046, %v5038
    %v6519 = vpack.c.b16 %v5055, %v5047
    %v6520 = vpack.c.b16 %v5056, %v5048
    %v6521 = vpack.c.b16 %v5057, %v5049
    %v6522 = vpack.c.b16 %v5058, %v5050
    %v6523 = vpack.c.b16 %v5059, %v5051
    %v6524 = vpack.c.b16 %v5060, %v5052
    %v6525 = vpack.c.b16 %v5061, %v5053
    %v6526 = vpack.c.b16 %v5062, %v5054
    %v6527 = vpack.c.b16 %v5071, %v5063
    %v6528 = vpack.c.b16 %v5072, %v5064
    %v6529 = vpack.c.b16 %v5073, %v5065
    %v6530 = vpack.c.b16 %v5074, %v5066
    %v6531 = vpack.c.b16 %v5075, %v5067
    %v6532 = vpack.c.b16 %v5076, %v5068
    %v6533 = vpack.c.b16 %v5077, %v5069
    %v6534 = vpack.c.b16 %v5078, %v5070
    %v6535 = vpack.c.b16 %v5087, %v5079
    %v6536 = vpack.c.b16 %v5088, %v5080
    %v6537 = vpack.c.b16 %v5089, %v5081
    %v6538 = vpack.c.b16 %v5090, %v5082
    %v6539 = vpack.c.b16 %v5091, %v5083
    %v6540 = vpack.c.b16 %v5092, %v5084
    %v6541 = vpack.c.b16 %v5093, %v5085
    %v6542 = vpack.c.b16 %v5094, %v5086
    %v6543 = vpack.c.b16 %v5103, %v5095
    %v6544 = vpack.c.b16 %v5104, %v5096
    %v6545 = vpack.c.b16 %v5105, %v5097
    %v6546 = vpack.c.b16 %v5106, %v5098
    %v6547 = vpack.c.b16 %v5107, %v5099
    %v6548 = vpack.c.b16 %v5108, %v5100
    %v6549 = vpack.c.b16 %v5109, %v5101
    %v6550 = vpack.c.b16 %v5110, %v5102
    %v6551 = vpack.c.b16 %v5119, %v5111
    %v6552 = vpack.c.b16 %v5120, %v5112
    %v6553 = vpack.c.b16 %v5121, %v5113
    %v6554 = vpack.c.b16 %v5122, %v5114
    %v6555 = vpack.c.b16 %v5123, %v5115
    %v6556 = vpack.c.b16 %v5124, %v5116
    %v6557 = vpack.c.b16 %v5125, %v5117
    %v6558 = vpack.c.b16 %v5126, %v5118
    %v6559 = vpack.c.b16 %v5135, %v5127
    %v6560 = vpack.c.b16 %v5136, %v5128
    %v6561 = vpack.c.b16 %v5137, %v5129
    %v6562 = vpack.c.b16 %v5138, %v5130
    %v6563 = vpack.c.b16 %v5139, %v5131
    %v6564 = vpack.c.b16 %v5140, %v5132
    %v6565 = vpack.c.b16 %v5141, %v5133
    %v6566 = vpack.c.b16 %v5142, %v5134
    %v6567 = vpack.c.b16 %v5151, %v5143
    %v6568 = vpack.c.b16 %v5152, %v5144
    %v6569 = vpack.c.b16 %v5153, %v5145
    %v6570 = vpack.c.b16 %v5154, %v5146
    %v6571 = vpack.c.b16 %v5155, %v5147
    %v6572 = vpack.c.b16 %v5156, %v5148
    %v6573 = vpack.c.b16 %v5157, %v5149
    %v6574 = vpack.c.b16 %v5158, %v5150
    %v6575 = vpack.c.b16 %v5167, %v5159
    %v6576 = vpack.c.b16 %v5168, %v5160
    %v6577 = vpack.c.b16 %v5169, %v5161
    %v6578 = vpack.c.b16 %v5170, %v5162
    %v6579 = vpack.c.b16 %v5171, %v5163
    %v6580 = vpack.c.b16 %v5172, %v5164
    %v6581 = vpack.c.b16 %v5173, %v5165
    %v6582 = vpack.c.b16 %v5174, %v5166
    %v6583 = vpack.c.b16 %v5183, %v5175
    %v6584 = vpack.c.b16 %v5184, %v5176
    %v6585 = vpack.c.b16 %v5185, %v5177
    %v6586 = vpack.c.b16 %v5186, %v5178
    %v6587 = vpack.c.b16 %v5187, %v5179
    %v6588 = vpack.c.b16 %v5188, %v5180
    %v6589 = vpack.c.b16 %v5189, %v5181
    %v6590 = vpack.c.b16 %v5190, %v5182
    %v6591 = vpack.c.b16 %v5199, %v5191
    %v6592 = vpack.c.b16 %v5200, %v5192
    %v6593 = vpack.c.b16 %v5201, %v5193
    %v6594 = vpack.c.b16 %v5202, %v5194
    %v6595 = vpack.c.b16 %v5203, %v5195
    %v6596 = vpack.c.b16 %v5204, %v5196
    %v6597 = vpack.c.b16 %v5205, %v5197
    %v6598 = vpack.c.b16 %v5206, %v5198
    %v6599 = vpack.c.b16 %v5215, %v5207
    %v6600 = vpack.c.b16 %v5216, %v5208
    %v6601 = vpack.c.b16 %v5217, %v5209
    %v6602 = vpack.c.b16 %v5218, %v5210
    %v6603 = vpack.c.b16 %v5219, %v5211
    %v6604 = vpack.c.b16 %v5220, %v5212
    %v6605 = vpack.c.b16 %v5221, %v5213
    %v6606 = vpack.c.b16 %v5222, %v5214
    %v6607 = vpack.c.b16 %v5231, %v5223
    %v6608 = vpack.c.b16 %v5232, %v5224
    %v6609 = vpack.c.b16 %v5233, %v5225
    %v6610 = vpack.c.b16 %v5234, %v5226
    %v6611 = vpack.c.b16 %v5235, %v5227
    %v6612 = vpack.c.b16 %v5236, %v5228
    %v6613 = vpack.c.b16 %v5237, %v5229
    %v6614 = vpack.c.b16 %v5238, %v5230
    %v6615 = vpack.c.b16 %v5247, %v5239
    %v6616 = vpack.c.b16 %v5248, %v5240
    %v6617 = vpack.c.b16 %v5249, %v5241
    %v6618 = vpack.c.b16 %v5250, %v5242
    %v6619 = vpack.c.b16 %v5251, %v5243
    %v6620 = vpack.c.b16 %v5252, %v5244
    %v6621 = vpack.c.b16 %v5253, %v5245
    %v6622 = vpack.c.b16 %v5254, %v5246
    %v6623 = vpack.c.b16 %v5263, %v5255
    %v6624 = vpack.c.b16 %v5264, %v5256
    %v6625 = vpack.c.b16 %v5265, %v5257
    %v6626 = vpack.c.b16 %v5266, %v5258
    %v6627 = vpack.c.b16 %v5267, %v5259
    %v6628 = vpack.c.b16 %v5268, %v5260
    %v6629 = vpack.c.b16 %v5269, %v5261
    %v6630 = vpack.c.b16 %v5270, %v5262
    %v6631 = vpack.c.b16 %v5279, %v5271
    %v6632 = vpack.c.b16 %v5280, %v5272
    %v6633 = vpack.c.b16 %v5281, %v5273
    %v6634 = vpack.c.b16 %v5282, %v5274
    %v6635 = vpack.c.b16 %v5283, %v5275
    %v6636 = vpack.c.b16 %v5284, %v5276
    %v6637 = vpack.c.b16 %v5285, %v5277
    %v6638 = vpack.c.b16 %v5286, %v5278
    %v6639 = vpack.c.b16 %v5295, %v5287
    %v6640 = vpack.c.b16 %v5296, %v5288
    %v6641 = vpack.c.b16 %v5297, %v5289
    %v6642 = vpack.c.b16 %v5298, %v5290
    %v6643 = vpack.c.b16 %v5299, %v5291
    %v6644 = vpack.c.b16 %v5300, %v5292
    %v6645 = vpack.c.b16 %v5301, %v5293
    %v6646 = vpack.c.b16 %v5302, %v5294
    %v6647 = vpack.c.b16 %v5311, %v5303
    %v6648 = vpack.c.b16 %v5312, %v5304
    %v6649 = vpack.c.b16 %v5313, %v5305
    %v6650 = vpack.c.b16 %v5314, %v5306
    %v6651 = vpack.c.b16 %v5315, %v5307
    %v6652 = vpack.c.b16 %v5316, %v5308
    %v6653 = vpack.c.b16 %v5317, %v5309
    %v6654 = vpack.c.b16 %v5318, %v5310
    %v6655 = vpack.c.b16 %v5327, %v5319
    %v6656 = vpack.c.b16 %v5328, %v5320
    %v6657 = vpack.c.b16 %v5329, %v5321
    %v6658 = vpack.c.b16 %v5330, %v5322
    %v6659 = vpack.c.b16 %v5331, %v5323
    %v6660 = vpack.c.b16 %v5332, %v5324
    %v6661 = vpack.c.b16 %v5333, %v5325
    %v6662 = vpack.c.b16 %v5334, %v5326
    %v6663 = vpack.c.b16 %v5343, %v5335
    %v6664 = vpack.c.b16 %v5344, %v5336
    %v6665 = vpack.c.b16 %v5345, %v5337
    %v6666 = vpack.c.b16 %v5346, %v5338
    %v6667 = vpack.c.b16 %v5347, %v5339
    %v6668 = vpack.c.b16 %v5348, %v5340
    %v6669 = vpack.c.b16 %v5349, %v5341
    %v6670 = vpack.c.b16 %v5350, %v5342
    %v6671 = vpack.c.b16 %v5359, %v5351
    %v6672 = vpack.c.b16 %v5360, %v5352
    %v6673 = vpack.c.b16 %v5361, %v5353
    %v6674 = vpack.c.b16 %v5362, %v5354
    %v6675 = vpack.c.b16 %v5363, %v5355
    %v6676 = vpack.c.b16 %v5364, %v5356
    %v6677 = vpack.c.b16 %v5365, %v5357
    %v6678 = vpack.c.b16 %v5366, %v5358
    %v6679 = vpack.c.b16 %v5375, %v5367
    %v6680 = vpack.c.b16 %v5376, %v5368
    %v6681 = vpack.c.b16 %v5377, %v5369
    %v6682 = vpack.c.b16 %v5378, %v5370
    %v6683 = vpack.c.b16 %v5379, %v5371
    %v6684 = vpack.c.b16 %v5380, %v5372
    %v6685 = vpack.c.b16 %v5381, %v5373
    %v6686 = vpack.c.b16 %v5382, %v5374
    %v6687 = vpack.c.b16 %v5391, %v5383
    %v6688 = vpack.c.b16 %v5392, %v5384
    %v6689 = vpack.c.b16 %v5393, %v5385
    %v6690 = vpack.c.b16 %v5394, %v5386
    %v6691 = vpack.c.b16 %v5395, %v5387
    %v6692 = vpack.c.b16 %v5396, %v5388
    %v6693 = vpack.c.b16 %v5397, %v5389
    %v6694 = vpack.c.b16 %v5398, %v5390
    %v6695 = vpack.c.b16 %v5407, %v5399
    %v6696 = vpack.c.b16 %v5408, %v5400
    %v6697 = vpack.c.b16 %v5409, %v5401
    %v6698 = vpack.c.b16 %v5410, %v5402
    %v6699 = vpack.c.b16 %v5411, %v5403
    %v6700 = vpack.c.b16 %v5412, %v5404
    %v6701 = vpack.c.b16 %v5413, %v5405
    %v6702 = vpack.c.b16 %v5414, %v5406
    %v6703 = vpack.c.b16 %v5423, %v5415
    %v6704 = vpack.c.b16 %v5424, %v5416
    %v6705 = vpack.c.b16 %v5425, %v5417
    %v6706 = vpack.c.b16 %v5426, %v5418
    %v6707 = vpack.c.b16 %v5427, %v5419
    %v6708 = vpack.c.b16 %v5428, %v5420
    %v6709 = vpack.c.b16 %v5429, %v5421
    %v6710 = vpack.c.b16 %v5430, %v5422
    %v6711 = vpack.c.b16 %v5439, %v5431
    %v6712 = vpack.c.b16 %v5440, %v5432
    %v6713 = vpack.c.b16 %v5441, %v5433
    %v6714 = vpack.c.b16 %v5442, %v5434
    %v6715 = vpack.c.b16 %v5443, %v5435
    %v6716 = vpack.c.b16 %v5444, %v5436
    %v6717 = vpack.c.b16 %v5445, %v5437
    %v6718 = vpack.c.b16 %v5446, %v5438
    %v6719 = vpack.c.b16 %v5455, %v5447
    %v6720 = vpack.c.b16 %v5456, %v5448
    %v6721 = vpack.c.b16 %v5457, %v5449
    %v6722 = vpack.c.b16 %v5458, %v5450
    %v6723 = vpack.c.b16 %v5459, %v5451
    %v6724 = vpack.c.b16 %v5460, %v5452
    %v6725 = vpack.c.b16 %v5461, %v5453
    %v6726 = vpack.c.b16 %v5462, %v5454
    %v6727 = vpack.c.b16 %v5471, %v5463
    %v6728 = vpack.c.b16 %v5472, %v5464
    %v6729 = vpack.c.b16 %v5473, %v5465
    %v6730 = vpack.c.b16 %v5474, %v5466
    %v6731 = vpack.c.b16 %v5475, %v5467
    %v6732 = vpack.c.b16 %v5476, %v5468
    %v6733 = vpack.c.b16 %v5477, %v5469
    %v6734 = vpack.c.b16 %v5478, %v5470
    %v6735 = vpack.c.b16 %v5487, %v5479
    %v6736 = vpack.c.b16 %v5488, %v5480
    %v6737 = vpack.c.b16 %v5489, %v5481
    %v6738 = vpack.c.b16 %v5490, %v5482
    %v6739 = vpack.c.b16 %v5491, %v5483
    %v6740 = vpack.c.b16 %v5492, %v5484
    %v6741 = vpack.c.b16 %v5493, %v5485
    %v6742 = vpack.c.b16 %v5494, %v5486
    %v6743 = vpack.c.b16 %v5503, %v5495
    %v6744 = vpack.c.b16 %v5504, %v5496
    %v6745 = vpack.c.b16 %v5505, %v5497
    %v6746 = vpack.c.b16 %v5506, %v5498
    %v6747 = vpack.c.b16 %v5507, %v5499
    %v6748 = vpack.c.b16 %v5508, %v5500
    %v6749 = vpack.c.b16 %v5509, %v5501
    %v6750 = vpack.c.b16 %v5510, %v5502
    %v6751 = vpack.c.b16 %v5519, %v5511
    %v6752 = vpack.c.b16 %v5520, %v5512
    %v6753 = vpack.c.b16 %v5521, %v5513
    %v6754 = vpack.c.b16 %v5522, %v5514
    %v6755 = vpack.c.b16 %v5523, %v5515
    %v6756 = vpack.c.b16 %v5524, %v5516
    %v6757 = vpack.c.b16 %v5525, %v5517
    %v6758 = vpack.c.b16 %v5526, %v5518
    %v6759 = vpack.c.b16 %v5535, %v5527
    %v6760 = vpack.c.b16 %v5536, %v5528
    %v6761 = vpack.c.b16 %v5537, %v5529
    %v6762 = vpack.c.b16 %v5538, %v5530
    %v6763 = vpack.c.b16 %v5539, %v5531
    %v6764 = vpack.c.b16 %v5540, %v5532
    %v6765 = vpack.c.b16 %v5541, %v5533
    %v6766 = vpack.c.b16 %v5542, %v5534
    %v6767 = vpack.c.b16 %v5551, %v5543
    %v6768 = vpack.c.b16 %v5552, %v5544
    %v6769 = vpack.c.b16 %v5553, %v5545
    %v6770 = vpack.c.b16 %v5554, %v5546
    %v6771 = vpack.c.b16 %v5555, %v5547
    %v6772 = vpack.c.b16 %v5556, %v5548
    %v6773 = vpack.c.b16 %v5557, %v5549
    %v6774 = vpack.c.b16 %v5558, %v5550
    %v6775 = vpack.c.b16 %v5567, %v5559
    %v6776 = vpack.c.b16 %v5568, %v5560
    %v6777 = vpack.c.b16 %v5569, %v5561
    %v6778 = vpack.c.b16 %v5570, %v5562
    %v6779 = vpack.c.b16 %v5571, %v5563
    %v6780 = vpack.c.b16 %v5572, %v5564
    %v6781 = vpack.c.b16 %v5573, %v5565
    %v6782 = vpack.c.b16 %v5574, %v5566
    %v6783 = vpack.c.b16 %v5583, %v5575
    %v6784 = vpack.c.b16 %v5584, %v5576
    %v6785 = vpack.c.b16 %v5585, %v5577
    %v6786 = vpack.c.b16 %v5586, %v5578
    %v6787 = vpack.c.b16 %v5587, %v5579
    %v6788 = vpack.c.b16 %v5588, %v5580
    %v6789 = vpack.c.b16 %v5589, %v5581
    %v6790 = vpack.c.b16 %v5590, %v5582
    %v6791 = vpack.c.b16 %v5599, %v5591
    %v6792 = vpack.c.b16 %v5600, %v5592
    %v6793 = vpack.c.b16 %v5601, %v5593
    %v6794 = vpack.c.b16 %v5602, %v5594
    %v6795 = vpack.c.b16 %v5603, %v5595
    %v6796 = vpack.c.b16 %v5604, %v5596
    %v6797 = vpack.c.b16 %v5605, %v5597
    %v6798 = vpack.c.b16 %v5606, %v5598
    %v6799 = vpack.c.b16 %v5615, %v5607
    %v6800 = vpack.c.b16 %v5616, %v5608
    %v6801 = vpack.c.b16 %v5617, %v5609
    %v6802 = vpack.c.b16 %v5618, %v5610
    %v6803 = vpack.c.b16 %v5619, %v5611
    %v6804 = vpack.c.b16 %v5620, %v5612
    %v6805 = vpack.c.b16 %v5621, %v5613
    %v6806 = vpack.c.b16 %v5622, %v5614
    %v6807 = vpack.c.b16 %v5631, %v5623
    %v6808 = vpack.c.b16 %v5632, %v5624
    %v6809 = vpack.c.b16 %v5633, %v5625
    %v6810 = vpack.c.b16 %v5634, %v5626
    %v6811 = vpack.c.b16 %v5635, %v5627
    %v6812 = vpack.c.b16 %v5636, %v5628
    %v6813 = vpack.c.b16 %v5637, %v5629
    %v6814 = vpack.c.b16 %v5638, %v5630
    %v6815 = vpack.c.b16 %v5647, %v5639
    %v6816 = vpack.c.b16 %v5648, %v5640
    %v6817 = vpack.c.b16 %v5649, %v5641
    %v6818 = vpack.c.b16 %v5650, %v5642
    %v6819 = vpack.c.b16 %v5651, %v5643
    %v6820 = vpack.c.b16 %v5652, %v5644
    %v6821 = vpack.c.b16 %v5653, %v5645
    %v6822 = vpack.c.b16 %v5654, %v5646
    %v6823 = vpack.c.b16 %v5663, %v5655
    %v6824 = vpack.c.b16 %v5664, %v5656
    %v6825 = vpack.c.b16 %v5665, %v5657
    %v6826 = vpack.c.b16 %v5666, %v5658
    %v6827 = vpack.c.b16 %v5667, %v5659
    %v6828 = vpack.c.b16 %v5668, %v5660
    %v6829 = vpack.c.b16 %v5669, %v5661
    %v6830 = vpack.c.b16 %v5670, %v5662
    %v6831 = vpack.c.b16 %v5679, %v5671
    %v6832 = vpack.c.b16 %v5680, %v5672
    %v6833 = vpack.c.b16 %v5681, %v5673
    %v6834 = vpack.c.b16 %v5682, %v5674
    %v6835 = vpack.c.b16 %v5683, %v5675
    %v6836 = vpack.c.b16 %v5684, %v5676
    %v6837 = vpack.c.b16 %v5685, %v5677
    %v6838 = vpack.c.b16 %v5686, %v5678
    %v6839 = vpack.c.b16 %v5695, %v5687
    %v6840 = vpack.c.b16 %v5696, %v5688
    %v6841 = vpack.c.b16 %v5697, %v5689
    %v6842 = vpack.c.b16 %v5698, %v5690
    %v6843 = vpack.c.b16 %v5699, %v5691
    %v6844 = vpack.c.b16 %v5700, %v5692
    %v6845 = vpack.c.b16 %v5701, %v5693
    %v6846 = vpack.c.b16 %v5702, %v5694
    %v6847 = vpack.c.b16 %v5711, %v5703
    %v6848 = vpack.c.b16 %v5712, %v5704
    %v6849 = vpack.c.b16 %v5713, %v5705
    %v6850 = vpack.c.b16 %v5714, %v5706
    %v6851 = vpack.c.b16 %v5715, %v5707
    %v6852 = vpack.c.b16 %v5716, %v5708
    %v6853 = vpack.c.b16 %v5717, %v5709
    %v6854 = vpack.c.b16 %v5718, %v5710
    %v6855 = vpack.c.b16 %v5727, %v5719
    %v6856 = vpack.c.b16 %v5728, %v5720
    %v6857 = vpack.c.b16 %v5729, %v5721
    %v6858 = vpack.c.b16 %v5730, %v5722
    %v6859 = vpack.c.b16 %v5731, %v5723
    %v6860 = vpack.c.b16 %v5732, %v5724
    %v6861 = vpack.c.b16 %v5733, %v5725
    %v6862 = vpack.c.b16 %v5734, %v5726
    %v6863 = vpack.c.b16 %v5743, %v5735
    %v6864 = vpack.c.b16 %v5744, %v5736
    %v6865 = vpack.c.b16 %v5745, %v5737
    %v6866 = vpack.c.b16 %v5746, %v5738
    %v6867 = vpack.c.b16 %v5747, %v5739
    %v6868 = vpack.c.b16 %v5748, %v5740
    %v6869 = vpack.c.b16 %v5749, %v5741
    %v6870 = vpack.c.b16 %v5750, %v5742
    %v6871 = vpack.c.b16 %v5759, %v5751
    %v6872 = vpack.c.b16 %v5760, %v5752
    %v6873 = vpack.c.b16 %v5761, %v5753
    %v6874 = vpack.c.b16 %v5762, %v5754
    %v6875 = vpack.c.b16 %v5763, %v5755
    %v6876 = vpack.c.b16 %v5764, %v5756
    %v6877 = vpack.c.b16 %v5765, %v5757
    %v6878 = vpack.c.b16 %v5766, %v5758
    %v6879 = vpack.c.b16 %v5775, %v5767
    %v6880 = vpack.c.b16 %v5776, %v5768
    %v6881 = vpack.c.b16 %v5777, %v5769
    %v6882 = vpack.c.b16 %v5778, %v5770
    %v6883 = vpack.c.b16 %v5779, %v5771
    %v6884 = vpack.c.b16 %v5780, %v5772
    %v6885 = vpack.c.b16 %v5781, %v5773
    %v6886 = vpack.c.b16 %v5782, %v5774
    %v6887 = vpack.c.b16 %v5791, %v5783
    %v6888 = vpack.c.b16 %v5792, %v5784
    %v6889 = vpack.c.b16 %v5793, %v5785
    %v6890 = vpack.c.b16 %v5794, %v5786
    %v6891 = vpack.c.b16 %v5795, %v5787
    %v6892 = vpack.c.b16 %v5796, %v5788
    %v6893 = vpack.c.b16 %v5797, %v5789
    %v6894 = vpack.c.b16 %v5798, %v5790
    %v6895 = vpack.c.b16 %v5807, %v5799
    %v6896 = vpack.c.b16 %v5808, %v5800
    %v6897 = vpack.c.b16 %v5809, %v5801
    %v6898 = vpack.c.b16 %v5810, %v5802
    %v6899 = vpack.c.b16 %v5811, %v5803
    %v6900 = vpack.c.b16 %v5812, %v5804
    %v6901 = vpack.c.b16 %v5813, %v5805
    %v6902 = vpack.c.b16 %v5814, %v5806
    %v6903 = vpack.c.b16 %v5823, %v5815
    %v6904 = vpack.c.b16 %v5824, %v5816
    %v6905 = vpack.c.b16 %v5825, %v5817
    %v6906 = vpack.c.b16 %v5826, %v5818
    %v6907 = vpack.c.b16 %v5827, %v5819
    %v6908 = vpack.c.b16 %v5828, %v5820
    %v6909 = vpack.c.b16 %v5829, %v5821
    %v6910 = vpack.c.b16 %v5830, %v5822
    %v6911 = vpack.c.b16 %v5839, %v5831
    %v6912 = vpack.c.b16 %v5840, %v5832
    %v6913 = vpack.c.b16 %v5841, %v5833
    %v6914 = vpack.c.b16 %v5842, %v5834
    %v6915 = vpack.c.b16 %v5843, %v5835
    %v6916 = vpack.c.b16 %v5844, %v5836
    %v6917 = vpack.c.b16 %v5845, %v5837
    %v6918 = vpack.c.b16 %v5846, %v5838
    %v6919 = vpack.c.b16 %v5855, %v5847
    %v6920 = vpack.c.b16 %v5856, %v5848
    %v6921 = vpack.c.b16 %v5857, %v5849
    %v6922 = vpack.c.b16 %v5858, %v5850
    %v6923 = vpack.c.b16 %v5859, %v5851
    %v6924 = vpack.c.b16 %v5860, %v5852
    %v6925 = vpack.c.b16 %v5861, %v5853
    %v6926 = vpack.c.b16 %v5862, %v5854
    %v6927 = vpack.c.b16 %v5871, %v5863
    %v6928 = vpack.c.b16 %v5872, %v5864
    %v6929 = vpack.c.b16 %v5873, %v5865
    %v6930 = vpack.c.b16 %v5874, %v5866
    %v6931 = vpack.c.b16 %v5875, %v5867
    %v6932 = vpack.c.b16 %v5876, %v5868
    %v6933 = vpack.c.b16 %v5877, %v5869
    %v6934 = vpack.c.b16 %v5878, %v5870
    %v6935 = vpack.c.b16 %v5887, %v5879
    %v6936 = vpack.c.b16 %v5888, %v5880
    %v6937 = vpack.c.b16 %v5889, %v5881
    %v6938 = vpack.c.b16 %v5890, %v5882
    %v6939 = vpack.c.b16 %v5891, %v5883
    %v6940 = vpack.c.b16 %v5892, %v5884
    %v6941 = vpack.c.b16 %v5893, %v5885
    %v6942 = vpack.c.b16 %v5894, %v5886
    %v6943 = vpack.c.b16 %v5903, %v5895
    %v6944 = vpack.c.b16 %v5904, %v5896
    %v6945 = vpack.c.b16 %v5905, %v5897
    %v6946 = vpack.c.b16 %v5906, %v5898
    %v6947 = vpack.c.b16 %v5907, %v5899
    %v6948 = vpack.c.b16 %v5908, %v5900
    %v6949 = vpack.c.b16 %v5909, %v5901
    %v6950 = vpack.c.b16 %v5910, %v5902
    %v6951 = vpack.c.b16 %v5919, %v5911
    %v6952 = vpack.c.b16 %v5920, %v5912
    %v6953 = vpack.c.b16 %v5921, %v5913
    %v6954 = vpack.c.b16 %v5922, %v5914
    %v6955 = vpack.c.b16 %v5923, %v5915
    %v6956 = vpack.c.b16 %v5924, %v5916
    %v6957 = vpack.c.b16 %v5925, %v5917
    %v6958 = vpack.c.b16 %v5926, %v5918
    %v6959 = vpack.c.b16 %v5935, %v5927
    %v6960 = vpack.c.b16 %v5936, %v5928
    %v6961 = vpack.c.b16 %v5937, %v5929
    %v6962 = vpack.c.b16 %v5938, %v5930
    %v6963 = vpack.c.b16 %v5939, %v5931
    %v6964 = vpack.c.b16 %v5940, %v5932
    %v6965 = vpack.c.b16 %v5941, %v5933
    %v6966 = vpack.c.b16 %v5942, %v5934
    %7991 = vmatprep.subr.bf16.mxu0 %v5944
    %7992 = vmatpush1.bf16.msra.mxu0 %v5943
    %7993 = vmatprep.subr.bf16.mxu0 %v5952
    %7994 = vmatpush1.bf16.msra.mxu0 %v5951
    %7995 = vmatprep.subr.bf16.mxu0 %v5960
    %7996 = vmatpush1.bf16.msra.mxu0 %v5959
    %7997 = vmatprep.subr.bf16.mxu0 %v5968
    %7998 = vmatpush1.bf16.msra.mxu0 %v5967
    %7999 = vmatprep.subr.bf16.mxu0 %v5976
    %8000 = vmatpush1.bf16.msra.mxu0 %v5975
    %8001 = vmatprep.subr.bf16.mxu0 %v5984
    %8002 = vmatpush1.bf16.msra.mxu0 %v5983
    %8003 = vmatprep.subr.bf16.mxu0 %v5992
    %8004 = vmatpush1.bf16.msra.mxu0 %v5991
    %8005 = vmatprep.subr.bf16.mxu0 %v6000
    %8006 = vmatpush1.bf16.msra.mxu0 %v5999
    %8007 = vmatprep.subr.bf16.mxu0 %v6008
    %8008 = vmatpush1.bf16.msra.mxu0 %v6007
    %8009 = vmatprep.subr.bf16.mxu0 %v6016
    %8010 = vmatpush1.bf16.msra.mxu0 %v6015
    %8011 = vmatprep.subr.bf16.mxu0 %v6024
    %8012 = vmatpush1.bf16.msra.mxu0 %v6023
    %8013 = vmatprep.subr.bf16.mxu0 %v6032
    %8014 = vmatpush1.bf16.msra.mxu0 %v6031
    %8015 = vmatprep.subr.bf16.mxu0 %v6040
    %8016 = vmatpush1.bf16.msra.mxu0 %v6039
    %8017 = vmatprep.subr.bf16.mxu0 %v6048
    %8018 = vmatpush1.bf16.msra.mxu0 %v6047
    %8019 = vmatprep.subr.bf16.mxu0 %v6056
    %8020 = vmatpush1.bf16.msra.mxu0 %v6055
    %8021 = vmatprep.subr.bf16.mxu0 %v6064
    %8022 = vmatpush1.bf16.msra.mxu0 %v6063
    %8023 = vmatprep.mubr.bf16.mxu0 %v1790
    %8024 = vmatmul.mubr.bf16.gmra.mrb[0].mxu0 %v1789
    %v8025 = vpop.f32.mrb[0].mxu0
    %v8026 = vadd.f32 %v2834, %v8025
    %v8027 = vpop.f32.mrb[0].mxu0
    %v8028 = vadd.f32 %v2838, %v8027
    %v8029 = vpop.f32.mrb[0].mxu0
    %v8030 = vpop.f32.mrb[0].mxu0
    %8031 = vdwg.mxu0
    %8032 = vmatprep.subr.bf16.mxu0 %v6072
    %8033 = vmatpush1.bf16.msra.mxu0 %v6071
    %8034 = vmatprep.subr.bf16.mxu0 %v6080
    %8035 = vmatpush1.bf16.msra.mxu0 %v6079
    %8036 = vmatprep.subr.bf16.mxu0 %v6088
    %8037 = vmatpush1.bf16.msra.mxu0 %v6087
    %8038 = vmatprep.subr.bf16.mxu0 %v6096
    %8039 = vmatpush1.bf16.msra.mxu0 %v6095
    %8040 = vmatprep.subr.bf16.mxu0 %v6104
    %8041 = vmatpush1.bf16.msra.mxu0 %v6103
    %8042 = vmatprep.subr.bf16.mxu0 %v6112
    %8043 = vmatpush1.bf16.msra.mxu0 %v6111
    %8044 = vmatprep.subr.bf16.mxu0 %v6120
    %8045 = vmatpush1.bf16.msra.mxu0 %v6119
    %8046 = vmatprep.subr.bf16.mxu0 %v6128
    %8047 = vmatpush1.bf16.msra.mxu0 %v6127
    %8048 = vmatprep.subr.bf16.mxu0 %v6136
    %8049 = vmatpush1.bf16.msra.mxu0 %v6135
    %8050 = vmatprep.subr.bf16.mxu0 %v6144
    %8051 = vmatpush1.bf16.msra.mxu0 %v6143
    %8052 = vmatprep.subr.bf16.mxu0 %v6152
    %8053 = vmatpush1.bf16.msra.mxu0 %v6151
    %8054 = vmatprep.subr.bf16.mxu0 %v6160
    %8055 = vmatpush1.bf16.msra.mxu0 %v6159
    %8056 = vmatprep.subr.bf16.mxu0 %v6168
    %8057 = vmatpush1.bf16.msra.mxu0 %v6167
    %8058 = vmatprep.subr.bf16.mxu0 %v6176
    %8059 = vmatpush1.bf16.msra.mxu0 %v6175
    %8060 = vmatprep.subr.bf16.mxu0 %v6184
    %8061 = vmatpush1.bf16.msra.mxu0 %v6183
    %8062 = vmatprep.subr.bf16.mxu0 %v6192
    %8063 = vmatpush1.bf16.msra.mxu0 %v6191
    %8064 = vmatprep.mubr.bf16.mxu0 %v1792
    %8065 = vmatmul.mubr.bf16.gmra.mrb[0].mxu0 %v1791
    %v8066 = vpop.f32.mrb[0].mxu0
    %v8067 = vadd.f32 %v8026, %v8066
    %v8068 = vpop.f32.mrb[0].mxu0
    %v8069 = vadd.f32 %v8028, %v8068
    %v8070 = vpop.f32.mrb[0].mxu0
    %v8071 = vpop.f32.mrb[0].mxu0
    %8072 = vdwg.mxu0
    %8073 = vmatprep.subr.bf16.mxu0 %v6200
    %8074 = vmatpush1.bf16.msra.mxu0 %v6199
    %8075 = vmatprep.subr.bf16.mxu0 %v6208
    %8076 = vmatpush1.bf16.msra.mxu0 %v6207
    %8077 = vmatprep.subr.bf16.mxu0 %v6216
    %8078 = vmatpush1.bf16.msra.mxu0 %v6215
    %8079 = vmatprep.subr.bf16.mxu0 %v6224
    %8080 = vmatpush1.bf16.msra.mxu0 %v6223
    %8081 = vmatprep.subr.bf16.mxu0 %v6232
    %8082 = vmatpush1.bf16.msra.mxu0 %v6231
    %8083 = vmatprep.subr.bf16.mxu0 %v6240
    %8084 = vmatpush1.bf16.msra.mxu0 %v6239
    %8085 = vmatprep.subr.bf16.mxu0 %v6248
    %8086 = vmatpush1.bf16.msra.mxu0 %v6247
    %8087 = vmatprep.subr.bf16.mxu0 %v6256
    %8088 = vmatpush1.bf16.msra.mxu0 %v6255
    %8089 = vmatprep.subr.bf16.mxu0 %v6264
    %8090 = vmatpush1.bf16.msra.mxu0 %v6263
    %8091 = vmatprep.subr.bf16.mxu0 %v6272
    %8092 = vmatpush1.bf16.msra.mxu0 %v6271
    %8093 = vmatprep.subr.bf16.mxu0 %v6280
    %8094 = vmatpush1.bf16.msra.mxu0 %v6279
    %8095 = vmatprep.subr.bf16.mxu0 %v6288
    %8096 = vmatpush1.bf16.msra.mxu0 %v6287
    %8097 = vmatprep.subr.bf16.mxu0 %v6296
    %8098 = vmatpush1.bf16.msra.mxu0 %v6295
    %8099 = vmatprep.subr.bf16.mxu0 %v6304
    %8100 = vmatpush1.bf16.msra.mxu0 %v6303
    %8101 = vmatprep.subr.bf16.mxu0 %v6312
    %8102 = vmatpush1.bf16.msra.mxu0 %v6311
    %8103 = vmatprep.subr.bf16.mxu0 %v6320
    %8104 = vmatpush1.bf16.msra.mxu0 %v6319
    %8105 = vmatprep.mubr.bf16.mxu0 %v1794
    %8106 = vmatmul.mubr.bf16.gmra.mrb[0].mxu0 %v1793
    %v8107 = vpop.f32.mrb[0].mxu0
    %v8108 = vadd.f32 %v8067, %v8107
    %v8109 = vpop.f32.mrb[0].mxu0
    %v8110 = vadd.f32 %v8069, %v8109
    %v8111 = vpop.f32.mrb[0].mxu0
    %v8112 = vpop.f32.mrb[0].mxu0
    %8113 = vdwg.mxu0
    %8114 = vmatprep.subr.bf16.mxu0 %v6328
    %8115 = vmatpush1.bf16.msra.mxu0 %v6327
    %8116 = vmatprep.subr.bf16.mxu0 %v6336
    %8117 = vmatpush1.bf16.msra.mxu0 %v6335
    %8118 = vmatprep.subr.bf16.mxu0 %v6344
    %8119 = vmatpush1.bf16.msra.mxu0 %v6343
    %8120 = vmatprep.subr.bf16.mxu0 %v6352
    %8121 = vmatpush1.bf16.msra.mxu0 %v6351
    %8122 = vmatprep.subr.bf16.mxu0 %v6360
    %8123 = vmatpush1.bf16.msra.mxu0 %v6359
    %8124 = vmatprep.subr.bf16.mxu0 %v6368
    %8125 = vmatpush1.bf16.msra.mxu0 %v6367
    %8126 = vmatprep.subr.bf16.mxu0 %v6376
    %8127 = vmatpush1.bf16.msra.mxu0 %v6375
    %8128 = vmatprep.subr.bf16.mxu0 %v6384
    %8129 = vmatpush1.bf16.msra.mxu0 %v6383
    %8130 = vmatprep.subr.bf16.mxu0 %v6392
    %8131 = vmatpush1.bf16.msra.mxu0 %v6391
    %8132 = vmatprep.subr.bf16.mxu0 %v6400
    %8133 = vmatpush1.bf16.msra.mxu0 %v6399
    %8134 = vmatprep.subr.bf16.mxu0 %v6408
    %8135 = vmatpush1.bf16.msra.mxu0 %v6407
    %8136 = vmatprep.subr.bf16.mxu0 %v6416
    %8137 = vmatpush1.bf16.msra.mxu0 %v6415
    %8138 = vmatprep.subr.bf16.mxu0 %v6424
    %8139 = vmatpush1.bf16.msra.mxu0 %v6423
    %8140 = vmatprep.subr.bf16.mxu0 %v6432
    %8141 = vmatpush1.bf16.msra.mxu0 %v6431
    %8142 = vmatprep.subr.bf16.mxu0 %v6440
    %8143 = vmatpush1.bf16.msra.mxu0 %v6439
    %8144 = vmatprep.subr.bf16.mxu0 %v6448
    %8145 = vmatpush1.bf16.msra.mxu0 %v6447
    %8146 = vmatprep.mubr.bf16.mxu0 %v1796
    %8147 = vmatmul.mubr.bf16.gmra.mrb[0].mxu0 %v1795
    %v8148 = vpop.f32.mrb[0].mxu0
    %v8149 = vadd.f32 %v8108, %v8148
    %v8150 = vpop.f32.mrb[0].mxu0
    %v8151 = vadd.f32 %v8110, %v8150
    %v8152 = vpop.f32.mrb[0].mxu0
    %v8153 = vpop.f32.mrb[0].mxu0
    %8154 = vdwg.mxu0
    %8155 = vmatprep.subr.bf16.mxu0 %v6456
    %8156 = vmatpush1.bf16.msra.mxu0 %v6455
    %8157 = vmatprep.subr.bf16.mxu0 %v6464
    %8158 = vmatpush1.bf16.msra.mxu0 %v6463
    %8159 = vmatprep.subr.bf16.mxu0 %v6472
    %8160 = vmatpush1.bf16.msra.mxu0 %v6471
    %8161 = vmatprep.subr.bf16.mxu0 %v6480
    %8162 = vmatpush1.bf16.msra.mxu0 %v6479
    %8163 = vmatprep.subr.bf16.mxu0 %v6488
    %8164 = vmatpush1.bf16.msra.mxu0 %v6487
    %8165 = vmatprep.subr.bf16.mxu0 %v6496
    %8166 = vmatpush1.bf16.msra.mxu0 %v6495
    %8167 = vmatprep.subr.bf16.mxu0 %v6504
    %8168 = vmatpush1.bf16.msra.mxu0 %v6503
    %8169 = vmatprep.subr.bf16.mxu0 %v6512
    %8170 = vmatpush1.bf16.msra.mxu0 %v6511
    %8171 = vmatprep.subr.bf16.mxu0 %v6520
    %8172 = vmatpush1.bf16.msra.mxu0 %v6519
    %8173 = vmatprep.subr.bf16.mxu0 %v6528
    %8174 = vmatpush1.bf16.msra.mxu0 %v6527
    %8175 = vmatprep.subr.bf16.mxu0 %v6536
    %8176 = vmatpush1.bf16.msra.mxu0 %v6535
    %8177 = vmatprep.subr.bf16.mxu0 %v6544
    %8178 = vmatpush1.bf16.msra.mxu0 %v6543
    %8179 = vmatprep.subr.bf16.mxu0 %v6552
    %8180 = vmatpush1.bf16.msra.mxu0 %v6551
    %8181 = vmatprep.subr.bf16.mxu0 %v6560
    %8182 = vmatpush1.bf16.msra.mxu0 %v6559
    %8183 = vmatprep.subr.bf16.mxu0 %v6568
    %8184 = vmatpush1.bf16.msra.mxu0 %v6567
    %8185 = vmatprep.subr.bf16.mxu0 %v6576
    %8186 = vmatpush1.bf16.msra.mxu0 %v6575
    %8187 = vmatprep.mubr.bf16.mxu0 %v1798
    %8188 = vmatmul.mubr.bf16.gmra.mrb[0].mxu0 %v1797
    %v8189 = vpop.f32.mrb[0].mxu0
    %v8190 = vadd.f32 %v8149, %v8189
    %v8191 = vpop.f32.mrb[0].mxu0
    %v8192 = vadd.f32 %v8151, %v8191
    %v8193 = vpop.f32.mrb[0].mxu0
    %v8194 = vpop.f32.mrb[0].mxu0
    %8195 = vdwg.mxu0
    %8196 = vmatprep.subr.bf16.mxu0 %v6584
    %8197 = vmatpush1.bf16.msra.mxu0 %v6583
    %8198 = vmatprep.subr.bf16.mxu0 %v6592
    %8199 = vmatpush1.bf16.msra.mxu0 %v6591
    %8200 = vmatprep.subr.bf16.mxu0 %v6600
    %8201 = vmatpush1.bf16.msra.mxu0 %v6599
    %8202 = vmatprep.subr.bf16.mxu0 %v6608
    %8203 = vmatpush1.bf16.msra.mxu0 %v6607
    %8204 = vmatprep.subr.bf16.mxu0 %v6616
    %8205 = vmatpush1.bf16.msra.mxu0 %v6615
    %8206 = vmatprep.subr.bf16.mxu0 %v6624
    %8207 = vmatpush1.bf16.msra.mxu0 %v6623
    %8208 = vmatprep.subr.bf16.mxu0 %v6632
    %8209 = vmatpush1.bf16.msra.mxu0 %v6631
    %8210 = vmatprep.subr.bf16.mxu0 %v6640
    %8211 = vmatpush1.bf16.msra.mxu0 %v6639
    %8212 = vmatprep.subr.bf16.mxu0 %v6648
    %8213 = vmatpush1.bf16.msra.mxu0 %v6647
    %8214 = vmatprep.subr.bf16.mxu0 %v6656
    %8215 = vmatpush1.bf16.msra.mxu0 %v6655
    %8216 = vmatprep.subr.bf16.mxu0 %v6664
    %8217 = vmatpush1.bf16.msra.mxu0 %v6663
    %8218 = vmatprep.subr.bf16.mxu0 %v6672
    %8219 = vmatpush1.bf16.msra.mxu0 %v6671
    %8220 = vmatprep.subr.bf16.mxu0 %v6680
    %8221 = vmatpush1.bf16.msra.mxu0 %v6679
    %8222 = vmatprep.subr.bf16.mxu0 %v6688
    %8223 = vmatpush1.bf16.msra.mxu0 %v6687
    %8224 = vmatprep.subr.bf16.mxu0 %v6696
    %8225 = vmatpush1.bf16.msra.mxu0 %v6695
    %8226 = vmatprep.subr.bf16.mxu0 %v6704
    %8227 = vmatpush1.bf16.msra.mxu0 %v6703
    %8228 = vmatprep.mubr.bf16.mxu0 %v1800
    %8229 = vmatmul.mubr.bf16.gmra.mrb[0].mxu0 %v1799
    %v8230 = vpop.f32.mrb[0].mxu0
    %v8231 = vadd.f32 %v8190, %v8230
    %v8232 = vpop.f32.mrb[0].mxu0
    %v8233 = vadd.f32 %v8192, %v8232
    %v8234 = vpop.f32.mrb[0].mxu0
    %v8235 = vpop.f32.mrb[0].mxu0
    %8236 = vdwg.mxu0
    %8237 = vmatprep.subr.bf16.mxu0 %v6712
    %8238 = vmatpush1.bf16.msra.mxu0 %v6711
    %8239 = vmatprep.subr.bf16.mxu0 %v6720
    %8240 = vmatpush1.bf16.msra.mxu0 %v6719
    %8241 = vmatprep.subr.bf16.mxu0 %v6728
    %8242 = vmatpush1.bf16.msra.mxu0 %v6727
    %8243 = vmatprep.subr.bf16.mxu0 %v6736
    %8244 = vmatpush1.bf16.msra.mxu0 %v6735
    %8245 = vmatprep.subr.bf16.mxu0 %v6744
    %8246 = vmatpush1.bf16.msra.mxu0 %v6743
    %8247 = vmatprep.subr.bf16.mxu0 %v6752
    %8248 = vmatpush1.bf16.msra.mxu0 %v6751
    %8249 = vmatprep.subr.bf16.mxu0 %v6760
    %8250 = vmatpush1.bf16.msra.mxu0 %v6759
    %8251 = vmatprep.subr.bf16.mxu0 %v6768
    %8252 = vmatpush1.bf16.msra.mxu0 %v6767
    %8253 = vmatprep.subr.bf16.mxu0 %v6776
    %8254 = vmatpush1.bf16.msra.mxu0 %v6775
    %8255 = vmatprep.subr.bf16.mxu0 %v6784
    %8256 = vmatpush1.bf16.msra.mxu0 %v6783
    %8257 = vmatprep.subr.bf16.mxu0 %v6792
    %8258 = vmatpush1.bf16.msra.mxu0 %v6791
    %8259 = vmatprep.subr.bf16.mxu0 %v6800
    %8260 = vmatpush1.bf16.msra.mxu0 %v6799
    %8261 = vmatprep.subr.bf16.mxu0 %v6808
    %8262 = vmatpush1.bf16.msra.mxu0 %v6807
    %8263 = vmatprep.subr.bf16.mxu0 %v6816
    %8264 = vmatpush1.bf16.msra.mxu0 %v6815
    %8265 = vmatprep.subr.bf16.mxu0 %v6824
    %8266 = vmatpush1.bf16.msra.mxu0 %v6823
    %8267 = vmatprep.subr.bf16.mxu0 %v6832
    %8268 = vmatpush1.bf16.msra.mxu0 %v6831
    %8269 = vmatprep.mubr.bf16.mxu0 %v1802
    %8270 = vmatmul.mubr.bf16.gmra.mrb[0].mxu0 %v1801
    %v8271 = vpop.f32.mrb[0].mxu0
    %v8272 = vadd.f32 %v8231, %v8271
    %v8273 = vpop.f32.mrb[0].mxu0
    %v8274 = vadd.f32 %v8233, %v8273
    %v8275 = vpop.f32.mrb[0].mxu0
    %v8276 = vpop.f32.mrb[0].mxu0
    %8277 = vdwg.mxu0
    %8278 = vmatprep.subr.bf16.mxu0 %v6840
    %8279 = vmatpush1.bf16.msra.mxu0 %v6839
    %8280 = vmatprep.subr.bf16.mxu0 %v6848
    %8281 = vmatpush1.bf16.msra.mxu0 %v6847
    %8282 = vmatprep.subr.bf16.mxu0 %v6856
    %8283 = vmatpush1.bf16.msra.mxu0 %v6855
    %8284 = vmatprep.subr.bf16.mxu0 %v6864
    %8285 = vmatpush1.bf16.msra.mxu0 %v6863
    %8286 = vmatprep.subr.bf16.mxu0 %v6872
    %8287 = vmatpush1.bf16.msra.mxu0 %v6871
    %8288 = vmatprep.subr.bf16.mxu0 %v6880
    %8289 = vmatpush1.bf16.msra.mxu0 %v6879
    %8290 = vmatprep.subr.bf16.mxu0 %v6888
    %8291 = vmatpush1.bf16.msra.mxu0 %v6887
    %8292 = vmatprep.subr.bf16.mxu0 %v6896
    %8293 = vmatpush1.bf16.msra.mxu0 %v6895
    %8294 = vmatprep.subr.bf16.mxu0 %v6904
    %8295 = vmatpush1.bf16.msra.mxu0 %v6903
    %8296 = vmatprep.subr.bf16.mxu0 %v6912
    %8297 = vmatpush1.bf16.msra.mxu0 %v6911
    %8298 = vmatprep.subr.bf16.mxu0 %v6920
    %8299 = vmatpush1.bf16.msra.mxu0 %v6919
    %8300 = vmatprep.subr.bf16.mxu0 %v6928
    %8301 = vmatpush1.bf16.msra.mxu0 %v6927
    %8302 = vmatprep.subr.bf16.mxu0 %v6936
    %8303 = vmatpush1.bf16.msra.mxu0 %v6935
    %8304 = vmatprep.subr.bf16.mxu0 %v6944
    %8305 = vmatpush1.bf16.msra.mxu0 %v6943
    %8306 = vmatprep.subr.bf16.mxu0 %v6952
    %8307 = vmatpush1.bf16.msra.mxu0 %v6951
    %8308 = vmatprep.subr.bf16.mxu0 %v6960
    %8309 = vmatpush1.bf16.msra.mxu0 %v6959
    %8310 = vmatprep.mubr.bf16.mxu0 %v1804
    %8311 = vmatmul.mubr.bf16.gmra.mrb[0].mxu0 %v1803
    %v8312 = vpop.f32.mrb[0].mxu0
    %v8313 = vadd.f32 %v8272, %v8312
    %v8314 = vpop.f32.mrb[0].mxu0
    %v8315 = vadd.f32 %v8274, %v8314
    %v8316 = vpop.f32.mrb[0].mxu0
    %v8317 = vpop.f32.mrb[0].mxu0
    %8318 = vdwg.mxu0
    %8319 = vmatprep.subr.bf16.mxu0 %v5946
    %8320 = vmatpush1.bf16.msra.mxu0 %v5945
    %8321 = vmatprep.subr.bf16.mxu0 %v5954
    %8322 = vmatpush1.bf16.msra.mxu0 %v5953
    %8323 = vmatprep.subr.bf16.mxu0 %v5962
    %8324 = vmatpush1.bf16.msra.mxu0 %v5961
    %8325 = vmatprep.subr.bf16.mxu0 %v5970
    %8326 = vmatpush1.bf16.msra.mxu0 %v5969
    %8327 = vmatprep.subr.bf16.mxu0 %v5978
    %8328 = vmatpush1.bf16.msra.mxu0 %v5977
    %8329 = vmatprep.subr.bf16.mxu0 %v5986
    %8330 = vmatpush1.bf16.msra.mxu0 %v5985
    %8331 = vmatprep.subr.bf16.mxu0 %v5994
    %8332 = vmatpush1.bf16.msra.mxu0 %v5993
    %8333 = vmatprep.subr.bf16.mxu0 %v6002
    %8334 = vmatpush1.bf16.msra.mxu0 %v6001
    %8335 = vmatprep.subr.bf16.mxu0 %v6010
    %8336 = vmatpush1.bf16.msra.mxu0 %v6009
    %8337 = vmatprep.subr.bf16.mxu0 %v6018
    %8338 = vmatpush1.bf16.msra.mxu0 %v6017
    %8339 = vmatprep.subr.bf16.mxu0 %v6026
    %8340 = vmatpush1.bf16.msra.mxu0 %v6025
    %8341 = vmatprep.subr.bf16.mxu0 %v6034
    %8342 = vmatpush1.bf16.msra.mxu0 %v6033
    %8343 = vmatprep.subr.bf16.mxu0 %v6042
    %8344 = vmatpush1.bf16.msra.mxu0 %v6041
    %8345 = vmatprep.subr.bf16.mxu0 %v6050
    %8346 = vmatpush1.bf16.msra.mxu0 %v6049
    %8347 = vmatprep.subr.bf16.mxu0 %v6058
    %8348 = vmatpush1.bf16.msra.mxu0 %v6057
    %8349 = vmatprep.subr.bf16.mxu0 %v6066
    %8350 = vmatpush1.bf16.msra.mxu0 %v6065
    %8351 = vmatprep.mubr.bf16.mxu0 %v1790
    %8352 = vmatmul.mubr.bf16.gmra.mrb[0].mxu0 %v1789
    %v8353 = vpop.f32.mrb[0].mxu0
    %v8354 = vadd.f32 %v2842, %v8353
    %v8355 = vpop.f32.mrb[0].mxu0
    %v8356 = vadd.f32 %v2846, %v8355
    %v8357 = vpop.f32.mrb[0].mxu0
    %v8358 = vpop.f32.mrb[0].mxu0
    %8359 = vdwg.mxu0
    %8360 = vmatprep.subr.bf16.mxu0 %v6074
    %8361 = vmatpush1.bf16.msra.mxu0 %v6073
    %8362 = vmatprep.subr.bf16.mxu0 %v6082
    %8363 = vmatpush1.bf16.msra.mxu0 %v6081
    %8364 = vmatprep.subr.bf16.mxu0 %v6090
    %8365 = vmatpush1.bf16.msra.mxu0 %v6089
    %8366 = vmatprep.subr.bf16.mxu0 %v6098
    %8367 = vmatpush1.bf16.msra.mxu0 %v6097
    %8368 = vmatprep.subr.bf16.mxu0 %v6106
    %8369 = vmatpush1.bf16.msra.mxu0 %v6105
    %8370 = vmatprep.subr.bf16.mxu0 %v6114
    %8371 = vmatpush1.bf16.msra.mxu0 %v6113
    %8372 = vmatprep.subr.bf16.mxu0 %v6122
    %8373 = vmatpush1.bf16.msra.mxu0 %v6121
    %8374 = vmatprep.subr.bf16.mxu0 %v6130
    %8375 = vmatpush1.bf16.msra.mxu0 %v6129
    %8376 = vmatprep.subr.bf16.mxu0 %v6138
    %8377 = vmatpush1.bf16.msra.mxu0 %v6137
    %8378 = vmatprep.subr.bf16.mxu0 %v6146
    %8379 = vmatpush1.bf16.msra.mxu0 %v6145
    %8380 = vmatprep.subr.bf16.mxu0 %v6154
    %8381 = vmatpush1.bf16.msra.mxu0 %v6153
    %8382 = vmatprep.subr.bf16.mxu0 %v6162
    %8383 = vmatpush1.bf16.msra.mxu0 %v6161
    %8384 = vmatprep.subr.bf16.mxu0 %v6170
    %8385 = vmatpush1.bf16.msra.mxu0 %v6169
    %8386 = vmatprep.subr.bf16.mxu0 %v6178
    %8387 = vmatpush1.bf16.msra.mxu0 %v6177
    %8388 = vmatprep.subr.bf16.mxu0 %v6186
    %8389 = vmatpush1.bf16.msra.mxu0 %v6185
    %8390 = vmatprep.subr.bf16.mxu0 %v6194
    %8391 = vmatpush1.bf16.msra.mxu0 %v6193
    %8392 = vmatprep.mubr.bf16.mxu0 %v1792
    %8393 = vmatmul.mubr.bf16.gmra.mrb[0].mxu0 %v1791
    %v8394 = vpop.f32.mrb[0].mxu0
    %v8395 = vadd.f32 %v8354, %v8394
    %v8396 = vpop.f32.mrb[0].mxu0
    %v8397 = vadd.f32 %v8356, %v8396
    %v8398 = vpop.f32.mrb[0].mxu0
    %v8399 = vpop.f32.mrb[0].mxu0
    %8400 = vdwg.mxu0
    %8401 = vmatprep.subr.bf16.mxu0 %v6202
    %8402 = vmatpush1.bf16.msra.mxu0 %v6201
    %8403 = vmatprep.subr.bf16.mxu0 %v6210
    %8404 = vmatpush1.bf16.msra.mxu0 %v6209
    %8405 = vmatprep.subr.bf16.mxu0 %v6218
    %8406 = vmatpush1.bf16.msra.mxu0 %v6217
    %8407 = vmatprep.subr.bf16.mxu0 %v6226
    %8408 = vmatpush1.bf16.msra.mxu0 %v6225
    %8409 = vmatprep.subr.bf16.mxu0 %v6234
    %8410 = vmatpush1.bf16.msra.mxu0 %v6233
    %8411 = vmatprep.subr.bf16.mxu0 %v6242
    %8412 = vmatpush1.bf16.msra.mxu0 %v6241
    %8413 = vmatprep.subr.bf16.mxu0 %v6250
    %8414 = vmatpush1.bf16.msra.mxu0 %v6249
    %8415 = vmatprep.subr.bf16.mxu0 %v6258
    %8416 = vmatpush1.bf16.msra.mxu0 %v6257
    %8417 = vmatprep.subr.bf16.mxu0 %v6266
    %8418 = vmatpush1.bf16.msra.mxu0 %v6265
    %8419 = vmatprep.subr.bf16.mxu0 %v6274
    %8420 = vmatpush1.bf16.msra.mxu0 %v6273
    %8421 = vmatprep.subr.bf16.mxu0 %v6282
    %8422 = vmatpush1.bf16.msra.mxu0 %v6281
    %8423 = vmatprep.subr.bf16.mxu0 %v6290
    %8424 = vmatpush1.bf16.msra.mxu0 %v6289
    %8425 = vmatprep.subr.bf16.mxu0 %v6298
    %8426 = vmatpush1.bf16.msra.mxu0 %v6297
    %8427 = vmatprep.subr.bf16.mxu0 %v6306
    %8428 = vmatpush1.bf16.msra.mxu0 %v6305
    %8429 = vmatprep.subr.bf16.mxu0 %v6314
    %8430 = vmatpush1.bf16.msra.mxu0 %v6313
    %8431 = vmatprep.subr.bf16.mxu0 %v6322
    %8432 = vmatpush1.bf16.msra.mxu0 %v6321
    %8433 = vmatprep.mubr.bf16.mxu0 %v1794
    %8434 = vmatmul.mubr.bf16.gmra.mrb[0].mxu0 %v1793
    %v8435 = vpop.f32.mrb[0].mxu0
    %v8436 = vadd.f32 %v8395, %v8435
    %v8437 = vpop.f32.mrb[0].mxu0
    %v8438 = vadd.f32 %v8397, %v8437
    %v8439 = vpop.f32.mrb[0].mxu0
    %v8440 = vpop.f32.mrb[0].mxu0
    %8441 = vdwg.mxu0
    %8442 = vmatprep.subr.bf16.mxu0 %v6330
    %8443 = vmatpush1.bf16.msra.mxu0 %v6329
    %8444 = vmatprep.subr.bf16.mxu0 %v6338
    %8445 = vmatpush1.bf16.msra.mxu0 %v6337
    %8446 = vmatprep.subr.bf16.mxu0 %v6346
    %8447 = vmatpush1.bf16.msra.mxu0 %v6345
    %8448 = vmatprep.subr.bf16.mxu0 %v6354
    %8449 = vmatpush1.bf16.msra.mxu0 %v6353
    %8450 = vmatprep.subr.bf16.mxu0 %v6362
    %8451 = vmatpush1.bf16.msra.mxu0 %v6361
    %8452 = vmatprep.subr.bf16.mxu0 %v6370
    %8453 = vmatpush1.bf16.msra.mxu0 %v6369
    %8454 = vmatprep.subr.bf16.mxu0 %v6378
    %8455 = vmatpush1.bf16.msra.mxu0 %v6377
    %8456 = vmatprep.subr.bf16.mxu0 %v6386
    %8457 = vmatpush1.bf16.msra.mxu0 %v6385
    %8458 = vmatprep.subr.bf16.mxu0 %v6394
    %8459 = vmatpush1.bf16.msra.mxu0 %v6393
    %8460 = vmatprep.subr.bf16.mxu0 %v6402
    %8461 = vmatpush1.bf16.msra.mxu0 %v6401
    %8462 = vmatprep.subr.bf16.mxu0 %v6410
    %8463 = vmatpush1.bf16.msra.mxu0 %v6409
    %8464 = vmatprep.subr.bf16.mxu0 %v6418
    %8465 = vmatpush1.bf16.msra.mxu0 %v6417
    %8466 = vmatprep.subr.bf16.mxu0 %v6426
    %8467 = vmatpush1.bf16.msra.mxu0 %v6425
    %8468 = vmatprep.subr.bf16.mxu0 %v6434
    %8469 = vmatpush1.bf16.msra.mxu0 %v6433
    %8470 = vmatprep.subr.bf16.mxu0 %v6442
    %8471 = vmatpush1.bf16.msra.mxu0 %v6441
    %8472 = vmatprep.subr.bf16.mxu0 %v6450
    %8473 = vmatpush1.bf16.msra.mxu0 %v6449
    %8474 = vmatprep.mubr.bf16.mxu0 %v1796
    %8475 = vmatmul.mubr.bf16.gmra.mrb[0].mxu0 %v1795
    %v8476 = vpop.f32.mrb[0].mxu0
    %v8477 = vadd.f32 %v8436, %v8476
    %v8478 = vpop.f32.mrb[0].mxu0
    %v8479 = vadd.f32 %v8438, %v8478
    %v8480 = vpop.f32.mrb[0].mxu0
    %v8481 = vpop.f32.mrb[0].mxu0
    %8482 = vdwg.mxu0
    %8483 = vmatprep.subr.bf16.mxu0 %v6458
    %8484 = vmatpush1.bf16.msra.mxu0 %v6457
    %8485 = vmatprep.subr.bf16.mxu0 %v6466
    %8486 = vmatpush1.bf16.msra.mxu0 %v6465
    %8487 = vmatprep.subr.bf16.mxu0 %v6474
    %8488 = vmatpush1.bf16.msra.mxu0 %v6473
    %8489 = vmatprep.subr.bf16.mxu0 %v6482
    %8490 = vmatpush1.bf16.msra.mxu0 %v6481
    %8491 = vmatprep.subr.bf16.mxu0 %v6490
    %8492 = vmatpush1.bf16.msra.mxu0 %v6489
    %8493 = vmatprep.subr.bf16.mxu0 %v6498
    %8494 = vmatpush1.bf16.msra.mxu0 %v6497
    %8495 = vmatprep.subr.bf16.mxu0 %v6506
    %8496 = vmatpush1.bf16.msra.mxu0 %v6505
    %8497 = vmatprep.subr.bf16.mxu0 %v6514
    %8498 = vmatpush1.bf16.msra.mxu0 %v6513
    %8499 = vmatprep.subr.bf16.mxu0 %v6522
    %8500 = vmatpush1.bf16.msra.mxu0 %v6521
    %8501 = vmatprep.subr.bf16.mxu0 %v6530
    %8502 = vmatpush1.bf16.msra.mxu0 %v6529
    %8503 = vmatprep.subr.bf16.mxu0 %v6538
    %8504 = vmatpush1.bf16.msra.mxu0 %v6537
    %8505 = vmatprep.subr.bf16.mxu0 %v6546
    %8506 = vmatpush1.bf16.msra.mxu0 %v6545
    %8507 = vmatprep.subr.bf16.mxu0 %v6554
    %8508 = vmatpush1.bf16.msra.mxu0 %v6553
    %8509 = vmatprep.subr.bf16.mxu0 %v6562
    %8510 = vmatpush1.bf16.msra.mxu0 %v6561
    %8511 = vmatprep.subr.bf16.mxu0 %v6570
    %8512 = vmatpush1.bf16.msra.mxu0 %v6569
    %8513 = vmatprep.subr.bf16.mxu0 %v6578
    %8514 = vmatpush1.bf16.msra.mxu0 %v6577
    %8515 = vmatprep.mubr.bf16.mxu0 %v1798
    %8516 = vmatmul.mubr.bf16.gmra.mrb[0].mxu0 %v1797
    %v8517 = vpop.f32.mrb[0].mxu0
    %v8518 = vadd.f32 %v8477, %v8517
    %v8519 = vpop.f32.mrb[0].mxu0
    %v8520 = vadd.f32 %v8479, %v8519
    %v8521 = vpop.f32.mrb[0].mxu0
    %v8522 = vpop.f32.mrb[0].mxu0
    %8523 = vdwg.mxu0
    %8524 = vmatprep.subr.bf16.mxu0 %v6586
    %8525 = vmatpush1.bf16.msra.mxu0 %v6585
    %8526 = vmatprep.subr.bf16.mxu0 %v6594
    %8527 = vmatpush1.bf16.msra.mxu0 %v6593
    %8528 = vmatprep.subr.bf16.mxu0 %v6602
    %8529 = vmatpush1.bf16.msra.mxu0 %v6601
    %8530 = vmatprep.subr.bf16.mxu0 %v6610
    %8531 = vmatpush1.bf16.msra.mxu0 %v6609
    %8532 = vmatprep.subr.bf16.mxu0 %v6618
    %8533 = vmatpush1.bf16.msra.mxu0 %v6617
    %8534 = vmatprep.subr.bf16.mxu0 %v6626
    %8535 = vmatpush1.bf16.msra.mxu0 %v6625
    %8536 = vmatprep.subr.bf16.mxu0 %v6634
    %8537 = vmatpush1.bf16.msra.mxu0 %v6633
    %8538 = vmatprep.subr.bf16.mxu0 %v6642
    %8539 = vmatpush1.bf16.msra.mxu0 %v6641
    %8540 = vmatprep.subr.bf16.mxu0 %v6650
    %8541 = vmatpush1.bf16.msra.mxu0 %v6649
    %8542 = vmatprep.subr.bf16.mxu0 %v6658
    %8543 = vmatpush1.bf16.msra.mxu0 %v6657
    %8544 = vmatprep.subr.bf16.mxu0 %v6666
    %8545 = vmatpush1.bf16.msra.mxu0 %v6665
    %8546 = vmatprep.subr.bf16.mxu0 %v6674
    %8547 = vmatpush1.bf16.msra.mxu0 %v6673
    %8548 = vmatprep.subr.bf16.mxu0 %v6682
    %8549 = vmatpush1.bf16.msra.mxu0 %v6681
    %8550 = vmatprep.subr.bf16.mxu0 %v6690
    %8551 = vmatpush1.bf16.msra.mxu0 %v6689
    %8552 = vmatprep.subr.bf16.mxu0 %v6698
    %8553 = vmatpush1.bf16.msra.mxu0 %v6697
    %8554 = vmatprep.subr.bf16.mxu0 %v6706
    %8555 = vmatpush1.bf16.msra.mxu0 %v6705
    %8556 = vmatprep.mubr.bf16.mxu0 %v1800
    %8557 = vmatmul.mubr.bf16.gmra.mrb[0].mxu0 %v1799
    %v8558 = vpop.f32.mrb[0].mxu0
    %v8559 = vadd.f32 %v8518, %v8558
    %v8560 = vpop.f32.mrb[0].mxu0
    %v8561 = vadd.f32 %v8520, %v8560
    %v8562 = vpop.f32.mrb[0].mxu0
    %v8563 = vpop.f32.mrb[0].mxu0
    %8564 = vdwg.mxu0
    %8565 = vmatprep.subr.bf16.mxu0 %v6714
    %8566 = vmatpush1.bf16.msra.mxu0 %v6713
    %8567 = vmatprep.subr.bf16.mxu0 %v6722
    %8568 = vmatpush1.bf16.msra.mxu0 %v6721
    %8569 = vmatprep.subr.bf16.mxu0 %v6730
    %8570 = vmatpush1.bf16.msra.mxu0 %v6729
    %8571 = vmatprep.subr.bf16.mxu0 %v6738
    %8572 = vmatpush1.bf16.msra.mxu0 %v6737
    %8573 = vmatprep.subr.bf16.mxu0 %v6746
    %8574 = vmatpush1.bf16.msra.mxu0 %v6745
    %8575 = vmatprep.subr.bf16.mxu0 %v6754
    %8576 = vmatpush1.bf16.msra.mxu0 %v6753
    %8577 = vmatprep.subr.bf16.mxu0 %v6762
    %8578 = vmatpush1.bf16.msra.mxu0 %v6761
    %8579 = vmatprep.subr.bf16.mxu0 %v6770
    %8580 = vmatpush1.bf16.msra.mxu0 %v6769
    %8581 = vmatprep.subr.bf16.mxu0 %v6778
    %8582 = vmatpush1.bf16.msra.mxu0 %v6777
    %8583 = vmatprep.subr.bf16.mxu0 %v6786
    %8584 = vmatpush1.bf16.msra.mxu0 %v6785
    %8585 = vmatprep.subr.bf16.mxu0 %v6794
    %8586 = vmatpush1.bf16.msra.mxu0 %v6793
    %8587 = vmatprep.subr.bf16.mxu0 %v6802
    %8588 = vmatpush1.bf16.msra.mxu0 %v6801
    %8589 = vmatprep.subr.bf16.mxu0 %v6810
    %8590 = vmatpush1.bf16.msra.mxu0 %v6809
    %8591 = vmatprep.subr.bf16.mxu0 %v6818
    %8592 = vmatpush1.bf16.msra.mxu0 %v6817
    %8593 = vmatprep.subr.bf16.mxu0 %v6826
    %8594 = vmatpush1.bf16.msra.mxu0 %v6825
    %8595 = vmatprep.subr.bf16.mxu0 %v6834
    %8596 = vmatpush1.bf16.msra.mxu0 %v6833
    %8597 = vmatprep.mubr.bf16.mxu0 %v1802
    %8598 = vmatmul.mubr.bf16.gmra.mrb[0].mxu0 %v1801
    %v8599 = vpop.f32.mrb[0].mxu0
    %v8600 = vadd.f32 %v8559, %v8599
    %v8601 = vpop.f32.mrb[0].mxu0
    %v8602 = vadd.f32 %v8561, %v8601
    %v8603 = vpop.f32.mrb[0].mxu0
    %v8604 = vpop.f32.mrb[0].mxu0
    %8605 = vdwg.mxu0
    %8606 = vmatprep.subr.bf16.mxu0 %v6842
    %8607 = vmatpush1.bf16.msra.mxu0 %v6841
    %8608 = vmatprep.subr.bf16.mxu0 %v6850
    %8609 = vmatpush1.bf16.msra.mxu0 %v6849
    %8610 = vmatprep.subr.bf16.mxu0 %v6858
    %8611 = vmatpush1.bf16.msra.mxu0 %v6857
    %8612 = vmatprep.subr.bf16.mxu0 %v6866
    %8613 = vmatpush1.bf16.msra.mxu0 %v6865
    %8614 = vmatprep.subr.bf16.mxu0 %v6874
    %8615 = vmatpush1.bf16.msra.mxu0 %v6873
    %8616 = vmatprep.subr.bf16.mxu0 %v6882
    %8617 = vmatpush1.bf16.msra.mxu0 %v6881
    %8618 = vmatprep.subr.bf16.mxu0 %v6890
    %8619 = vmatpush1.bf16.msra.mxu0 %v6889
    %8620 = vmatprep.subr.bf16.mxu0 %v6898
    %8621 = vmatpush1.bf16.msra.mxu0 %v6897
    %8622 = vmatprep.subr.bf16.mxu0 %v6906
    %8623 = vmatpush1.bf16.msra.mxu0 %v6905
    %8624 = vmatprep.subr.bf16.mxu0 %v6914
    %8625 = vmatpush1.bf16.msra.mxu0 %v6913
    %8626 = vmatprep.subr.bf16.mxu0 %v6922
    %8627 = vmatpush1.bf16.msra.mxu0 %v6921
    %8628 = vmatprep.subr.bf16.mxu0 %v6930
    %8629 = vmatpush1.bf16.msra.mxu0 %v6929
    %8630 = vmatprep.subr.bf16.mxu0 %v6938
    %8631 = vmatpush1.bf16.msra.mxu0 %v6937
    %8632 = vmatprep.subr.bf16.mxu0 %v6946
    %8633 = vmatpush1.bf16.msra.mxu0 %v6945
    %8634 = vmatprep.subr.bf16.mxu0 %v6954
    %8635 = vmatpush1.bf16.msra.mxu0 %v6953
    %8636 = vmatprep.subr.bf16.mxu0 %v6962
    %8637 = vmatpush1.bf16.msra.mxu0 %v6961
    %8638 = vmatprep.mubr.bf16.mxu0 %v1804
    %8639 = vmatmul.mubr.bf16.gmra.mrb[0].mxu0 %v1803
    %v8640 = vpop.f32.mrb[0].mxu0
    %v8641 = vadd.f32 %v8600, %v8640
    %v8642 = vpop.f32.mrb[0].mxu0
    %v8643 = vadd.f32 %v8602, %v8642
    %v8644 = vpop.f32.mrb[0].mxu0
    %v8645 = vpop.f32.mrb[0].mxu0
    %8646 = vdwg.mxu0
    %8647 = vmatprep.subr.bf16.mxu0 %v5948
    %8648 = vmatpush1.bf16.msra.mxu0 %v5947
    %8649 = vmatprep.subr.bf16.mxu0 %v5956
    %8650 = vmatpush1.bf16.msra.mxu0 %v5955
    %8651 = vmatprep.subr.bf16.mxu0 %v5964
    %8652 = vmatpush1.bf16.msra.mxu0 %v5963
    %8653 = vmatprep.subr.bf16.mxu0 %v5972
    %8654 = vmatpush1.bf16.msra.mxu0 %v5971
    %8655 = vmatprep.subr.bf16.mxu0 %v5980
    %8656 = vmatpush1.bf16.msra.mxu0 %v5979
    %8657 = vmatprep.subr.bf16.mxu0 %v5988
    %8658 = vmatpush1.bf16.msra.mxu0 %v5987
    %8659 = vmatprep.subr.bf16.mxu0 %v5996
    %8660 = vmatpush1.bf16.msra.mxu0 %v5995
    %8661 = vmatprep.subr.bf16.mxu0 %v6004
    %8662 = vmatpush1.bf16.msra.mxu0 %v6003
    %8663 = vmatprep.subr.bf16.mxu0 %v6012
    %8664 = vmatpush1.bf16.msra.mxu0 %v6011
    %8665 = vmatprep.subr.bf16.mxu0 %v6020
    %8666 = vmatpush1.bf16.msra.mxu0 %v6019
    %8667 = vmatprep.subr.bf16.mxu0 %v6028
    %8668 = vmatpush1.bf16.msra.mxu0 %v6027
    %8669 = vmatprep.subr.bf16.mxu0 %v6036
    %8670 = vmatpush1.bf16.msra.mxu0 %v6035
    %8671 = vmatprep.subr.bf16.mxu0 %v6044
    %8672 = vmatpush1.bf16.msra.mxu0 %v6043
    %8673 = vmatprep.subr.bf16.mxu0 %v6052
    %8674 = vmatpush1.bf16.msra.mxu0 %v6051
    %8675 = vmatprep.subr.bf16.mxu0 %v6060
    %8676 = vmatpush1.bf16.msra.mxu0 %v6059
    %8677 = vmatprep.subr.bf16.mxu0 %v6068
    %8678 = vmatpush1.bf16.msra.mxu0 %v6067
    %8679 = vmatprep.mubr.bf16.mxu0 %v1790
    %8680 = vmatmul.mubr.bf16.gmra.mrb[0].mxu0 %v1789
    %v8681 = vpop.f32.mrb[0].mxu0
    %v8682 = vadd.f32 %v2850, %v8681
    %v8683 = vpop.f32.mrb[0].mxu0
    %v8684 = vadd.f32 %v2854, %v8683
    %v8685 = vpop.f32.mrb[0].mxu0
    %v8686 = vpop.f32.mrb[0].mxu0
    %8687 = vdwg.mxu0
    %8688 = vmatprep.subr.bf16.mxu0 %v6076
    %8689 = vmatpush1.bf16.msra.mxu0 %v6075
    %8690 = vmatprep.subr.bf16.mxu0 %v6084
    %8691 = vmatpush1.bf16.msra.mxu0 %v6083
    %8692 = vmatprep.subr.bf16.mxu0 %v6092
    %8693 = vmatpush1.bf16.msra.mxu0 %v6091
    %8694 = vmatprep.subr.bf16.mxu0 %v6100
    %8695 = vmatpush1.bf16.msra.mxu0 %v6099
    %8696 = vmatprep.subr.bf16.mxu0 %v6108
    %8697 = vmatpush1.bf16.msra.mxu0 %v6107
    %8698 = vmatprep.subr.bf16.mxu0 %v6116
    %8699 = vmatpush1.bf16.msra.mxu0 %v6115
    %8700 = vmatprep.subr.bf16.mxu0 %v6124
    %8701 = vmatpush1.bf16.msra.mxu0 %v6123
    %8702 = vmatprep.subr.bf16.mxu0 %v6132
    %8703 = vmatpush1.bf16.msra.mxu0 %v6131
    %8704 = vmatprep.subr.bf16.mxu0 %v6140
    %8705 = vmatpush1.bf16.msra.mxu0 %v6139
    %8706 = vmatprep.subr.bf16.mxu0 %v6148
    %8707 = vmatpush1.bf16.msra.mxu0 %v6147
    %8708 = vmatprep.subr.bf16.mxu0 %v6156
    %8709 = vmatpush1.bf16.msra.mxu0 %v6155
    %8710 = vmatprep.subr.bf16.mxu0 %v6164
    %8711 = vmatpush1.bf16.msra.mxu0 %v6163
    %8712 = vmatprep.subr.bf16.mxu0 %v6172
    %8713 = vmatpush1.bf16.msra.mxu0 %v6171
    %8714 = vmatprep.subr.bf16.mxu0 %v6180
    %8715 = vmatpush1.bf16.msra.mxu0 %v6179
    %8716 = vmatprep.subr.bf16.mxu0 %v6188
    %8717 = vmatpush1.bf16.msra.mxu0 %v6187
    %8718 = vmatprep.subr.bf16.mxu0 %v6196
    %8719 = vmatpush1.bf16.msra.mxu0 %v6195
    %8720 = vmatprep.mubr.bf16.mxu0 %v1792
    %8721 = vmatmul.mubr.bf16.gmra.mrb[0].mxu0 %v1791
    %v8722 = vpop.f32.mrb[0].mxu0
    %v8723 = vadd.f32 %v8682, %v8722
    %v8724 = vpop.f32.mrb[0].mxu0
    %v8725 = vadd.f32 %v8684, %v8724
    %v8726 = vpop.f32.mrb[0].mxu0
    %v8727 = vpop.f32.mrb[0].mxu0
    %8728 = vdwg.mxu0
    %8729 = vmatprep.subr.bf16.mxu0 %v6204
    %8730 = vmatpush1.bf16.msra.mxu0 %v6203
    %8731 = vmatprep.subr.bf16.mxu0 %v6212
    %8732 = vmatpush1.bf16.msra.mxu0 %v6211
    %8733 = vmatprep.subr.bf16.mxu0 %v6220
    %8734 = vmatpush1.bf16.msra.mxu0 %v6219
    %8735 = vmatprep.subr.bf16.mxu0 %v6228
    %8736 = vmatpush1.bf16.msra.mxu0 %v6227
    %8737 = vmatprep.subr.bf16.mxu0 %v6236
    %8738 = vmatpush1.bf16.msra.mxu0 %v6235
    %8739 = vmatprep.subr.bf16.mxu0 %v6244
    %8740 = vmatpush1.bf16.msra.mxu0 %v6243
    %8741 = vmatprep.subr.bf16.mxu0 %v6252
    %8742 = vmatpush1.bf16.msra.mxu0 %v6251
    %8743 = vmatprep.subr.bf16.mxu0 %v6260
    %8744 = vmatpush1.bf16.msra.mxu0 %v6259
    %8745 = vmatprep.subr.bf16.mxu0 %v6268
    %8746 = vmatpush1.bf16.msra.mxu0 %v6267
    %8747 = vmatprep.subr.bf16.mxu0 %v6276
    %8748 = vmatpush1.bf16.msra.mxu0 %v6275
    %8749 = vmatprep.subr.bf16.mxu0 %v6284
    %8750 = vmatpush1.bf16.msra.mxu0 %v6283
    %8751 = vmatprep.subr.bf16.mxu0 %v6292
    %8752 = vmatpush1.bf16.msra.mxu0 %v6291
    %8753 = vmatprep.subr.bf16.mxu0 %v6300
    %8754 = vmatpush1.bf16.msra.mxu0 %v6299
    %8755 = vmatprep.subr.bf16.mxu0 %v6308
    %8756 = vmatpush1.bf16.msra.mxu0 %v6307
    %8757 = vmatprep.subr.bf16.mxu0 %v6316
    %8758 = vmatpush1.bf16.msra.mxu0 %v6315
    %8759 = vmatprep.subr.bf16.mxu0 %v6324
    %8760 = vmatpush1.bf16.msra.mxu0 %v6323
    %8761 = vmatprep.mubr.bf16.mxu0 %v1794
    %8762 = vmatmul.mubr.bf16.gmra.mrb[0].mxu0 %v1793
    %v8763 = vpop.f32.mrb[0].mxu0
    %v8764 = vadd.f32 %v8723, %v8763
    %v8765 = vpop.f32.mrb[0].mxu0
    %v8766 = vadd.f32 %v8725, %v8765
    %v8767 = vpop.f32.mrb[0].mxu0
    %v8768 = vpop.f32.mrb[0].mxu0
    %8769 = vdwg.mxu0
    %8770 = vmatprep.subr.bf16.mxu0 %v6332
    %8771 = vmatpush1.bf16.msra.mxu0 %v6331
    %8772 = vmatprep.subr.bf16.mxu0 %v6340
    %8773 = vmatpush1.bf16.msra.mxu0 %v6339
    %8774 = vmatprep.subr.bf16.mxu0 %v6348
    %8775 = vmatpush1.bf16.msra.mxu0 %v6347
    %8776 = vmatprep.subr.bf16.mxu0 %v6356
    %8777 = vmatpush1.bf16.msra.mxu0 %v6355
    %8778 = vmatprep.subr.bf16.mxu0 %v6364
    %8779 = vmatpush1.bf16.msra.mxu0 %v6363
    %8780 = vmatprep.subr.bf16.mxu0 %v6372
    %8781 = vmatpush1.bf16.msra.mxu0 %v6371
    %8782 = vmatprep.subr.bf16.mxu0 %v6380
    %8783 = vmatpush1.bf16.msra.mxu0 %v6379
    %8784 = vmatprep.subr.bf16.mxu0 %v6388
    %8785 = vmatpush1.bf16.msra.mxu0 %v6387
    %8786 = vmatprep.subr.bf16.mxu0 %v6396
    %8787 = vmatpush1.bf16.msra.mxu0 %v6395
    %8788 = vmatprep.subr.bf16.mxu0 %v6404
    %8789 = vmatpush1.bf16.msra.mxu0 %v6403
    %8790 = vmatprep.subr.bf16.mxu0 %v6412
    %8791 = vmatpush1.bf16.msra.mxu0 %v6411
    %8792 = vmatprep.subr.bf16.mxu0 %v6420
    %8793 = vmatpush1.bf16.msra.mxu0 %v6419
    %8794 = vmatprep.subr.bf16.mxu0 %v6428
    %8795 = vmatpush1.bf16.msra.mxu0 %v6427
    %8796 = vmatprep.subr.bf16.mxu0 %v6436
    %8797 = vmatpush1.bf16.msra.mxu0 %v6435
    %8798 = vmatprep.subr.bf16.mxu0 %v6444
    %8799 = vmatpush1.bf16.msra.mxu0 %v6443
    %8800 = vmatprep.subr.bf16.mxu0 %v6452
    %8801 = vmatpush1.bf16.msra.mxu0 %v6451
    %8802 = vmatprep.mubr.bf16.mxu0 %v1796
    %8803 = vmatmul.mubr.bf16.gmra.mrb[0].mxu0 %v1795
    %v8804 = vpop.f32.mrb[0].mxu0
    %v8805 = vadd.f32 %v8764, %v8804
    %v8806 = vpop.f32.mrb[0].mxu0
    %v8807 = vadd.f32 %v8766, %v8806
    %v8808 = vpop.f32.mrb[0].mxu0
    %v8809 = vpop.f32.mrb[0].mxu0
    %8810 = vdwg.mxu0
    %8811 = vmatprep.subr.bf16.mxu0 %v6460
    %8812 = vmatpush1.bf16.msra.mxu0 %v6459
    %8813 = vmatprep.subr.bf16.mxu0 %v6468
    %8814 = vmatpush1.bf16.msra.mxu0 %v6467
    %8815 = vmatprep.subr.bf16.mxu0 %v6476
    %8816 = vmatpush1.bf16.msra.mxu0 %v6475
    %8817 = vmatprep.subr.bf16.mxu0 %v6484
    %8818 = vmatpush1.bf16.msra.mxu0 %v6483
    %8819 = vmatprep.subr.bf16.mxu0 %v6492
    %8820 = vmatpush1.bf16.msra.mxu0 %v6491
    %8821 = vmatprep.subr.bf16.mxu0 %v6500
    %8822 = vmatpush1.bf16.msra.mxu0 %v6499
    %8823 = vmatprep.subr.bf16.mxu0 %v6508
    %8824 = vmatpush1.bf16.msra.mxu0 %v6507
    %8825 = vmatprep.subr.bf16.mxu0 %v6516
    %8826 = vmatpush1.bf16.msra.mxu0 %v6515
    %8827 = vmatprep.subr.bf16.mxu0 %v6524
    %8828 = vmatpush1.bf16.msra.mxu0 %v6523
    %8829 = vmatprep.subr.bf16.mxu0 %v6532
    %8830 = vmatpush1.bf16.msra.mxu0 %v6531
    %8831 = vmatprep.subr.bf16.mxu0 %v6540
    %8832 = vmatpush1.bf16.msra.mxu0 %v6539
    %8833 = vmatprep.subr.bf16.mxu0 %v6548
    %8834 = vmatpush1.bf16.msra.mxu0 %v6547
    %8835 = vmatprep.subr.bf16.mxu0 %v6556
    %8836 = vmatpush1.bf16.msra.mxu0 %v6555
    %8837 = vmatprep.subr.bf16.mxu0 %v6564
    %8838 = vmatpush1.bf16.msra.mxu0 %v6563
    %8839 = vmatprep.subr.bf16.mxu0 %v6572
    %8840 = vmatpush1.bf16.msra.mxu0 %v6571
    %8841 = vmatprep.subr.bf16.mxu0 %v6580
    %8842 = vmatpush1.bf16.msra.mxu0 %v6579
    %8843 = vmatprep.mubr.bf16.mxu0 %v1798
    %8844 = vmatmul.mubr.bf16.gmra.mrb[0].mxu0 %v1797
    %v8845 = vpop.f32.mrb[0].mxu0
    %v8846 = vadd.f32 %v8805, %v8845
    %v8847 = vpop.f32.mrb[0].mxu0
    %v8848 = vadd.f32 %v8807, %v8847
    %v8849 = vpop.f32.mrb[0].mxu0
    %v8850 = vpop.f32.mrb[0].mxu0
    %8851 = vdwg.mxu0
    %8852 = vmatprep.subr.bf16.mxu0 %v6588
    %8853 = vmatpush1.bf16.msra.mxu0 %v6587
    %8854 = vmatprep.subr.bf16.mxu0 %v6596
    %8855 = vmatpush1.bf16.msra.mxu0 %v6595
    %8856 = vmatprep.subr.bf16.mxu0 %v6604
    %8857 = vmatpush1.bf16.msra.mxu0 %v6603
    %8858 = vmatprep.subr.bf16.mxu0 %v6612
    %8859 = vmatpush1.bf16.msra.mxu0 %v6611
    %8860 = vmatprep.subr.bf16.mxu0 %v6620
    %8861 = vmatpush1.bf16.msra.mxu0 %v6619
    %8862 = vmatprep.subr.bf16.mxu0 %v6628
    %8863 = vmatpush1.bf16.msra.mxu0 %v6627
    %8864 = vmatprep.subr.bf16.mxu0 %v6636
    %8865 = vmatpush1.bf16.msra.mxu0 %v6635
    %8866 = vmatprep.subr.bf16.mxu0 %v6644
    %8867 = vmatpush1.bf16.msra.mxu0 %v6643
    %8868 = vmatprep.subr.bf16.mxu0 %v6652
    %8869 = vmatpush1.bf16.msra.mxu0 %v6651
    %8870 = vmatprep.subr.bf16.mxu0 %v6660
    %8871 = vmatpush1.bf16.msra.mxu0 %v6659
    %8872 = vmatprep.subr.bf16.mxu0 %v6668
    %8873 = vmatpush1.bf16.msra.mxu0 %v6667
    %8874 = vmatprep.subr.bf16.mxu0 %v6676
    %8875 = vmatpush1.bf16.msra.mxu0 %v6675
    %8876 = vmatprep.subr.bf16.mxu0 %v6684
    %8877 = vmatpush1.bf16.msra.mxu0 %v6683
    %8878 = vmatprep.subr.bf16.mxu0 %v6692
    %8879 = vmatpush1.bf16.msra.mxu0 %v6691
    %8880 = vmatprep.subr.bf16.mxu0 %v6700
    %8881 = vmatpush1.bf16.msra.mxu0 %v6699
    %8882 = vmatprep.subr.bf16.mxu0 %v6708
    %8883 = vmatpush1.bf16.msra.mxu0 %v6707
    %8884 = vmatprep.mubr.bf16.mxu0 %v1800
    %8885 = vmatmul.mubr.bf16.gmra.mrb[0].mxu0 %v1799
    %v8886 = vpop.f32.mrb[0].mxu0
    %v8887 = vadd.f32 %v8846, %v8886
    %v8888 = vpop.f32.mrb[0].mxu0
    %v8889 = vadd.f32 %v8848, %v8888
    %v8890 = vpop.f32.mrb[0].mxu0
    %v8891 = vpop.f32.mrb[0].mxu0
    %8892 = vdwg.mxu0
    %8893 = vmatprep.subr.bf16.mxu0 %v6716
    %8894 = vmatpush1.bf16.msra.mxu0 %v6715
    %8895 = vmatprep.subr.bf16.mxu0 %v6724
    %8896 = vmatpush1.bf16.msra.mxu0 %v6723
    %8897 = vmatprep.subr.bf16.mxu0 %v6732
    %8898 = vmatpush1.bf16.msra.mxu0 %v6731
    %8899 = vmatprep.subr.bf16.mxu0 %v6740
    %8900 = vmatpush1.bf16.msra.mxu0 %v6739
    %8901 = vmatprep.subr.bf16.mxu0 %v6748
    %8902 = vmatpush1.bf16.msra.mxu0 %v6747
    %8903 = vmatprep.subr.bf16.mxu0 %v6756
    %8904 = vmatpush1.bf16.msra.mxu0 %v6755
    %8905 = vmatprep.subr.bf16.mxu0 %v6764
    %8906 = vmatpush1.bf16.msra.mxu0 %v6763
    %8907 = vmatprep.subr.bf16.mxu0 %v6772
    %8908 = vmatpush1.bf16.msra.mxu0 %v6771
    %8909 = vmatprep.subr.bf16.mxu0 %v6780
    %8910 = vmatpush1.bf16.msra.mxu0 %v6779
    %8911 = vmatprep.subr.bf16.mxu0 %v6788
    %8912 = vmatpush1.bf16.msra.mxu0 %v6787
    %8913 = vmatprep.subr.bf16.mxu0 %v6796
    %8914 = vmatpush1.bf16.msra.mxu0 %v6795
    %8915 = vmatprep.subr.bf16.mxu0 %v6804
    %8916 = vmatpush1.bf16.msra.mxu0 %v6803
    %8917 = vmatprep.subr.bf16.mxu0 %v6812
    %8918 = vmatpush1.bf16.msra.mxu0 %v6811
    %8919 = vmatprep.subr.bf16.mxu0 %v6820
    %8920 = vmatpush1.bf16.msra.mxu0 %v6819
    %8921 = vmatprep.subr.bf16.mxu0 %v6828
    %8922 = vmatpush1.bf16.msra.mxu0 %v6827
    %8923 = vmatprep.subr.bf16.mxu0 %v6836
    %8924 = vmatpush1.bf16.msra.mxu0 %v6835
    %8925 = vmatprep.mubr.bf16.mxu0 %v1802
    %8926 = vmatmul.mubr.bf16.gmra.mrb[0].mxu0 %v1801
    %v8927 = vpop.f32.mrb[0].mxu0
    %v8928 = vadd.f32 %v8887, %v8927
    %v8929 = vpop.f32.mrb[0].mxu0
    %v8930 = vadd.f32 %v8889, %v8929
    %v8931 = vpop.f32.mrb[0].mxu0
    %v8932 = vpop.f32.mrb[0].mxu0
    %8933 = vdwg.mxu0
    %8934 = vmatprep.subr.bf16.mxu0 %v6844
    %8935 = vmatpush1.bf16.msra.mxu0 %v6843
    %8936 = vmatprep.subr.bf16.mxu0 %v6852
    %8937 = vmatpush1.bf16.msra.mxu0 %v6851
    %8938 = vmatprep.subr.bf16.mxu0 %v6860
    %8939 = vmatpush1.bf16.msra.mxu0 %v6859
    %8940 = vmatprep.subr.bf16.mxu0 %v6868
    %8941 = vmatpush1.bf16.msra.mxu0 %v6867
    %8942 = vmatprep.subr.bf16.mxu0 %v6876
    %8943 = vmatpush1.bf16.msra.mxu0 %v6875
    %8944 = vmatprep.subr.bf16.mxu0 %v6884
    %8945 = vmatpush1.bf16.msra.mxu0 %v6883
    %8946 = vmatprep.subr.bf16.mxu0 %v6892
    %8947 = vmatpush1.bf16.msra.mxu0 %v6891
    %8948 = vmatprep.subr.bf16.mxu0 %v6900
    %8949 = vmatpush1.bf16.msra.mxu0 %v6899
    %8950 = vmatprep.subr.bf16.mxu0 %v6908
    %8951 = vmatpush1.bf16.msra.mxu0 %v6907
    %8952 = vmatprep.subr.bf16.mxu0 %v6916
    %8953 = vmatpush1.bf16.msra.mxu0 %v6915
    %8954 = vmatprep.subr.bf16.mxu0 %v6924
    %8955 = vmatpush1.bf16.msra.mxu0 %v6923
    %8956 = vmatprep.subr.bf16.mxu0 %v6932
    %8957 = vmatpush1.bf16.msra.mxu0 %v6931
    %8958 = vmatprep.subr.bf16.mxu0 %v6940
    %8959 = vmatpush1.bf16.msra.mxu0 %v6939
    %8960 = vmatprep.subr.bf16.mxu0 %v6948
    %8961 = vmatpush1.bf16.msra.mxu0 %v6947
    %8962 = vmatprep.subr.bf16.mxu0 %v6956
    %8963 = vmatpush1.bf16.msra.mxu0 %v6955
    %8964 = vmatprep.subr.bf16.mxu0 %v6964
    %8965 = vmatpush1.bf16.msra.mxu0 %v6963
    %8966 = vmatprep.mubr.bf16.mxu0 %v1804
    %8967 = vmatmul.mubr.bf16.gmra.mrb[0].mxu0 %v1803
    %v8968 = vpop.f32.mrb[0].mxu0
    %v8969 = vadd.f32 %v8928, %v8968
    %v8970 = vpop.f32.mrb[0].mxu0
    %v8971 = vadd.f32 %v8930, %v8970
    %v8972 = vpop.f32.mrb[0].mxu0
    %v8973 = vpop.f32.mrb[0].mxu0
    %8974 = vdwg.mxu0
    %8975 = vmatprep.subr.bf16.mxu0 %v5950
    %8976 = vmatpush1.bf16.msra.mxu0 %v5949
    %8977 = vmatprep.subr.bf16.mxu0 %v5958
    %8978 = vmatpush1.bf16.msra.mxu0 %v5957
    %8979 = vmatprep.subr.bf16.mxu0 %v5966
    %8980 = vmatpush1.bf16.msra.mxu0 %v5965
    %8981 = vmatprep.subr.bf16.mxu0 %v5974
    %8982 = vmatpush1.bf16.msra.mxu0 %v5973
    %8983 = vmatprep.subr.bf16.mxu0 %v5982
    %8984 = vmatpush1.bf16.msra.mxu0 %v5981
    %8985 = vmatprep.subr.bf16.mxu0 %v5990
    %8986 = vmatpush1.bf16.msra.mxu0 %v5989
    %8987 = vmatprep.subr.bf16.mxu0 %v5998
    %8988 = vmatpush1.bf16.msra.mxu0 %v5997
    %8989 = vmatprep.subr.bf16.mxu0 %v6006
    %8990 = vmatpush1.bf16.msra.mxu0 %v6005
    %8991 = vmatprep.subr.bf16.mxu0 %v6014
    %8992 = vmatpush1.bf16.msra.mxu0 %v6013
    %8993 = vmatprep.subr.bf16.mxu0 %v6022
    %8994 = vmatpush1.bf16.msra.mxu0 %v6021
    %8995 = vmatprep.subr.bf16.mxu0 %v6030
    %8996 = vmatpush1.bf16.msra.mxu0 %v6029
    %8997 = vmatprep.subr.bf16.mxu0 %v6038
    %8998 = vmatpush1.bf16.msra.mxu0 %v6037
    %8999 = vmatprep.subr.bf16.mxu0 %v6046
    %9000 = vmatpush1.bf16.msra.mxu0 %v6045
    %9001 = vmatprep.subr.bf16.mxu0 %v6054
    %9002 = vmatpush1.bf16.msra.mxu0 %v6053
    %9003 = vmatprep.subr.bf16.mxu0 %v6062
    %9004 = vmatpush1.bf16.msra.mxu0 %v6061
    %9005 = vmatprep.subr.bf16.mxu0 %v6070
    %9006 = vmatpush1.bf16.msra.mxu0 %v6069
    %9007 = vmatprep.mubr.bf16.mxu0 %v1790
    %9008 = vmatmul.mubr.bf16.gmra.mrb[0].mxu0 %v1789
    %v9009 = vpop.f32.mrb[0].mxu0
    %v9010 = vadd.f32 %v2858, %v9009
    %v9011 = vpop.f32.mrb[0].mxu0
    %v9012 = vadd.f32 %v2862, %v9011
    %v9013 = vpop.f32.mrb[0].mxu0
    %v9014 = vpop.f32.mrb[0].mxu0
    %9015 = vdwg.mxu0
    %9016 = vmatprep.subr.bf16.mxu0 %v6078
    %9017 = vmatpush1.bf16.msra.mxu0 %v6077
    %9018 = vmatprep.subr.bf16.mxu0 %v6086
    %9019 = vmatpush1.bf16.msra.mxu0 %v6085
    %9020 = vmatprep.subr.bf16.mxu0 %v6094
    %9021 = vmatpush1.bf16.msra.mxu0 %v6093
    %9022 = vmatprep.subr.bf16.mxu0 %v6102
    %9023 = vmatpush1.bf16.msra.mxu0 %v6101
    %9024 = vmatprep.subr.bf16.mxu0 %v6110
    %9025 = vmatpush1.bf16.msra.mxu0 %v6109
    %9026 = vmatprep.subr.bf16.mxu0 %v6118
    %9027 = vmatpush1.bf16.msra.mxu0 %v6117
    %9028 = vmatprep.subr.bf16.mxu0 %v6126
    %9029 = vmatpush1.bf16.msra.mxu0 %v6125
    %9030 = vmatprep.subr.bf16.mxu0 %v6134
    %9031 = vmatpush1.bf16.msra.mxu0 %v6133
    %9032 = vmatprep.subr.bf16.mxu0 %v6142
    %9033 = vmatpush1.bf16.msra.mxu0 %v6141
    %9034 = vmatprep.subr.bf16.mxu0 %v6150
    %9035 = vmatpush1.bf16.msra.mxu0 %v6149
    %9036 = vmatprep.subr.bf16.mxu0 %v6158
    %9037 = vmatpush1.bf16.msra.mxu0 %v6157
    %9038 = vmatprep.subr.bf16.mxu0 %v6166
    %9039 = vmatpush1.bf16.msra.mxu0 %v6165
    %9040 = vmatprep.subr.bf16.mxu0 %v6174
    %9041 = vmatpush1.bf16.msra.mxu0 %v6173
    %9042 = vmatprep.subr.bf16.mxu0 %v6182
    %9043 = vmatpush1.bf16.msra.mxu0 %v6181
    %9044 = vmatprep.subr.bf16.mxu0 %v6190
    %9045 = vmatpush1.bf16.msra.mxu0 %v6189
    %9046 = vmatprep.subr.bf16.mxu0 %v6198
    %9047 = vmatpush1.bf16.msra.mxu0 %v6197
    %9048 = vmatprep.mubr.bf16.mxu0 %v1792
    %9049 = vmatmul.mubr.bf16.gmra.mrb[0].mxu0 %v1791
    %v9050 = vpop.f32.mrb[0].mxu0
    %v9051 = vadd.f32 %v9010, %v9050
    %v9052 = vpop.f32.mrb[0].mxu0
    %v9053 = vadd.f32 %v9012, %v9052
    %v9054 = vpop.f32.mrb[0].mxu0
    %v9055 = vpop.f32.mrb[0].mxu0
    %9056 = vdwg.mxu0
    %9057 = vmatprep.subr.bf16.mxu0 %v6206
    %9058 = vmatpush1.bf16.msra.mxu0 %v6205
    %9059 = vmatprep.subr.bf16.mxu0 %v6214
    %9060 = vmatpush1.bf16.msra.mxu0 %v6213
    %9061 = vmatprep.subr.bf16.mxu0 %v6222
    %9062 = vmatpush1.bf16.msra.mxu0 %v6221
    %9063 = vmatprep.subr.bf16.mxu0 %v6230
    %9064 = vmatpush1.bf16.msra.mxu0 %v6229
    %9065 = vmatprep.subr.bf16.mxu0 %v6238
    %9066 = vmatpush1.bf16.msra.mxu0 %v6237
    %9067 = vmatprep.subr.bf16.mxu0 %v6246
    %9068 = vmatpush1.bf16.msra.mxu0 %v6245
    %9069 = vmatprep.subr.bf16.mxu0 %v6254
    %9070 = vmatpush1.bf16.msra.mxu0 %v6253
    %9071 = vmatprep.subr.bf16.mxu0 %v6262
    %9072 = vmatpush1.bf16.msra.mxu0 %v6261
    %9073 = vmatprep.subr.bf16.mxu0 %v6270
    %9074 = vmatpush1.bf16.msra.mxu0 %v6269
    %9075 = vmatprep.subr.bf16.mxu0 %v6278
    %9076 = vmatpush1.bf16.msra.mxu0 %v6277
    %9077 = vmatprep.subr.bf16.mxu0 %v6286
    %9078 = vmatpush1.bf16.msra.mxu0 %v6285
    %9079 = vmatprep.subr.bf16.mxu0 %v6294
    %9080 = vmatpush1.bf16.msra.mxu0 %v6293
    %9081 = vmatprep.subr.bf16.mxu0 %v6302
    %9082 = vmatpush1.bf16.msra.mxu0 %v6301
    %9083 = vmatprep.subr.bf16.mxu0 %v6310
    %9084 = vmatpush1.bf16.msra.mxu0 %v6309
    %9085 = vmatprep.subr.bf16.mxu0 %v6318
    %9086 = vmatpush1.bf16.msra.mxu0 %v6317
    %9087 = vmatprep.subr.bf16.mxu0 %v6326
    %9088 = vmatpush1.bf16.msra.mxu0 %v6325
    %9089 = vmatprep.mubr.bf16.mxu0 %v1794
    %9090 = vmatmul.mubr.bf16.gmra.mrb[0].mxu0 %v1793
    %v9091 = vpop.f32.mrb[0].mxu0
    %v9092 = vadd.f32 %v9051, %v9091
    %v9093 = vpop.f32.mrb[0].mxu0
    %v9094 = vadd.f32 %v9053, %v9093
    %v9095 = vpop.f32.mrb[0].mxu0
    %v9096 = vpop.f32.mrb[0].mxu0
    %9097 = vdwg.mxu0
    %9098 = vmatprep.subr.bf16.mxu0 %v6334
    %9099 = vmatpush1.bf16.msra.mxu0 %v6333
    %9100 = vmatprep.subr.bf16.mxu0 %v6342
    %9101 = vmatpush1.bf16.msra.mxu0 %v6341
    %9102 = vmatprep.subr.bf16.mxu0 %v6350
    %9103 = vmatpush1.bf16.msra.mxu0 %v6349
    %9104 = vmatprep.subr.bf16.mxu0 %v6358
    %9105 = vmatpush1.bf16.msra.mxu0 %v6357
    %9106 = vmatprep.subr.bf16.mxu0 %v6366
    %9107 = vmatpush1.bf16.msra.mxu0 %v6365
    %9108 = vmatprep.subr.bf16.mxu0 %v6374
    %9109 = vmatpush1.bf16.msra.mxu0 %v6373
    %9110 = vmatprep.subr.bf16.mxu0 %v6382
    %9111 = vmatpush1.bf16.msra.mxu0 %v6381
    %9112 = vmatprep.subr.bf16.mxu0 %v6390
    %9113 = vmatpush1.bf16.msra.mxu0 %v6389
    %9114 = vmatprep.subr.bf16.mxu0 %v6398
    %9115 = vmatpush1.bf16.msra.mxu0 %v6397
    %9116 = vmatprep.subr.bf16.mxu0 %v6406
    %9117 = vmatpush1.bf16.msra.mxu0 %v6405
    %9118 = vmatprep.subr.bf16.mxu0 %v6414
    %9119 = vmatpush1.bf16.msra.mxu0 %v6413
    %9120 = vmatprep.subr.bf16.mxu0 %v6422
    %9121 = vmatpush1.bf16.msra.mxu0 %v6421
    %9122 = vmatprep.subr.bf16.mxu0 %v6430
    %9123 = vmatpush1.bf16.msra.mxu0 %v6429
    %9124 = vmatprep.subr.bf16.mxu0 %v6438
    %9125 = vmatpush1.bf16.msra.mxu0 %v6437
    %9126 = vmatprep.subr.bf16.mxu0 %v6446
    %9127 = vmatpush1.bf16.msra.mxu0 %v6445
    %9128 = vmatprep.subr.bf16.mxu0 %v6454
    %9129 = vmatpush1.bf16.msra.mxu0 %v6453
    %9130 = vmatprep.mubr.bf16.mxu0 %v1796
    %9131 = vmatmul.mubr.bf16.gmra.mrb[0].mxu0 %v1795
    %v9132 = vpop.f32.mrb[0].mxu0
    %v9133 = vadd.f32 %v9092, %v9132
    %v9134 = vpop.f32.mrb[0].mxu0
    %v9135 = vadd.f32 %v9094, %v9134
    %v9136 = vpop.f32.mrb[0].mxu0
    %v9137 = vpop.f32.mrb[0].mxu0
    %9138 = vdwg.mxu0
    %9139 = vmatprep.subr.bf16.mxu0 %v6462
    %9140 = vmatpush1.bf16.msra.mxu0 %v6461
    %9141 = vmatprep.subr.bf16.mxu0 %v6470
    %9142 = vmatpush1.bf16.msra.mxu0 %v6469
    %9143 = vmatprep.subr.bf16.mxu0 %v6478
    %9144 = vmatpush1.bf16.msra.mxu0 %v6477
    %9145 = vmatprep.subr.bf16.mxu0 %v6486
    %9146 = vmatpush1.bf16.msra.mxu0 %v6485
    %9147 = vmatprep.subr.bf16.mxu0 %v6494
    %9148 = vmatpush1.bf16.msra.mxu0 %v6493
    %9149 = vmatprep.subr.bf16.mxu0 %v6502
    %9150 = vmatpush1.bf16.msra.mxu0 %v6501
    %9151 = vmatprep.subr.bf16.mxu0 %v6510
    %9152 = vmatpush1.bf16.msra.mxu0 %v6509
    %9153 = vmatprep.subr.bf16.mxu0 %v6518
    %9154 = vmatpush1.bf16.msra.mxu0 %v6517
    %9155 = vmatprep.subr.bf16.mxu0 %v6526
    %9156 = vmatpush1.bf16.msra.mxu0 %v6525
    %9157 = vmatprep.subr.bf16.mxu0 %v6534
    %9158 = vmatpush1.bf16.msra.mxu0 %v6533
    %9159 = vmatprep.subr.bf16.mxu0 %v6542
    %9160 = vmatpush1.bf16.msra.mxu0 %v6541
    %9161 = vmatprep.subr.bf16.mxu0 %v6550
    %9162 = vmatpush1.bf16.msra.mxu0 %v6549
    %9163 = vmatprep.subr.bf16.mxu0 %v6558
    %9164 = vmatpush1.bf16.msra.mxu0 %v6557
    %9165 = vmatprep.subr.bf16.mxu0 %v6566
    %9166 = vmatpush1.bf16.msra.mxu0 %v6565
    %9167 = vmatprep.subr.bf16.mxu0 %v6574
    %9168 = vmatpush1.bf16.msra.mxu0 %v6573
    %9169 = vmatprep.subr.bf16.mxu0 %v6582
    %9170 = vmatpush1.bf16.msra.mxu0 %v6581
    %9171 = vmatprep.mubr.bf16.mxu0 %v1798
    %9172 = vmatmul.mubr.bf16.gmra.mrb[0].mxu0 %v1797
    %v9173 = vpop.f32.mrb[0].mxu0
    %v9174 = vadd.f32 %v9133, %v9173
    %v9175 = vpop.f32.mrb[0].mxu0
    %v9176 = vadd.f32 %v9135, %v9175
    %v9177 = vpop.f32.mrb[0].mxu0
    %v9178 = vpop.f32.mrb[0].mxu0
    %9179 = vdwg.mxu0
    %9180 = vmatprep.subr.bf16.mxu0 %v6590
    %9181 = vmatpush1.bf16.msra.mxu0 %v6589
    %9182 = vmatprep.subr.bf16.mxu0 %v6598
    %9183 = vmatpush1.bf16.msra.mxu0 %v6597
    %9184 = vmatprep.subr.bf16.mxu0 %v6606
    %9185 = vmatpush1.bf16.msra.mxu0 %v6605
    %9186 = vmatprep.subr.bf16.mxu0 %v6614
    %9187 = vmatpush1.bf16.msra.mxu0 %v6613
    %9188 = vmatprep.subr.bf16.mxu0 %v6622
    %9189 = vmatpush1.bf16.msra.mxu0 %v6621
    %9190 = vmatprep.subr.bf16.mxu0 %v6630
    %9191 = vmatpush1.bf16.msra.mxu0 %v6629
    %9192 = vmatprep.subr.bf16.mxu0 %v6638
    %9193 = vmatpush1.bf16.msra.mxu0 %v6637
    %9194 = vmatprep.subr.bf16.mxu0 %v6646
    %9195 = vmatpush1.bf16.msra.mxu0 %v6645
    %9196 = vmatprep.subr.bf16.mxu0 %v6654
    %9197 = vmatpush1.bf16.msra.mxu0 %v6653
    %9198 = vmatprep.subr.bf16.mxu0 %v6662
    %9199 = vmatpush1.bf16.msra.mxu0 %v6661
    %9200 = vmatprep.subr.bf16.mxu0 %v6670
    %9201 = vmatpush1.bf16.msra.mxu0 %v6669
    %9202 = vmatprep.subr.bf16.mxu0 %v6678
    %9203 = vmatpush1.bf16.msra.mxu0 %v6677
    %9204 = vmatprep.subr.bf16.mxu0 %v6686
    %9205 = vmatpush1.bf16.msra.mxu0 %v6685
    %9206 = vmatprep.subr.bf16.mxu0 %v6694
    %9207 = vmatpush1.bf16.msra.mxu0 %v6693
    %9208 = vmatprep.subr.bf16.mxu0 %v6702
    %9209 = vmatpush1.bf16.msra.mxu0 %v6701
    %9210 = vmatprep.subr.bf16.mxu0 %v6710
    %9211 = vmatpush1.bf16.msra.mxu0 %v6709
    %9212 = vmatprep.mubr.bf16.mxu0 %v1800
    %9213 = vmatmul.mubr.bf16.gmra.mrb[0].mxu0 %v1799
    %v9214 = vpop.f32.mrb[0].mxu0
    %v9215 = vadd.f32 %v9174, %v9214
    %v9216 = vpop.f32.mrb[0].mxu0
    %v9217 = vadd.f32 %v9176, %v9216
    %v9218 = vpop.f32.mrb[0].mxu0
    %v9219 = vpop.f32.mrb[0].mxu0
    %9220 = vdwg.mxu0
    %9221 = vmatprep.subr.bf16.mxu0 %v6718
    %9222 = vmatpush1.bf16.msra.mxu0 %v6717
    %9223 = vmatprep.subr.bf16.mxu0 %v6726
    %9224 = vmatpush1.bf16.msra.mxu0 %v6725
    %9225 = vmatprep.subr.bf16.mxu0 %v6734
    %9226 = vmatpush1.bf16.msra.mxu0 %v6733
    %9227 = vmatprep.subr.bf16.mxu0 %v6742
    %9228 = vmatpush1.bf16.msra.mxu0 %v6741
    %9229 = vmatprep.subr.bf16.mxu0 %v6750
    %9230 = vmatpush1.bf16.msra.mxu0 %v6749
    %9231 = vmatprep.subr.bf16.mxu0 %v6758
    %9232 = vmatpush1.bf16.msra.mxu0 %v6757
    %9233 = vmatprep.subr.bf16.mxu0 %v6766
    %9234 = vmatpush1.bf16.msra.mxu0 %v6765
    %9235 = vmatprep.subr.bf16.mxu0 %v6774
    %9236 = vmatpush1.bf16.msra.mxu0 %v6773
    %9237 = vmatprep.subr.bf16.mxu0 %v6782
    %9238 = vmatpush1.bf16.msra.mxu0 %v6781
    %9239 = vmatprep.subr.bf16.mxu0 %v6790
    %9240 = vmatpush1.bf16.msra.mxu0 %v6789
    %9241 = vmatprep.subr.bf16.mxu0 %v6798
    %9242 = vmatpush1.bf16.msra.mxu0 %v6797
    %9243 = vmatprep.subr.bf16.mxu0 %v6806
    %9244 = vmatpush1.bf16.msra.mxu0 %v6805
    %9245 = vmatprep.subr.bf16.mxu0 %v6814
    %9246 = vmatpush1.bf16.msra.mxu0 %v6813
    %9247 = vmatprep.subr.bf16.mxu0 %v6822
    %9248 = vmatpush1.bf16.msra.mxu0 %v6821
    %9249 = vmatprep.subr.bf16.mxu0 %v6830
    %9250 = vmatpush1.bf16.msra.mxu0 %v6829
    %9251 = vmatprep.subr.bf16.mxu0 %v6838
    %9252 = vmatpush1.bf16.msra.mxu0 %v6837
    %9253 = vmatprep.mubr.bf16.mxu0 %v1802
    %9254 = vmatmul.mubr.bf16.gmra.mrb[0].mxu0 %v1801
    %v9255 = vpop.f32.mrb[0].mxu0
    %v9256 = vadd.f32 %v9215, %v9255
    %v9257 = vpop.f32.mrb[0].mxu0
    %v9258 = vadd.f32 %v9217, %v9257
    %v9259 = vpop.f32.mrb[0].mxu0
    %v9260 = vpop.f32.mrb[0].mxu0
    %9261 = vdwg.mxu0
    %9262 = vmatprep.subr.bf16.mxu0 %v6846
    %9263 = vmatpush1.bf16.msra.mxu0 %v6845
    %9264 = vmatprep.subr.bf16.mxu0 %v6854
    %9265 = vmatpush1.bf16.msra.mxu0 %v6853
    %9266 = vmatprep.subr.bf16.mxu0 %v6862
    %9267 = vmatpush1.bf16.msra.mxu0 %v6861
    %9268 = vmatprep.subr.bf16.mxu0 %v6870
    %9269 = vmatpush1.bf16.msra.mxu0 %v6869
    %9270 = vmatprep.subr.bf16.mxu0 %v6878
    %9271 = vmatpush1.bf16.msra.mxu0 %v6877
    %9272 = vmatprep.subr.bf16.mxu0 %v6886
    %9273 = vmatpush1.bf16.msra.mxu0 %v6885
    %9274 = vmatprep.subr.bf16.mxu0 %v6894
    %9275 = vmatpush1.bf16.msra.mxu0 %v6893
    %9276 = vmatprep.subr.bf16.mxu0 %v6902
    %9277 = vmatpush1.bf16.msra.mxu0 %v6901
    %9278 = vmatprep.subr.bf16.mxu0 %v6910
    %9279 = vmatpush1.bf16.msra.mxu0 %v6909
    %9280 = vmatprep.subr.bf16.mxu0 %v6918
    %9281 = vmatpush1.bf16.msra.mxu0 %v6917
    %9282 = vmatprep.subr.bf16.mxu0 %v6926
    %9283 = vmatpush1.bf16.msra.mxu0 %v6925
    %9284 = vmatprep.subr.bf16.mxu0 %v6934
    %9285 = vmatpush1.bf16.msra.mxu0 %v6933
    %9286 = vmatprep.subr.bf16.mxu0 %v6942
    %9287 = vmatpush1.bf16.msra.mxu0 %v6941
    %9288 = vmatprep.subr.bf16.mxu0 %v6950
    %9289 = vmatpush1.bf16.msra.mxu0 %v6949
    %9290 = vmatprep.subr.bf16.mxu0 %v6958
    %9291 = vmatpush1.bf16.msra.mxu0 %v6957
    %9292 = vmatprep.subr.bf16.mxu0 %v6966
    %9293 = vmatpush1.bf16.msra.mxu0 %v6965
    %9294 = vmatprep.mubr.bf16.mxu0 %v1804
    %9295 = vmatmul.mubr.bf16.gmra.mrb[0].mxu0 %v1803
    %v9296 = vpop.f32.mrb[0].mxu0
    %v9297 = vadd.f32 %v9256, %v9296
    %v9298 = vpop.f32.mrb[0].mxu0
    %v9299 = vadd.f32 %v9258, %v9298
    %v9300 = vpop.f32.mrb[0].mxu0
    %v9301 = vpop.f32.mrb[0].mxu0
    %9302 = vdwg.mxu0
    %vm9303 = vcmp.ge.f32.partialorder %v8313, 0.0
    %vm9304 = vcmp.ge.f32.partialorder %v8315, 0.0
    %vm9305 = vcmp.ge.f32.partialorder %v8641, 0.0
    %vm9306 = vcmp.ge.f32.partialorder %v8643, 0.0
    %vm9307 = vcmp.ge.f32.partialorder %v8969, 0.0
    %vm9308 = vcmp.ge.f32.partialorder %v8971, 0.0
    %vm9309 = vcmp.ge.f32.partialorder %v9297, 0.0
    %vm9310 = vcmp.ge.f32.partialorder %v9299, 0.0
    %v9311 = vmul.f32 %v8313, 0.01
    %v9312 = vmul.f32 %v8315, 0.01
    %v9313 = vmul.f32 %v8641, 0.01
    %v9314 = vmul.f32 %v8643, 0.01
    %v9315 = vmul.f32 %v8969, 0.01
    %v9316 = vmul.f32 %v8971, 0.01
    %v9317 = vmul.f32 %v9297, 0.01
    %v9318 = vmul.f32 %v9299, 0.01
    %v9319 = vsel %vm9303, %v8313, %v9311
    %v9320 = vsel %vm9304, %v8315, %v9312
    %v9321 = vsel %vm9305, %v8641, %v9313
    %v9322 = vsel %vm9306, %v8643, %v9314
    %v9323 = vsel %vm9307, %v8969, %v9315
    %v9324 = vsel %vm9308, %v8971, %v9316
    %v9325 = vsel %vm9309, %v9297, %v9317
    %v9326 = vsel %vm9310, %v9299, %v9318
    %v9327 = vpack.c.bf16 %v9319, %v9319
    %v9328 = vpack.c.bf16 %v9320, %v9320
    %v9329 = vpack.c.bf16 %v9321, %v9321
    %v9330 = vpack.c.bf16 %v9322, %v9322
    %v9331 = vpack.c.bf16 %v9323, %v9323
    %v9332 = vpack.c.bf16 %v9324, %v9324
    %v9333 = vpack.c.bf16 %v9325, %v9325
    %v9334 = vpack.c.bf16 %v9326, %v9326
    %v9335 = vld [vmem:[#allocation23] sm:$0xff]
    %v9336 = vld [vmem:[#allocation23 + $0x8] sm:$0xff]
    %v9337 = vld [vmem:[#allocation23 + $0x10] sm:$0xff]
    %v9338 = vld [vmem:[#allocation23 + $0x18] sm:$0xff]
    %v9339 = vld [vmem:[#allocation23 + $0x20] sm:$0xff]
    %v9340 = vld [vmem:[#allocation23 + $0x28] sm:$0xff]
    %v9341 = vld [vmem:[#allocation23 + $0x30] sm:$0xff]
    %v9342 = vld [vmem:[#allocation23 + $0x38] sm:$0xff]
    %v9343 = vld [vmem:[#allocation23 + $0x40] sm:$0xff]
    %v9344 = vld [vmem:[#allocation23 + $0x48] sm:$0xff]
    %v9345 = vld [vmem:[#allocation23 + $0x50] sm:$0xff]
    %v9346 = vld [vmem:[#allocation23 + $0x58] sm:$0xff]
    %v9347 = vld [vmem:[#allocation23 + $0x60] sm:$0xff]
    %v9348 = vld [vmem:[#allocation23 + $0x68] sm:$0xff]
    %v9349 = vld [vmem:[#allocation23 + $0x70] sm:$0xff]
    %v9350 = vld [vmem:[#allocation23 + $0x78] sm:$0xff]
    %v9351 = vld [vmem:[#allocation23 + $0x80] sm:$0xff]
    %v9352 = vld [vmem:[#allocation23 + $0x88] sm:$0xff]
    %v9353 = vld [vmem:[#allocation23 + $0x90] sm:$0xff]
    %v9354 = vld [vmem:[#allocation23 + $0x98] sm:$0xff]
    %v9355 = vld [vmem:[#allocation23 + $0xa0] sm:$0xff]
    %v9356 = vld [vmem:[#allocation23 + $0xa8] sm:$0xff]
    %v9357 = vld [vmem:[#allocation23 + $0xb0] sm:$0xff]
    %v9358 = vld [vmem:[#allocation23 + $0xb8] sm:$0xff]
    %v9359 = vld [vmem:[#allocation23 + $0xc0] sm:$0xff]
    %v9360 = vld [vmem:[#allocation23 + $0xc8] sm:$0xff]
    %v9361 = vld [vmem:[#allocation23 + $0xd0] sm:$0xff]
    %v9362 = vld [vmem:[#allocation23 + $0xd8] sm:$0xff]
    %v9363 = vld [vmem:[#allocation23 + $0xe0] sm:$0xff]
    %v9364 = vld [vmem:[#allocation23 + $0xe8] sm:$0xff]
    %v9365 = vld [vmem:[#allocation23 + $0xf0] sm:$0xff]
    %v9366 = vld [vmem:[#allocation23 + $0xf8] sm:$0xff]
    %v9367 = vld [vmem:[#allocation23 + $0x100] sm:$0xff]
    %v9368 = vld [vmem:[#allocation23 + $0x108] sm:$0xff]
    %v9369 = vld [vmem:[#allocation23 + $0x110] sm:$0xff]
    %v9370 = vld [vmem:[#allocation23 + $0x118] sm:$0xff]
    %v9371 = vld [vmem:[#allocation23 + $0x120] sm:$0xff]
    %v9372 = vld [vmem:[#allocation23 + $0x128] sm:$0xff]
    %v9373 = vld [vmem:[#allocation23 + $0x130] sm:$0xff]
    %v9374 = vld [vmem:[#allocation23 + $0x138] sm:$0xff]
    %v9375 = vld [vmem:[#allocation23 + $0x140] sm:$0xff]
    %v9376 = vld [vmem:[#allocation23 + $0x148] sm:$0xff]
    %v9377 = vld [vmem:[#allocation23 + $0x150] sm:$0xff]
    %v9378 = vld [vmem:[#allocation23 + $0x158] sm:$0xff]
    %v9379 = vld [vmem:[#allocation23 + $0x160] sm:$0xff]
    %v9380 = vld [vmem:[#allocation23 + $0x168] sm:$0xff]
    %v9381 = vld [vmem:[#allocation23 + $0x170] sm:$0xff]
    %v9382 = vld [vmem:[#allocation23 + $0x178] sm:$0xff]
    %v9383 = vld [vmem:[#allocation23 + $0x180] sm:$0xff]
    %v9384 = vld [vmem:[#allocation23 + $0x188] sm:$0xff]
    %v9385 = vld [vmem:[#allocation23 + $0x190] sm:$0xff]
    %v9386 = vld [vmem:[#allocation23 + $0x198] sm:$0xff]
    %v9387 = vld [vmem:[#allocation23 + $0x1a0] sm:$0xff]
    %v9388 = vld [vmem:[#allocation23 + $0x1a8] sm:$0xff]
    %v9389 = vld [vmem:[#allocation23 + $0x1b0] sm:$0xff]
    %v9390 = vld [vmem:[#allocation23 + $0x1b8] sm:$0xff]
    %v9391 = vld [vmem:[#allocation23 + $0x1c0] sm:$0xff]
    %v9392 = vld [vmem:[#allocation23 + $0x1c8] sm:$0xff]
    %v9393 = vld [vmem:[#allocation23 + $0x1d0] sm:$0xff]
    %v9394 = vld [vmem:[#allocation23 + $0x1d8] sm:$0xff]
    %v9395 = vld [vmem:[#allocation23 + $0x1e0] sm:$0xff]
    %v9396 = vld [vmem:[#allocation23 + $0x1e8] sm:$0xff]
    %v9397 = vld [vmem:[#allocation23 + $0x1f0] sm:$0xff]
    %v9398 = vld [vmem:[#allocation23 + $0x1f8] sm:$0xff]
    %v9399 = vld [vmem:[#allocation23 + $0x200] sm:$0xff]
    %v9400 = vld [vmem:[#allocation23 + $0x208] sm:$0xff]
    %v9401 = vld [vmem:[#allocation23 + $0x210] sm:$0xff]
    %v9402 = vld [vmem:[#allocation23 + $0x218] sm:$0xff]
    %v9403 = vld [vmem:[#allocation23 + $0x220] sm:$0xff]
    %v9404 = vld [vmem:[#allocation23 + $0x228] sm:$0xff]
    %v9405 = vld [vmem:[#allocation23 + $0x230] sm:$0xff]
    %v9406 = vld [vmem:[#allocation23 + $0x238] sm:$0xff]
    %v9407 = vld [vmem:[#allocation23 + $0x240] sm:$0xff]
    %v9408 = vld [vmem:[#allocation23 + $0x248] sm:$0xff]
    %v9409 = vld [vmem:[#allocation23 + $0x250] sm:$0xff]
    %v9410 = vld [vmem:[#allocation23 + $0x258] sm:$0xff]
    %v9411 = vld [vmem:[#allocation23 + $0x260] sm:$0xff]
    %v9412 = vld [vmem:[#allocation23 + $0x268] sm:$0xff]
    %v9413 = vld [vmem:[#allocation23 + $0x270] sm:$0xff]
    %v9414 = vld [vmem:[#allocation23 + $0x278] sm:$0xff]
    %v9415 = vld [vmem:[#allocation23 + $0x280] sm:$0xff]
    %v9416 = vld [vmem:[#allocation23 + $0x288] sm:$0xff]
    %v9417 = vld [vmem:[#allocation23 + $0x290] sm:$0xff]
    %v9418 = vld [vmem:[#allocation23 + $0x298] sm:$0xff]
    %v9419 = vld [vmem:[#allocation23 + $0x2a0] sm:$0xff]
    %v9420 = vld [vmem:[#allocation23 + $0x2a8] sm:$0xff]
    %v9421 = vld [vmem:[#allocation23 + $0x2b0] sm:$0xff]
    %v9422 = vld [vmem:[#allocation23 + $0x2b8] sm:$0xff]
    %v9423 = vld [vmem:[#allocation23 + $0x2c0] sm:$0xff]
    %v9424 = vld [vmem:[#allocation23 + $0x2c8] sm:$0xff]
    %v9425 = vld [vmem:[#allocation23 + $0x2d0] sm:$0xff]
    %v9426 = vld [vmem:[#allocation23 + $0x2d8] sm:$0xff]
    %v9427 = vld [vmem:[#allocation23 + $0x2e0] sm:$0xff]
    %v9428 = vld [vmem:[#allocation23 + $0x2e8] sm:$0xff]
    %v9429 = vld [vmem:[#allocation23 + $0x2f0] sm:$0xff]
    %v9430 = vld [vmem:[#allocation23 + $0x2f8] sm:$0xff]
    %v9431 = vld [vmem:[#allocation23 + $0x300] sm:$0xff]
    %v9432 = vld [vmem:[#allocation23 + $0x308] sm:$0xff]
    %v9433 = vld [vmem:[#allocation23 + $0x310] sm:$0xff]
    %v9434 = vld [vmem:[#allocation23 + $0x318] sm:$0xff]
    %v9435 = vld [vmem:[#allocation23 + $0x320] sm:$0xff]
    %v9436 = vld [vmem:[#allocation23 + $0x328] sm:$0xff]
    %v9437 = vld [vmem:[#allocation23 + $0x330] sm:$0xff]
    %v9438 = vld [vmem:[#allocation23 + $0x338] sm:$0xff]
    %v9439 = vld [vmem:[#allocation23 + $0x340] sm:$0xff]
    %v9440 = vld [vmem:[#allocation23 + $0x348] sm:$0xff]
    %v9441 = vld [vmem:[#allocation23 + $0x350] sm:$0xff]
    %v9442 = vld [vmem:[#allocation23 + $0x358] sm:$0xff]
    %v9443 = vld [vmem:[#allocation23 + $0x360] sm:$0xff]
    %v9444 = vld [vmem:[#allocation23 + $0x368] sm:$0xff]
    %v9445 = vld [vmem:[#allocation23 + $0x370] sm:$0xff]
    %v9446 = vld [vmem:[#allocation23 + $0x378] sm:$0xff]
    %v9447 = vld [vmem:[#allocation23 + $0x380] sm:$0xff]
    %v9448 = vld [vmem:[#allocation23 + $0x388] sm:$0xff]
    %v9449 = vld [vmem:[#allocation23 + $0x390] sm:$0xff]
    %v9450 = vld [vmem:[#allocation23 + $0x398] sm:$0xff]
    %v9451 = vld [vmem:[#allocation23 + $0x3a0] sm:$0xff]
    %v9452 = vld [vmem:[#allocation23 + $0x3a8] sm:$0xff]
    %v9453 = vld [vmem:[#allocation23 + $0x3b0] sm:$0xff]
    %v9454 = vld [vmem:[#allocation23 + $0x3b8] sm:$0xff]
    %v9455 = vld [vmem:[#allocation23 + $0x3c0] sm:$0xff]
    %v9456 = vld [vmem:[#allocation23 + $0x3c8] sm:$0xff]
    %v9457 = vld [vmem:[#allocation23 + $0x3d0] sm:$0xff]
    %v9458 = vld [vmem:[#allocation23 + $0x3d8] sm:$0xff]
    %v9459 = vld [vmem:[#allocation23 + $0x3e0] sm:$0xff]
    %v9460 = vld [vmem:[#allocation23 + $0x3e8] sm:$0xff]
    %v9461 = vld [vmem:[#allocation23 + $0x3f0] sm:$0xff]
    %v9462 = vld [vmem:[#allocation23 + $0x3f8] sm:$0xff]
    %v9463 = vld [vmem:[#allocation25] sm:$0x3]
    %v9465 = vlaneseq
    %v9466 = vshrl.u32 %v9465, 7
    %v9467 = vsub.s32 0, %v9466
    %v9468 = vrot.slane %v9463, %v9467
    %v9469 = vlaneseq
    %v9470 = vshrl.u32 %v9469, 7
    %v9471 = vsub.s32 1, %v9470
    %v9472 = vrot.slane %v9463, %v9471
    %v9603 = vunpack.c.l.b16 %v9335
    %v9604 = vunpack.c.h.b16 %v9335
    %v9605 = vunpack.c.l.b16 %v9336
    %v9606 = vunpack.c.h.b16 %v9336
    %v9607 = vunpack.c.l.b16 %v9337
    %v9608 = vunpack.c.h.b16 %v9337
    %v9609 = vunpack.c.l.b16 %v9338
    %v9610 = vunpack.c.h.b16 %v9338
    %v9611 = vunpack.c.l.b16 %v9339
    %v9612 = vunpack.c.h.b16 %v9339
    %v9613 = vunpack.c.l.b16 %v9340
    %v9614 = vunpack.c.h.b16 %v9340
    %v9615 = vunpack.c.l.b16 %v9341
    %v9616 = vunpack.c.h.b16 %v9341
    %v9617 = vunpack.c.l.b16 %v9342
    %v9618 = vunpack.c.h.b16 %v9342
    %v9619 = vunpack.c.l.b16 %v9343
    %v9620 = vunpack.c.h.b16 %v9343
    %v9621 = vunpack.c.l.b16 %v9344
    %v9622 = vunpack.c.h.b16 %v9344
    %v9623 = vunpack.c.l.b16 %v9345
    %v9624 = vunpack.c.h.b16 %v9345
    %v9625 = vunpack.c.l.b16 %v9346
    %v9626 = vunpack.c.h.b16 %v9346
    %v9627 = vunpack.c.l.b16 %v9347
    %v9628 = vunpack.c.h.b16 %v9347
    %v9629 = vunpack.c.l.b16 %v9348
    %v9630 = vunpack.c.h.b16 %v9348
    %v9631 = vunpack.c.l.b16 %v9349
    %v9632 = vunpack.c.h.b16 %v9349
    %v9633 = vunpack.c.l.b16 %v9350
    %v9634 = vunpack.c.h.b16 %v9350
    %v9635 = vunpack.c.l.b16 %v9351
    %v9636 = vunpack.c.h.b16 %v9351
    %v9637 = vunpack.c.l.b16 %v9352
    %v9638 = vunpack.c.h.b16 %v9352
    %v9639 = vunpack.c.l.b16 %v9353
    %v9640 = vunpack.c.h.b16 %v9353
    %v9641 = vunpack.c.l.b16 %v9354
    %v9642 = vunpack.c.h.b16 %v9354
    %v9643 = vunpack.c.l.b16 %v9355
    %v9644 = vunpack.c.h.b16 %v9355
    %v9645 = vunpack.c.l.b16 %v9356
    %v9646 = vunpack.c.h.b16 %v9356
    %v9647 = vunpack.c.l.b16 %v9357
    %v9648 = vunpack.c.h.b16 %v9357
    %v9649 = vunpack.c.l.b16 %v9358
    %v9650 = vunpack.c.h.b16 %v9358
    %v9651 = vunpack.c.l.b16 %v9359
    %v9652 = vunpack.c.h.b16 %v9359
    %v9653 = vunpack.c.l.b16 %v9360
    %v9654 = vunpack.c.h.b16 %v9360
    %v9655 = vunpack.c.l.b16 %v9361
    %v9656 = vunpack.c.h.b16 %v9361
    %v9657 = vunpack.c.l.b16 %v9362
    %v9658 = vunpack.c.h.b16 %v9362
    %v9659 = vunpack.c.l.b16 %v9363
    %v9660 = vunpack.c.h.b16 %v9363
    %v9661 = vunpack.c.l.b16 %v9364
    %v9662 = vunpack.c.h.b16 %v9364
    %v9663 = vunpack.c.l.b16 %v9365
    %v9664 = vunpack.c.h.b16 %v9365
    %v9665 = vunpack.c.l.b16 %v9366
    %v9666 = vunpack.c.h.b16 %v9366
    %v9667 = vunpack.c.l.b16 %v9367
    %v9668 = vunpack.c.h.b16 %v9367
    %v9669 = vunpack.c.l.b16 %v9368
    %v9670 = vunpack.c.h.b16 %v9368
    %v9671 = vunpack.c.l.b16 %v9369
    %v9672 = vunpack.c.h.b16 %v9369
    %v9673 = vunpack.c.l.b16 %v9370
    %v9674 = vunpack.c.h.b16 %v9370
    %v9675 = vunpack.c.l.b16 %v9371
    %v9676 = vunpack.c.h.b16 %v9371
    %v9677 = vunpack.c.l.b16 %v9372
    %v9678 = vunpack.c.h.b16 %v9372
    %v9679 = vunpack.c.l.b16 %v9373
    %v9680 = vunpack.c.h.b16 %v9373
    %v9681 = vunpack.c.l.b16 %v9374
    %v9682 = vunpack.c.h.b16 %v9374
    %v9683 = vunpack.c.l.b16 %v9375
    %v9684 = vunpack.c.h.b16 %v9375
    %v9685 = vunpack.c.l.b16 %v9376
    %v9686 = vunpack.c.h.b16 %v9376
    %v9687 = vunpack.c.l.b16 %v9377
    %v9688 = vunpack.c.h.b16 %v9377
    %v9689 = vunpack.c.l.b16 %v9378
    %v9690 = vunpack.c.h.b16 %v9378
    %v9691 = vunpack.c.l.b16 %v9379
    %v9692 = vunpack.c.h.b16 %v9379
    %v9693 = vunpack.c.l.b16 %v9380
    %v9694 = vunpack.c.h.b16 %v9380
    %v9695 = vunpack.c.l.b16 %v9381
    %v9696 = vunpack.c.h.b16 %v9381
    %v9697 = vunpack.c.l.b16 %v9382
    %v9698 = vunpack.c.h.b16 %v9382
    %v9699 = vunpack.c.l.b16 %v9383
    %v9700 = vunpack.c.h.b16 %v9383
    %v9701 = vunpack.c.l.b16 %v9384
    %v9702 = vunpack.c.h.b16 %v9384
    %v9703 = vunpack.c.l.b16 %v9385
    %v9704 = vunpack.c.h.b16 %v9385
    %v9705 = vunpack.c.l.b16 %v9386
    %v9706 = vunpack.c.h.b16 %v9386
    %v9707 = vunpack.c.l.b16 %v9387
    %v9708 = vunpack.c.h.b16 %v9387
    %v9709 = vunpack.c.l.b16 %v9388
    %v9710 = vunpack.c.h.b16 %v9388
    %v9711 = vunpack.c.l.b16 %v9389
    %v9712 = vunpack.c.h.b16 %v9389
    %v9713 = vunpack.c.l.b16 %v9390
    %v9714 = vunpack.c.h.b16 %v9390
    %v9715 = vunpack.c.l.b16 %v9391
    %v9716 = vunpack.c.h.b16 %v9391
    %v9717 = vunpack.c.l.b16 %v9392
    %v9718 = vunpack.c.h.b16 %v9392
    %v9719 = vunpack.c.l.b16 %v9393
    %v9720 = vunpack.c.h.b16 %v9393
    %v9721 = vunpack.c.l.b16 %v9394
    %v9722 = vunpack.c.h.b16 %v9394
    %v9723 = vunpack.c.l.b16 %v9395
    %v9724 = vunpack.c.h.b16 %v9395
    %v9725 = vunpack.c.l.b16 %v9396
    %v9726 = vunpack.c.h.b16 %v9396
    %v9727 = vunpack.c.l.b16 %v9397
    %v9728 = vunpack.c.h.b16 %v9397
    %v9729 = vunpack.c.l.b16 %v9398
    %v9730 = vunpack.c.h.b16 %v9398
    %v9731 = vunpack.c.l.b16 %v9399
    %v9732 = vunpack.c.h.b16 %v9399
    %v9733 = vunpack.c.l.b16 %v9400
    %v9734 = vunpack.c.h.b16 %v9400
    %v9735 = vunpack.c.l.b16 %v9401
    %v9736 = vunpack.c.h.b16 %v9401
    %v9737 = vunpack.c.l.b16 %v9402
    %v9738 = vunpack.c.h.b16 %v9402
    %v9739 = vunpack.c.l.b16 %v9403
    %v9740 = vunpack.c.h.b16 %v9403
    %v9741 = vunpack.c.l.b16 %v9404
    %v9742 = vunpack.c.h.b16 %v9404
    %v9743 = vunpack.c.l.b16 %v9405
    %v9744 = vunpack.c.h.b16 %v9405
    %v9745 = vunpack.c.l.b16 %v9406
    %v9746 = vunpack.c.h.b16 %v9406
    %v9747 = vunpack.c.l.b16 %v9407
    %v9748 = vunpack.c.h.b16 %v9407
    %v9749 = vunpack.c.l.b16 %v9408
    %v9750 = vunpack.c.h.b16 %v9408
    %v9751 = vunpack.c.l.b16 %v9409
    %v9752 = vunpack.c.h.b16 %v9409
    %v9753 = vunpack.c.l.b16 %v9410
    %v9754 = vunpack.c.h.b16 %v9410
    %v9755 = vunpack.c.l.b16 %v9411
    %v9756 = vunpack.c.h.b16 %v9411
    %v9757 = vunpack.c.l.b16 %v9412
    %v9758 = vunpack.c.h.b16 %v9412
    %v9759 = vunpack.c.l.b16 %v9413
    %v9760 = vunpack.c.h.b16 %v9413
    %v9761 = vunpack.c.l.b16 %v9414
    %v9762 = vunpack.c.h.b16 %v9414
    %v9763 = vunpack.c.l.b16 %v9415
    %v9764 = vunpack.c.h.b16 %v9415
    %v9765 = vunpack.c.l.b16 %v9416
    %v9766 = vunpack.c.h.b16 %v9416
    %v9767 = vunpack.c.l.b16 %v9417
    %v9768 = vunpack.c.h.b16 %v9417
    %v9769 = vunpack.c.l.b16 %v9418
    %v9770 = vunpack.c.h.b16 %v9418
    %v9771 = vunpack.c.l.b16 %v9419
    %v9772 = vunpack.c.h.b16 %v9419
    %v9773 = vunpack.c.l.b16 %v9420
    %v9774 = vunpack.c.h.b16 %v9420
    %v9775 = vunpack.c.l.b16 %v9421
    %v9776 = vunpack.c.h.b16 %v9421
    %v9777 = vunpack.c.l.b16 %v9422
    %v9778 = vunpack.c.h.b16 %v9422
    %v9779 = vunpack.c.l.b16 %v9423
    %v9780 = vunpack.c.h.b16 %v9423
    %v9781 = vunpack.c.l.b16 %v9424
    %v9782 = vunpack.c.h.b16 %v9424
    %v9783 = vunpack.c.l.b16 %v9425
    %v9784 = vunpack.c.h.b16 %v9425
    %v9785 = vunpack.c.l.b16 %v9426
    %v9786 = vunpack.c.h.b16 %v9426
    %v9787 = vunpack.c.l.b16 %v9427
    %v9788 = vunpack.c.h.b16 %v9427
    %v9789 = vunpack.c.l.b16 %v9428
    %v9790 = vunpack.c.h.b16 %v9428
    %v9791 = vunpack.c.l.b16 %v9429
    %v9792 = vunpack.c.h.b16 %v9429
    %v9793 = vunpack.c.l.b16 %v9430
    %v9794 = vunpack.c.h.b16 %v9430
    %v9795 = vunpack.c.l.b16 %v9431
    %v9796 = vunpack.c.h.b16 %v9431
    %v9797 = vunpack.c.l.b16 %v9432
    %v9798 = vunpack.c.h.b16 %v9432
    %v9799 = vunpack.c.l.b16 %v9433
    %v9800 = vunpack.c.h.b16 %v9433
    %v9801 = vunpack.c.l.b16 %v9434
    %v9802 = vunpack.c.h.b16 %v9434
    %v9803 = vunpack.c.l.b16 %v9435
    %v9804 = vunpack.c.h.b16 %v9435
    %v9805 = vunpack.c.l.b16 %v9436
    %v9806 = vunpack.c.h.b16 %v9436
    %v9807 = vunpack.c.l.b16 %v9437
    %v9808 = vunpack.c.h.b16 %v9437
    %v9809 = vunpack.c.l.b16 %v9438
    %v9810 = vunpack.c.h.b16 %v9438
    %v9811 = vunpack.c.l.b16 %v9439
    %v9812 = vunpack.c.h.b16 %v9439
    %v9813 = vunpack.c.l.b16 %v9440
    %v9814 = vunpack.c.h.b16 %v9440
    %v9815 = vunpack.c.l.b16 %v9441
    %v9816 = vunpack.c.h.b16 %v9441
    %v9817 = vunpack.c.l.b16 %v9442
    %v9818 = vunpack.c.h.b16 %v9442
    %v9819 = vunpack.c.l.b16 %v9443
    %v9820 = vunpack.c.h.b16 %v9443
    %v9821 = vunpack.c.l.b16 %v9444
    %v9822 = vunpack.c.h.b16 %v9444
    %v9823 = vunpack.c.l.b16 %v9445
    %v9824 = vunpack.c.h.b16 %v9445
    %v9825 = vunpack.c.l.b16 %v9446
    %v9826 = vunpack.c.h.b16 %v9446
    %v9827 = vunpack.c.l.b16 %v9447
    %v9828 = vunpack.c.h.b16 %v9447
    %v9829 = vunpack.c.l.b16 %v9448
    %v9830 = vunpack.c.h.b16 %v9448
    %v9831 = vunpack.c.l.b16 %v9449
    %v9832 = vunpack.c.h.b16 %v9449
    %v9833 = vunpack.c.l.b16 %v9450
    %v9834 = vunpack.c.h.b16 %v9450
    %v9835 = vunpack.c.l.b16 %v9451
    %v9836 = vunpack.c.h.b16 %v9451
    %v9837 = vunpack.c.l.b16 %v9452
    %v9838 = vunpack.c.h.b16 %v9452
    %v9839 = vunpack.c.l.b16 %v9453
    %v9840 = vunpack.c.h.b16 %v9453
    %v9841 = vunpack.c.l.b16 %v9454
    %v9842 = vunpack.c.h.b16 %v9454
    %v9843 = vunpack.c.l.b16 %v9455
    %v9844 = vunpack.c.h.b16 %v9455
    %v9845 = vunpack.c.l.b16 %v9456
    %v9846 = vunpack.c.h.b16 %v9456
    %v9847 = vunpack.c.l.b16 %v9457
    %v9848 = vunpack.c.h.b16 %v9457
    %v9849 = vunpack.c.l.b16 %v9458
    %v9850 = vunpack.c.h.b16 %v9458
    %v9851 = vunpack.c.l.b16 %v9459
    %v9852 = vunpack.c.h.b16 %v9459
    %v9853 = vunpack.c.l.b16 %v9460
    %v9854 = vunpack.c.h.b16 %v9460
    %v9855 = vunpack.c.l.b16 %v9461
    %v9856 = vunpack.c.h.b16 %v9461
    %v9857 = vunpack.c.l.b16 %v9462
    %v9858 = vunpack.c.h.b16 %v9462
    %v9859 = vpack.c.b16 %v9605, %v9603
    %v9860 = vpack.c.b16 %v9606, %v9604
    %v9861 = vpack.c.b16 %v9609, %v9607
    %v9862 = vpack.c.b16 %v9610, %v9608
    %v9863 = vpack.c.b16 %v9613, %v9611
    %v9864 = vpack.c.b16 %v9614, %v9612
    %v9865 = vpack.c.b16 %v9617, %v9615
    %v9866 = vpack.c.b16 %v9618, %v9616
    %v9867 = vpack.c.b16 %v9621, %v9619
    %v9868 = vpack.c.b16 %v9622, %v9620
    %v9869 = vpack.c.b16 %v9625, %v9623
    %v9870 = vpack.c.b16 %v9626, %v9624
    %v9871 = vpack.c.b16 %v9629, %v9627
    %v9872 = vpack.c.b16 %v9630, %v9628
    %v9873 = vpack.c.b16 %v9633, %v9631
    %v9874 = vpack.c.b16 %v9634, %v9632
    %v9875 = vpack.c.b16 %v9637, %v9635
    %v9876 = vpack.c.b16 %v9638, %v9636
    %v9877 = vpack.c.b16 %v9641, %v9639
    %v9878 = vpack.c.b16 %v9642, %v9640
    %v9879 = vpack.c.b16 %v9645, %v9643
    %v9880 = vpack.c.b16 %v9646, %v9644
    %v9881 = vpack.c.b16 %v9649, %v9647
    %v9882 = vpack.c.b16 %v9650, %v9648
    %v9883 = vpack.c.b16 %v9653, %v9651
    %v9884 = vpack.c.b16 %v9654, %v9652
    %v9885 = vpack.c.b16 %v9657, %v9655
    %v9886 = vpack.c.b16 %v9658, %v9656
    %v9887 = vpack.c.b16 %v9661, %v9659
    %v9888 = vpack.c.b16 %v9662, %v9660
    %v9889 = vpack.c.b16 %v9665, %v9663
    %v9890 = vpack.c.b16 %v9666, %v9664
    %v9891 = vpack.c.b16 %v9669, %v9667
    %v9892 = vpack.c.b16 %v9670, %v9668
    %v9893 = vpack.c.b16 %v9673, %v9671
    %v9894 = vpack.c.b16 %v9674, %v9672
    %v9895 = vpack.c.b16 %v9677, %v9675
    %v9896 = vpack.c.b16 %v9678, %v9676
    %v9897 = vpack.c.b16 %v9681, %v9679
    %v9898 = vpack.c.b16 %v9682, %v9680
    %v9899 = vpack.c.b16 %v9685, %v9683
    %v9900 = vpack.c.b16 %v9686, %v9684
    %v9901 = vpack.c.b16 %v9689, %v9687
    %v9902 = vpack.c.b16 %v9690, %v9688
    %v9903 = vpack.c.b16 %v9693, %v9691
    %v9904 = vpack.c.b16 %v9694, %v9692
    %v9905 = vpack.c.b16 %v9697, %v9695
    %v9906 = vpack.c.b16 %v9698, %v9696
    %v9907 = vpack.c.b16 %v9701, %v9699
    %v9908 = vpack.c.b16 %v9702, %v9700
    %v9909 = vpack.c.b16 %v9705, %v9703
    %v9910 = vpack.c.b16 %v9706, %v9704
    %v9911 = vpack.c.b16 %v9709, %v9707
    %v9912 = vpack.c.b16 %v9710, %v9708
    %v9913 = vpack.c.b16 %v9713, %v9711
    %v9914 = vpack.c.b16 %v9714, %v9712
    %v9915 = vpack.c.b16 %v9717, %v9715
    %v9916 = vpack.c.b16 %v9718, %v9716
    %v9917 = vpack.c.b16 %v9721, %v9719
    %v9918 = vpack.c.b16 %v9722, %v9720
    %v9919 = vpack.c.b16 %v9725, %v9723
    %v9920 = vpack.c.b16 %v9726, %v9724
    %v9921 = vpack.c.b16 %v9729, %v9727
    %v9922 = vpack.c.b16 %v9730, %v9728
    %v9923 = vpack.c.b16 %v9733, %v9731
    %v9924 = vpack.c.b16 %v9734, %v9732
    %v9925 = vpack.c.b16 %v9737, %v9735
    %v9926 = vpack.c.b16 %v9738, %v9736
    %v9927 = vpack.c.b16 %v9741, %v9739
    %v9928 = vpack.c.b16 %v9742, %v9740
    %v9929 = vpack.c.b16 %v9745, %v9743
    %v9930 = vpack.c.b16 %v9746, %v9744
    %v9931 = vpack.c.b16 %v9749, %v9747
    %v9932 = vpack.c.b16 %v9750, %v9748
    %v9933 = vpack.c.b16 %v9753, %v9751
    %v9934 = vpack.c.b16 %v9754, %v9752
    %v9935 = vpack.c.b16 %v9757, %v9755
    %v9936 = vpack.c.b16 %v9758, %v9756
    %v9937 = vpack.c.b16 %v9761, %v9759
    %v9938 = vpack.c.b16 %v9762, %v9760
    %v9939 = vpack.c.b16 %v9765, %v9763
    %v9940 = vpack.c.b16 %v9766, %v9764
    %v9941 = vpack.c.b16 %v9769, %v9767
    %v9942 = vpack.c.b16 %v9770, %v9768
    %v9943 = vpack.c.b16 %v9773, %v9771
    %v9944 = vpack.c.b16 %v9774, %v9772
    %v9945 = vpack.c.b16 %v9777, %v9775
    %v9946 = vpack.c.b16 %v9778, %v9776
    %v9947 = vpack.c.b16 %v9781, %v9779
    %v9948 = vpack.c.b16 %v9782, %v9780
    %v9949 = vpack.c.b16 %v9785, %v9783
    %v9950 = vpack.c.b16 %v9786, %v9784
    %v9951 = vpack.c.b16 %v9789, %v9787
    %v9952 = vpack.c.b16 %v9790, %v9788
    %v9953 = vpack.c.b16 %v9793, %v9791
    %v9954 = vpack.c.b16 %v9794, %v9792
    %v9955 = vpack.c.b16 %v9797, %v9795
    %v9956 = vpack.c.b16 %v9798, %v9796
    %v9957 = vpack.c.b16 %v9801, %v9799
    %v9958 = vpack.c.b16 %v9802, %v9800
    %v9959 = vpack.c.b16 %v9805, %v9803
    %v9960 = vpack.c.b16 %v9806, %v9804
    %v9961 = vpack.c.b16 %v9809, %v9807
    %v9962 = vpack.c.b16 %v9810, %v9808
    %v9963 = vpack.c.b16 %v9813, %v9811
    %v9964 = vpack.c.b16 %v9814, %v9812
    %v9965 = vpack.c.b16 %v9817, %v9815
    %v9966 = vpack.c.b16 %v9818, %v9816
    %v9967 = vpack.c.b16 %v9821, %v9819
    %v9968 = vpack.c.b16 %v9822, %v9820
    %v9969 = vpack.c.b16 %v9825, %v9823
    %v9970 = vpack.c.b16 %v9826, %v9824
    %v9971 = vpack.c.b16 %v9829, %v9827
    %v9972 = vpack.c.b16 %v9830, %v9828
    %v9973 = vpack.c.b16 %v9833, %v9831
    %v9974 = vpack.c.b16 %v9834, %v9832
    %v9975 = vpack.c.b16 %v9837, %v9835
    %v9976 = vpack.c.b16 %v9838, %v9836
    %v9977 = vpack.c.b16 %v9841, %v9839
    %v9978 = vpack.c.b16 %v9842, %v9840
    %v9979 = vpack.c.b16 %v9845, %v9843
    %v9980 = vpack.c.b16 %v9846, %v9844
    %v9981 = vpack.c.b16 %v9849, %v9847
    %v9982 = vpack.c.b16 %v9850, %v9848
    %v9983 = vpack.c.b16 %v9853, %v9851
    %v9984 = vpack.c.b16 %v9854, %v9852
    %v9985 = vpack.c.b16 %v9857, %v9855
    %v9986 = vpack.c.b16 %v9858, %v9856
    %10115 = vmatprep.subr.bf16.mxu0 %v9860
    %10116 = vmatpush1.bf16.msra.mxu0 %v9859
    %10117 = vmatprep.subr.bf16.mxu0 %v9862
    %10118 = vmatpush1.bf16.msra.mxu0 %v9861
    %10119 = vmatprep.subr.bf16.mxu0 %v9864
    %10120 = vmatpush1.bf16.msra.mxu0 %v9863
    %10121 = vmatprep.subr.bf16.mxu0 %v9866
    %10122 = vmatpush1.bf16.msra.mxu0 %v9865
    %10123 = vmatprep.subr.bf16.mxu0 %v9868
    %10124 = vmatpush1.bf16.msra.mxu0 %v9867
    %10125 = vmatprep.subr.bf16.mxu0 %v9870
    %10126 = vmatpush1.bf16.msra.mxu0 %v9869
    %10127 = vmatprep.subr.bf16.mxu0 %v9872
    %10128 = vmatpush1.bf16.msra.mxu0 %v9871
    %10129 = vmatprep.subr.bf16.mxu0 %v9874
    %10130 = vmatpush1.bf16.msra.mxu0 %v9873
    %10131 = vmatprep.subr.bf16.mxu0 %v9876
    %10132 = vmatpush1.bf16.msra.mxu0 %v9875
    %10133 = vmatprep.subr.bf16.mxu0 %v9878
    %10134 = vmatpush1.bf16.msra.mxu0 %v9877
    %10135 = vmatprep.subr.bf16.mxu0 %v9880
    %10136 = vmatpush1.bf16.msra.mxu0 %v9879
    %10137 = vmatprep.subr.bf16.mxu0 %v9882
    %10138 = vmatpush1.bf16.msra.mxu0 %v9881
    %10139 = vmatprep.subr.bf16.mxu0 %v9884
    %10140 = vmatpush1.bf16.msra.mxu0 %v9883
    %10141 = vmatprep.subr.bf16.mxu0 %v9886
    %10142 = vmatpush1.bf16.msra.mxu0 %v9885
    %10143 = vmatprep.subr.bf16.mxu0 %v9888
    %10144 = vmatpush1.bf16.msra.mxu0 %v9887
    %10145 = vmatprep.subr.bf16.mxu0 %v9890
    %10146 = vmatpush1.bf16.msra.mxu0 %v9889
    %10147 = vmatprep.mubr.bf16.mxu0 %v9328
    %10148 = vmatmul.mubr.bf16.gmra.mrb[0].mxu0 %v9327
    %v10149 = vpop.f32.mrb[0].mxu0
    %v10150 = vadd.f32 %v9468, %v10149
    %v10151 = vpop.f32.mrb[0].mxu0
    %v10152 = vadd.f32 %v9472, %v10151
    %v10153 = vpop.f32.mrb[0].mxu0
    %v10154 = vpop.f32.mrb[0].mxu0
    %10155 = vdwg.mxu0
    %10156 = vmatprep.subr.bf16.mxu0 %v9892
    %10157 = vmatpush1.bf16.msra.mxu0 %v9891
    %10158 = vmatprep.subr.bf16.mxu0 %v9894
    %10159 = vmatpush1.bf16.msra.mxu0 %v9893
    %10160 = vmatprep.subr.bf16.mxu0 %v9896
    %10161 = vmatpush1.bf16.msra.mxu0 %v9895
    %10162 = vmatprep.subr.bf16.mxu0 %v9898
    %10163 = vmatpush1.bf16.msra.mxu0 %v9897
    %10164 = vmatprep.subr.bf16.mxu0 %v9900
    %10165 = vmatpush1.bf16.msra.mxu0 %v9899
    %10166 = vmatprep.subr.bf16.mxu0 %v9902
    %10167 = vmatpush1.bf16.msra.mxu0 %v9901
    %10168 = vmatprep.subr.bf16.mxu0 %v9904
    %10169 = vmatpush1.bf16.msra.mxu0 %v9903
    %10170 = vmatprep.subr.bf16.mxu0 %v9906
    %10171 = vmatpush1.bf16.msra.mxu0 %v9905
    %10172 = vmatprep.subr.bf16.mxu0 %v9908
    %10173 = vmatpush1.bf16.msra.mxu0 %v9907
    %10174 = vmatprep.subr.bf16.mxu0 %v9910
    %10175 = vmatpush1.bf16.msra.mxu0 %v9909
    %10176 = vmatprep.subr.bf16.mxu0 %v9912
    %10177 = vmatpush1.bf16.msra.mxu0 %v9911
    %10178 = vmatprep.subr.bf16.mxu0 %v9914
    %10179 = vmatpush1.bf16.msra.mxu0 %v9913
    %10180 = vmatprep.subr.bf16.mxu0 %v9916
    %10181 = vmatpush1.bf16.msra.mxu0 %v9915
    %10182 = vmatprep.subr.bf16.mxu0 %v9918
    %10183 = vmatpush1.bf16.msra.mxu0 %v9917
    %10184 = vmatprep.subr.bf16.mxu0 %v9920
    %10185 = vmatpush1.bf16.msra.mxu0 %v9919
    %10186 = vmatprep.subr.bf16.mxu0 %v9922
    %10187 = vmatpush1.bf16.msra.mxu0 %v9921
    %10188 = vmatprep.mubr.bf16.mxu0 %v9330
    %10189 = vmatmul.mubr.bf16.gmra.mrb[0].mxu0 %v9329
    %v10190 = vpop.f32.mrb[0].mxu0
    %v10191 = vadd.f32 %v10150, %v10190
    %v10192 = vpop.f32.mrb[0].mxu0
    %v10193 = vadd.f32 %v10152, %v10192
    %v10194 = vpop.f32.mrb[0].mxu0
    %v10195 = vpop.f32.mrb[0].mxu0
    %10196 = vdwg.mxu0
    %10197 = vmatprep.subr.bf16.mxu0 %v9924
    %10198 = vmatpush1.bf16.msra.mxu0 %v9923
    %10199 = vmatprep.subr.bf16.mxu0 %v9926
    %10200 = vmatpush1.bf16.msra.mxu0 %v9925
    %10201 = vmatprep.subr.bf16.mxu0 %v9928
    %10202 = vmatpush1.bf16.msra.mxu0 %v9927
    %10203 = vmatprep.subr.bf16.mxu0 %v9930
    %10204 = vmatpush1.bf16.msra.mxu0 %v9929
    %10205 = vmatprep.subr.bf16.mxu0 %v9932
    %10206 = vmatpush1.bf16.msra.mxu0 %v9931
    %10207 = vmatprep.subr.bf16.mxu0 %v9934
    %10208 = vmatpush1.bf16.msra.mxu0 %v9933
    %10209 = vmatprep.subr.bf16.mxu0 %v9936
    %10210 = vmatpush1.bf16.msra.mxu0 %v9935
    %10211 = vmatprep.subr.bf16.mxu0 %v9938
    %10212 = vmatpush1.bf16.msra.mxu0 %v9937
    %10213 = vmatprep.subr.bf16.mxu0 %v9940
    %10214 = vmatpush1.bf16.msra.mxu0 %v9939
    %10215 = vmatprep.subr.bf16.mxu0 %v9942
    %10216 = vmatpush1.bf16.msra.mxu0 %v9941
    %10217 = vmatprep.subr.bf16.mxu0 %v9944
    %10218 = vmatpush1.bf16.msra.mxu0 %v9943
    %10219 = vmatprep.subr.bf16.mxu0 %v9946
    %10220 = vmatpush1.bf16.msra.mxu0 %v9945
    %10221 = vmatprep.subr.bf16.mxu0 %v9948
    %10222 = vmatpush1.bf16.msra.mxu0 %v9947
    %10223 = vmatprep.subr.bf16.mxu0 %v9950
    %10224 = vmatpush1.bf16.msra.mxu0 %v9949
    %10225 = vmatprep.subr.bf16.mxu0 %v9952
    %10226 = vmatpush1.bf16.msra.mxu0 %v9951
    %10227 = vmatprep.subr.bf16.mxu0 %v9954
    %10228 = vmatpush1.bf16.msra.mxu0 %v9953
    %10229 = vmatprep.mubr.bf16.mxu0 %v9332
    %10230 = vmatmul.mubr.bf16.gmra.mrb[0].mxu0 %v9331
    %v10231 = vpop.f32.mrb[0].mxu0
    %v10232 = vadd.f32 %v10191, %v10231
    %v10233 = vpop.f32.mrb[0].mxu0
    %v10234 = vadd.f32 %v10193, %v10233
    %v10235 = vpop.f32.mrb[0].mxu0
    %v10236 = vpop.f32.mrb[0].mxu0
    %10237 = vdwg.mxu0
    %10238 = vmatprep.subr.bf16.mxu0 %v9956
    %10239 = vmatpush1.bf16.msra.mxu0 %v9955
    %10240 = vmatprep.subr.bf16.mxu0 %v9958
    %10241 = vmatpush1.bf16.msra.mxu0 %v9957
    %10242 = vmatprep.subr.bf16.mxu0 %v9960
    %10243 = vmatpush1.bf16.msra.mxu0 %v9959
    %10244 = vmatprep.subr.bf16.mxu0 %v9962
    %10245 = vmatpush1.bf16.msra.mxu0 %v9961
    %10246 = vmatprep.subr.bf16.mxu0 %v9964
    %10247 = vmatpush1.bf16.msra.mxu0 %v9963
    %10248 = vmatprep.subr.bf16.mxu0 %v9966
    %10249 = vmatpush1.bf16.msra.mxu0 %v9965
    %10250 = vmatprep.subr.bf16.mxu0 %v9968
    %10251 = vmatpush1.bf16.msra.mxu0 %v9967
    %10252 = vmatprep.subr.bf16.mxu0 %v9970
    %10253 = vmatpush1.bf16.msra.mxu0 %v9969
    %10254 = vmatprep.subr.bf16.mxu0 %v9972
    %10255 = vmatpush1.bf16.msra.mxu0 %v9971
    %10256 = vmatprep.subr.bf16.mxu0 %v9974
    %10257 = vmatpush1.bf16.msra.mxu0 %v9973
    %10258 = vmatprep.subr.bf16.mxu0 %v9976
    %10259 = vmatpush1.bf16.msra.mxu0 %v9975
    %10260 = vmatprep.subr.bf16.mxu0 %v9978
    %10261 = vmatpush1.bf16.msra.mxu0 %v9977
    %10262 = vmatprep.subr.bf16.mxu0 %v9980
    %10263 = vmatpush1.bf16.msra.mxu0 %v9979
    %10264 = vmatprep.subr.bf16.mxu0 %v9982
    %10265 = vmatpush1.bf16.msra.mxu0 %v9981
    %10266 = vmatprep.subr.bf16.mxu0 %v9984
    %10267 = vmatpush1.bf16.msra.mxu0 %v9983
    %10268 = vmatprep.subr.bf16.mxu0 %v9986
    %10269 = vmatpush1.bf16.msra.mxu0 %v9985
    %10270 = vmatprep.mubr.bf16.mxu0 %v9334
    %10271 = vmatmul.mubr.bf16.gmra.mrb[0].mxu0 %v9333
    %v10272 = vpop.f32.mrb[0].mxu0
    %v10273 = vadd.f32 %v10232, %v10272
    %v10274 = vpop.f32.mrb[0].mxu0
    %v10275 = vadd.f32 %v10234, %v10274
    %v10276 = vpop.f32.mrb[0].mxu0
    %v10277 = vpop.f32.mrb[0].mxu0
    %10278 = vdwg.mxu0
    %vm10279 = vcmp.ge.f32.partialorder %v10273, 0.0
    %vm10280 = vcmp.ge.f32.partialorder %v10275, 0.0
    %v10281 = vmul.f32 %v10273, 0.01
    %v10282 = vmul.f32 %v10275, 0.01
    %v10283 = vsel %vm10279, %v10273, %v10281
    %v10284 = vsel %vm10280, %v10275, %v10282
    %v10285 = vpack.c.bf16 %v10283, %v10283
    %v10286 = vpack.c.bf16 %v10284, %v10284
    %v10287 = vld [vmem:[%s17] sm:$0xf]
    %v10288 = vld [vmem:[%s17 + $0x4] sm:$0xf]
    %v10289 = vld [vmem:[%s17 + $0x8] sm:$0xf]
    %v10290 = vld [vmem:[%s17 + $0xc] sm:$0xf]
    %v10291 = vld [vmem:[%s17 + $0x10] sm:$0xf]
    %v10292 = vld [vmem:[%s17 + $0x14] sm:$0xf]
    %v10293 = vld [vmem:[%s17 + $0x18] sm:$0xf]
    %v10294 = vld [vmem:[%s17 + $0x1c] sm:$0xf]
    %v10295 = vld [vmem:[%s17 + $0x20] sm:$0xf]
    %v10296 = vld [vmem:[%s17 + $0x24] sm:$0xf]
    %v10297 = vld [vmem:[%s17 + $0x28] sm:$0xf]
    %v10298 = vld [vmem:[%s17 + $0x2c] sm:$0xf]
    %v10299 = vld [vmem:[%s17 + $0x30] sm:$0xf]
    %v10300 = vld [vmem:[%s17 + $0x34] sm:$0xf]
    %v10301 = vld [vmem:[%s17 + $0x38] sm:$0xf]
    %v10302 = vld [vmem:[%s17 + $0x3c] sm:$0xf]
    %v10303 = vld [vmem:[%s17 + $0x40] sm:$0xf]
    %v10304 = vld [vmem:[%s17 + $0x44] sm:$0xf]
    %v10305 = vld [vmem:[%s17 + $0x48] sm:$0xf]
    %v10306 = vld [vmem:[%s17 + $0x4c] sm:$0xf]
    %v10307 = vld [vmem:[%s17 + $0x50] sm:$0xf]
    %v10308 = vld [vmem:[%s17 + $0x54] sm:$0xf]
    %v10309 = vld [vmem:[%s17 + $0x58] sm:$0xf]
    %v10310 = vld [vmem:[%s17 + $0x5c] sm:$0xf]
    %v10311 = vld [vmem:[%s17 + $0x60] sm:$0xf]
    %v10312 = vld [vmem:[%s17 + $0x64] sm:$0xf]
    %v10313 = vld [vmem:[%s17 + $0x68] sm:$0xf]
    %v10314 = vld [vmem:[%s17 + $0x6c] sm:$0xf]
    %v10315 = vld [vmem:[%s17 + $0x70] sm:$0xf]
    %v10316 = vld [vmem:[%s17 + $0x74] sm:$0xf]
    %v10317 = vld [vmem:[%s17 + $0x78] sm:$0xf]
    %v10318 = vld [vmem:[%s17 + $0x7c] sm:$0xf]
    %v10319 = vld [vmem:[#allocation26] sm:$0x1]
    %v10321 = vlaneseq
    %v10322 = vshrl.u32 %v10321, 7
    %v10323 = vsub.s32 0, %v10322
    %v10324 = vrot.slane %v10319, %v10323
    %v10358 = vunpack.c.l.b16 %v10287
    %v10359 = vunpack.c.l.b16 %v10288
    %v10360 = vunpack.c.l.b16 %v10289
    %v10361 = vunpack.c.l.b16 %v10290
    %v10362 = vunpack.c.l.b16 %v10291
    %v10363 = vunpack.c.l.b16 %v10292
    %v10364 = vunpack.c.l.b16 %v10293
    %v10365 = vunpack.c.l.b16 %v10294
    %v10366 = vunpack.c.l.b16 %v10295
    %v10367 = vunpack.c.l.b16 %v10296
    %v10368 = vunpack.c.l.b16 %v10297
    %v10369 = vunpack.c.l.b16 %v10298
    %v10370 = vunpack.c.l.b16 %v10299
    %v10371 = vunpack.c.l.b16 %v10300
    %v10372 = vunpack.c.l.b16 %v10301
    %v10373 = vunpack.c.l.b16 %v10302
    %v10374 = vunpack.c.l.b16 %v10303
    %v10375 = vunpack.c.l.b16 %v10304
    %v10376 = vunpack.c.l.b16 %v10305
    %v10377 = vunpack.c.l.b16 %v10306
    %v10378 = vunpack.c.l.b16 %v10307
    %v10379 = vunpack.c.l.b16 %v10308
    %v10380 = vunpack.c.l.b16 %v10309
    %v10381 = vunpack.c.l.b16 %v10310
    %v10382 = vunpack.c.l.b16 %v10311
    %v10383 = vunpack.c.l.b16 %v10312
    %v10384 = vunpack.c.l.b16 %v10313
    %v10385 = vunpack.c.l.b16 %v10314
    %v10386 = vunpack.c.l.b16 %v10315
    %v10387 = vunpack.c.l.b16 %v10316
    %v10388 = vunpack.c.l.b16 %v10317
    %v10389 = vunpack.c.l.b16 %v10318
    %v10390 = vpack.c.b16 %v10359, %v10358
    %v10391 = vpack.c.b16 %v10361, %v10360
    %v10392 = vpack.c.b16 %v10363, %v10362
    %v10393 = vpack.c.b16 %v10365, %v10364
    %v10394 = vpack.c.b16 %v10367, %v10366
    %v10395 = vpack.c.b16 %v10369, %v10368
    %v10396 = vpack.c.b16 %v10371, %v10370
    %v10397 = vpack.c.b16 %v10373, %v10372
    %v10398 = vpack.c.b16 %v10375, %v10374
    %v10399 = vpack.c.b16 %v10377, %v10376
    %v10400 = vpack.c.b16 %v10379, %v10378
    %v10401 = vpack.c.b16 %v10381, %v10380
    %v10402 = vpack.c.b16 %v10383, %v10382
    %v10403 = vpack.c.b16 %v10385, %v10384
    %v10404 = vpack.c.b16 %v10387, %v10386
    %v10405 = vpack.c.b16 %v10389, %v10388
    %10422 = vmatprep.subr.bf16.mxu0 0
    %10423 = vmatpush1.bf16.msra.mxu0 %v10390
    %10424 = vmatprep.subr.bf16.mxu0 0
    %10425 = vmatpush1.bf16.msra.mxu0 %v10391
    %10426 = vmatprep.subr.bf16.mxu0 0
    %10427 = vmatpush1.bf16.msra.mxu0 %v10392
    %10428 = vmatprep.subr.bf16.mxu0 0
    %10429 = vmatpush1.bf16.msra.mxu0 %v10393
    %10430 = vmatprep.subr.bf16.mxu0 0
    %10431 = vmatpush1.bf16.msra.mxu0 %v10394
    %10432 = vmatprep.subr.bf16.mxu0 0
    %10433 = vmatpush1.bf16.msra.mxu0 %v10395
    %10434 = vmatprep.subr.bf16.mxu0 0
    %10435 = vmatpush1.bf16.msra.mxu0 %v10396
    %10436 = vmatprep.subr.bf16.mxu0 0
    %10437 = vmatpush1.bf16.msra.mxu0 %v10397
    %10438 = vmatprep.subr.bf16.mxu0 0
    %10439 = vmatpush1.bf16.msra.mxu0 %v10398
    %10440 = vmatprep.subr.bf16.mxu0 0
    %10441 = vmatpush1.bf16.msra.mxu0 %v10399
    %10442 = vmatprep.subr.bf16.mxu0 0
    %10443 = vmatpush1.bf16.msra.mxu0 %v10400
    %10444 = vmatprep.subr.bf16.mxu0 0
    %10445 = vmatpush1.bf16.msra.mxu0 %v10401
    %10446 = vmatprep.subr.bf16.mxu0 0
    %10447 = vmatpush1.bf16.msra.mxu0 %v10402
    %10448 = vmatprep.subr.bf16.mxu0 0
    %10449 = vmatpush1.bf16.msra.mxu0 %v10403
    %10450 = vmatprep.subr.bf16.mxu0 0
    %10451 = vmatpush1.bf16.msra.mxu0 %v10404
    %10452 = vmatprep.subr.bf16.mxu0 0
    %10453 = vmatpush1.bf16.msra.mxu0 %v10405
    %10454 = vmatprep.mubr.bf16.mxu0 %v10286
    %10455 = vmatmul.mubr.bf16.gmra.mrb[0].mxu0 %v10285
    %v10456 = vpop.f32.mrb[0].mxu0
    %v10457 = vadd.f32 %v10324, %v10456
    %v10458 = vpop.f32.mrb[0].mxu0
    %v10459 = vpop.f32.mrb[0].mxu0
    %v10460 = vpop.f32.mrb[0].mxu0
    %10461 = vdwg.mxu0
    %vm10462 = vcmp.ge.f32.partialorder %v10457, 0.0
    %v10463 = vmul.f32 %v10457, 0.01
    %v10464 = vsel %vm10462, %v10457, %v10463
    %v10465 = vpack.c.bf16 %v10464, %v10464
    %v10466 = vld [vmem:[%s19] sm:$0xf]
    %v10467 = vld [vmem:[%s19 + $0x4] sm:$0xf]
    %v10468 = vld [vmem:[%s19 + $0x8] sm:$0xf]
    %v10469 = vld [vmem:[%s19 + $0xc] sm:$0xf]
    %v10470 = vld [vmem:[%s19 + $0x10] sm:$0xf]
    %v10471 = vld [vmem:[%s19 + $0x14] sm:$0xf]
    %v10472 = vld [vmem:[%s19 + $0x18] sm:$0xf]
    %v10473 = vld [vmem:[%s19 + $0x1c] sm:$0xf]
    %v10474 = vld [vmem:[#allocation28] sm:$0x1]
    %v10476 = vlaneseq
    %v10477 = vshrl.u32 %v10476, 7
    %v10478 = vsub.s32 0, %v10477
    %v10479 = vrot.slane %v10474, %v10478
    %v10489 = vunpack.c.l.b16 %v10466
    %v10490 = vunpack.c.l.b16 %v10467
    %v10491 = vunpack.c.l.b16 %v10468
    %v10492 = vunpack.c.l.b16 %v10469
    %v10493 = vunpack.c.l.b16 %v10470
    %v10494 = vunpack.c.l.b16 %v10471
    %v10495 = vunpack.c.l.b16 %v10472
    %v10496 = vunpack.c.l.b16 %v10473
    %v10497 = vpack.c.b16 %v10490, %v10489
    %v10498 = vpack.c.b16 %v10492, %v10491
    %v10499 = vpack.c.b16 %v10494, %v10493
    %v10500 = vpack.c.b16 %v10496, %v10495
    %v10506 = vsel %vm535, %v10465, 0
    %10508 = vmatprep.subr.bf16.mxu0 0
    %10509 = vmatpush1.bf16.msra.mxu0 %v10497
    %10510 = vmatprep.subr.bf16.mxu0 0
    %10511 = vmatpush1.bf16.msra.mxu0 %v10498
    %10512 = vmatprep.subr.bf16.mxu0 0
    %10513 = vmatpush1.bf16.msra.mxu0 %v10499
    %10514 = vmatprep.subr.bf16.mxu0 0
    %10515 = vmatpush1.bf16.msra.mxu0 %v10500
    %10516 = vmatprep.subr.bf16.mxu0 0
    %10517 = vmatpush1.bf16.msra.mxu0 0
    %10518 = vmatprep.subr.bf16.mxu0 0
    %10519 = vmatpush1.bf16.msra.mxu0 0
    %10520 = vmatprep.subr.bf16.mxu0 0
    %10521 = vmatpush1.bf16.msra.mxu0 0
    %10522 = vmatprep.subr.bf16.mxu0 0
    %10523 = vmatpush1.bf16.msra.mxu0 0
    %10524 = vmatprep.subr.bf16.mxu0 0
    %10525 = vmatpush1.bf16.msra.mxu0 0
    %10526 = vmatprep.subr.bf16.mxu0 0
    %10527 = vmatpush1.bf16.msra.mxu0 0
    %10528 = vmatprep.subr.bf16.mxu0 0
    %10529 = vmatpush1.bf16.msra.mxu0 0
    %10530 = vmatprep.subr.bf16.mxu0 0
    %10531 = vmatpush1.bf16.msra.mxu0 0
    %10532 = vmatprep.subr.bf16.mxu0 0
    %10533 = vmatpush1.bf16.msra.mxu0 0
    %10534 = vmatprep.subr.bf16.mxu0 0
    %10535 = vmatpush1.bf16.msra.mxu0 0
    %10536 = vmatprep.subr.bf16.mxu0 0
    %10537 = vmatpush1.bf16.msra.mxu0 0
    %10538 = vmatprep.subr.bf16.mxu0 0
    %10539 = vmatpush1.bf16.msra.mxu0 0
    %10540 = vmatprep.mubr.bf16.mxu0 0
    %10541 = vmatmul.mubr.bf16.gmra.mrb[0].mxu0 %v10506
    %v10542 = vpop.f32.mrb[0].mxu0
    %v10543 = vadd.f32 %v10479, %v10542
    %v10544 = vpop.f32.mrb[0].mxu0
    %v10545 = vpop.f32.mrb[0].mxu0
    %v10546 = vpop.f32.mrb[0].mxu0
    %10547 = vdwg.mxu0
    %vm10548 = vcmp.ge.f32.partialorder %v10543, 0.0
    %v10549 = vmul.f32 %v10543, 0.01
    %v10550 = vsel %vm10548, %v10543, %v10549
    %v10551 = vld [vmem:[%s21] sm:$0xff]
    %v10552 = vld [vmem:[%s21 + $0x8] sm:$0xff]
    %v10553 = vld [vmem:[#allocation2] sm:$0x1]
    %v10555 = vlaneseq
    %v10556 = vshrl.u32 %v10555, 7
    %v10557 = vsub.s32 0, %v10556
    %v10558 = vrot.slane %v10553, %v10557
    %vm10560 = vcmask 130048
    %v10562 = vsel %vm10560, %v10550, 0
    %10564 = vmatprep.subr.mxu0 0.0
    %10565 = vmatpush1.msra.mxu0 %v10551
    %10566 = vmatprep.subr.mxu0 0.0
    %10567 = vmatpush1.msra.mxu0 %v10552
    %10568 = vmatprep.subr.mxu0 0.0
    %10569 = vmatpush1.msra.mxu0 0.0
    %10570 = vmatprep.subr.mxu0 0.0
    %10571 = vmatpush1.msra.mxu0 0.0
    %10572 = vmatprep.subr.mxu0 0.0
    %10573 = vmatpush1.msra.mxu0 0.0
    %10574 = vmatprep.subr.mxu0 0.0
    %10575 = vmatpush1.msra.mxu0 0.0
    %10576 = vmatprep.subr.mxu0 0.0
    %10577 = vmatpush1.msra.mxu0 0.0
    %10578 = vmatprep.subr.mxu0 0.0
    %10579 = vmatpush1.msra.mxu0 0.0
    %10580 = vmatprep.subr.mxu0 0.0
    %10581 = vmatpush1.msra.mxu0 0.0
    %10582 = vmatprep.subr.mxu0 0.0
    %10583 = vmatpush1.msra.mxu0 0.0
    %10584 = vmatprep.subr.mxu0 0.0
    %10585 = vmatpush1.msra.mxu0 0.0
    %10586 = vmatprep.subr.mxu0 0.0
    %10587 = vmatpush1.msra.mxu0 0.0
    %10588 = vmatprep.subr.mxu0 0.0
    %10589 = vmatpush1.msra.mxu0 0.0
    %10590 = vmatprep.subr.mxu0 0.0
    %10591 = vmatpush1.msra.mxu0 0.0
    %10592 = vmatprep.subr.mxu0 0.0
    %10593 = vmatpush1.msra.mxu0 0.0
    %10594 = vmatprep.subr.mxu0 0.0
    %10595 = vmatpush1.msra.mxu0 0.0
    %10596 = vmatprep.subr.mxu0 0.0
    %10597 = vmatpush1.msra.mxu0 0.0
    %10598 = vmatprep.subr.mxu0 0.0
    %10599 = vmatpush1.msra.mxu0 0.0
    %10600 = vmatprep.subr.mxu0 0.0
    %10601 = vmatpush1.msra.mxu0 0.0
    %10602 = vmatprep.subr.mxu0 0.0
    %10603 = vmatpush1.msra.mxu0 0.0
    %10604 = vmatprep.subr.mxu0 0.0
    %10605 = vmatpush1.msra.mxu0 0.0
    %10606 = vmatprep.subr.mxu0 0.0
    %10607 = vmatpush1.msra.mxu0 0.0
    %10608 = vmatprep.subr.mxu0 0.0
    %10609 = vmatpush1.msra.mxu0 0.0
    %10610 = vmatprep.subr.mxu0 0.0
    %10611 = vmatpush1.msra.mxu0 0.0
    %10612 = vmatprep.subr.mxu0 0.0
    %10613 = vmatpush1.msra.mxu0 0.0
    %10614 = vmatprep.subr.mxu0 0.0
    %10615 = vmatpush1.msra.mxu0 0.0
    %10616 = vmatprep.subr.mxu0 0.0
    %10617 = vmatpush1.msra.mxu0 0.0
    %10618 = vmatprep.subr.mxu0 0.0
    %10619 = vmatpush1.msra.mxu0 0.0
    %10620 = vmatprep.subr.mxu0 0.0
    %10621 = vmatpush1.msra.mxu0 0.0
    %10622 = vmatprep.subr.mxu0 0.0
    %10623 = vmatpush1.msra.mxu0 0.0
    %10624 = vmatprep.subr.mxu0 0.0
    %10625 = vmatpush1.msra.mxu0 0.0
    %10626 = vmatprep.subr.mxu0 0.0
    %10627 = vmatpush1.msra.mxu0 0.0
    %10628 = vmatprep.mubr.f32.mxu0 0.0
    %10629 = vmatmul.mubr.f32.gmra.mrb[0].mxu0 %v10562
    %v10630 = vpop.f32.mrb[0].mxu0
    %v10631 = vadd.f32 %v10558, %v10630
    %v10632 = vpop.f32.mrb[0].mxu0
    %10633 = vdwg.mxu0
    %vm10634 = vcmask 1024
    %10635 = vst.msk [vmem:[%s23] sm:$0x3] %vm10634, %v10631
    // Predicated region
    $region162: #{tpu_custom_call.1} parent=1 // pred_check
      _
    $region163: #{tpu_custom_call.1} parent=1 // pred_check_branch
      %10637 = sbr.rel (0) target = $region165
    $region164: #{tpu_custom_call.1} parent=1 // pred_region
      _
    $region165: #{tpu_custom_call.1} parent=1 // pred_fallthru
      _
    // Predicated region
    $region166: #{tpu_custom_call.1} parent=1 // pred_check
      _
    $region167: #{tpu_custom_call.1} parent=1 // pred_check_branch
      %10639 = sbr.rel (0) target = $region169
    $region168: #{tpu_custom_call.1} parent=1 // pred_region
      _
    $region169: #{tpu_custom_call.1} parent=1 // pred_fallthru
      _
    %10640 = vsyncpa [#allocation4], 1
    %10641 = vsyncpa [#allocation6], 1
    %10642 = vsyncpa [#allocation9], 1
    %10643 = vsyncpa [#allocation12], 1
    %10644 = vsyncpa [#allocation15], 1
    %10645 = vsyncpa [#allocation18], 1
    %10646 = vsyncpa [#allocation21], 1
    %10647 = vsyncpa [#allocation24], 1
    %10648 = vsyncpa [#allocation27], 1

</llo_original>
